<compile_context>
chip_gen: v7x
topology: tpu7x:2x2x1
jax: 0.10.0
libtpu: 0.0.40
codegen_flags: <defaults>
</compile_context>

<pallas_src>
import functools

import numpy as np

import jax
import jax.numpy as jnp
from jax.experimental import pallas as pl
from jax.experimental.pallas import tpu as pltpu


_ENC_LAYERS = 4
_ACTS = ("relu", "relu", "relu", "relu",      # encoder
         "relu", "relu", "relu", "sigmoid")   # decoder (deconv arch)


# ----------------------------------------------------------------------------
# The single fused Pallas kernel
# ----------------------------------------------------------------------------
def _cae_kernel(*refs, acts, enc_layer_idx):
    n_layers = len(acts)
    x_ref = refs[0]
    layer_refs = refs[1:1 + 2 * n_layers]          # (T_1, b_1, ..., T_L, b_L)
    proto_t_ref = refs[1 + 2 * n_layers]           # (n_features, n_prototypes)
    lin_w_ref = refs[2 + 2 * n_layers]             # (n_prototypes, n_classes)
    lin_b_ref = refs[3 + 2 * n_layers]             # (1, n_classes)
    logits_ref, r_ref, r1_ref, r2_ref = refs[4 + 2 * n_layers:]

    x_true = x_ref[...]                            # (B, C*H*W) f32, NCHW flat
    h = x_true
    x_enc = None
    for i in range(n_layers):
        t_ref = layer_refs[2 * i]
        b_ref = layer_refs[2 * i + 1]
        # bf16 operands on the MXU, f32 accumulate / bias / activation.
        z = jnp.dot(h.astype(jnp.bfloat16), t_ref[...],
                    preferred_element_type=jnp.float32) + b_ref[...]
        h = jnp.maximum(z, 0.0) if acts[i] == "relu" else jax.nn.sigmoid(z)
        if i == enc_layer_idx:
            x_enc = h                              # (B, n_features)
    x_out = h                                      # (B, C*H*W) reconstruction

    # Prototype L2 distances via the Gram trick (contraction on the MXU).
    proto_t = proto_t_ref[...]                                    # (F, P)
    cross = jnp.dot(x_enc, proto_t, preferred_element_type=jnp.float32)  # (B,P)
    x_sq = jnp.sum(x_enc * x_enc, axis=1, keepdims=True)          # (B, 1)
    p_sq = jnp.sum(proto_t * proto_t, axis=0, keepdims=True)      # (1, P)
    dist = jnp.sqrt(jnp.maximum(x_sq + p_sq - 2.0 * cross, 0.0))  # (B, P)

    logits_ref[...] = (
        jnp.dot(dist, lin_w_ref[...], preferred_element_type=jnp.float32)
        + lin_b_ref[...])

    # R  = mean_b ||x_out_b - x_true_b||_2
    rec = x_out - x_true
    per_sample = jnp.sqrt(jnp.sum(rec * rec, axis=1, keepdims=True))  # (B, 1)
    r_ref[0] = jnp.mean(per_sample)
    # R1 = mean over prototypes of min over batch ; R2 = mean over batch of
    # min over prototypes (same axis conventions as the PyTorch module).
    r1_ref[0] = jnp.mean(jnp.min(dist, axis=0, keepdims=True))
    r2_ref[0] = jnp.mean(jnp.min(dist, axis=1, keepdims=True))


def cae_forward(params, x_nchw):
    B = x_nchw.shape[0]
    x_flat = x_nchw.reshape(B, -1)                 # PyTorch NCHW flatten

    layer_ts = params["layer_T"]
    layer_bs = params["layer_b"]
    n_classes = params["lin_w"].shape[1]

    inputs = [x_flat]
    for t, b in zip(layer_ts, layer_bs):
        inputs.append(t)
        inputs.append(b)
    inputs += [params["proto_t"], params["lin_w"], params["lin_b"]]

    vmem = pl.BlockSpec(memory_space=pltpu.MemorySpace.VMEM)
    smem = pl.BlockSpec(memory_space=pltpu.MemorySpace.SMEM)

    kernel = functools.partial(_cae_kernel, acts=_ACTS,
                               enc_layer_idx=_ENC_LAYERS - 1)

    logits, r, r1, r2 = pl.pallas_call(
        kernel,
        out_shape=(
            jax.ShapeDtypeStruct((B, n_classes), jnp.float32),
            jax.ShapeDtypeStruct((1,), jnp.float32),
            jax.ShapeDtypeStruct((1,), jnp.float32),
            jax.ShapeDtypeStruct((1,), jnp.float32),
        ),
        in_specs=[vmem] * len(inputs),
        out_specs=(vmem, smem, smem, smem),
        compiler_params=pltpu.CompilerParams(
            vmem_limit_bytes=32 * 1024 * 1024),
    )(*inputs)
    return logits, r[0], r1[0], r2[0]


# ----------------------------------------------------------------------------
# Host-side (init-time) folding of conv / deconv layers into linear operators
# acting on NCHW-flattened per-sample vectors:  y_flat = x_flat @ T + b_flat
# ----------------------------------------------------------------------------
def _conv_out_size(inp, k=3, s=2, p=1, d=1):
    return (inp + 2 * p - d * (k - 1) - 1) // s + 1


def _xavier(key, shape, fan_in, fan_out):
    limit = (6.0 / (fan_in + fan_out)) ** 0.5
    return jax.random.uniform(key, shape, jnp.float32, -limit, limit)


def _conv2d_operator(w_oihw, b_chan, H, W, stride=2, pad=1):
    """nn.Conv2d(k=3, stride, pad) with PyTorch OIHW weight."""
    Cout, Cin, KH, KW = w_oihw.shape
    Ho = (H + 2 * pad - KH) // stride + 1
    Wo = (W + 2 * pad - KW) // stride + 1
    T = np.zeros((Cin * H * W, Cout * Ho * Wo), np.float32)
    ci = np.arange(Cin)
    co = np.arange(Cout)
    for ho in range(Ho):
        for wo in range(Wo):
            for kh in range(KH):
                for kw in range(KW):
                    ih = ho * stride - pad + kh
                    iw = wo * stride - pad + kw
                    if 0 <= ih < H and 0 <= iw < W:
                        rows = (ci * H + ih) * W + iw
                        cols = (co * Ho + ho) * Wo + wo
                        T[np.ix_(rows, cols)] += w_oihw[:, :, kh, kw].T
    b_flat = np.repeat(b_chan, Ho * Wo)[None, :]
    return T, b_flat, Ho, Wo


def _convT2d_operator(w_iohw, b_chan, H, W, Hout, Wout, stride=2, pad=1):
    """nn.ConvTranspose2d(k=3, stride=2, padding=1) evaluated at
    output_size=(Hout, Wout), built directly from the transposed-conv
    definition with the PyTorch IOHW weight (no flip/swap needed)."""
    Cin, Cout, KH, KW = w_iohw.shape
    T = np.zeros((Cin * H * W, Cout * Hout * Wout), np.float32)
    ci = np.arange(Cin)
    co = np.arange(Cout)
    for ih in range(H):
        for iw in range(W):
            for kh in range(KH):
                for kw in range(KW):
                    oh = ih * stride - pad + kh
                    ow = iw * stride - pad + kw
                    if 0 <= oh < Hout and 0 <= ow < Wout:
                        rows = (ci * H + ih) * W + iw
                        cols = (co * Hout + oh) * Wout + ow
                        T[np.ix_(rows, cols)] += w_iohw[:, :, kh, kw]
    b_flat = np.repeat(b_chan, Hout * Wout)[None, :]
    return T, b_flat


def init_cae_params(key, n_in_channels, n_classes, img_size, n_prototypes,
                    channels):
    c0, c1, c2, c3 = channels
    l1 = _conv_out_size(img_size)
    l2 = _conv_out_size(l1)
    l3 = _conv_out_size(l2)
    l4 = _conv_out_size(l3)
    n_features = c3 * l4 * l4

    keys = jax.random.split(key, 20)
    kidx = iter(range(20))

    def uniform_np(k, shape, bound):
        return np.asarray(jax.random.uniform(k, shape, jnp.float32,
                                             -bound, bound))

    layer_T, layer_b = [], []

    # encoder: nn.Conv2d(ci, co, 3, 2, 1), PyTorch OIHW weights
    enc_io = [(n_in_channels, c0), (c0, c1), (c1, c2), (c2, c3)]
    enc_sp = [img_size, l1, l2, l3]
    for (ci_, co_), sp in zip(enc_io, enc_sp):
        w = np.asarray(_xavier(keys[next(kidx)], (co_, ci_, 3, 3),
                               9 * ci_, 9 * co_))
        b = uniform_np(keys[next(kidx)], (co_,), 1.0 / np.sqrt(9 * ci_))
        T, bf, _, _ = _conv2d_operator(w, b, sp, sp)
        layer_T.append(jnp.asarray(T, jnp.bfloat16))   # bf16 MXU operands
        layer_b.append(jnp.asarray(bf, jnp.float32))

    # decoder (deconv arch): nn.ConvTranspose2d(ci, co, 3, 2, 1), IOHW weights
    dec_io = [(c3, c2), (c2, c1), (c1, c0), (c0, n_in_channels)]
    dec_in_sp = [l4, l3, l2, l1]
    dec_out_sp = [l3, l2, l1, img_size]
    for (ci_, co_), si, so in zip(dec_io, dec_in_sp, dec_out_sp):
        w = np.asarray(_xavier(keys[next(kidx)], (ci_, co_, 3, 3),
                               9 * ci_, 9 * co_))
        b = uniform_np(keys[next(kidx)], (co_,), 1.0 / np.sqrt(9 * ci_))
        T, bf = _convT2d_operator(w, b, si, si, so, so)
        layer_T.append(jnp.asarray(T, jnp.bfloat16))
        layer_b.append(jnp.asarray(bf, jnp.float32))

    prototypes = _xavier(keys[next(kidx)], (n_prototypes, n_features),
                         n_features, n_prototypes)
    lin_w = _xavier(keys[next(kidx)], (n_prototypes, n_classes),
                    n_prototypes, n_classes)
    lin_b = jnp.zeros((1, n_classes), jnp.float32)

    params = {
        "layer_T": layer_T,
        "layer_b": layer_b,
        "proto_t": prototypes.T,                 # (n_features, n_prototypes)
        "lin_w": lin_w,
        "lin_b": lin_b,
    }
    sizes = (l1, l2, l3, l4)
    return params, sizes


if __name__ == "__main__":
    n_in_channels, n_classes, img_size, n_prototypes = 1, 4, 16, 8
    channels = [32, 32, 32, 10]
    batch = 2

    key = jax.random.PRNGKey(0)
    kp, kx = jax.random.split(key)
    params, sizes = init_cae_params(kp, n_in_channels, n_classes, img_size,
                                    n_prototypes, channels)
    x = jax.random.uniform(kx, (batch, n_in_channels, img_size, img_size),
                           jnp.float32)

    logits, R, R1, R2 = jax.jit(cae_forward)(params, x)
    jax.block_until_ready((logits, R, R1, R2))

    assert logits.shape == (batch, n_classes)
    assert R.shape == () and R1.shape == () and R2.shape == ()
    print("KERNEL_OK")
</pallas_src>

<mosaic_0001>
module attributes {stable_mosaic.version = 11 : i64} {
  func.func @_cae_kernel(%arg0: memref<2x256xf32, #tpu.memory_space<vmem>>, %arg1: memref<256x2048xbf16, #tpu.memory_space<vmem>>, %arg2: memref<1x2048xf32, #tpu.memory_space<vmem>>, %arg3: memref<2048x512xbf16, #tpu.memory_space<vmem>>, %arg4: memref<1x512xf32, #tpu.memory_space<vmem>>, %arg5: memref<512x128xbf16, #tpu.memory_space<vmem>>, %arg6: memref<1x128xf32, #tpu.memory_space<vmem>>, %arg7: memref<128x10xbf16, #tpu.memory_space<vmem>>, %arg8: memref<1x10xf32, #tpu.memory_space<vmem>>, %arg9: memref<10x128xbf16, #tpu.memory_space<vmem>>, %arg10: memref<1x128xf32, #tpu.memory_space<vmem>>, %arg11: memref<128x512xbf16, #tpu.memory_space<vmem>>, %arg12: memref<1x512xf32, #tpu.memory_space<vmem>>, %arg13: memref<512x2048xbf16, #tpu.memory_space<vmem>>, %arg14: memref<1x2048xf32, #tpu.memory_space<vmem>>, %arg15: memref<2048x256xbf16, #tpu.memory_space<vmem>>, %arg16: memref<1x256xf32, #tpu.memory_space<vmem>>, %arg17: memref<10x8xf32, #tpu.memory_space<vmem>>, %arg18: memref<8x4xf32, #tpu.memory_space<vmem>>, %arg19: memref<1x4xf32, #tpu.memory_space<vmem>>, %arg20: memref<2x4xf32, #tpu.memory_space<vmem>>, %arg21: memref<1xf32, #tpu.memory_space<smem>>, %arg22: memref<1xf32, #tpu.memory_space<smem>>, %arg23: memref<1xf32, #tpu.memory_space<smem>>) attributes {dimension_semantics = [], scalar_prefetch = 0 : i64, scratch_operands = 0 : i64, tpu.core_type = #tpu.core_type<tc>} {
    %c0 = arith.constant 0 : index
    %c0_0 = arith.constant 0 : index
    %0 = vector.load %arg0[%c0, %c0_0] : memref<2x256xf32, #tpu.memory_space<vmem>>, vector<2x256xf32>
    %1 = arith.truncf %0 : vector<2x256xf32> to vector<2x256xbf16>
    %c0_1 = arith.constant 0 : index
    %c0_2 = arith.constant 0 : index
    %2 = vector.load %arg1[%c0_1, %c0_2] : memref<256x2048xbf16, #tpu.memory_space<vmem>>, vector<256x2048xbf16>
    %cst = arith.constant dense<0.000000e+00> : vector<2x2048xf32>
    %3 = tpu.matmul %1, %2, %cst {dimension_numbers = #tpu.dot_dimension_numbers<[1], [0], [0], [1], [0, 0, 1, 1], [], []>} : vector<2x256xbf16>, vector<256x2048xbf16>, vector<2x2048xf32> -> vector<2x2048xf32>
    %c0_3 = arith.constant 0 : index
    %c0_4 = arith.constant 0 : index
    %4 = vector.load %arg2[%c0_3, %c0_4] : memref<1x2048xf32, #tpu.memory_space<vmem>>, vector<1x2048xf32>
    %5 = vector.broadcast %4 : vector<1x2048xf32> to vector<2x2048xf32>
    %6 = arith.addf %3, %5 : vector<2x2048xf32>
    %cst_5 = arith.constant 0.000000e+00 : f32
    %7 = vector.broadcast %cst_5 : f32 to vector<2x2048xf32>
    %8 = arith.maximumf %6, %7 : vector<2x2048xf32>
    %9 = arith.truncf %8 : vector<2x2048xf32> to vector<2x2048xbf16>
    %c0_6 = arith.constant 0 : index
    %c0_7 = arith.constant 0 : index
    %10 = vector.load %arg3[%c0_6, %c0_7] : memref<2048x512xbf16, #tpu.memory_space<vmem>>, vector<2048x512xbf16>
    %cst_8 = arith.constant dense<0.000000e+00> : vector<2x512xf32>
    %11 = tpu.matmul %9, %10, %cst_8 {dimension_numbers = #tpu.dot_dimension_numbers<[1], [0], [0], [1], [0, 0, 1, 1], [], []>} : vector<2x2048xbf16>, vector<2048x512xbf16>, vector<2x512xf32> -> vector<2x512xf32>
    %c0_9 = arith.constant 0 : index
    %c0_10 = arith.constant 0 : index
    %12 = vector.load %arg4[%c0_9, %c0_10] : memref<1x512xf32, #tpu.memory_space<vmem>>, vector<1x512xf32>
    %13 = vector.broadcast %12 : vector<1x512xf32> to vector<2x512xf32>
    %14 = arith.addf %11, %13 : vector<2x512xf32>
    %cst_11 = arith.constant 0.000000e+00 : f32
    %15 = vector.broadcast %cst_11 : f32 to vector<2x512xf32>
    %16 = arith.maximumf %14, %15 : vector<2x512xf32>
    %17 = arith.truncf %16 : vector<2x512xf32> to vector<2x512xbf16>
    %c0_12 = arith.constant 0 : index
    %c0_13 = arith.constant 0 : index
    %18 = vector.load %arg5[%c0_12, %c0_13] : memref<512x128xbf16, #tpu.memory_space<vmem>>, vector<512x128xbf16>
    %cst_14 = arith.constant dense<0.000000e+00> : vector<2x128xf32>
    %19 = tpu.matmul %17, %18, %cst_14 {dimension_numbers = #tpu.dot_dimension_numbers<[1], [0], [0], [1], [0, 0, 1, 1], [], []>} : vector<2x512xbf16>, vector<512x128xbf16>, vector<2x128xf32> -> vector<2x128xf32>
    %c0_15 = arith.constant 0 : index
    %c0_16 = arith.constant 0 : index
    %20 = vector.load %arg6[%c0_15, %c0_16] : memref<1x128xf32, #tpu.memory_space<vmem>>, vector<1x128xf32>
    %21 = vector.broadcast %20 : vector<1x128xf32> to vector<2x128xf32>
    %22 = arith.addf %19, %21 : vector<2x128xf32>
    %cst_17 = arith.constant 0.000000e+00 : f32
    %23 = vector.broadcast %cst_17 : f32 to vector<2x128xf32>
    %24 = arith.maximumf %22, %23 : vector<2x128xf32>
    %25 = arith.truncf %24 : vector<2x128xf32> to vector<2x128xbf16>
    %c0_18 = arith.constant 0 : index
    %c0_19 = arith.constant 0 : index
    %26 = vector.load %arg7[%c0_18, %c0_19] : memref<128x10xbf16, #tpu.memory_space<vmem>>, vector<128x10xbf16>
    %cst_20 = arith.constant dense<0.000000e+00> : vector<2x10xf32>
    %27 = tpu.matmul %25, %26, %cst_20 {dimension_numbers = #tpu.dot_dimension_numbers<[1], [0], [0], [1], [0, 0, 1, 1], [], []>} : vector<2x128xbf16>, vector<128x10xbf16>, vector<2x10xf32> -> vector<2x10xf32>
    %c0_21 = arith.constant 0 : index
    %c0_22 = arith.constant 0 : index
    %28 = vector.load %arg8[%c0_21, %c0_22] : memref<1x10xf32, #tpu.memory_space<vmem>>, vector<1x10xf32>
    %29 = vector.broadcast %28 : vector<1x10xf32> to vector<2x10xf32>
    %30 = arith.addf %27, %29 : vector<2x10xf32>
    %cst_23 = arith.constant 0.000000e+00 : f32
    %31 = vector.broadcast %cst_23 : f32 to vector<2x10xf32>
    %32 = arith.maximumf %30, %31 : vector<2x10xf32>
    %33 = arith.truncf %32 : vector<2x10xf32> to vector<2x10xbf16>
    %c0_24 = arith.constant 0 : index
    %c0_25 = arith.constant 0 : index
    %34 = vector.load %arg9[%c0_24, %c0_25] : memref<10x128xbf16, #tpu.memory_space<vmem>>, vector<10x128xbf16>
    %cst_26 = arith.constant dense<0.000000e+00> : vector<2x128xf32>
    %35 = tpu.matmul %33, %34, %cst_26 {dimension_numbers = #tpu.dot_dimension_numbers<[1], [0], [0], [1], [0, 0, 1, 1], [], []>} : vector<2x10xbf16>, vector<10x128xbf16>, vector<2x128xf32> -> vector<2x128xf32>
    %c0_27 = arith.constant 0 : index
    %c0_28 = arith.constant 0 : index
    %36 = vector.load %arg10[%c0_27, %c0_28] : memref<1x128xf32, #tpu.memory_space<vmem>>, vector<1x128xf32>
    %37 = vector.broadcast %36 : vector<1x128xf32> to vector<2x128xf32>
    %38 = arith.addf %35, %37 : vector<2x128xf32>
    %cst_29 = arith.constant 0.000000e+00 : f32
    %39 = vector.broadcast %cst_29 : f32 to vector<2x128xf32>
    %40 = arith.maximumf %38, %39 : vector<2x128xf32>
    %41 = arith.truncf %40 : vector<2x128xf32> to vector<2x128xbf16>
    %c0_30 = arith.constant 0 : index
    %c0_31 = arith.constant 0 : index
    %42 = vector.load %arg11[%c0_30, %c0_31] : memref<128x512xbf16, #tpu.memory_space<vmem>>, vector<128x512xbf16>
    %cst_32 = arith.constant dense<0.000000e+00> : vector<2x512xf32>
    %43 = tpu.matmul %41, %42, %cst_32 {dimension_numbers = #tpu.dot_dimension_numbers<[1], [0], [0], [1], [0, 0, 1, 1], [], []>} : vector<2x128xbf16>, vector<128x512xbf16>, vector<2x512xf32> -> vector<2x512xf32>
    %c0_33 = arith.constant 0 : index
    %c0_34 = arith.constant 0 : index
    %44 = vector.load %arg12[%c0_33, %c0_34] : memref<1x512xf32, #tpu.memory_space<vmem>>, vector<1x512xf32>
    %45 = vector.broadcast %44 : vector<1x512xf32> to vector<2x512xf32>
    %46 = arith.addf %43, %45 : vector<2x512xf32>
    %cst_35 = arith.constant 0.000000e+00 : f32
    %47 = vector.broadcast %cst_35 : f32 to vector<2x512xf32>
    %48 = arith.maximumf %46, %47 : vector<2x512xf32>
    %49 = arith.truncf %48 : vector<2x512xf32> to vector<2x512xbf16>
    %c0_36 = arith.constant 0 : index
    %c0_37 = arith.constant 0 : index
    %50 = vector.load %arg13[%c0_36, %c0_37] : memref<512x2048xbf16, #tpu.memory_space<vmem>>, vector<512x2048xbf16>
    %cst_38 = arith.constant dense<0.000000e+00> : vector<2x2048xf32>
    %51 = tpu.matmul %49, %50, %cst_38 {dimension_numbers = #tpu.dot_dimension_numbers<[1], [0], [0], [1], [0, 0, 1, 1], [], []>} : vector<2x512xbf16>, vector<512x2048xbf16>, vector<2x2048xf32> -> vector<2x2048xf32>
    %c0_39 = arith.constant 0 : index
    %c0_40 = arith.constant 0 : index
    %52 = vector.load %arg14[%c0_39, %c0_40] : memref<1x2048xf32, #tpu.memory_space<vmem>>, vector<1x2048xf32>
    %53 = vector.broadcast %52 : vector<1x2048xf32> to vector<2x2048xf32>
    %54 = arith.addf %51, %53 : vector<2x2048xf32>
    %cst_41 = arith.constant 0.000000e+00 : f32
    %55 = vector.broadcast %cst_41 : f32 to vector<2x2048xf32>
    %56 = arith.maximumf %54, %55 : vector<2x2048xf32>
    %57 = arith.truncf %56 : vector<2x2048xf32> to vector<2x2048xbf16>
    %c0_42 = arith.constant 0 : index
    %c0_43 = arith.constant 0 : index
    %58 = vector.load %arg15[%c0_42, %c0_43] : memref<2048x256xbf16, #tpu.memory_space<vmem>>, vector<2048x256xbf16>
    %cst_44 = arith.constant dense<0.000000e+00> : vector<2x256xf32>
    %59 = tpu.matmul %57, %58, %cst_44 {dimension_numbers = #tpu.dot_dimension_numbers<[1], [0], [0], [1], [0, 0, 1, 1], [], []>} : vector<2x2048xbf16>, vector<2048x256xbf16>, vector<2x256xf32> -> vector<2x256xf32>
    %c0_45 = arith.constant 0 : index
    %c0_46 = arith.constant 0 : index
    %60 = vector.load %arg16[%c0_45, %c0_46] : memref<1x256xf32, #tpu.memory_space<vmem>>, vector<1x256xf32>
    %61 = vector.broadcast %60 : vector<1x256xf32> to vector<2x256xf32>
    %62 = arith.addf %59, %61 : vector<2x256xf32>
    %63 = arith.negf %62 : vector<2x256xf32>
    %64 = math.exp %63 : vector<2x256xf32>
    %cst_47 = arith.constant 1.000000e+00 : f32
    %65 = vector.broadcast %cst_47 : f32 to vector<2x256xf32>
    %66 = arith.addf %65, %64 : vector<2x256xf32>
    %67 = arith.divf %65, %66 : vector<2x256xf32>
    %c0_48 = arith.constant 0 : index
    %c0_49 = arith.constant 0 : index
    %68 = vector.load %arg17[%c0_48, %c0_49] : memref<10x8xf32, #tpu.memory_space<vmem>>, vector<10x8xf32>
    %cst_50 = arith.constant dense<0.000000e+00> : vector<2x8xf32>
    %69 = tpu.matmul %32, %68, %cst_50 {dimension_numbers = #tpu.dot_dimension_numbers<[1], [0], [0], [1], [0, 0, 1, 1], [], []>} : vector<2x10xf32>, vector<10x8xf32>, vector<2x8xf32> -> vector<2x8xf32>
    %70 = arith.mulf %32, %32 : vector<2x10xf32>
    %cst_51 = arith.constant dense<0.000000e+00> : vector<2xf32>
    %71 = vector.multi_reduction <add>, %70, %cst_51 [1] : vector<2x10xf32> to vector<2xf32>
    %72 = vector.shape_cast %71 : vector<2xf32> to vector<2x1xf32>
    %73 = arith.mulf %68, %68 : vector<10x8xf32>
    %cst_52 = arith.constant dense<0.000000e+00> : vector<8xf32>
    %74 = vector.multi_reduction <add>, %73, %cst_52 [0] : vector<10x8xf32> to vector<8xf32>
    %75 = vector.shape_cast %74 : vector<8xf32> to vector<1x8xf32>
    %76 = vector.broadcast %72 : vector<2x1xf32> to vector<2x8xf32>
    %77 = vector.broadcast %75 : vector<1x8xf32> to vector<2x8xf32>
    %78 = arith.addf %76, %77 : vector<2x8xf32>
    %cst_53 = arith.constant 2.000000e+00 : f32
    %79 = vector.broadcast %cst_53 : f32 to vector<2x8xf32>
    %80 = arith.mulf %79, %69 : vector<2x8xf32>
    %81 = arith.subf %78, %80 : vector<2x8xf32>
    %cst_54 = arith.constant 0.000000e+00 : f32
    %82 = vector.broadcast %cst_54 : f32 to vector<2x8xf32>
    %83 = arith.maximumf %81, %82 : vector<2x8xf32>
    %84 = math.sqrt %83 : vector<2x8xf32>
    %c0_55 = arith.constant 0 : index
    %c0_56 = arith.constant 0 : index
    %85 = vector.load %arg18[%c0_55, %c0_56] : memref<8x4xf32, #tpu.memory_space<vmem>>, vector<8x4xf32>
    %cst_57 = arith.constant dense<0.000000e+00> : vector<2x4xf32>
    %86 = tpu.matmul %84, %85, %cst_57 {dimension_numbers = #tpu.dot_dimension_numbers<[1], [0], [0], [1], [0, 0, 1, 1], [], []>} : vector<2x8xf32>, vector<8x4xf32>, vector<2x4xf32> -> vector<2x4xf32>
    %c0_58 = arith.constant 0 : index
    %c0_59 = arith.constant 0 : index
    %87 = vector.load %arg19[%c0_58, %c0_59] : memref<1x4xf32, #tpu.memory_space<vmem>>, vector<1x4xf32>
    %88 = vector.broadcast %87 : vector<1x4xf32> to vector<2x4xf32>
    %89 = arith.addf %86, %88 : vector<2x4xf32>
    %c0_60 = arith.constant 0 : index
    %c0_61 = arith.constant 0 : index
    %90 = vector.load %arg20[%c0_60, %c0_61] : memref<2x4xf32, #tpu.memory_space<vmem>>, vector<2x4xf32>
    tpu.vector_store %arg20[%c0_60, %c0_61], %89 {strides = array<i32>} : memref<2x4xf32, #tpu.memory_space<vmem>>, vector<2x4xf32>,
    %91 = arith.subf %67, %0 : vector<2x256xf32>
    %92 = arith.mulf %91, %91 : vector<2x256xf32>
    %cst_62 = arith.constant dense<0.000000e+00> : vector<2xf32>
    %93 = vector.multi_reduction <add>, %92, %cst_62 [1] : vector<2x256xf32> to vector<2xf32>
    %94 = vector.shape_cast %93 : vector<2xf32> to vector<2x1xf32>
    %95 = math.sqrt %94 : vector<2x1xf32>
    %96 = vector.shape_cast %95 : vector<2x1xf32> to vector<1x2x1xf32>
    %cst_63 = arith.constant dense<0.000000e+00> : vector<1xf32>
    %97 = vector.multi_reduction <add>, %96, %cst_63 [1, 2] : vector<1x2x1xf32> to vector<1xf32>
    %98 = vector.shape_cast %97 : vector<1xf32> to vector<1x1x1xf32>
    %99 = vector.extract %98[0, 0, 0] : f32 from vector<1x1x1xf32>
    %cst_64 = arith.constant 2.000000e+00 : f32
    %100 = arith.divf %99, %cst_64 : f32
    %c0_65 = arith.constant 0 : index
    %101 = memref.load %arg21[%c0_65] : memref<1xf32, #tpu.memory_space<smem>>
    memref.store %100, %arg21[%c0_65] : memref<1xf32, #tpu.memory_space<smem>>
    %cst_66 = arith.constant dense<0x7F800000> : vector<8xf32>
    %102 = vector.multi_reduction <minimumf>, %84, %cst_66 [0] : vector<2x8xf32> to vector<8xf32>
    %103 = vector.shape_cast %102 : vector<8xf32> to vector<1x8xf32>
    %104 = vector.shape_cast %103 : vector<1x8xf32> to vector<1x1x8xf32>
    %cst_67 = arith.constant dense<0.000000e+00> : vector<1xf32>
    %105 = vector.multi_reduction <add>, %104, %cst_67 [1, 2] : vector<1x1x8xf32> to vector<1xf32>
    %106 = vector.shape_cast %105 : vector<1xf32> to vector<1x1x1xf32>
    %107 = vector.extract %106[0, 0, 0] : f32 from vector<1x1x1xf32>
    %cst_68 = arith.constant 8.000000e+00 : f32
    %108 = arith.divf %107, %cst_68 : f32
    %c0_69 = arith.constant 0 : index
    %109 = memref.load %arg22[%c0_69] : memref<1xf32, #tpu.memory_space<smem>>
    memref.store %108, %arg22[%c0_69] : memref<1xf32, #tpu.memory_space<smem>>
    %cst_70 = arith.constant dense<0x7F800000> : vector<2xf32>
    %110 = vector.multi_reduction <minimumf>, %84, %cst_70 [1] : vector<2x8xf32> to vector<2xf32>
    %111 = vector.shape_cast %110 : vector<2xf32> to vector<2x1xf32>
    %112 = vector.shape_cast %111 : vector<2x1xf32> to vector<1x2x1xf32>
    %cst_71 = arith.constant dense<0.000000e+00> : vector<1xf32>
    %113 = vector.multi_reduction <add>, %112, %cst_71 [1, 2] : vector<1x2x1xf32> to vector<1xf32>
    %114 = vector.shape_cast %113 : vector<1xf32> to vector<1x1x1xf32>
    %115 = vector.extract %114[0, 0, 0] : f32 from vector<1x1x1xf32>
    %cst_72 = arith.constant 2.000000e+00 : f32
    %116 = arith.divf %115, %cst_72 : f32
    %c0_73 = arith.constant 0 : index
    %117 = memref.load %arg23[%c0_73] : memref<1xf32, #tpu.memory_space<smem>>
    memref.store %116, %arg23[%c0_73] : memref<1xf32, #tpu.memory_space<smem>>
    return
  }
}

</mosaic_0001>

<llo_original>
// kernel: cae_forward.1
$region0: #{cae_forward.1}
  #allocation0 [shape = 'u32[]', space=smem, size = 0x4, offset = 0x4, fixed_abs, tag = 'smem constant byte address 0x4 - core index']
  #allocation1 [shape = 'u32[144,128]{1,0:T(1,128)}', space=vmem, size = 0x12000, scoped, tag = 'internal scratch']
  %s0 = inlined_call_operand.vmem [shape: f32[2,256], index: 0, kind: input, shape index: {}]
  %s1 = inlined_call_operand.hbm [shape: bf16[256,2048], index: 1, kind: input, shape index: {}]
  %s2 = inlined_call_operand.hbm [shape: f32[1,2048], index: 2, kind: input, shape index: {}]
  %s3 = inlined_call_operand.hbm [shape: bf16[2048,512], index: 3, kind: input, shape index: {}]
  %s4 = inlined_call_operand.hbm [shape: f32[1,512], index: 4, kind: input, shape index: {}]
  %s5 = inlined_call_operand.hbm [shape: bf16[512,128], index: 5, kind: input, shape index: {}]
  %s6 = inlined_call_operand.hbm [shape: f32[1,128], index: 6, kind: input, shape index: {}]
  %s7 = inlined_call_operand.vmem [shape: bf16[128,10], index: 7, kind: input, shape index: {}]
  %s8 = inlined_call_operand.hbm [shape: f32[1,10], index: 8, kind: input, shape index: {}]
  %s9 = inlined_call_operand.hbm [shape: bf16[10,128], index: 9, kind: input, shape index: {}]
  %s10 = inlined_call_operand.hbm [shape: f32[1,128], index: 10, kind: input, shape index: {}]
  %s11 = inlined_call_operand.hbm [shape: bf16[128,512], index: 11, kind: input, shape index: {}]
  %s12 = inlined_call_operand.hbm [shape: f32[1,512], index: 12, kind: input, shape index: {}]
  %s13 = inlined_call_operand.hbm [shape: bf16[512,2048], index: 13, kind: input, shape index: {}]
  %s14 = inlined_call_operand.hbm [shape: f32[1,2048], index: 14, kind: input, shape index: {}]
  %s15 = inlined_call_operand.hbm [shape: bf16[2048,256], index: 15, kind: input, shape index: {}]
  %s16 = inlined_call_operand.hbm [shape: f32[1,256], index: 16, kind: input, shape index: {}]
  %s17 = inlined_call_operand.vmem [shape: f32[10,8], index: 17, kind: input, shape index: {}]
  %s18 = inlined_call_operand.vmem [shape: f32[8,4], index: 18, kind: input, shape index: {}]
  %s19 = inlined_call_operand.hbm [shape: f32[1,4], index: 19, kind: input, shape index: {}]
  %s20 = inlined_call_operand.hbm [shape: f32[2,4], index: 20, kind: output, shape index: {0}]
  %s21 = inlined_call_operand.hbm [shape: f32[1], index: 21, kind: output, shape index: {1}]
  %s22 = inlined_call_operand.hbm [shape: f32[1], index: 22, kind: output, shape index: {2}]
  %s23 = inlined_call_operand.hbm [shape: f32[1], index: 23, kind: output, shape index: {3}]
  %24 = xla_tuple %s20, %s21, %s22, %s23
  %s25 = sld [smem:[#allocation0]]
  $region178: #{cae_forward.1} parent=0
    _
  %s27 = ssub.s32 1, %s25
  %s28 = scalar_select 0, %s27, %s25
  $region1: #{cae_forward.1} parent=0
    #allocation2 [shape = 'u8[1048576]{0}', space=vmem, size = 0x100000, scoped, tag = 'input window, operand 1, single buffered']
    #allocation3 [shape = 's32[1]{0}', space=sflag, size = 0x4, scoped, tag = 'scoped memory for cae_forward.1']
    #allocation4 [shape = 's32[1]{0}', space=sflag, size = 0x4, scoped, tag = 'scoped memory for cae_forward.1']
    #allocation5 [shape = 's32[1]{0}', space=sflag, size = 0x4, scoped, tag = 'scoped memory for cae_forward.1']
    #allocation6 [shape = 'u8[8192]{0}', space=vmem, size = 0x2000, scoped, tag = 'input window, operand 2, single buffered']
    #allocation7 [shape = 's32[1]{0}', space=sflag, size = 0x4, scoped, tag = 'scoped memory for cae_forward.1']
    #allocation8 [shape = 'u8[2097152]{0}', space=vmem, size = 0x200000, scoped, tag = 'input window, operand 3, single buffered']
    #allocation9 [shape = 'u8[2048]{0}', space=vmem, size = 0x800, scoped, tag = 'input window, operand 4, single buffered']
    #allocation10 [shape = 's32[1]{0}', space=sflag, size = 0x4, scoped, tag = 'scoped memory for cae_forward.1']
    #allocation11 [shape = 'u8[131072]{0}', space=vmem, size = 0x20000, scoped, tag = 'input window, operand 5, single buffered']
    #allocation12 [shape = 'u8[512]{0}', space=vmem, size = 0x400, scoped, tag = 'input window, operand 6, single buffered']
    #allocation13 [shape = 's32[1]{0}', space=sflag, size = 0x4, scoped, tag = 'scoped memory for cae_forward.1']
    #allocation14 [shape = 'u8[512]{0}', space=vmem, size = 0x400, scoped, tag = 'input window, operand 8, single buffered']
    #allocation15 [shape = 'u8[4096]{0}', space=vmem, size = 0x1000, scoped, tag = 'input window, operand 9, single buffered']
    #allocation16 [shape = 's32[1]{0}', space=sflag, size = 0x4, scoped, tag = 'scoped memory for cae_forward.1']
    #allocation17 [shape = 'u8[512]{0}', space=vmem, size = 0x400, scoped, tag = 'input window, operand 10, single buffered']
    #allocation18 [shape = 'u8[131072]{0}', space=vmem, size = 0x20000, scoped, tag = 'input window, operand 11, single buffered']
    #allocation19 [shape = 's32[1]{0}', space=sflag, size = 0x4, scoped, tag = 'scoped memory for cae_forward.1']
    #allocation20 [shape = 'u8[2048]{0}', space=vmem, size = 0x800, scoped, tag = 'input window, operand 12, single buffered']
    #allocation21 [shape = 'u8[2097152]{0}', space=vmem, size = 0x200000, scoped, tag = 'input window, operand 13, single buffered']
    #allocation22 [shape = 's32[1]{0}', space=sflag, size = 0x4, scoped, tag = 'scoped memory for cae_forward.1']
    #allocation23 [shape = 'u8[8192]{0}', space=vmem, size = 0x2000, scoped, tag = 'input window, operand 14, single buffered']
    #allocation24 [shape = 'u8[1048576]{0}', space=vmem, size = 0x100000, scoped, tag = 'input window, operand 15, single buffered']
    #allocation25 [shape = 's32[1]{0}', space=sflag, size = 0x4, scoped, tag = 'scoped memory for cae_forward.1']
    #allocation26 [shape = 'u8[1024]{0}', space=vmem, size = 0x400, scoped, tag = 'input window, operand 16, single buffered']
    #allocation27 [shape = 'u8[512]{0}', space=vmem, size = 0x400, scoped, tag = 'input window, operand 19, single buffered']
    #allocation28 [shape = 's32[1]{0}', space=sflag, size = 0x4, scoped, tag = 'scoped memory for cae_forward.1']
    #allocation29 [shape = 'u8[1024]{0}', space=vmem, size = 0x400, scoped, tag = 'output window, operand 0, single buffered']
    #allocation30 [shape = 'u8[512]{0}', space=smem, size = 0x200, scoped, tag = 'output window, operand 1, single buffered']
    #allocation31 [shape = 'u8[512]{0}', space=smem, size = 0x200, scoped, tag = 'output window, operand 2, single buffered']
    #allocation32 [shape = 's32[1]{0}', space=sflag, size = 0x4, scoped, tag = 'scoped memory for cae_forward.1']
    #allocation33 [shape = 'u8[512]{0}', space=smem, size = 0x200, scoped, tag = 'output window, operand 3, single buffered']
    %29 = vsyncpa [#allocation3], 0
    %30 = vsyncpa [#allocation7], 0
    %31 = vsyncpa [#allocation10], 0
    %32 = vsyncpa [#allocation13], 0
    %33 = vsyncpa [#allocation16], 0
    %34 = vsyncpa [#allocation19], 0
    %35 = vsyncpa [#allocation22], 0
    %36 = vsyncpa [#allocation25], 0
    %37 = vsyncpa [#allocation28], 0
    %38 = vsyncpa [#allocation4], 0
    %39 = vsyncpa [#allocation5], 0
    %40 = vsyncpa [#allocation32], 0
    // Predicated region
    $region2: #{cae_forward.1} parent=1 // pred_check
      _
    $region3: #{cae_forward.1} parent=1 // pred_check_branch
      %42 = sbr.rel (0) target = $region5
    $region4: #{cae_forward.1} parent=1 // pred_region
      _
    $region5: #{cae_forward.1} parent=1 // pred_fallthru
      _
    // Predicated region
    $region6: #{cae_forward.1} parent=1 // pred_check
      _
    $region7: #{cae_forward.1} parent=1 // pred_check_branch
      %44 = sbr.rel (0) target = $region9
    $region8: #{cae_forward.1} parent=1 // pred_region
      %s46 = ssub.s32 32768, 32768
      %47 = vsyncadd [#allocation3], %s46
      %s48 = sshll.u32 [#allocation2], 4
      %s49 = int_to_ptr.vmem [resolvable:$true] %s48
      %54 = dma.hbm_to_vmem [thread:$0]  %s1, 32768, %s49, [#allocation3], 1024, 1024, 64
    $region9: #{cae_forward.1} parent=1 // pred_fallthru
      _
    // Predicated region
    $region10: #{cae_forward.1} parent=1 // pred_check
      _
    $region11: #{cae_forward.1} parent=1 // pred_check_branch
      %56 = sbr.rel (0) target = $region13
    $region12: #{cae_forward.1} parent=1 // pred_region
      %s58 = ssub.s32 256, 256
      %59 = vsyncadd [#allocation7], %s58
      %s61 = sshll.u32 [#allocation6], 4
      %s62 = int_to_ptr.vmem [resolvable:$true] %s61
      %64 = dma.hbm_to_vmem [thread:$0]  %s2, 256, %s62, [#allocation7]
    $region13: #{cae_forward.1} parent=1 // pred_fallthru
      _
    // Predicated region
    $region14: #{cae_forward.1} parent=1 // pred_check
      _
    $region15: #{cae_forward.1} parent=1 // pred_check_branch
      %66 = sbr.rel (0) target = $region17
    $region16: #{cae_forward.1} parent=1 // pred_region
      %s68 = ssub.s32 65536, 65536
      %69 = vsyncadd [#allocation7], %s68
      %s70 = sshll.u32 [#allocation8], 4
      %s71 = int_to_ptr.vmem [resolvable:$true] %s70
      %76 = dma.hbm_to_vmem [thread:$0]  %s3, 65536, %s71, [#allocation7], 256, 256, 16
    $region17: #{cae_forward.1} parent=1 // pred_fallthru
      _
    // Predicated region
    $region18: #{cae_forward.1} parent=1 // pred_check
      _
    $region19: #{cae_forward.1} parent=1 // pred_check_branch
      %78 = sbr.rel (0) target = $region21
    $region20: #{cae_forward.1} parent=1 // pred_region
      %s80 = ssub.s32 64, 64
      %81 = vsyncadd [#allocation10], %s80
      %s83 = sshll.u32 [#allocation9], 4
      %s84 = int_to_ptr.vmem [resolvable:$true] %s83
      %86 = dma.hbm_to_vmem [thread:$0]  %s4, 64, %s84, [#allocation10]
    $region21: #{cae_forward.1} parent=1 // pred_fallthru
      _
    // Predicated region
    $region22: #{cae_forward.1} parent=1 // pred_check
      _
    $region23: #{cae_forward.1} parent=1 // pred_check_branch
      %88 = sbr.rel (0) target = $region25
    $region24: #{cae_forward.1} parent=1 // pred_region
      %s90 = ssub.s32 4096, 4096
      %91 = vsyncadd [#allocation10], %s90
      %s92 = sshll.u32 [#allocation11], 4
      %s93 = int_to_ptr.vmem [resolvable:$true] %s92
      %98 = dma.hbm_to_vmem [thread:$0]  %s5, 4096, %s93, [#allocation10], 64, 64, 4
    $region25: #{cae_forward.1} parent=1 // pred_fallthru
      _
    // Predicated region
    $region26: #{cae_forward.1} parent=1 // pred_check
      _
    $region27: #{cae_forward.1} parent=1 // pred_check_branch
      %100 = sbr.rel (0) target = $region29
    $region28: #{cae_forward.1} parent=1 // pred_region
      %s102 = ssub.s32 16, 16
      %103 = vsyncadd [#allocation13], %s102
      %s105 = sshll.u32 [#allocation12], 4
      %s106 = int_to_ptr.vmem [resolvable:$true] %s105
      %108 = dma.hbm_to_vmem [thread:$0]  %s6, 16, %s106, [#allocation13]
    $region29: #{cae_forward.1} parent=1 // pred_fallthru
      _
    // Predicated region
    $region30: #{cae_forward.1} parent=1 // pred_check
      _
    $region31: #{cae_forward.1} parent=1 // pred_check_branch
      %110 = sbr.rel (0) target = $region33
    $region32: #{cae_forward.1} parent=1 // pred_region
      _
    $region33: #{cae_forward.1} parent=1 // pred_fallthru
      _
    // Predicated region
    $region34: #{cae_forward.1} parent=1 // pred_check
      _
    $region35: #{cae_forward.1} parent=1 // pred_check_branch
      %112 = sbr.rel (0) target = $region37
    $region36: #{cae_forward.1} parent=1 // pred_region
      %s114 = ssub.s32 16, 16
      %115 = vsyncadd [#allocation13], %s114
      %s117 = sshll.u32 [#allocation14], 4
      %s118 = int_to_ptr.vmem [resolvable:$true] %s117
      %120 = dma.hbm_to_vmem [thread:$0]  %s8, 16, %s118, [#allocation13]
    $region37: #{cae_forward.1} parent=1 // pred_fallthru
      _
    // Predicated region
    $region38: #{cae_forward.1} parent=1 // pred_check
      _
    $region39: #{cae_forward.1} parent=1 // pred_check_branch
      %122 = sbr.rel (0) target = $region41
    $region40: #{cae_forward.1} parent=1 // pred_region
      %s124 = ssub.s32 128, 128
      %125 = vsyncadd [#allocation16], %s124
      %s126 = sshll.u32 [#allocation15], 4
      %s127 = int_to_ptr.vmem [resolvable:$true] %s126
      %132 = dma.hbm_to_vmem [thread:$0]  %s9, 128, %s127, [#allocation16], 64, 64, 4
    $region41: #{cae_forward.1} parent=1 // pred_fallthru
      _
    // Predicated region
    $region42: #{cae_forward.1} parent=1 // pred_check
      _
    $region43: #{cae_forward.1} parent=1 // pred_check_branch
      %134 = sbr.rel (0) target = $region45
    $region44: #{cae_forward.1} parent=1 // pred_region
      %s136 = ssub.s32 16, 16
      %137 = vsyncadd [#allocation16], %s136
      %s139 = sshll.u32 [#allocation17], 4
      %s140 = int_to_ptr.vmem [resolvable:$true] %s139
      %142 = dma.hbm_to_vmem [thread:$0]  %s10, 16, %s140, [#allocation16]
    $region45: #{cae_forward.1} parent=1 // pred_fallthru
      _
    // Predicated region
    $region46: #{cae_forward.1} parent=1 // pred_check
      _
    $region47: #{cae_forward.1} parent=1 // pred_check_branch
      %144 = sbr.rel (0) target = $region49
    $region48: #{cae_forward.1} parent=1 // pred_region
      %s146 = ssub.s32 4096, 4096
      %147 = vsyncadd [#allocation19], %s146
      %s148 = sshll.u32 [#allocation18], 4
      %s149 = int_to_ptr.vmem [resolvable:$true] %s148
      %154 = dma.hbm_to_vmem [thread:$0]  %s11, 4096, %s149, [#allocation19], 256, 256, 16
    $region49: #{cae_forward.1} parent=1 // pred_fallthru
      _
    // Predicated region
    $region50: #{cae_forward.1} parent=1 // pred_check
      _
    $region51: #{cae_forward.1} parent=1 // pred_check_branch
      %156 = sbr.rel (0) target = $region53
    $region52: #{cae_forward.1} parent=1 // pred_region
      %s158 = ssub.s32 64, 64
      %159 = vsyncadd [#allocation19], %s158
      %s161 = sshll.u32 [#allocation20], 4
      %s162 = int_to_ptr.vmem [resolvable:$true] %s161
      %164 = dma.hbm_to_vmem [thread:$0]  %s12, 64, %s162, [#allocation19]
    $region53: #{cae_forward.1} parent=1 // pred_fallthru
      _
    // Predicated region
    $region54: #{cae_forward.1} parent=1 // pred_check
      _
    $region55: #{cae_forward.1} parent=1 // pred_check_branch
      %166 = sbr.rel (0) target = $region57
    $region56: #{cae_forward.1} parent=1 // pred_region
      %s168 = ssub.s32 65536, 65536
      %169 = vsyncadd [#allocation22], %s168
      %s170 = sshll.u32 [#allocation21], 4
      %s171 = int_to_ptr.vmem [resolvable:$true] %s170
      %176 = dma.hbm_to_vmem [thread:$0]  %s13, 65536, %s171, [#allocation22], 1024, 1024, 64
    $region57: #{cae_forward.1} parent=1 // pred_fallthru
      _
    // Predicated region
    $region58: #{cae_forward.1} parent=1 // pred_check
      _
    $region59: #{cae_forward.1} parent=1 // pred_check_branch
      %178 = sbr.rel (0) target = $region61
    $region60: #{cae_forward.1} parent=1 // pred_region
      %s180 = ssub.s32 256, 256
      %181 = vsyncadd [#allocation22], %s180
      %s183 = sshll.u32 [#allocation23], 4
      %s184 = int_to_ptr.vmem [resolvable:$true] %s183
      %186 = dma.hbm_to_vmem [thread:$0]  %s14, 256, %s184, [#allocation22]
    $region61: #{cae_forward.1} parent=1 // pred_fallthru
      _
    // Predicated region
    $region62: #{cae_forward.1} parent=1 // pred_check
      _
    $region63: #{cae_forward.1} parent=1 // pred_check_branch
      %188 = sbr.rel (0) target = $region65
    $region64: #{cae_forward.1} parent=1 // pred_region
      %s190 = ssub.s32 32768, 32768
      %191 = vsyncadd [#allocation25], %s190
      %s192 = sshll.u32 [#allocation24], 4
      %s193 = int_to_ptr.vmem [resolvable:$true] %s192
      %198 = dma.hbm_to_vmem [thread:$0]  %s15, 32768, %s193, [#allocation25], 128, 128, 8
    $region65: #{cae_forward.1} parent=1 // pred_fallthru
      _
    // Predicated region
    $region66: #{cae_forward.1} parent=1 // pred_check
      _
    $region67: #{cae_forward.1} parent=1 // pred_check_branch
      %200 = sbr.rel (0) target = $region69
    $region68: #{cae_forward.1} parent=1 // pred_region
      %s202 = ssub.s32 32, 32
      %203 = vsyncadd [#allocation25], %s202
      %s205 = sshll.u32 [#allocation26], 4
      %s206 = int_to_ptr.vmem [resolvable:$true] %s205
      %208 = dma.hbm_to_vmem [thread:$0]  %s16, 32, %s206, [#allocation25]
    $region69: #{cae_forward.1} parent=1 // pred_fallthru
      _
    // Predicated region
    $region70: #{cae_forward.1} parent=1 // pred_check
      _
    $region71: #{cae_forward.1} parent=1 // pred_check_branch
      %210 = sbr.rel (0) target = $region73
    $region72: #{cae_forward.1} parent=1 // pred_region
      _
    $region73: #{cae_forward.1} parent=1 // pred_fallthru
      _
    // Predicated region
    $region74: #{cae_forward.1} parent=1 // pred_check
      _
    $region75: #{cae_forward.1} parent=1 // pred_check_branch
      %212 = sbr.rel (0) target = $region77
    $region76: #{cae_forward.1} parent=1 // pred_region
      _
    $region77: #{cae_forward.1} parent=1 // pred_fallthru
      _
    // Predicated region
    $region78: #{cae_forward.1} parent=1 // pred_check
      _
    $region79: #{cae_forward.1} parent=1 // pred_check_branch
      %214 = sbr.rel (0) target = $region81
    $region80: #{cae_forward.1} parent=1 // pred_region
      %s216 = ssub.s32 16, 16
      %217 = vsyncadd [#allocation28], %s216
      %s219 = sshll.u32 [#allocation27], 4
      %s220 = int_to_ptr.vmem [resolvable:$true] %s219
      %222 = dma.hbm_to_vmem [thread:$0]  %s19, 16, %s220, [#allocation28]
    $region81: #{cae_forward.1} parent=1 // pred_fallthru
      _
    // Predicated region
    $region82: #{cae_forward.1} parent=1 // pred_check
      _
    $region83: #{cae_forward.1} parent=1 // pred_check_branch
      %224 = sbr.rel (0) target = $region85
    $region84: #{cae_forward.1} parent=1 // pred_region
      %225 = dma.done [#allocation3], 32768
    $region85: #{cae_forward.1} parent=1 // pred_fallthru
      _
    // Predicated region
    $region86: #{cae_forward.1} parent=1 // pred_check
      _
    $region87: #{cae_forward.1} parent=1 // pred_check_branch
      %227 = sbr.rel (0) target = $region89
    $region88: #{cae_forward.1} parent=1 // pred_region
      %228 = dma.done [#allocation7], 256
    $region89: #{cae_forward.1} parent=1 // pred_fallthru
      _
    // Predicated region
    $region90: #{cae_forward.1} parent=1 // pred_check
      _
    $region91: #{cae_forward.1} parent=1 // pred_check_branch
      %230 = sbr.rel (0) target = $region93
    $region92: #{cae_forward.1} parent=1 // pred_region
      %231 = dma.done [#allocation7], 65536
    $region93: #{cae_forward.1} parent=1 // pred_fallthru
      _
    // Predicated region
    $region94: #{cae_forward.1} parent=1 // pred_check
      _
    $region95: #{cae_forward.1} parent=1 // pred_check_branch
      %233 = sbr.rel (0) target = $region97
    $region96: #{cae_forward.1} parent=1 // pred_region
      %234 = dma.done [#allocation10], 64
    $region97: #{cae_forward.1} parent=1 // pred_fallthru
      _
    // Predicated region
    $region98: #{cae_forward.1} parent=1 // pred_check
      _
    $region99: #{cae_forward.1} parent=1 // pred_check_branch
      %236 = sbr.rel (0) target = $region101
    $region100: #{cae_forward.1} parent=1 // pred_region
      %237 = dma.done [#allocation10], 4096
    $region101: #{cae_forward.1} parent=1 // pred_fallthru
      _
    // Predicated region
    $region102: #{cae_forward.1} parent=1 // pred_check
      _
    $region103: #{cae_forward.1} parent=1 // pred_check_branch
      %239 = sbr.rel (0) target = $region105
    $region104: #{cae_forward.1} parent=1 // pred_region
      %240 = dma.done [#allocation13], 16
    $region105: #{cae_forward.1} parent=1 // pred_fallthru
      _
    // Predicated region
    $region106: #{cae_forward.1} parent=1 // pred_check
      _
    $region107: #{cae_forward.1} parent=1 // pred_check_branch
      %242 = sbr.rel (0) target = $region109
    $region108: #{cae_forward.1} parent=1 // pred_region
      %243 = dma.done [#allocation13], 16
    $region109: #{cae_forward.1} parent=1 // pred_fallthru
      _
    // Predicated region
    $region110: #{cae_forward.1} parent=1 // pred_check
      _
    $region111: #{cae_forward.1} parent=1 // pred_check_branch
      %245 = sbr.rel (0) target = $region113
    $region112: #{cae_forward.1} parent=1 // pred_region
      %246 = dma.done [#allocation16], 128
    $region113: #{cae_forward.1} parent=1 // pred_fallthru
      _
    // Predicated region
    $region114: #{cae_forward.1} parent=1 // pred_check
      _
    $region115: #{cae_forward.1} parent=1 // pred_check_branch
      %248 = sbr.rel (0) target = $region117
    $region116: #{cae_forward.1} parent=1 // pred_region
      %249 = dma.done [#allocation16], 16
    $region117: #{cae_forward.1} parent=1 // pred_fallthru
      _
    // Predicated region
    $region118: #{cae_forward.1} parent=1 // pred_check
      _
    $region119: #{cae_forward.1} parent=1 // pred_check_branch
      %251 = sbr.rel (0) target = $region121
    $region120: #{cae_forward.1} parent=1 // pred_region
      %252 = dma.done [#allocation19], 4096
    $region121: #{cae_forward.1} parent=1 // pred_fallthru
      _
    // Predicated region
    $region122: #{cae_forward.1} parent=1 // pred_check
      _
    $region123: #{cae_forward.1} parent=1 // pred_check_branch
      %254 = sbr.rel (0) target = $region125
    $region124: #{cae_forward.1} parent=1 // pred_region
      %255 = dma.done [#allocation19], 64
    $region125: #{cae_forward.1} parent=1 // pred_fallthru
      _
    // Predicated region
    $region126: #{cae_forward.1} parent=1 // pred_check
      _
    $region127: #{cae_forward.1} parent=1 // pred_check_branch
      %257 = sbr.rel (0) target = $region129
    $region128: #{cae_forward.1} parent=1 // pred_region
      %258 = dma.done [#allocation22], 65536
    $region129: #{cae_forward.1} parent=1 // pred_fallthru
      _
    // Predicated region
    $region130: #{cae_forward.1} parent=1 // pred_check
      _
    $region131: #{cae_forward.1} parent=1 // pred_check_branch
      %260 = sbr.rel (0) target = $region133
    $region132: #{cae_forward.1} parent=1 // pred_region
      %261 = dma.done [#allocation22], 256
    $region133: #{cae_forward.1} parent=1 // pred_fallthru
      _
    // Predicated region
    $region134: #{cae_forward.1} parent=1 // pred_check
      _
    $region135: #{cae_forward.1} parent=1 // pred_check_branch
      %263 = sbr.rel (0) target = $region137
    $region136: #{cae_forward.1} parent=1 // pred_region
      %264 = dma.done [#allocation25], 32768
    $region137: #{cae_forward.1} parent=1 // pred_fallthru
      _
    // Predicated region
    $region138: #{cae_forward.1} parent=1 // pred_check
      _
    $region139: #{cae_forward.1} parent=1 // pred_check_branch
      %266 = sbr.rel (0) target = $region141
    $region140: #{cae_forward.1} parent=1 // pred_region
      %267 = dma.done [#allocation25], 32
    $region141: #{cae_forward.1} parent=1 // pred_fallthru
      _
    // Predicated region
    $region142: #{cae_forward.1} parent=1 // pred_check
      _
    $region143: #{cae_forward.1} parent=1 // pred_check_branch
      %269 = sbr.rel (0) target = $region145
    $region144: #{cae_forward.1} parent=1 // pred_region
      %270 = dma.done [#allocation28], 16
    $region145: #{cae_forward.1} parent=1 // pred_fallthru
      _
    %v272 = vld [vmem:[%s0] sm:$0xf]
    %v275 = vunpack.c.l.s4 1983009808
    %v276 = vunpack.c.0.s8 %v275
    %v277 = vlaneseq
    %v278 = vshrl.u32 %v277, 7
    %v279 = vsub.s32 %v276, %v278
    %v280 = vrot.slane %v272, %v279
    %v281 = vcombine.high %v280, %v280
    %v284 = vpack.c.bf16 %v280, %v280
    %v285 = vpack.c.bf16 %v281, %v281
    %v286 = vld [vmem:[#allocation2] sm:$0xff]
    %v287 = vld [vmem:[#allocation2 + $0x8] sm:$0xff]
    %v288 = vld [vmem:[#allocation2 + $0x10] sm:$0xff]
    %v289 = vld [vmem:[#allocation2 + $0x18] sm:$0xff]
    %v290 = vld [vmem:[#allocation2 + $0x20] sm:$0xff]
    %v291 = vld [vmem:[#allocation2 + $0x28] sm:$0xff]
    %v292 = vld [vmem:[#allocation2 + $0x30] sm:$0xff]
    %v293 = vld [vmem:[#allocation2 + $0x38] sm:$0xff]
    %v294 = vld [vmem:[#allocation2 + $0x40] sm:$0xff]
    %v295 = vld [vmem:[#allocation2 + $0x48] sm:$0xff]
    %v296 = vld [vmem:[#allocation2 + $0x50] sm:$0xff]
    %v297 = vld [vmem:[#allocation2 + $0x58] sm:$0xff]
    %v298 = vld [vmem:[#allocation2 + $0x60] sm:$0xff]
    %v299 = vld [vmem:[#allocation2 + $0x68] sm:$0xff]
    %v300 = vld [vmem:[#allocation2 + $0x70] sm:$0xff]
    %v301 = vld [vmem:[#allocation2 + $0x78] sm:$0xff]
    %v302 = vld [vmem:[#allocation2 + $0x80] sm:$0xff]
    %v303 = vld [vmem:[#allocation2 + $0x88] sm:$0xff]
    %v304 = vld [vmem:[#allocation2 + $0x90] sm:$0xff]
    %v305 = vld [vmem:[#allocation2 + $0x98] sm:$0xff]
    %v306 = vld [vmem:[#allocation2 + $0xa0] sm:$0xff]
    %v307 = vld [vmem:[#allocation2 + $0xa8] sm:$0xff]
    %v308 = vld [vmem:[#allocation2 + $0xb0] sm:$0xff]
    %v309 = vld [vmem:[#allocation2 + $0xb8] sm:$0xff]
    %v310 = vld [vmem:[#allocation2 + $0xc0] sm:$0xff]
    %v311 = vld [vmem:[#allocation2 + $0xc8] sm:$0xff]
    %v312 = vld [vmem:[#allocation2 + $0xd0] sm:$0xff]
    %v313 = vld [vmem:[#allocation2 + $0xd8] sm:$0xff]
    %v314 = vld [vmem:[#allocation2 + $0xe0] sm:$0xff]
    %v315 = vld [vmem:[#allocation2 + $0xe8] sm:$0xff]
    %v316 = vld [vmem:[#allocation2 + $0xf0] sm:$0xff]
    %v317 = vld [vmem:[#allocation2 + $0xf8] sm:$0xff]
    %v318 = vld [vmem:[#allocation2 + $0x100] sm:$0xff]
    %v319 = vld [vmem:[#allocation2 + $0x108] sm:$0xff]
    %v320 = vld [vmem:[#allocation2 + $0x110] sm:$0xff]
    %v321 = vld [vmem:[#allocation2 + $0x118] sm:$0xff]
    %v322 = vld [vmem:[#allocation2 + $0x120] sm:$0xff]
    %v323 = vld [vmem:[#allocation2 + $0x128] sm:$0xff]
    %v324 = vld [vmem:[#allocation2 + $0x130] sm:$0xff]
    %v325 = vld [vmem:[#allocation2 + $0x138] sm:$0xff]
    %v326 = vld [vmem:[#allocation2 + $0x140] sm:$0xff]
    %v327 = vld [vmem:[#allocation2 + $0x148] sm:$0xff]
    %v328 = vld [vmem:[#allocation2 + $0x150] sm:$0xff]
    %v329 = vld [vmem:[#allocation2 + $0x158] sm:$0xff]
    %v330 = vld [vmem:[#allocation2 + $0x160] sm:$0xff]
    %v331 = vld [vmem:[#allocation2 + $0x168] sm:$0xff]
    %v332 = vld [vmem:[#allocation2 + $0x170] sm:$0xff]
    %v333 = vld [vmem:[#allocation2 + $0x178] sm:$0xff]
    %v334 = vld [vmem:[#allocation2 + $0x180] sm:$0xff]
    %v335 = vld [vmem:[#allocation2 + $0x188] sm:$0xff]
    %v336 = vld [vmem:[#allocation2 + $0x190] sm:$0xff]
    %v337 = vld [vmem:[#allocation2 + $0x198] sm:$0xff]
    %v338 = vld [vmem:[#allocation2 + $0x1a0] sm:$0xff]
    %v339 = vld [vmem:[#allocation2 + $0x1a8] sm:$0xff]
    %v340 = vld [vmem:[#allocation2 + $0x1b0] sm:$0xff]
    %v341 = vld [vmem:[#allocation2 + $0x1b8] sm:$0xff]
    %v342 = vld [vmem:[#allocation2 + $0x1c0] sm:$0xff]
    %v343 = vld [vmem:[#allocation2 + $0x1c8] sm:$0xff]
    %v344 = vld [vmem:[#allocation2 + $0x1d0] sm:$0xff]
    %v345 = vld [vmem:[#allocation2 + $0x1d8] sm:$0xff]
    %v346 = vld [vmem:[#allocation2 + $0x1e0] sm:$0xff]
    %v347 = vld [vmem:[#allocation2 + $0x1e8] sm:$0xff]
    %v348 = vld [vmem:[#allocation2 + $0x1f0] sm:$0xff]
    %v349 = vld [vmem:[#allocation2 + $0x1f8] sm:$0xff]
    %v350 = vld [vmem:[#allocation2 + $0x200] sm:$0xff]
    %v351 = vld [vmem:[#allocation2 + $0x208] sm:$0xff]
    %v352 = vld [vmem:[#allocation2 + $0x210] sm:$0xff]
    %v353 = vld [vmem:[#allocation2 + $0x218] sm:$0xff]
    %v354 = vld [vmem:[#allocation2 + $0x220] sm:$0xff]
    %v355 = vld [vmem:[#allocation2 + $0x228] sm:$0xff]
    %v356 = vld [vmem:[#allocation2 + $0x230] sm:$0xff]
    %v357 = vld [vmem:[#allocation2 + $0x238] sm:$0xff]
    %v358 = vld [vmem:[#allocation2 + $0x240] sm:$0xff]
    %v359 = vld [vmem:[#allocation2 + $0x248] sm:$0xff]
    %v360 = vld [vmem:[#allocation2 + $0x250] sm:$0xff]
    %v361 = vld [vmem:[#allocation2 + $0x258] sm:$0xff]
    %v362 = vld [vmem:[#allocation2 + $0x260] sm:$0xff]
    %v363 = vld [vmem:[#allocation2 + $0x268] sm:$0xff]
    %v364 = vld [vmem:[#allocation2 + $0x270] sm:$0xff]
    %v365 = vld [vmem:[#allocation2 + $0x278] sm:$0xff]
    %v366 = vld [vmem:[#allocation2 + $0x280] sm:$0xff]
    %v367 = vld [vmem:[#allocation2 + $0x288] sm:$0xff]
    %v368 = vld [vmem:[#allocation2 + $0x290] sm:$0xff]
    %v369 = vld [vmem:[#allocation2 + $0x298] sm:$0xff]
    %v370 = vld [vmem:[#allocation2 + $0x2a0] sm:$0xff]
    %v371 = vld [vmem:[#allocation2 + $0x2a8] sm:$0xff]
    %v372 = vld [vmem:[#allocation2 + $0x2b0] sm:$0xff]
    %v373 = vld [vmem:[#allocation2 + $0x2b8] sm:$0xff]
    %v374 = vld [vmem:[#allocation2 + $0x2c0] sm:$0xff]
    %v375 = vld [vmem:[#allocation2 + $0x2c8] sm:$0xff]
    %v376 = vld [vmem:[#allocation2 + $0x2d0] sm:$0xff]
    %v377 = vld [vmem:[#allocation2 + $0x2d8] sm:$0xff]
    %v378 = vld [vmem:[#allocation2 + $0x2e0] sm:$0xff]
    %v379 = vld [vmem:[#allocation2 + $0x2e8] sm:$0xff]
    %v380 = vld [vmem:[#allocation2 + $0x2f0] sm:$0xff]
    %v381 = vld [vmem:[#allocation2 + $0x2f8] sm:$0xff]
    %v382 = vld [vmem:[#allocation2 + $0x300] sm:$0xff]
    %v383 = vld [vmem:[#allocation2 + $0x308] sm:$0xff]
    %v384 = vld [vmem:[#allocation2 + $0x310] sm:$0xff]
    %v385 = vld [vmem:[#allocation2 + $0x318] sm:$0xff]
    %v386 = vld [vmem:[#allocation2 + $0x320] sm:$0xff]
    %v387 = vld [vmem:[#allocation2 + $0x328] sm:$0xff]
    %v388 = vld [vmem:[#allocation2 + $0x330] sm:$0xff]
    %v389 = vld [vmem:[#allocation2 + $0x338] sm:$0xff]
    %v390 = vld [vmem:[#allocation2 + $0x340] sm:$0xff]
    %v391 = vld [vmem:[#allocation2 + $0x348] sm:$0xff]
    %v392 = vld [vmem:[#allocation2 + $0x350] sm:$0xff]
    %v393 = vld [vmem:[#allocation2 + $0x358] sm:$0xff]
    %v394 = vld [vmem:[#allocation2 + $0x360] sm:$0xff]
    %v395 = vld [vmem:[#allocation2 + $0x368] sm:$0xff]
    %v396 = vld [vmem:[#allocation2 + $0x370] sm:$0xff]
    %v397 = vld [vmem:[#allocation2 + $0x378] sm:$0xff]
    %v398 = vld [vmem:[#allocation2 + $0x380] sm:$0xff]
    %v399 = vld [vmem:[#allocation2 + $0x388] sm:$0xff]
    %v400 = vld [vmem:[#allocation2 + $0x390] sm:$0xff]
    %v401 = vld [vmem:[#allocation2 + $0x398] sm:$0xff]
    %v402 = vld [vmem:[#allocation2 + $0x3a0] sm:$0xff]
    %v403 = vld [vmem:[#allocation2 + $0x3a8] sm:$0xff]
    %v404 = vld [vmem:[#allocation2 + $0x3b0] sm:$0xff]
    %v405 = vld [vmem:[#allocation2 + $0x3b8] sm:$0xff]
    %v406 = vld [vmem:[#allocation2 + $0x3c0] sm:$0xff]
    %v407 = vld [vmem:[#allocation2 + $0x3c8] sm:$0xff]
    %v408 = vld [vmem:[#allocation2 + $0x3d0] sm:$0xff]
    %v409 = vld [vmem:[#allocation2 + $0x3d8] sm:$0xff]
    %v410 = vld [vmem:[#allocation2 + $0x3e0] sm:$0xff]
    %v411 = vld [vmem:[#allocation2 + $0x3e8] sm:$0xff]
    %v412 = vld [vmem:[#allocation2 + $0x3f0] sm:$0xff]
    %v413 = vld [vmem:[#allocation2 + $0x3f8] sm:$0xff]
    %v414 = vld [vmem:[#allocation2 + $0x400] sm:$0xff]
    %v415 = vld [vmem:[#allocation2 + $0x408] sm:$0xff]
    %v416 = vld [vmem:[#allocation2 + $0x410] sm:$0xff]
    %v417 = vld [vmem:[#allocation2 + $0x418] sm:$0xff]
    %v418 = vld [vmem:[#allocation2 + $0x420] sm:$0xff]
    %v419 = vld [vmem:[#allocation2 + $0x428] sm:$0xff]
    %v420 = vld [vmem:[#allocation2 + $0x430] sm:$0xff]
    %v421 = vld [vmem:[#allocation2 + $0x438] sm:$0xff]
    %v422 = vld [vmem:[#allocation2 + $0x440] sm:$0xff]
    %v423 = vld [vmem:[#allocation2 + $0x448] sm:$0xff]
    %v424 = vld [vmem:[#allocation2 + $0x450] sm:$0xff]
    %v425 = vld [vmem:[#allocation2 + $0x458] sm:$0xff]
    %v426 = vld [vmem:[#allocation2 + $0x460] sm:$0xff]
    %v427 = vld [vmem:[#allocation2 + $0x468] sm:$0xff]
    %v428 = vld [vmem:[#allocation2 + $0x470] sm:$0xff]
    %v429 = vld [vmem:[#allocation2 + $0x478] sm:$0xff]
    %v430 = vld [vmem:[#allocation2 + $0x480] sm:$0xff]
    %v431 = vld [vmem:[#allocation2 + $0x488] sm:$0xff]
    %v432 = vld [vmem:[#allocation2 + $0x490] sm:$0xff]
    %v433 = vld [vmem:[#allocation2 + $0x498] sm:$0xff]
    %v434 = vld [vmem:[#allocation2 + $0x4a0] sm:$0xff]
    %v435 = vld [vmem:[#allocation2 + $0x4a8] sm:$0xff]
    %v436 = vld [vmem:[#allocation2 + $0x4b0] sm:$0xff]
    %v437 = vld [vmem:[#allocation2 + $0x4b8] sm:$0xff]
    %v438 = vld [vmem:[#allocation2 + $0x4c0] sm:$0xff]
    %v439 = vld [vmem:[#allocation2 + $0x4c8] sm:$0xff]
    %v440 = vld [vmem:[#allocation2 + $0x4d0] sm:$0xff]
    %v441 = vld [vmem:[#allocation2 + $0x4d8] sm:$0xff]
    %v442 = vld [vmem:[#allocation2 + $0x4e0] sm:$0xff]
    %v443 = vld [vmem:[#allocation2 + $0x4e8] sm:$0xff]
    %v444 = vld [vmem:[#allocation2 + $0x4f0] sm:$0xff]
    %v445 = vld [vmem:[#allocation2 + $0x4f8] sm:$0xff]
    %v446 = vld [vmem:[#allocation2 + $0x500] sm:$0xff]
    %v447 = vld [vmem:[#allocation2 + $0x508] sm:$0xff]
    %v448 = vld [vmem:[#allocation2 + $0x510] sm:$0xff]
    %v449 = vld [vmem:[#allocation2 + $0x518] sm:$0xff]
    %v450 = vld [vmem:[#allocation2 + $0x520] sm:$0xff]
    %v451 = vld [vmem:[#allocation2 + $0x528] sm:$0xff]
    %v452 = vld [vmem:[#allocation2 + $0x530] sm:$0xff]
    %v453 = vld [vmem:[#allocation2 + $0x538] sm:$0xff]
    %v454 = vld [vmem:[#allocation2 + $0x540] sm:$0xff]
    %v455 = vld [vmem:[#allocation2 + $0x548] sm:$0xff]
    %v456 = vld [vmem:[#allocation2 + $0x550] sm:$0xff]
    %v457 = vld [vmem:[#allocation2 + $0x558] sm:$0xff]
    %v458 = vld [vmem:[#allocation2 + $0x560] sm:$0xff]
    %v459 = vld [vmem:[#allocation2 + $0x568] sm:$0xff]
    %v460 = vld [vmem:[#allocation2 + $0x570] sm:$0xff]
    %v461 = vld [vmem:[#allocation2 + $0x578] sm:$0xff]
    %v462 = vld [vmem:[#allocation2 + $0x580] sm:$0xff]
    %v463 = vld [vmem:[#allocation2 + $0x588] sm:$0xff]
    %v464 = vld [vmem:[#allocation2 + $0x590] sm:$0xff]
    %v465 = vld [vmem:[#allocation2 + $0x598] sm:$0xff]
    %v466 = vld [vmem:[#allocation2 + $0x5a0] sm:$0xff]
    %v467 = vld [vmem:[#allocation2 + $0x5a8] sm:$0xff]
    %v468 = vld [vmem:[#allocation2 + $0x5b0] sm:$0xff]
    %v469 = vld [vmem:[#allocation2 + $0x5b8] sm:$0xff]
    %v470 = vld [vmem:[#allocation2 + $0x5c0] sm:$0xff]
    %v471 = vld [vmem:[#allocation2 + $0x5c8] sm:$0xff]
    %v472 = vld [vmem:[#allocation2 + $0x5d0] sm:$0xff]
    %v473 = vld [vmem:[#allocation2 + $0x5d8] sm:$0xff]
    %v474 = vld [vmem:[#allocation2 + $0x5e0] sm:$0xff]
    %v475 = vld [vmem:[#allocation2 + $0x5e8] sm:$0xff]
    %v476 = vld [vmem:[#allocation2 + $0x5f0] sm:$0xff]
    %v477 = vld [vmem:[#allocation2 + $0x5f8] sm:$0xff]
    %v478 = vld [vmem:[#allocation2 + $0x600] sm:$0xff]
    %v479 = vld [vmem:[#allocation2 + $0x608] sm:$0xff]
    %v480 = vld [vmem:[#allocation2 + $0x610] sm:$0xff]
    %v481 = vld [vmem:[#allocation2 + $0x618] sm:$0xff]
    %v482 = vld [vmem:[#allocation2 + $0x620] sm:$0xff]
    %v483 = vld [vmem:[#allocation2 + $0x628] sm:$0xff]
    %v484 = vld [vmem:[#allocation2 + $0x630] sm:$0xff]
    %v485 = vld [vmem:[#allocation2 + $0x638] sm:$0xff]
    %v486 = vld [vmem:[#allocation2 + $0x640] sm:$0xff]
    %v487 = vld [vmem:[#allocation2 + $0x648] sm:$0xff]
    %v488 = vld [vmem:[#allocation2 + $0x650] sm:$0xff]
    %v489 = vld [vmem:[#allocation2 + $0x658] sm:$0xff]
    %v490 = vld [vmem:[#allocation2 + $0x660] sm:$0xff]
    %v491 = vld [vmem:[#allocation2 + $0x668] sm:$0xff]
    %v492 = vld [vmem:[#allocation2 + $0x670] sm:$0xff]
    %v493 = vld [vmem:[#allocation2 + $0x678] sm:$0xff]
    %v494 = vld [vmem:[#allocation2 + $0x680] sm:$0xff]
    %v495 = vld [vmem:[#allocation2 + $0x688] sm:$0xff]
    %v496 = vld [vmem:[#allocation2 + $0x690] sm:$0xff]
    %v497 = vld [vmem:[#allocation2 + $0x698] sm:$0xff]
    %v498 = vld [vmem:[#allocation2 + $0x6a0] sm:$0xff]
    %v499 = vld [vmem:[#allocation2 + $0x6a8] sm:$0xff]
    %v500 = vld [vmem:[#allocation2 + $0x6b0] sm:$0xff]
    %v501 = vld [vmem:[#allocation2 + $0x6b8] sm:$0xff]
    %v502 = vld [vmem:[#allocation2 + $0x6c0] sm:$0xff]
    %v503 = vld [vmem:[#allocation2 + $0x6c8] sm:$0xff]
    %v504 = vld [vmem:[#allocation2 + $0x6d0] sm:$0xff]
    %v505 = vld [vmem:[#allocation2 + $0x6d8] sm:$0xff]
    %v506 = vld [vmem:[#allocation2 + $0x6e0] sm:$0xff]
    %v507 = vld [vmem:[#allocation2 + $0x6e8] sm:$0xff]
    %v508 = vld [vmem:[#allocation2 + $0x6f0] sm:$0xff]
    %v509 = vld [vmem:[#allocation2 + $0x6f8] sm:$0xff]
    %v510 = vld [vmem:[#allocation2 + $0x700] sm:$0xff]
    %v511 = vld [vmem:[#allocation2 + $0x708] sm:$0xff]
    %v512 = vld [vmem:[#allocation2 + $0x710] sm:$0xff]
    %v513 = vld [vmem:[#allocation2 + $0x718] sm:$0xff]
    %v514 = vld [vmem:[#allocation2 + $0x720] sm:$0xff]
    %v515 = vld [vmem:[#allocation2 + $0x728] sm:$0xff]
    %v516 = vld [vmem:[#allocation2 + $0x730] sm:$0xff]
    %v517 = vld [vmem:[#allocation2 + $0x738] sm:$0xff]
    %v518 = vld [vmem:[#allocation2 + $0x740] sm:$0xff]
    %v519 = vld [vmem:[#allocation2 + $0x748] sm:$0xff]
    %v520 = vld [vmem:[#allocation2 + $0x750] sm:$0xff]
    %v521 = vld [vmem:[#allocation2 + $0x758] sm:$0xff]
    %v522 = vld [vmem:[#allocation2 + $0x760] sm:$0xff]
    %v523 = vld [vmem:[#allocation2 + $0x768] sm:$0xff]
    %v524 = vld [vmem:[#allocation2 + $0x770] sm:$0xff]
    %v525 = vld [vmem:[#allocation2 + $0x778] sm:$0xff]
    %v526 = vld [vmem:[#allocation2 + $0x780] sm:$0xff]
    %v527 = vld [vmem:[#allocation2 + $0x788] sm:$0xff]
    %v528 = vld [vmem:[#allocation2 + $0x790] sm:$0xff]
    %v529 = vld [vmem:[#allocation2 + $0x798] sm:$0xff]
    %v530 = vld [vmem:[#allocation2 + $0x7a0] sm:$0xff]
    %v531 = vld [vmem:[#allocation2 + $0x7a8] sm:$0xff]
    %v532 = vld [vmem:[#allocation2 + $0x7b0] sm:$0xff]
    %v533 = vld [vmem:[#allocation2 + $0x7b8] sm:$0xff]
    %v534 = vld [vmem:[#allocation2 + $0x7c0] sm:$0xff]
    %v535 = vld [vmem:[#allocation2 + $0x7c8] sm:$0xff]
    %v536 = vld [vmem:[#allocation2 + $0x7d0] sm:$0xff]
    %v537 = vld [vmem:[#allocation2 + $0x7d8] sm:$0xff]
    %v538 = vld [vmem:[#allocation2 + $0x7e0] sm:$0xff]
    %v539 = vld [vmem:[#allocation2 + $0x7e8] sm:$0xff]
    %v540 = vld [vmem:[#allocation2 + $0x7f0] sm:$0xff]
    %v541 = vld [vmem:[#allocation2 + $0x7f8] sm:$0xff]
    %v542 = vld [vmem:[#allocation6] sm:$0xff]
    %v543 = vld [vmem:[#allocation6 + $0x8] sm:$0xff]
    %v546 = vlaneseq
    %v547 = vshrl.u32 %v546, 7
    %v548 = vsub.s32 0, %v547
    %v549 = vrot.slane %v542, %v548
    %v550 = vlaneseq
    %v551 = vshrl.u32 %v550, 7
    %v552 = vsub.s32 1, %v551
    %v553 = vrot.slane %v542, %v552
    %v554 = vlaneseq
    %v555 = vshrl.u32 %v554, 7
    %v556 = vsub.s32 2, %v555
    %v557 = vrot.slane %v542, %v556
    %v558 = vlaneseq
    %v559 = vshrl.u32 %v558, 7
    %v560 = vsub.s32 3, %v559
    %v561 = vrot.slane %v542, %v560
    %v562 = vlaneseq
    %v563 = vshrl.u32 %v562, 7
    %v564 = vsub.s32 4, %v563
    %v565 = vrot.slane %v542, %v564
    %v566 = vlaneseq
    %v567 = vshrl.u32 %v566, 7
    %v568 = vsub.s32 5, %v567
    %v569 = vrot.slane %v542, %v568
    %v570 = vlaneseq
    %v571 = vshrl.u32 %v570, 7
    %v572 = vsub.s32 6, %v571
    %v573 = vrot.slane %v542, %v572
    %v574 = vlaneseq
    %v575 = vshrl.u32 %v574, 7
    %v576 = vsub.s32 7, %v575
    %v577 = vrot.slane %v542, %v576
    %v578 = vlaneseq
    %v579 = vshrl.u32 %v578, 7
    %v580 = vsub.s32 0, %v579
    %v581 = vrot.slane %v543, %v580
    %v582 = vlaneseq
    %v583 = vshrl.u32 %v582, 7
    %v584 = vsub.s32 1, %v583
    %v585 = vrot.slane %v543, %v584
    %v586 = vlaneseq
    %v587 = vshrl.u32 %v586, 7
    %v588 = vsub.s32 2, %v587
    %v589 = vrot.slane %v543, %v588
    %v590 = vlaneseq
    %v591 = vshrl.u32 %v590, 7
    %v592 = vsub.s32 3, %v591
    %v593 = vrot.slane %v543, %v592
    %v594 = vlaneseq
    %v595 = vshrl.u32 %v594, 7
    %v596 = vsub.s32 4, %v595
    %v597 = vrot.slane %v543, %v596
    %v598 = vlaneseq
    %v599 = vshrl.u32 %v598, 7
    %v600 = vsub.s32 5, %v599
    %v601 = vrot.slane %v543, %v600
    %v602 = vlaneseq
    %v603 = vshrl.u32 %v602, 7
    %v604 = vsub.s32 6, %v603
    %v605 = vrot.slane %v543, %v604
    %v606 = vlaneseq
    %v607 = vshrl.u32 %v606, 7
    %v608 = vsub.s32 7, %v607
    %v609 = vrot.slane %v543, %v608
    %v882 = vunpack.c.l.b16 %v286
    %v883 = vunpack.c.h.b16 %v286
    %v884 = vunpack.c.l.b16 %v287
    %v885 = vunpack.c.h.b16 %v287
    %v886 = vunpack.c.l.b16 %v288
    %v887 = vunpack.c.h.b16 %v288
    %v888 = vunpack.c.l.b16 %v289
    %v889 = vunpack.c.h.b16 %v289
    %v890 = vunpack.c.l.b16 %v290
    %v891 = vunpack.c.h.b16 %v290
    %v892 = vunpack.c.l.b16 %v291
    %v893 = vunpack.c.h.b16 %v291
    %v894 = vunpack.c.l.b16 %v292
    %v895 = vunpack.c.h.b16 %v292
    %v896 = vunpack.c.l.b16 %v293
    %v897 = vunpack.c.h.b16 %v293
    %v898 = vunpack.c.l.b16 %v294
    %v899 = vunpack.c.h.b16 %v294
    %v900 = vunpack.c.l.b16 %v295
    %v901 = vunpack.c.h.b16 %v295
    %v902 = vunpack.c.l.b16 %v296
    %v903 = vunpack.c.h.b16 %v296
    %v904 = vunpack.c.l.b16 %v297
    %v905 = vunpack.c.h.b16 %v297
    %v906 = vunpack.c.l.b16 %v298
    %v907 = vunpack.c.h.b16 %v298
    %v908 = vunpack.c.l.b16 %v299
    %v909 = vunpack.c.h.b16 %v299
    %v910 = vunpack.c.l.b16 %v300
    %v911 = vunpack.c.h.b16 %v300
    %v912 = vunpack.c.l.b16 %v301
    %v913 = vunpack.c.h.b16 %v301
    %v914 = vunpack.c.l.b16 %v302
    %v915 = vunpack.c.h.b16 %v302
    %v916 = vunpack.c.l.b16 %v303
    %v917 = vunpack.c.h.b16 %v303
    %v918 = vunpack.c.l.b16 %v304
    %v919 = vunpack.c.h.b16 %v304
    %v920 = vunpack.c.l.b16 %v305
    %v921 = vunpack.c.h.b16 %v305
    %v922 = vunpack.c.l.b16 %v306
    %v923 = vunpack.c.h.b16 %v306
    %v924 = vunpack.c.l.b16 %v307
    %v925 = vunpack.c.h.b16 %v307
    %v926 = vunpack.c.l.b16 %v308
    %v927 = vunpack.c.h.b16 %v308
    %v928 = vunpack.c.l.b16 %v309
    %v929 = vunpack.c.h.b16 %v309
    %v930 = vunpack.c.l.b16 %v310
    %v931 = vunpack.c.h.b16 %v310
    %v932 = vunpack.c.l.b16 %v311
    %v933 = vunpack.c.h.b16 %v311
    %v934 = vunpack.c.l.b16 %v312
    %v935 = vunpack.c.h.b16 %v312
    %v936 = vunpack.c.l.b16 %v313
    %v937 = vunpack.c.h.b16 %v313
    %v938 = vunpack.c.l.b16 %v314
    %v939 = vunpack.c.h.b16 %v314
    %v940 = vunpack.c.l.b16 %v315
    %v941 = vunpack.c.h.b16 %v315
    %v942 = vunpack.c.l.b16 %v316
    %v943 = vunpack.c.h.b16 %v316
    %v944 = vunpack.c.l.b16 %v317
    %v945 = vunpack.c.h.b16 %v317
    %v946 = vunpack.c.l.b16 %v318
    %v947 = vunpack.c.h.b16 %v318
    %v948 = vunpack.c.l.b16 %v319
    %v949 = vunpack.c.h.b16 %v319
    %v950 = vunpack.c.l.b16 %v320
    %v951 = vunpack.c.h.b16 %v320
    %v952 = vunpack.c.l.b16 %v321
    %v953 = vunpack.c.h.b16 %v321
    %v954 = vunpack.c.l.b16 %v322
    %v955 = vunpack.c.h.b16 %v322
    %v956 = vunpack.c.l.b16 %v323
    %v957 = vunpack.c.h.b16 %v323
    %v958 = vunpack.c.l.b16 %v324
    %v959 = vunpack.c.h.b16 %v324
    %v960 = vunpack.c.l.b16 %v325
    %v961 = vunpack.c.h.b16 %v325
    %v962 = vunpack.c.l.b16 %v326
    %v963 = vunpack.c.h.b16 %v326
    %v964 = vunpack.c.l.b16 %v327
    %v965 = vunpack.c.h.b16 %v327
    %v966 = vunpack.c.l.b16 %v328
    %v967 = vunpack.c.h.b16 %v328
    %v968 = vunpack.c.l.b16 %v329
    %v969 = vunpack.c.h.b16 %v329
    %v970 = vunpack.c.l.b16 %v330
    %v971 = vunpack.c.h.b16 %v330
    %v972 = vunpack.c.l.b16 %v331
    %v973 = vunpack.c.h.b16 %v331
    %v974 = vunpack.c.l.b16 %v332
    %v975 = vunpack.c.h.b16 %v332
    %v976 = vunpack.c.l.b16 %v333
    %v977 = vunpack.c.h.b16 %v333
    %v978 = vunpack.c.l.b16 %v334
    %v979 = vunpack.c.h.b16 %v334
    %v980 = vunpack.c.l.b16 %v335
    %v981 = vunpack.c.h.b16 %v335
    %v982 = vunpack.c.l.b16 %v336
    %v983 = vunpack.c.h.b16 %v336
    %v984 = vunpack.c.l.b16 %v337
    %v985 = vunpack.c.h.b16 %v337
    %v986 = vunpack.c.l.b16 %v338
    %v987 = vunpack.c.h.b16 %v338
    %v988 = vunpack.c.l.b16 %v339
    %v989 = vunpack.c.h.b16 %v339
    %v990 = vunpack.c.l.b16 %v340
    %v991 = vunpack.c.h.b16 %v340
    %v992 = vunpack.c.l.b16 %v341
    %v993 = vunpack.c.h.b16 %v341
    %v994 = vunpack.c.l.b16 %v342
    %v995 = vunpack.c.h.b16 %v342
    %v996 = vunpack.c.l.b16 %v343
    %v997 = vunpack.c.h.b16 %v343
    %v998 = vunpack.c.l.b16 %v344
    %v999 = vunpack.c.h.b16 %v344
    %v1000 = vunpack.c.l.b16 %v345
    %v1001 = vunpack.c.h.b16 %v345
    %v1002 = vunpack.c.l.b16 %v346
    %v1003 = vunpack.c.h.b16 %v346
    %v1004 = vunpack.c.l.b16 %v347
    %v1005 = vunpack.c.h.b16 %v347
    %v1006 = vunpack.c.l.b16 %v348
    %v1007 = vunpack.c.h.b16 %v348
    %v1008 = vunpack.c.l.b16 %v349
    %v1009 = vunpack.c.h.b16 %v349
    %v1010 = vunpack.c.l.b16 %v350
    %v1011 = vunpack.c.h.b16 %v350
    %v1012 = vunpack.c.l.b16 %v351
    %v1013 = vunpack.c.h.b16 %v351
    %v1014 = vunpack.c.l.b16 %v352
    %v1015 = vunpack.c.h.b16 %v352
    %v1016 = vunpack.c.l.b16 %v353
    %v1017 = vunpack.c.h.b16 %v353
    %v1018 = vunpack.c.l.b16 %v354
    %v1019 = vunpack.c.h.b16 %v354
    %v1020 = vunpack.c.l.b16 %v355
    %v1021 = vunpack.c.h.b16 %v355
    %v1022 = vunpack.c.l.b16 %v356
    %v1023 = vunpack.c.h.b16 %v356
    %v1024 = vunpack.c.l.b16 %v357
    %v1025 = vunpack.c.h.b16 %v357
    %v1026 = vunpack.c.l.b16 %v358
    %v1027 = vunpack.c.h.b16 %v358
    %v1028 = vunpack.c.l.b16 %v359
    %v1029 = vunpack.c.h.b16 %v359
    %v1030 = vunpack.c.l.b16 %v360
    %v1031 = vunpack.c.h.b16 %v360
    %v1032 = vunpack.c.l.b16 %v361
    %v1033 = vunpack.c.h.b16 %v361
    %v1034 = vunpack.c.l.b16 %v362
    %v1035 = vunpack.c.h.b16 %v362
    %v1036 = vunpack.c.l.b16 %v363
    %v1037 = vunpack.c.h.b16 %v363
    %v1038 = vunpack.c.l.b16 %v364
    %v1039 = vunpack.c.h.b16 %v364
    %v1040 = vunpack.c.l.b16 %v365
    %v1041 = vunpack.c.h.b16 %v365
    %v1042 = vunpack.c.l.b16 %v366
    %v1043 = vunpack.c.h.b16 %v366
    %v1044 = vunpack.c.l.b16 %v367
    %v1045 = vunpack.c.h.b16 %v367
    %v1046 = vunpack.c.l.b16 %v368
    %v1047 = vunpack.c.h.b16 %v368
    %v1048 = vunpack.c.l.b16 %v369
    %v1049 = vunpack.c.h.b16 %v369
    %v1050 = vunpack.c.l.b16 %v370
    %v1051 = vunpack.c.h.b16 %v370
    %v1052 = vunpack.c.l.b16 %v371
    %v1053 = vunpack.c.h.b16 %v371
    %v1054 = vunpack.c.l.b16 %v372
    %v1055 = vunpack.c.h.b16 %v372
    %v1056 = vunpack.c.l.b16 %v373
    %v1057 = vunpack.c.h.b16 %v373
    %v1058 = vunpack.c.l.b16 %v374
    %v1059 = vunpack.c.h.b16 %v374
    %v1060 = vunpack.c.l.b16 %v375
    %v1061 = vunpack.c.h.b16 %v375
    %v1062 = vunpack.c.l.b16 %v376
    %v1063 = vunpack.c.h.b16 %v376
    %v1064 = vunpack.c.l.b16 %v377
    %v1065 = vunpack.c.h.b16 %v377
    %v1066 = vunpack.c.l.b16 %v378
    %v1067 = vunpack.c.h.b16 %v378
    %v1068 = vunpack.c.l.b16 %v379
    %v1069 = vunpack.c.h.b16 %v379
    %v1070 = vunpack.c.l.b16 %v380
    %v1071 = vunpack.c.h.b16 %v380
    %v1072 = vunpack.c.l.b16 %v381
    %v1073 = vunpack.c.h.b16 %v381
    %v1074 = vunpack.c.l.b16 %v382
    %v1075 = vunpack.c.h.b16 %v382
    %v1076 = vunpack.c.l.b16 %v383
    %v1077 = vunpack.c.h.b16 %v383
    %v1078 = vunpack.c.l.b16 %v384
    %v1079 = vunpack.c.h.b16 %v384
    %v1080 = vunpack.c.l.b16 %v385
    %v1081 = vunpack.c.h.b16 %v385
    %v1082 = vunpack.c.l.b16 %v386
    %v1083 = vunpack.c.h.b16 %v386
    %v1084 = vunpack.c.l.b16 %v387
    %v1085 = vunpack.c.h.b16 %v387
    %v1086 = vunpack.c.l.b16 %v388
    %v1087 = vunpack.c.h.b16 %v388
    %v1088 = vunpack.c.l.b16 %v389
    %v1089 = vunpack.c.h.b16 %v389
    %v1090 = vunpack.c.l.b16 %v390
    %v1091 = vunpack.c.h.b16 %v390
    %v1092 = vunpack.c.l.b16 %v391
    %v1093 = vunpack.c.h.b16 %v391
    %v1094 = vunpack.c.l.b16 %v392
    %v1095 = vunpack.c.h.b16 %v392
    %v1096 = vunpack.c.l.b16 %v393
    %v1097 = vunpack.c.h.b16 %v393
    %v1098 = vunpack.c.l.b16 %v394
    %v1099 = vunpack.c.h.b16 %v394
    %v1100 = vunpack.c.l.b16 %v395
    %v1101 = vunpack.c.h.b16 %v395
    %v1102 = vunpack.c.l.b16 %v396
    %v1103 = vunpack.c.h.b16 %v396
    %v1104 = vunpack.c.l.b16 %v397
    %v1105 = vunpack.c.h.b16 %v397
    %v1106 = vunpack.c.l.b16 %v398
    %v1107 = vunpack.c.h.b16 %v398
    %v1108 = vunpack.c.l.b16 %v399
    %v1109 = vunpack.c.h.b16 %v399
    %v1110 = vunpack.c.l.b16 %v400
    %v1111 = vunpack.c.h.b16 %v400
    %v1112 = vunpack.c.l.b16 %v401
    %v1113 = vunpack.c.h.b16 %v401
    %v1114 = vunpack.c.l.b16 %v402
    %v1115 = vunpack.c.h.b16 %v402
    %v1116 = vunpack.c.l.b16 %v403
    %v1117 = vunpack.c.h.b16 %v403
    %v1118 = vunpack.c.l.b16 %v404
    %v1119 = vunpack.c.h.b16 %v404
    %v1120 = vunpack.c.l.b16 %v405
    %v1121 = vunpack.c.h.b16 %v405
    %v1122 = vunpack.c.l.b16 %v406
    %v1123 = vunpack.c.h.b16 %v406
    %v1124 = vunpack.c.l.b16 %v407
    %v1125 = vunpack.c.h.b16 %v407
    %v1126 = vunpack.c.l.b16 %v408
    %v1127 = vunpack.c.h.b16 %v408
    %v1128 = vunpack.c.l.b16 %v409
    %v1129 = vunpack.c.h.b16 %v409
    %v1130 = vunpack.c.l.b16 %v410
    %v1131 = vunpack.c.h.b16 %v410
    %v1132 = vunpack.c.l.b16 %v411
    %v1133 = vunpack.c.h.b16 %v411
    %v1134 = vunpack.c.l.b16 %v412
    %v1135 = vunpack.c.h.b16 %v412
    %v1136 = vunpack.c.l.b16 %v413
    %v1137 = vunpack.c.h.b16 %v413
    %v1138 = vunpack.c.l.b16 %v414
    %v1139 = vunpack.c.h.b16 %v414
    %v1140 = vunpack.c.l.b16 %v415
    %v1141 = vunpack.c.h.b16 %v415
    %v1142 = vunpack.c.l.b16 %v416
    %v1143 = vunpack.c.h.b16 %v416
    %v1144 = vunpack.c.l.b16 %v417
    %v1145 = vunpack.c.h.b16 %v417
    %v1146 = vunpack.c.l.b16 %v418
    %v1147 = vunpack.c.h.b16 %v418
    %v1148 = vunpack.c.l.b16 %v419
    %v1149 = vunpack.c.h.b16 %v419
    %v1150 = vunpack.c.l.b16 %v420
    %v1151 = vunpack.c.h.b16 %v420
    %v1152 = vunpack.c.l.b16 %v421
    %v1153 = vunpack.c.h.b16 %v421
    %v1154 = vunpack.c.l.b16 %v422
    %v1155 = vunpack.c.h.b16 %v422
    %v1156 = vunpack.c.l.b16 %v423
    %v1157 = vunpack.c.h.b16 %v423
    %v1158 = vunpack.c.l.b16 %v424
    %v1159 = vunpack.c.h.b16 %v424
    %v1160 = vunpack.c.l.b16 %v425
    %v1161 = vunpack.c.h.b16 %v425
    %v1162 = vunpack.c.l.b16 %v426
    %v1163 = vunpack.c.h.b16 %v426
    %v1164 = vunpack.c.l.b16 %v427
    %v1165 = vunpack.c.h.b16 %v427
    %v1166 = vunpack.c.l.b16 %v428
    %v1167 = vunpack.c.h.b16 %v428
    %v1168 = vunpack.c.l.b16 %v429
    %v1169 = vunpack.c.h.b16 %v429
    %v1170 = vunpack.c.l.b16 %v430
    %v1171 = vunpack.c.h.b16 %v430
    %v1172 = vunpack.c.l.b16 %v431
    %v1173 = vunpack.c.h.b16 %v431
    %v1174 = vunpack.c.l.b16 %v432
    %v1175 = vunpack.c.h.b16 %v432
    %v1176 = vunpack.c.l.b16 %v433
    %v1177 = vunpack.c.h.b16 %v433
    %v1178 = vunpack.c.l.b16 %v434
    %v1179 = vunpack.c.h.b16 %v434
    %v1180 = vunpack.c.l.b16 %v435
    %v1181 = vunpack.c.h.b16 %v435
    %v1182 = vunpack.c.l.b16 %v436
    %v1183 = vunpack.c.h.b16 %v436
    %v1184 = vunpack.c.l.b16 %v437
    %v1185 = vunpack.c.h.b16 %v437
    %v1186 = vunpack.c.l.b16 %v438
    %v1187 = vunpack.c.h.b16 %v438
    %v1188 = vunpack.c.l.b16 %v439
    %v1189 = vunpack.c.h.b16 %v439
    %v1190 = vunpack.c.l.b16 %v440
    %v1191 = vunpack.c.h.b16 %v440
    %v1192 = vunpack.c.l.b16 %v441
    %v1193 = vunpack.c.h.b16 %v441
    %v1194 = vunpack.c.l.b16 %v442
    %v1195 = vunpack.c.h.b16 %v442
    %v1196 = vunpack.c.l.b16 %v443
    %v1197 = vunpack.c.h.b16 %v443
    %v1198 = vunpack.c.l.b16 %v444
    %v1199 = vunpack.c.h.b16 %v444
    %v1200 = vunpack.c.l.b16 %v445
    %v1201 = vunpack.c.h.b16 %v445
    %v1202 = vunpack.c.l.b16 %v446
    %v1203 = vunpack.c.h.b16 %v446
    %v1204 = vunpack.c.l.b16 %v447
    %v1205 = vunpack.c.h.b16 %v447
    %v1206 = vunpack.c.l.b16 %v448
    %v1207 = vunpack.c.h.b16 %v448
    %v1208 = vunpack.c.l.b16 %v449
    %v1209 = vunpack.c.h.b16 %v449
    %v1210 = vunpack.c.l.b16 %v450
    %v1211 = vunpack.c.h.b16 %v450
    %v1212 = vunpack.c.l.b16 %v451
    %v1213 = vunpack.c.h.b16 %v451
    %v1214 = vunpack.c.l.b16 %v452
    %v1215 = vunpack.c.h.b16 %v452
    %v1216 = vunpack.c.l.b16 %v453
    %v1217 = vunpack.c.h.b16 %v453
    %v1218 = vunpack.c.l.b16 %v454
    %v1219 = vunpack.c.h.b16 %v454
    %v1220 = vunpack.c.l.b16 %v455
    %v1221 = vunpack.c.h.b16 %v455
    %v1222 = vunpack.c.l.b16 %v456
    %v1223 = vunpack.c.h.b16 %v456
    %v1224 = vunpack.c.l.b16 %v457
    %v1225 = vunpack.c.h.b16 %v457
    %v1226 = vunpack.c.l.b16 %v458
    %v1227 = vunpack.c.h.b16 %v458
    %v1228 = vunpack.c.l.b16 %v459
    %v1229 = vunpack.c.h.b16 %v459
    %v1230 = vunpack.c.l.b16 %v460
    %v1231 = vunpack.c.h.b16 %v460
    %v1232 = vunpack.c.l.b16 %v461
    %v1233 = vunpack.c.h.b16 %v461
    %v1234 = vunpack.c.l.b16 %v462
    %v1235 = vunpack.c.h.b16 %v462
    %v1236 = vunpack.c.l.b16 %v463
    %v1237 = vunpack.c.h.b16 %v463
    %v1238 = vunpack.c.l.b16 %v464
    %v1239 = vunpack.c.h.b16 %v464
    %v1240 = vunpack.c.l.b16 %v465
    %v1241 = vunpack.c.h.b16 %v465
    %v1242 = vunpack.c.l.b16 %v466
    %v1243 = vunpack.c.h.b16 %v466
    %v1244 = vunpack.c.l.b16 %v467
    %v1245 = vunpack.c.h.b16 %v467
    %v1246 = vunpack.c.l.b16 %v468
    %v1247 = vunpack.c.h.b16 %v468
    %v1248 = vunpack.c.l.b16 %v469
    %v1249 = vunpack.c.h.b16 %v469
    %v1250 = vunpack.c.l.b16 %v470
    %v1251 = vunpack.c.h.b16 %v470
    %v1252 = vunpack.c.l.b16 %v471
    %v1253 = vunpack.c.h.b16 %v471
    %v1254 = vunpack.c.l.b16 %v472
    %v1255 = vunpack.c.h.b16 %v472
    %v1256 = vunpack.c.l.b16 %v473
    %v1257 = vunpack.c.h.b16 %v473
    %v1258 = vunpack.c.l.b16 %v474
    %v1259 = vunpack.c.h.b16 %v474
    %v1260 = vunpack.c.l.b16 %v475
    %v1261 = vunpack.c.h.b16 %v475
    %v1262 = vunpack.c.l.b16 %v476
    %v1263 = vunpack.c.h.b16 %v476
    %v1264 = vunpack.c.l.b16 %v477
    %v1265 = vunpack.c.h.b16 %v477
    %v1266 = vunpack.c.l.b16 %v478
    %v1267 = vunpack.c.h.b16 %v478
    %v1268 = vunpack.c.l.b16 %v479
    %v1269 = vunpack.c.h.b16 %v479
    %v1270 = vunpack.c.l.b16 %v480
    %v1271 = vunpack.c.h.b16 %v480
    %v1272 = vunpack.c.l.b16 %v481
    %v1273 = vunpack.c.h.b16 %v481
    %v1274 = vunpack.c.l.b16 %v482
    %v1275 = vunpack.c.h.b16 %v482
    %v1276 = vunpack.c.l.b16 %v483
    %v1277 = vunpack.c.h.b16 %v483
    %v1278 = vunpack.c.l.b16 %v484
    %v1279 = vunpack.c.h.b16 %v484
    %v1280 = vunpack.c.l.b16 %v485
    %v1281 = vunpack.c.h.b16 %v485
    %v1282 = vunpack.c.l.b16 %v486
    %v1283 = vunpack.c.h.b16 %v486
    %v1284 = vunpack.c.l.b16 %v487
    %v1285 = vunpack.c.h.b16 %v487
    %v1286 = vunpack.c.l.b16 %v488
    %v1287 = vunpack.c.h.b16 %v488
    %v1288 = vunpack.c.l.b16 %v489
    %v1289 = vunpack.c.h.b16 %v489
    %v1290 = vunpack.c.l.b16 %v490
    %v1291 = vunpack.c.h.b16 %v490
    %v1292 = vunpack.c.l.b16 %v491
    %v1293 = vunpack.c.h.b16 %v491
    %v1294 = vunpack.c.l.b16 %v492
    %v1295 = vunpack.c.h.b16 %v492
    %v1296 = vunpack.c.l.b16 %v493
    %v1297 = vunpack.c.h.b16 %v493
    %v1298 = vunpack.c.l.b16 %v494
    %v1299 = vunpack.c.h.b16 %v494
    %v1300 = vunpack.c.l.b16 %v495
    %v1301 = vunpack.c.h.b16 %v495
    %v1302 = vunpack.c.l.b16 %v496
    %v1303 = vunpack.c.h.b16 %v496
    %v1304 = vunpack.c.l.b16 %v497
    %v1305 = vunpack.c.h.b16 %v497
    %v1306 = vunpack.c.l.b16 %v498
    %v1307 = vunpack.c.h.b16 %v498
    %v1308 = vunpack.c.l.b16 %v499
    %v1309 = vunpack.c.h.b16 %v499
    %v1310 = vunpack.c.l.b16 %v500
    %v1311 = vunpack.c.h.b16 %v500
    %v1312 = vunpack.c.l.b16 %v501
    %v1313 = vunpack.c.h.b16 %v501
    %v1314 = vunpack.c.l.b16 %v502
    %v1315 = vunpack.c.h.b16 %v502
    %v1316 = vunpack.c.l.b16 %v503
    %v1317 = vunpack.c.h.b16 %v503
    %v1318 = vunpack.c.l.b16 %v504
    %v1319 = vunpack.c.h.b16 %v504
    %v1320 = vunpack.c.l.b16 %v505
    %v1321 = vunpack.c.h.b16 %v505
    %v1322 = vunpack.c.l.b16 %v506
    %v1323 = vunpack.c.h.b16 %v506
    %v1324 = vunpack.c.l.b16 %v507
    %v1325 = vunpack.c.h.b16 %v507
    %v1326 = vunpack.c.l.b16 %v508
    %v1327 = vunpack.c.h.b16 %v508
    %v1328 = vunpack.c.l.b16 %v509
    %v1329 = vunpack.c.h.b16 %v509
    %v1330 = vunpack.c.l.b16 %v510
    %v1331 = vunpack.c.h.b16 %v510
    %v1332 = vunpack.c.l.b16 %v511
    %v1333 = vunpack.c.h.b16 %v511
    %v1334 = vunpack.c.l.b16 %v512
    %v1335 = vunpack.c.h.b16 %v512
    %v1336 = vunpack.c.l.b16 %v513
    %v1337 = vunpack.c.h.b16 %v513
    %v1338 = vunpack.c.l.b16 %v514
    %v1339 = vunpack.c.h.b16 %v514
    %v1340 = vunpack.c.l.b16 %v515
    %v1341 = vunpack.c.h.b16 %v515
    %v1342 = vunpack.c.l.b16 %v516
    %v1343 = vunpack.c.h.b16 %v516
    %v1344 = vunpack.c.l.b16 %v517
    %v1345 = vunpack.c.h.b16 %v517
    %v1346 = vunpack.c.l.b16 %v518
    %v1347 = vunpack.c.h.b16 %v518
    %v1348 = vunpack.c.l.b16 %v519
    %v1349 = vunpack.c.h.b16 %v519
    %v1350 = vunpack.c.l.b16 %v520
    %v1351 = vunpack.c.h.b16 %v520
    %v1352 = vunpack.c.l.b16 %v521
    %v1353 = vunpack.c.h.b16 %v521
    %v1354 = vunpack.c.l.b16 %v522
    %v1355 = vunpack.c.h.b16 %v522
    %v1356 = vunpack.c.l.b16 %v523
    %v1357 = vunpack.c.h.b16 %v523
    %v1358 = vunpack.c.l.b16 %v524
    %v1359 = vunpack.c.h.b16 %v524
    %v1360 = vunpack.c.l.b16 %v525
    %v1361 = vunpack.c.h.b16 %v525
    %v1362 = vunpack.c.l.b16 %v526
    %v1363 = vunpack.c.h.b16 %v526
    %v1364 = vunpack.c.l.b16 %v527
    %v1365 = vunpack.c.h.b16 %v527
    %v1366 = vunpack.c.l.b16 %v528
    %v1367 = vunpack.c.h.b16 %v528
    %v1368 = vunpack.c.l.b16 %v529
    %v1369 = vunpack.c.h.b16 %v529
    %v1370 = vunpack.c.l.b16 %v530
    %v1371 = vunpack.c.h.b16 %v530
    %v1372 = vunpack.c.l.b16 %v531
    %v1373 = vunpack.c.h.b16 %v531
    %v1374 = vunpack.c.l.b16 %v532
    %v1375 = vunpack.c.h.b16 %v532
    %v1376 = vunpack.c.l.b16 %v533
    %v1377 = vunpack.c.h.b16 %v533
    %v1378 = vunpack.c.l.b16 %v534
    %v1379 = vunpack.c.h.b16 %v534
    %v1380 = vunpack.c.l.b16 %v535
    %v1381 = vunpack.c.h.b16 %v535
    %v1382 = vunpack.c.l.b16 %v536
    %v1383 = vunpack.c.h.b16 %v536
    %v1384 = vunpack.c.l.b16 %v537
    %v1385 = vunpack.c.h.b16 %v537
    %v1386 = vunpack.c.l.b16 %v538
    %v1387 = vunpack.c.h.b16 %v538
    %v1388 = vunpack.c.l.b16 %v539
    %v1389 = vunpack.c.h.b16 %v539
    %v1390 = vunpack.c.l.b16 %v540
    %v1391 = vunpack.c.h.b16 %v540
    %v1392 = vunpack.c.l.b16 %v541
    %v1393 = vunpack.c.h.b16 %v541
    %v1394 = vpack.c.b16 %v898, %v882
    %v1395 = vpack.c.b16 %v899, %v883
    %v1396 = vpack.c.b16 %v900, %v884
    %v1397 = vpack.c.b16 %v901, %v885
    %v1398 = vpack.c.b16 %v902, %v886
    %v1399 = vpack.c.b16 %v903, %v887
    %v1400 = vpack.c.b16 %v904, %v888
    %v1401 = vpack.c.b16 %v905, %v889
    %v1402 = vpack.c.b16 %v906, %v890
    %v1403 = vpack.c.b16 %v907, %v891
    %v1404 = vpack.c.b16 %v908, %v892
    %v1405 = vpack.c.b16 %v909, %v893
    %v1406 = vpack.c.b16 %v910, %v894
    %v1407 = vpack.c.b16 %v911, %v895
    %v1408 = vpack.c.b16 %v912, %v896
    %v1409 = vpack.c.b16 %v913, %v897
    %v1410 = vpack.c.b16 %v930, %v914
    %v1411 = vpack.c.b16 %v931, %v915
    %v1412 = vpack.c.b16 %v932, %v916
    %v1413 = vpack.c.b16 %v933, %v917
    %v1414 = vpack.c.b16 %v934, %v918
    %v1415 = vpack.c.b16 %v935, %v919
    %v1416 = vpack.c.b16 %v936, %v920
    %v1417 = vpack.c.b16 %v937, %v921
    %v1418 = vpack.c.b16 %v938, %v922
    %v1419 = vpack.c.b16 %v939, %v923
    %v1420 = vpack.c.b16 %v940, %v924
    %v1421 = vpack.c.b16 %v941, %v925
    %v1422 = vpack.c.b16 %v942, %v926
    %v1423 = vpack.c.b16 %v943, %v927
    %v1424 = vpack.c.b16 %v944, %v928
    %v1425 = vpack.c.b16 %v945, %v929
    %v1426 = vpack.c.b16 %v962, %v946
    %v1427 = vpack.c.b16 %v963, %v947
    %v1428 = vpack.c.b16 %v964, %v948
    %v1429 = vpack.c.b16 %v965, %v949
    %v1430 = vpack.c.b16 %v966, %v950
    %v1431 = vpack.c.b16 %v967, %v951
    %v1432 = vpack.c.b16 %v968, %v952
    %v1433 = vpack.c.b16 %v969, %v953
    %v1434 = vpack.c.b16 %v970, %v954
    %v1435 = vpack.c.b16 %v971, %v955
    %v1436 = vpack.c.b16 %v972, %v956
    %v1437 = vpack.c.b16 %v973, %v957
    %v1438 = vpack.c.b16 %v974, %v958
    %v1439 = vpack.c.b16 %v975, %v959
    %v1440 = vpack.c.b16 %v976, %v960
    %v1441 = vpack.c.b16 %v977, %v961
    %v1442 = vpack.c.b16 %v994, %v978
    %v1443 = vpack.c.b16 %v995, %v979
    %v1444 = vpack.c.b16 %v996, %v980
    %v1445 = vpack.c.b16 %v997, %v981
    %v1446 = vpack.c.b16 %v998, %v982
    %v1447 = vpack.c.b16 %v999, %v983
    %v1448 = vpack.c.b16 %v1000, %v984
    %v1449 = vpack.c.b16 %v1001, %v985
    %v1450 = vpack.c.b16 %v1002, %v986
    %v1451 = vpack.c.b16 %v1003, %v987
    %v1452 = vpack.c.b16 %v1004, %v988
    %v1453 = vpack.c.b16 %v1005, %v989
    %v1454 = vpack.c.b16 %v1006, %v990
    %v1455 = vpack.c.b16 %v1007, %v991
    %v1456 = vpack.c.b16 %v1008, %v992
    %v1457 = vpack.c.b16 %v1009, %v993
    %v1458 = vpack.c.b16 %v1026, %v1010
    %v1459 = vpack.c.b16 %v1027, %v1011
    %v1460 = vpack.c.b16 %v1028, %v1012
    %v1461 = vpack.c.b16 %v1029, %v1013
    %v1462 = vpack.c.b16 %v1030, %v1014
    %v1463 = vpack.c.b16 %v1031, %v1015
    %v1464 = vpack.c.b16 %v1032, %v1016
    %v1465 = vpack.c.b16 %v1033, %v1017
    %v1466 = vpack.c.b16 %v1034, %v1018
    %v1467 = vpack.c.b16 %v1035, %v1019
    %v1468 = vpack.c.b16 %v1036, %v1020
    %v1469 = vpack.c.b16 %v1037, %v1021
    %v1470 = vpack.c.b16 %v1038, %v1022
    %v1471 = vpack.c.b16 %v1039, %v1023
    %v1472 = vpack.c.b16 %v1040, %v1024
    %v1473 = vpack.c.b16 %v1041, %v1025
    %v1474 = vpack.c.b16 %v1058, %v1042
    %v1475 = vpack.c.b16 %v1059, %v1043
    %v1476 = vpack.c.b16 %v1060, %v1044
    %v1477 = vpack.c.b16 %v1061, %v1045
    %v1478 = vpack.c.b16 %v1062, %v1046
    %v1479 = vpack.c.b16 %v1063, %v1047
    %v1480 = vpack.c.b16 %v1064, %v1048
    %v1481 = vpack.c.b16 %v1065, %v1049
    %v1482 = vpack.c.b16 %v1066, %v1050
    %v1483 = vpack.c.b16 %v1067, %v1051
    %v1484 = vpack.c.b16 %v1068, %v1052
    %v1485 = vpack.c.b16 %v1069, %v1053
    %v1486 = vpack.c.b16 %v1070, %v1054
    %v1487 = vpack.c.b16 %v1071, %v1055
    %v1488 = vpack.c.b16 %v1072, %v1056
    %v1489 = vpack.c.b16 %v1073, %v1057
    %v1490 = vpack.c.b16 %v1090, %v1074
    %v1491 = vpack.c.b16 %v1091, %v1075
    %v1492 = vpack.c.b16 %v1092, %v1076
    %v1493 = vpack.c.b16 %v1093, %v1077
    %v1494 = vpack.c.b16 %v1094, %v1078
    %v1495 = vpack.c.b16 %v1095, %v1079
    %v1496 = vpack.c.b16 %v1096, %v1080
    %v1497 = vpack.c.b16 %v1097, %v1081
    %v1498 = vpack.c.b16 %v1098, %v1082
    %v1499 = vpack.c.b16 %v1099, %v1083
    %v1500 = vpack.c.b16 %v1100, %v1084
    %v1501 = vpack.c.b16 %v1101, %v1085
    %v1502 = vpack.c.b16 %v1102, %v1086
    %v1503 = vpack.c.b16 %v1103, %v1087
    %v1504 = vpack.c.b16 %v1104, %v1088
    %v1505 = vpack.c.b16 %v1105, %v1089
    %v1506 = vpack.c.b16 %v1122, %v1106
    %v1507 = vpack.c.b16 %v1123, %v1107
    %v1508 = vpack.c.b16 %v1124, %v1108
    %v1509 = vpack.c.b16 %v1125, %v1109
    %v1510 = vpack.c.b16 %v1126, %v1110
    %v1511 = vpack.c.b16 %v1127, %v1111
    %v1512 = vpack.c.b16 %v1128, %v1112
    %v1513 = vpack.c.b16 %v1129, %v1113
    %v1514 = vpack.c.b16 %v1130, %v1114
    %v1515 = vpack.c.b16 %v1131, %v1115
    %v1516 = vpack.c.b16 %v1132, %v1116
    %v1517 = vpack.c.b16 %v1133, %v1117
    %v1518 = vpack.c.b16 %v1134, %v1118
    %v1519 = vpack.c.b16 %v1135, %v1119
    %v1520 = vpack.c.b16 %v1136, %v1120
    %v1521 = vpack.c.b16 %v1137, %v1121
    %v1522 = vpack.c.b16 %v1154, %v1138
    %v1523 = vpack.c.b16 %v1155, %v1139
    %v1524 = vpack.c.b16 %v1156, %v1140
    %v1525 = vpack.c.b16 %v1157, %v1141
    %v1526 = vpack.c.b16 %v1158, %v1142
    %v1527 = vpack.c.b16 %v1159, %v1143
    %v1528 = vpack.c.b16 %v1160, %v1144
    %v1529 = vpack.c.b16 %v1161, %v1145
    %v1530 = vpack.c.b16 %v1162, %v1146
    %v1531 = vpack.c.b16 %v1163, %v1147
    %v1532 = vpack.c.b16 %v1164, %v1148
    %v1533 = vpack.c.b16 %v1165, %v1149
    %v1534 = vpack.c.b16 %v1166, %v1150
    %v1535 = vpack.c.b16 %v1167, %v1151
    %v1536 = vpack.c.b16 %v1168, %v1152
    %v1537 = vpack.c.b16 %v1169, %v1153
    %v1538 = vpack.c.b16 %v1186, %v1170
    %v1539 = vpack.c.b16 %v1187, %v1171
    %v1540 = vpack.c.b16 %v1188, %v1172
    %v1541 = vpack.c.b16 %v1189, %v1173
    %v1542 = vpack.c.b16 %v1190, %v1174
    %v1543 = vpack.c.b16 %v1191, %v1175
    %v1544 = vpack.c.b16 %v1192, %v1176
    %v1545 = vpack.c.b16 %v1193, %v1177
    %v1546 = vpack.c.b16 %v1194, %v1178
    %v1547 = vpack.c.b16 %v1195, %v1179
    %v1548 = vpack.c.b16 %v1196, %v1180
    %v1549 = vpack.c.b16 %v1197, %v1181
    %v1550 = vpack.c.b16 %v1198, %v1182
    %v1551 = vpack.c.b16 %v1199, %v1183
    %v1552 = vpack.c.b16 %v1200, %v1184
    %v1553 = vpack.c.b16 %v1201, %v1185
    %v1554 = vpack.c.b16 %v1218, %v1202
    %v1555 = vpack.c.b16 %v1219, %v1203
    %v1556 = vpack.c.b16 %v1220, %v1204
    %v1557 = vpack.c.b16 %v1221, %v1205
    %v1558 = vpack.c.b16 %v1222, %v1206
    %v1559 = vpack.c.b16 %v1223, %v1207
    %v1560 = vpack.c.b16 %v1224, %v1208
    %v1561 = vpack.c.b16 %v1225, %v1209
    %v1562 = vpack.c.b16 %v1226, %v1210
    %v1563 = vpack.c.b16 %v1227, %v1211
    %v1564 = vpack.c.b16 %v1228, %v1212
    %v1565 = vpack.c.b16 %v1229, %v1213
    %v1566 = vpack.c.b16 %v1230, %v1214
    %v1567 = vpack.c.b16 %v1231, %v1215
    %v1568 = vpack.c.b16 %v1232, %v1216
    %v1569 = vpack.c.b16 %v1233, %v1217
    %v1570 = vpack.c.b16 %v1250, %v1234
    %v1571 = vpack.c.b16 %v1251, %v1235
    %v1572 = vpack.c.b16 %v1252, %v1236
    %v1573 = vpack.c.b16 %v1253, %v1237
    %v1574 = vpack.c.b16 %v1254, %v1238
    %v1575 = vpack.c.b16 %v1255, %v1239
    %v1576 = vpack.c.b16 %v1256, %v1240
    %v1577 = vpack.c.b16 %v1257, %v1241
    %v1578 = vpack.c.b16 %v1258, %v1242
    %v1579 = vpack.c.b16 %v1259, %v1243
    %v1580 = vpack.c.b16 %v1260, %v1244
    %v1581 = vpack.c.b16 %v1261, %v1245
    %v1582 = vpack.c.b16 %v1262, %v1246
    %v1583 = vpack.c.b16 %v1263, %v1247
    %v1584 = vpack.c.b16 %v1264, %v1248
    %v1585 = vpack.c.b16 %v1265, %v1249
    %v1586 = vpack.c.b16 %v1282, %v1266
    %v1587 = vpack.c.b16 %v1283, %v1267
    %v1588 = vpack.c.b16 %v1284, %v1268
    %v1589 = vpack.c.b16 %v1285, %v1269
    %v1590 = vpack.c.b16 %v1286, %v1270
    %v1591 = vpack.c.b16 %v1287, %v1271
    %v1592 = vpack.c.b16 %v1288, %v1272
    %v1593 = vpack.c.b16 %v1289, %v1273
    %v1594 = vpack.c.b16 %v1290, %v1274
    %v1595 = vpack.c.b16 %v1291, %v1275
    %v1596 = vpack.c.b16 %v1292, %v1276
    %v1597 = vpack.c.b16 %v1293, %v1277
    %v1598 = vpack.c.b16 %v1294, %v1278
    %v1599 = vpack.c.b16 %v1295, %v1279
    %v1600 = vpack.c.b16 %v1296, %v1280
    %v1601 = vpack.c.b16 %v1297, %v1281
    %v1602 = vpack.c.b16 %v1314, %v1298
    %v1603 = vpack.c.b16 %v1315, %v1299
    %v1604 = vpack.c.b16 %v1316, %v1300
    %v1605 = vpack.c.b16 %v1317, %v1301
    %v1606 = vpack.c.b16 %v1318, %v1302
    %v1607 = vpack.c.b16 %v1319, %v1303
    %v1608 = vpack.c.b16 %v1320, %v1304
    %v1609 = vpack.c.b16 %v1321, %v1305
    %v1610 = vpack.c.b16 %v1322, %v1306
    %v1611 = vpack.c.b16 %v1323, %v1307
    %v1612 = vpack.c.b16 %v1324, %v1308
    %v1613 = vpack.c.b16 %v1325, %v1309
    %v1614 = vpack.c.b16 %v1326, %v1310
    %v1615 = vpack.c.b16 %v1327, %v1311
    %v1616 = vpack.c.b16 %v1328, %v1312
    %v1617 = vpack.c.b16 %v1329, %v1313
    %v1618 = vpack.c.b16 %v1346, %v1330
    %v1619 = vpack.c.b16 %v1347, %v1331
    %v1620 = vpack.c.b16 %v1348, %v1332
    %v1621 = vpack.c.b16 %v1349, %v1333
    %v1622 = vpack.c.b16 %v1350, %v1334
    %v1623 = vpack.c.b16 %v1351, %v1335
    %v1624 = vpack.c.b16 %v1352, %v1336
    %v1625 = vpack.c.b16 %v1353, %v1337
    %v1626 = vpack.c.b16 %v1354, %v1338
    %v1627 = vpack.c.b16 %v1355, %v1339
    %v1628 = vpack.c.b16 %v1356, %v1340
    %v1629 = vpack.c.b16 %v1357, %v1341
    %v1630 = vpack.c.b16 %v1358, %v1342
    %v1631 = vpack.c.b16 %v1359, %v1343
    %v1632 = vpack.c.b16 %v1360, %v1344
    %v1633 = vpack.c.b16 %v1361, %v1345
    %v1634 = vpack.c.b16 %v1378, %v1362
    %v1635 = vpack.c.b16 %v1379, %v1363
    %v1636 = vpack.c.b16 %v1380, %v1364
    %v1637 = vpack.c.b16 %v1381, %v1365
    %v1638 = vpack.c.b16 %v1382, %v1366
    %v1639 = vpack.c.b16 %v1383, %v1367
    %v1640 = vpack.c.b16 %v1384, %v1368
    %v1641 = vpack.c.b16 %v1385, %v1369
    %v1642 = vpack.c.b16 %v1386, %v1370
    %v1643 = vpack.c.b16 %v1387, %v1371
    %v1644 = vpack.c.b16 %v1388, %v1372
    %v1645 = vpack.c.b16 %v1389, %v1373
    %v1646 = vpack.c.b16 %v1390, %v1374
    %v1647 = vpack.c.b16 %v1391, %v1375
    %v1648 = vpack.c.b16 %v1392, %v1376
    %v1649 = vpack.c.b16 %v1393, %v1377
    %1906 = vmatprep.subr.bf16.mxu0 %v1395
    %1907 = vmatpush1.bf16.msra.mxu0 %v1394
    %1908 = vmatprep.subr.bf16.mxu0 %v1411
    %1909 = vmatpush1.bf16.msra.mxu0 %v1410
    %1910 = vmatprep.subr.bf16.mxu0 %v1427
    %1911 = vmatpush1.bf16.msra.mxu0 %v1426
    %1912 = vmatprep.subr.bf16.mxu0 %v1443
    %1913 = vmatpush1.bf16.msra.mxu0 %v1442
    %1914 = vmatprep.subr.bf16.mxu0 %v1459
    %1915 = vmatpush1.bf16.msra.mxu0 %v1458
    %1916 = vmatprep.subr.bf16.mxu0 %v1475
    %1917 = vmatpush1.bf16.msra.mxu0 %v1474
    %1918 = vmatprep.subr.bf16.mxu0 %v1491
    %1919 = vmatpush1.bf16.msra.mxu0 %v1490
    %1920 = vmatprep.subr.bf16.mxu0 %v1507
    %1921 = vmatpush1.bf16.msra.mxu0 %v1506
    %1922 = vmatprep.subr.bf16.mxu0 %v1523
    %1923 = vmatpush1.bf16.msra.mxu0 %v1522
    %1924 = vmatprep.subr.bf16.mxu0 %v1539
    %1925 = vmatpush1.bf16.msra.mxu0 %v1538
    %1926 = vmatprep.subr.bf16.mxu0 %v1555
    %1927 = vmatpush1.bf16.msra.mxu0 %v1554
    %1928 = vmatprep.subr.bf16.mxu0 %v1571
    %1929 = vmatpush1.bf16.msra.mxu0 %v1570
    %1930 = vmatprep.subr.bf16.mxu0 %v1587
    %1931 = vmatpush1.bf16.msra.mxu0 %v1586
    %1932 = vmatprep.subr.bf16.mxu0 %v1603
    %1933 = vmatpush1.bf16.msra.mxu0 %v1602
    %1934 = vmatprep.subr.bf16.mxu0 %v1619
    %1935 = vmatpush1.bf16.msra.mxu0 %v1618
    %1936 = vmatprep.subr.bf16.mxu0 %v1635
    %1937 = vmatpush1.bf16.msra.mxu0 %v1634
    %1938 = vmatprep.mubr.bf16.mxu0 %v285
    %1939 = vmatmul.mubr.bf16.gmra.mrb[0].mxu0 %v284
    %v1940 = vpop.f32.mrb[0].mxu0
    %v1941 = vadd.f32 %v549, %v1940
    %v1942 = vpop.f32.mrb[0].mxu0
    %v1943 = vadd.f32 %v553, %v1942
    %v1944 = vpop.f32.mrb[0].mxu0
    %v1945 = vpop.f32.mrb[0].mxu0
    %1946 = vdwg.mxu0
    %1947 = vmatprep.subr.bf16.mxu0 %v1397
    %1948 = vmatpush1.bf16.msra.mxu0 %v1396
    %1949 = vmatprep.subr.bf16.mxu0 %v1413
    %1950 = vmatpush1.bf16.msra.mxu0 %v1412
    %1951 = vmatprep.subr.bf16.mxu0 %v1429
    %1952 = vmatpush1.bf16.msra.mxu0 %v1428
    %1953 = vmatprep.subr.bf16.mxu0 %v1445
    %1954 = vmatpush1.bf16.msra.mxu0 %v1444
    %1955 = vmatprep.subr.bf16.mxu0 %v1461
    %1956 = vmatpush1.bf16.msra.mxu0 %v1460
    %1957 = vmatprep.subr.bf16.mxu0 %v1477
    %1958 = vmatpush1.bf16.msra.mxu0 %v1476
    %1959 = vmatprep.subr.bf16.mxu0 %v1493
    %1960 = vmatpush1.bf16.msra.mxu0 %v1492
    %1961 = vmatprep.subr.bf16.mxu0 %v1509
    %1962 = vmatpush1.bf16.msra.mxu0 %v1508
    %1963 = vmatprep.subr.bf16.mxu0 %v1525
    %1964 = vmatpush1.bf16.msra.mxu0 %v1524
    %1965 = vmatprep.subr.bf16.mxu0 %v1541
    %1966 = vmatpush1.bf16.msra.mxu0 %v1540
    %1967 = vmatprep.subr.bf16.mxu0 %v1557
    %1968 = vmatpush1.bf16.msra.mxu0 %v1556
    %1969 = vmatprep.subr.bf16.mxu0 %v1573
    %1970 = vmatpush1.bf16.msra.mxu0 %v1572
    %1971 = vmatprep.subr.bf16.mxu0 %v1589
    %1972 = vmatpush1.bf16.msra.mxu0 %v1588
    %1973 = vmatprep.subr.bf16.mxu0 %v1605
    %1974 = vmatpush1.bf16.msra.mxu0 %v1604
    %1975 = vmatprep.subr.bf16.mxu0 %v1621
    %1976 = vmatpush1.bf16.msra.mxu0 %v1620
    %1977 = vmatprep.subr.bf16.mxu0 %v1637
    %1978 = vmatpush1.bf16.msra.mxu0 %v1636
    %1979 = vmatprep.mubr.bf16.mxu0 %v285
    %1980 = vmatmul.mubr.bf16.gmra.mrb[0].mxu0 %v284
    %v1981 = vpop.f32.mrb[0].mxu0
    %v1982 = vadd.f32 %v557, %v1981
    %v1983 = vpop.f32.mrb[0].mxu0
    %v1984 = vadd.f32 %v561, %v1983
    %v1985 = vpop.f32.mrb[0].mxu0
    %v1986 = vpop.f32.mrb[0].mxu0
    %1987 = vdwg.mxu0
    %1988 = vmatprep.subr.bf16.mxu0 %v1399
    %1989 = vmatpush1.bf16.msra.mxu0 %v1398
    %1990 = vmatprep.subr.bf16.mxu0 %v1415
    %1991 = vmatpush1.bf16.msra.mxu0 %v1414
    %1992 = vmatprep.subr.bf16.mxu0 %v1431
    %1993 = vmatpush1.bf16.msra.mxu0 %v1430
    %1994 = vmatprep.subr.bf16.mxu0 %v1447
    %1995 = vmatpush1.bf16.msra.mxu0 %v1446
    %1996 = vmatprep.subr.bf16.mxu0 %v1463
    %1997 = vmatpush1.bf16.msra.mxu0 %v1462
    %1998 = vmatprep.subr.bf16.mxu0 %v1479
    %1999 = vmatpush1.bf16.msra.mxu0 %v1478
    %2000 = vmatprep.subr.bf16.mxu0 %v1495
    %2001 = vmatpush1.bf16.msra.mxu0 %v1494
    %2002 = vmatprep.subr.bf16.mxu0 %v1511
    %2003 = vmatpush1.bf16.msra.mxu0 %v1510
    %2004 = vmatprep.subr.bf16.mxu0 %v1527
    %2005 = vmatpush1.bf16.msra.mxu0 %v1526
    %2006 = vmatprep.subr.bf16.mxu0 %v1543
    %2007 = vmatpush1.bf16.msra.mxu0 %v1542
    %2008 = vmatprep.subr.bf16.mxu0 %v1559
    %2009 = vmatpush1.bf16.msra.mxu0 %v1558
    %2010 = vmatprep.subr.bf16.mxu0 %v1575
    %2011 = vmatpush1.bf16.msra.mxu0 %v1574
    %2012 = vmatprep.subr.bf16.mxu0 %v1591
    %2013 = vmatpush1.bf16.msra.mxu0 %v1590
    %2014 = vmatprep.subr.bf16.mxu0 %v1607
    %2015 = vmatpush1.bf16.msra.mxu0 %v1606
    %2016 = vmatprep.subr.bf16.mxu0 %v1623
    %2017 = vmatpush1.bf16.msra.mxu0 %v1622
    %2018 = vmatprep.subr.bf16.mxu0 %v1639
    %2019 = vmatpush1.bf16.msra.mxu0 %v1638
    %2020 = vmatprep.mubr.bf16.mxu0 %v285
    %2021 = vmatmul.mubr.bf16.gmra.mrb[0].mxu0 %v284
    %v2022 = vpop.f32.mrb[0].mxu0
    %v2023 = vadd.f32 %v565, %v2022
    %v2024 = vpop.f32.mrb[0].mxu0
    %v2025 = vadd.f32 %v569, %v2024
    %v2026 = vpop.f32.mrb[0].mxu0
    %v2027 = vpop.f32.mrb[0].mxu0
    %2028 = vdwg.mxu0
    %2029 = vmatprep.subr.bf16.mxu0 %v1401
    %2030 = vmatpush1.bf16.msra.mxu0 %v1400
    %2031 = vmatprep.subr.bf16.mxu0 %v1417
    %2032 = vmatpush1.bf16.msra.mxu0 %v1416
    %2033 = vmatprep.subr.bf16.mxu0 %v1433
    %2034 = vmatpush1.bf16.msra.mxu0 %v1432
    %2035 = vmatprep.subr.bf16.mxu0 %v1449
    %2036 = vmatpush1.bf16.msra.mxu0 %v1448
    %2037 = vmatprep.subr.bf16.mxu0 %v1465
    %2038 = vmatpush1.bf16.msra.mxu0 %v1464
    %2039 = vmatprep.subr.bf16.mxu0 %v1481
    %2040 = vmatpush1.bf16.msra.mxu0 %v1480
    %2041 = vmatprep.subr.bf16.mxu0 %v1497
    %2042 = vmatpush1.bf16.msra.mxu0 %v1496
    %2043 = vmatprep.subr.bf16.mxu0 %v1513
    %2044 = vmatpush1.bf16.msra.mxu0 %v1512
    %2045 = vmatprep.subr.bf16.mxu0 %v1529
    %2046 = vmatpush1.bf16.msra.mxu0 %v1528
    %2047 = vmatprep.subr.bf16.mxu0 %v1545
    %2048 = vmatpush1.bf16.msra.mxu0 %v1544
    %2049 = vmatprep.subr.bf16.mxu0 %v1561
    %2050 = vmatpush1.bf16.msra.mxu0 %v1560
    %2051 = vmatprep.subr.bf16.mxu0 %v1577
    %2052 = vmatpush1.bf16.msra.mxu0 %v1576
    %2053 = vmatprep.subr.bf16.mxu0 %v1593
    %2054 = vmatpush1.bf16.msra.mxu0 %v1592
    %2055 = vmatprep.subr.bf16.mxu0 %v1609
    %2056 = vmatpush1.bf16.msra.mxu0 %v1608
    %2057 = vmatprep.subr.bf16.mxu0 %v1625
    %2058 = vmatpush1.bf16.msra.mxu0 %v1624
    %2059 = vmatprep.subr.bf16.mxu0 %v1641
    %2060 = vmatpush1.bf16.msra.mxu0 %v1640
    %2061 = vmatprep.mubr.bf16.mxu0 %v285
    %2062 = vmatmul.mubr.bf16.gmra.mrb[0].mxu0 %v284
    %v2063 = vpop.f32.mrb[0].mxu0
    %v2064 = vadd.f32 %v573, %v2063
    %v2065 = vpop.f32.mrb[0].mxu0
    %v2066 = vadd.f32 %v577, %v2065
    %v2067 = vpop.f32.mrb[0].mxu0
    %v2068 = vpop.f32.mrb[0].mxu0
    %2069 = vdwg.mxu0
    %2070 = vmatprep.subr.bf16.mxu0 %v1403
    %2071 = vmatpush1.bf16.msra.mxu0 %v1402
    %2072 = vmatprep.subr.bf16.mxu0 %v1419
    %2073 = vmatpush1.bf16.msra.mxu0 %v1418
    %2074 = vmatprep.subr.bf16.mxu0 %v1435
    %2075 = vmatpush1.bf16.msra.mxu0 %v1434
    %2076 = vmatprep.subr.bf16.mxu0 %v1451
    %2077 = vmatpush1.bf16.msra.mxu0 %v1450
    %2078 = vmatprep.subr.bf16.mxu0 %v1467
    %2079 = vmatpush1.bf16.msra.mxu0 %v1466
    %2080 = vmatprep.subr.bf16.mxu0 %v1483
    %2081 = vmatpush1.bf16.msra.mxu0 %v1482
    %2082 = vmatprep.subr.bf16.mxu0 %v1499
    %2083 = vmatpush1.bf16.msra.mxu0 %v1498
    %2084 = vmatprep.subr.bf16.mxu0 %v1515
    %2085 = vmatpush1.bf16.msra.mxu0 %v1514
    %2086 = vmatprep.subr.bf16.mxu0 %v1531
    %2087 = vmatpush1.bf16.msra.mxu0 %v1530
    %2088 = vmatprep.subr.bf16.mxu0 %v1547
    %2089 = vmatpush1.bf16.msra.mxu0 %v1546
    %2090 = vmatprep.subr.bf16.mxu0 %v1563
    %2091 = vmatpush1.bf16.msra.mxu0 %v1562
    %2092 = vmatprep.subr.bf16.mxu0 %v1579
    %2093 = vmatpush1.bf16.msra.mxu0 %v1578
    %2094 = vmatprep.subr.bf16.mxu0 %v1595
    %2095 = vmatpush1.bf16.msra.mxu0 %v1594
    %2096 = vmatprep.subr.bf16.mxu0 %v1611
    %2097 = vmatpush1.bf16.msra.mxu0 %v1610
    %2098 = vmatprep.subr.bf16.mxu0 %v1627
    %2099 = vmatpush1.bf16.msra.mxu0 %v1626
    %2100 = vmatprep.subr.bf16.mxu0 %v1643
    %2101 = vmatpush1.bf16.msra.mxu0 %v1642
    %2102 = vmatprep.mubr.bf16.mxu0 %v285
    %2103 = vmatmul.mubr.bf16.gmra.mrb[0].mxu0 %v284
    %v2104 = vpop.f32.mrb[0].mxu0
    %v2105 = vadd.f32 %v581, %v2104
    %v2106 = vpop.f32.mrb[0].mxu0
    %v2107 = vadd.f32 %v585, %v2106
    %v2108 = vpop.f32.mrb[0].mxu0
    %v2109 = vpop.f32.mrb[0].mxu0
    %2110 = vdwg.mxu0
    %2111 = vmatprep.subr.bf16.mxu0 %v1405
    %2112 = vmatpush1.bf16.msra.mxu0 %v1404
    %2113 = vmatprep.subr.bf16.mxu0 %v1421
    %2114 = vmatpush1.bf16.msra.mxu0 %v1420
    %2115 = vmatprep.subr.bf16.mxu0 %v1437
    %2116 = vmatpush1.bf16.msra.mxu0 %v1436
    %2117 = vmatprep.subr.bf16.mxu0 %v1453
    %2118 = vmatpush1.bf16.msra.mxu0 %v1452
    %2119 = vmatprep.subr.bf16.mxu0 %v1469
    %2120 = vmatpush1.bf16.msra.mxu0 %v1468
    %2121 = vmatprep.subr.bf16.mxu0 %v1485
    %2122 = vmatpush1.bf16.msra.mxu0 %v1484
    %2123 = vmatprep.subr.bf16.mxu0 %v1501
    %2124 = vmatpush1.bf16.msra.mxu0 %v1500
    %2125 = vmatprep.subr.bf16.mxu0 %v1517
    %2126 = vmatpush1.bf16.msra.mxu0 %v1516
    %2127 = vmatprep.subr.bf16.mxu0 %v1533
    %2128 = vmatpush1.bf16.msra.mxu0 %v1532
    %2129 = vmatprep.subr.bf16.mxu0 %v1549
    %2130 = vmatpush1.bf16.msra.mxu0 %v1548
    %2131 = vmatprep.subr.bf16.mxu0 %v1565
    %2132 = vmatpush1.bf16.msra.mxu0 %v1564
    %2133 = vmatprep.subr.bf16.mxu0 %v1581
    %2134 = vmatpush1.bf16.msra.mxu0 %v1580
    %2135 = vmatprep.subr.bf16.mxu0 %v1597
    %2136 = vmatpush1.bf16.msra.mxu0 %v1596
    %2137 = vmatprep.subr.bf16.mxu0 %v1613
    %2138 = vmatpush1.bf16.msra.mxu0 %v1612
    %2139 = vmatprep.subr.bf16.mxu0 %v1629
    %2140 = vmatpush1.bf16.msra.mxu0 %v1628
    %2141 = vmatprep.subr.bf16.mxu0 %v1645
    %2142 = vmatpush1.bf16.msra.mxu0 %v1644
    %2143 = vmatprep.mubr.bf16.mxu0 %v285
    %2144 = vmatmul.mubr.bf16.gmra.mrb[0].mxu0 %v284
    %v2145 = vpop.f32.mrb[0].mxu0
    %v2146 = vadd.f32 %v589, %v2145
    %v2147 = vpop.f32.mrb[0].mxu0
    %v2148 = vadd.f32 %v593, %v2147
    %v2149 = vpop.f32.mrb[0].mxu0
    %v2150 = vpop.f32.mrb[0].mxu0
    %2151 = vdwg.mxu0
    %2152 = vmatprep.subr.bf16.mxu0 %v1407
    %2153 = vmatpush1.bf16.msra.mxu0 %v1406
    %2154 = vmatprep.subr.bf16.mxu0 %v1423
    %2155 = vmatpush1.bf16.msra.mxu0 %v1422
    %2156 = vmatprep.subr.bf16.mxu0 %v1439
    %2157 = vmatpush1.bf16.msra.mxu0 %v1438
    %2158 = vmatprep.subr.bf16.mxu0 %v1455
    %2159 = vmatpush1.bf16.msra.mxu0 %v1454
    %2160 = vmatprep.subr.bf16.mxu0 %v1471
    %2161 = vmatpush1.bf16.msra.mxu0 %v1470
    %2162 = vmatprep.subr.bf16.mxu0 %v1487
    %2163 = vmatpush1.bf16.msra.mxu0 %v1486
    %2164 = vmatprep.subr.bf16.mxu0 %v1503
    %2165 = vmatpush1.bf16.msra.mxu0 %v1502
    %2166 = vmatprep.subr.bf16.mxu0 %v1519
    %2167 = vmatpush1.bf16.msra.mxu0 %v1518
    %2168 = vmatprep.subr.bf16.mxu0 %v1535
    %2169 = vmatpush1.bf16.msra.mxu0 %v1534
    %2170 = vmatprep.subr.bf16.mxu0 %v1551
    %2171 = vmatpush1.bf16.msra.mxu0 %v1550
    %2172 = vmatprep.subr.bf16.mxu0 %v1567
    %2173 = vmatpush1.bf16.msra.mxu0 %v1566
    %2174 = vmatprep.subr.bf16.mxu0 %v1583
    %2175 = vmatpush1.bf16.msra.mxu0 %v1582
    %2176 = vmatprep.subr.bf16.mxu0 %v1599
    %2177 = vmatpush1.bf16.msra.mxu0 %v1598
    %2178 = vmatprep.subr.bf16.mxu0 %v1615
    %2179 = vmatpush1.bf16.msra.mxu0 %v1614
    %2180 = vmatprep.subr.bf16.mxu0 %v1631
    %2181 = vmatpush1.bf16.msra.mxu0 %v1630
    %2182 = vmatprep.subr.bf16.mxu0 %v1647
    %2183 = vmatpush1.bf16.msra.mxu0 %v1646
    %2184 = vmatprep.mubr.bf16.mxu0 %v285
    %2185 = vmatmul.mubr.bf16.gmra.mrb[0].mxu0 %v284
    %v2186 = vpop.f32.mrb[0].mxu0
    %v2187 = vadd.f32 %v597, %v2186
    %v2188 = vpop.f32.mrb[0].mxu0
    %v2189 = vadd.f32 %v601, %v2188
    %v2190 = vpop.f32.mrb[0].mxu0
    %v2191 = vpop.f32.mrb[0].mxu0
    %2192 = vdwg.mxu0
    %2193 = vmatprep.subr.bf16.mxu0 %v1409
    %2194 = vmatpush1.bf16.msra.mxu0 %v1408
    %2195 = vmatprep.subr.bf16.mxu0 %v1425
    %2196 = vmatpush1.bf16.msra.mxu0 %v1424
    %2197 = vmatprep.subr.bf16.mxu0 %v1441
    %2198 = vmatpush1.bf16.msra.mxu0 %v1440
    %2199 = vmatprep.subr.bf16.mxu0 %v1457
    %2200 = vmatpush1.bf16.msra.mxu0 %v1456
    %2201 = vmatprep.subr.bf16.mxu0 %v1473
    %2202 = vmatpush1.bf16.msra.mxu0 %v1472
    %2203 = vmatprep.subr.bf16.mxu0 %v1489
    %2204 = vmatpush1.bf16.msra.mxu0 %v1488
    %2205 = vmatprep.subr.bf16.mxu0 %v1505
    %2206 = vmatpush1.bf16.msra.mxu0 %v1504
    %2207 = vmatprep.subr.bf16.mxu0 %v1521
    %2208 = vmatpush1.bf16.msra.mxu0 %v1520
    %2209 = vmatprep.subr.bf16.mxu0 %v1537
    %2210 = vmatpush1.bf16.msra.mxu0 %v1536
    %2211 = vmatprep.subr.bf16.mxu0 %v1553
    %2212 = vmatpush1.bf16.msra.mxu0 %v1552
    %2213 = vmatprep.subr.bf16.mxu0 %v1569
    %2214 = vmatpush1.bf16.msra.mxu0 %v1568
    %2215 = vmatprep.subr.bf16.mxu0 %v1585
    %2216 = vmatpush1.bf16.msra.mxu0 %v1584
    %2217 = vmatprep.subr.bf16.mxu0 %v1601
    %2218 = vmatpush1.bf16.msra.mxu0 %v1600
    %2219 = vmatprep.subr.bf16.mxu0 %v1617
    %2220 = vmatpush1.bf16.msra.mxu0 %v1616
    %2221 = vmatprep.subr.bf16.mxu0 %v1633
    %2222 = vmatpush1.bf16.msra.mxu0 %v1632
    %2223 = vmatprep.subr.bf16.mxu0 %v1649
    %2224 = vmatpush1.bf16.msra.mxu0 %v1648
    %2225 = vmatprep.mubr.bf16.mxu0 %v285
    %2226 = vmatmul.mubr.bf16.gmra.mrb[0].mxu0 %v284
    %v2227 = vpop.f32.mrb[0].mxu0
    %v2228 = vadd.f32 %v605, %v2227
    %v2229 = vpop.f32.mrb[0].mxu0
    %v2230 = vadd.f32 %v609, %v2229
    %v2231 = vpop.f32.mrb[0].mxu0
    %v2232 = vpop.f32.mrb[0].mxu0
    %2233 = vdwg.mxu0
    %v2234 = vmax.f32 %v1941, 0.0
    %v2235 = vmax.f32 %v1943, 0.0
    %v2236 = vmax.f32 %v1982, 0.0
    %v2237 = vmax.f32 %v1984, 0.0
    %v2238 = vmax.f32 %v2023, 0.0
    %v2239 = vmax.f32 %v2025, 0.0
    %v2240 = vmax.f32 %v2064, 0.0
    %v2241 = vmax.f32 %v2066, 0.0
    %v2242 = vmax.f32 %v2105, 0.0
    %v2243 = vmax.f32 %v2107, 0.0
    %v2244 = vmax.f32 %v2146, 0.0
    %v2245 = vmax.f32 %v2148, 0.0
    %v2246 = vmax.f32 %v2187, 0.0
    %v2247 = vmax.f32 %v2189, 0.0
    %v2248 = vmax.f32 %v2228, 0.0
    %v2249 = vmax.f32 %v2230, 0.0
    %v2250 = vpack.c.bf16 %v2234, %v2234
    %v2251 = vpack.c.bf16 %v2235, %v2235
    %v2252 = vpack.c.bf16 %v2236, %v2236
    %v2253 = vpack.c.bf16 %v2237, %v2237
    %v2254 = vpack.c.bf16 %v2238, %v2238
    %v2255 = vpack.c.bf16 %v2239, %v2239
    %v2256 = vpack.c.bf16 %v2240, %v2240
    %v2257 = vpack.c.bf16 %v2241, %v2241
    %v2258 = vpack.c.bf16 %v2242, %v2242
    %v2259 = vpack.c.bf16 %v2243, %v2243
    %v2260 = vpack.c.bf16 %v2244, %v2244
    %v2261 = vpack.c.bf16 %v2245, %v2245
    %v2262 = vpack.c.bf16 %v2246, %v2246
    %v2263 = vpack.c.bf16 %v2247, %v2247
    %v2264 = vpack.c.bf16 %v2248, %v2248
    %v2265 = vpack.c.bf16 %v2249, %v2249
    %v2266 = vld [vmem:[#allocation8] sm:$0xff]
    %v2267 = vld [vmem:[#allocation8 + $0x8] sm:$0xff]
    %v2268 = vld [vmem:[#allocation8 + $0x10] sm:$0xff]
    %v2269 = vld [vmem:[#allocation8 + $0x18] sm:$0xff]
    %v2270 = vld [vmem:[#allocation8 + $0x20] sm:$0xff]
    %v2271 = vld [vmem:[#allocation8 + $0x28] sm:$0xff]
    %v2272 = vld [vmem:[#allocation8 + $0x30] sm:$0xff]
    %v2273 = vld [vmem:[#allocation8 + $0x38] sm:$0xff]
    %v2274 = vld [vmem:[#allocation8 + $0x40] sm:$0xff]
    %v2275 = vld [vmem:[#allocation8 + $0x48] sm:$0xff]
    %v2276 = vld [vmem:[#allocation8 + $0x50] sm:$0xff]
    %v2277 = vld [vmem:[#allocation8 + $0x58] sm:$0xff]
    %v2278 = vld [vmem:[#allocation8 + $0x60] sm:$0xff]
    %v2279 = vld [vmem:[#allocation8 + $0x68] sm:$0xff]
    %v2280 = vld [vmem:[#allocation8 + $0x70] sm:$0xff]
    %v2281 = vld [vmem:[#allocation8 + $0x78] sm:$0xff]
    %v2282 = vld [vmem:[#allocation8 + $0x80] sm:$0xff]
    %v2283 = vld [vmem:[#allocation8 + $0x88] sm:$0xff]
    %v2284 = vld [vmem:[#allocation8 + $0x90] sm:$0xff]
    %v2285 = vld [vmem:[#allocation8 + $0x98] sm:$0xff]
    %v2286 = vld [vmem:[#allocation8 + $0xa0] sm:$0xff]
    %v2287 = vld [vmem:[#allocation8 + $0xa8] sm:$0xff]
    %v2288 = vld [vmem:[#allocation8 + $0xb0] sm:$0xff]
    %v2289 = vld [vmem:[#allocation8 + $0xb8] sm:$0xff]
    %v2290 = vld [vmem:[#allocation8 + $0xc0] sm:$0xff]
    %v2291 = vld [vmem:[#allocation8 + $0xc8] sm:$0xff]
    %v2292 = vld [vmem:[#allocation8 + $0xd0] sm:$0xff]
    %v2293 = vld [vmem:[#allocation8 + $0xd8] sm:$0xff]
    %v2294 = vld [vmem:[#allocation8 + $0xe0] sm:$0xff]
    %v2295 = vld [vmem:[#allocation8 + $0xe8] sm:$0xff]
    %v2296 = vld [vmem:[#allocation8 + $0xf0] sm:$0xff]
    %v2297 = vld [vmem:[#allocation8 + $0xf8] sm:$0xff]
    %v2298 = vld [vmem:[#allocation8 + $0x100] sm:$0xff]
    %v2299 = vld [vmem:[#allocation8 + $0x108] sm:$0xff]
    %v2300 = vld [vmem:[#allocation8 + $0x110] sm:$0xff]
    %v2301 = vld [vmem:[#allocation8 + $0x118] sm:$0xff]
    %v2302 = vld [vmem:[#allocation8 + $0x120] sm:$0xff]
    %v2303 = vld [vmem:[#allocation8 + $0x128] sm:$0xff]
    %v2304 = vld [vmem:[#allocation8 + $0x130] sm:$0xff]
    %v2305 = vld [vmem:[#allocation8 + $0x138] sm:$0xff]
    %v2306 = vld [vmem:[#allocation8 + $0x140] sm:$0xff]
    %v2307 = vld [vmem:[#allocation8 + $0x148] sm:$0xff]
    %v2308 = vld [vmem:[#allocation8 + $0x150] sm:$0xff]
    %v2309 = vld [vmem:[#allocation8 + $0x158] sm:$0xff]
    %v2310 = vld [vmem:[#allocation8 + $0x160] sm:$0xff]
    %v2311 = vld [vmem:[#allocation8 + $0x168] sm:$0xff]
    %v2312 = vld [vmem:[#allocation8 + $0x170] sm:$0xff]
    %v2313 = vld [vmem:[#allocation8 + $0x178] sm:$0xff]
    %v2314 = vld [vmem:[#allocation8 + $0x180] sm:$0xff]
    %v2315 = vld [vmem:[#allocation8 + $0x188] sm:$0xff]
    %v2316 = vld [vmem:[#allocation8 + $0x190] sm:$0xff]
    %v2317 = vld [vmem:[#allocation8 + $0x198] sm:$0xff]
    %v2318 = vld [vmem:[#allocation8 + $0x1a0] sm:$0xff]
    %v2319 = vld [vmem:[#allocation8 + $0x1a8] sm:$0xff]
    %v2320 = vld [vmem:[#allocation8 + $0x1b0] sm:$0xff]
    %v2321 = vld [vmem:[#allocation8 + $0x1b8] sm:$0xff]
    %v2322 = vld [vmem:[#allocation8 + $0x1c0] sm:$0xff]
    %v2323 = vld [vmem:[#allocation8 + $0x1c8] sm:$0xff]
    %v2324 = vld [vmem:[#allocation8 + $0x1d0] sm:$0xff]
    %v2325 = vld [vmem:[#allocation8 + $0x1d8] sm:$0xff]
    %v2326 = vld [vmem:[#allocation8 + $0x1e0] sm:$0xff]
    %v2327 = vld [vmem:[#allocation8 + $0x1e8] sm:$0xff]
    %v2328 = vld [vmem:[#allocation8 + $0x1f0] sm:$0xff]
    %v2329 = vld [vmem:[#allocation8 + $0x1f8] sm:$0xff]
    %v2330 = vld [vmem:[#allocation8 + $0x200] sm:$0xff]
    %v2331 = vld [vmem:[#allocation8 + $0x208] sm:$0xff]
    %v2332 = vld [vmem:[#allocation8 + $0x210] sm:$0xff]
    %v2333 = vld [vmem:[#allocation8 + $0x218] sm:$0xff]
    %v2334 = vld [vmem:[#allocation8 + $0x220] sm:$0xff]
    %v2335 = vld [vmem:[#allocation8 + $0x228] sm:$0xff]
    %v2336 = vld [vmem:[#allocation8 + $0x230] sm:$0xff]
    %v2337 = vld [vmem:[#allocation8 + $0x238] sm:$0xff]
    %v2338 = vld [vmem:[#allocation8 + $0x240] sm:$0xff]
    %v2339 = vld [vmem:[#allocation8 + $0x248] sm:$0xff]
    %v2340 = vld [vmem:[#allocation8 + $0x250] sm:$0xff]
    %v2341 = vld [vmem:[#allocation8 + $0x258] sm:$0xff]
    %v2342 = vld [vmem:[#allocation8 + $0x260] sm:$0xff]
    %v2343 = vld [vmem:[#allocation8 + $0x268] sm:$0xff]
    %v2344 = vld [vmem:[#allocation8 + $0x270] sm:$0xff]
    %v2345 = vld [vmem:[#allocation8 + $0x278] sm:$0xff]
    %v2346 = vld [vmem:[#allocation8 + $0x280] sm:$0xff]
    %v2347 = vld [vmem:[#allocation8 + $0x288] sm:$0xff]
    %v2348 = vld [vmem:[#allocation8 + $0x290] sm:$0xff]
    %v2349 = vld [vmem:[#allocation8 + $0x298] sm:$0xff]
    %v2350 = vld [vmem:[#allocation8 + $0x2a0] sm:$0xff]
    %v2351 = vld [vmem:[#allocation8 + $0x2a8] sm:$0xff]
    %v2352 = vld [vmem:[#allocation8 + $0x2b0] sm:$0xff]
    %v2353 = vld [vmem:[#allocation8 + $0x2b8] sm:$0xff]
    %v2354 = vld [vmem:[#allocation8 + $0x2c0] sm:$0xff]
    %v2355 = vld [vmem:[#allocation8 + $0x2c8] sm:$0xff]
    %v2356 = vld [vmem:[#allocation8 + $0x2d0] sm:$0xff]
    %v2357 = vld [vmem:[#allocation8 + $0x2d8] sm:$0xff]
    %v2358 = vld [vmem:[#allocation8 + $0x2e0] sm:$0xff]
    %v2359 = vld [vmem:[#allocation8 + $0x2e8] sm:$0xff]
    %v2360 = vld [vmem:[#allocation8 + $0x2f0] sm:$0xff]
    %v2361 = vld [vmem:[#allocation8 + $0x2f8] sm:$0xff]
    %v2362 = vld [vmem:[#allocation8 + $0x300] sm:$0xff]
    %v2363 = vld [vmem:[#allocation8 + $0x308] sm:$0xff]
    %v2364 = vld [vmem:[#allocation8 + $0x310] sm:$0xff]
    %v2365 = vld [vmem:[#allocation8 + $0x318] sm:$0xff]
    %v2366 = vld [vmem:[#allocation8 + $0x320] sm:$0xff]
    %v2367 = vld [vmem:[#allocation8 + $0x328] sm:$0xff]
    %v2368 = vld [vmem:[#allocation8 + $0x330] sm:$0xff]
    %v2369 = vld [vmem:[#allocation8 + $0x338] sm:$0xff]
    %v2370 = vld [vmem:[#allocation8 + $0x340] sm:$0xff]
    %v2371 = vld [vmem:[#allocation8 + $0x348] sm:$0xff]
    %v2372 = vld [vmem:[#allocation8 + $0x350] sm:$0xff]
    %v2373 = vld [vmem:[#allocation8 + $0x358] sm:$0xff]
    %v2374 = vld [vmem:[#allocation8 + $0x360] sm:$0xff]
    %v2375 = vld [vmem:[#allocation8 + $0x368] sm:$0xff]
    %v2376 = vld [vmem:[#allocation8 + $0x370] sm:$0xff]
    %v2377 = vld [vmem:[#allocation8 + $0x378] sm:$0xff]
    %v2378 = vld [vmem:[#allocation8 + $0x380] sm:$0xff]
    %v2379 = vld [vmem:[#allocation8 + $0x388] sm:$0xff]
    %v2380 = vld [vmem:[#allocation8 + $0x390] sm:$0xff]
    %v2381 = vld [vmem:[#allocation8 + $0x398] sm:$0xff]
    %v2382 = vld [vmem:[#allocation8 + $0x3a0] sm:$0xff]
    %v2383 = vld [vmem:[#allocation8 + $0x3a8] sm:$0xff]
    %v2384 = vld [vmem:[#allocation8 + $0x3b0] sm:$0xff]
    %v2385 = vld [vmem:[#allocation8 + $0x3b8] sm:$0xff]
    %v2386 = vld [vmem:[#allocation8 + $0x3c0] sm:$0xff]
    %v2387 = vld [vmem:[#allocation8 + $0x3c8] sm:$0xff]
    %v2388 = vld [vmem:[#allocation8 + $0x3d0] sm:$0xff]
    %v2389 = vld [vmem:[#allocation8 + $0x3d8] sm:$0xff]
    %v2390 = vld [vmem:[#allocation8 + $0x3e0] sm:$0xff]
    %v2391 = vld [vmem:[#allocation8 + $0x3e8] sm:$0xff]
    %v2392 = vld [vmem:[#allocation8 + $0x3f0] sm:$0xff]
    %v2393 = vld [vmem:[#allocation8 + $0x3f8] sm:$0xff]
    %v2394 = vld [vmem:[#allocation8 + $0x400] sm:$0xff]
    %v2395 = vld [vmem:[#allocation8 + $0x408] sm:$0xff]
    %v2396 = vld [vmem:[#allocation8 + $0x410] sm:$0xff]
    %v2397 = vld [vmem:[#allocation8 + $0x418] sm:$0xff]
    %v2398 = vld [vmem:[#allocation8 + $0x420] sm:$0xff]
    %v2399 = vld [vmem:[#allocation8 + $0x428] sm:$0xff]
    %v2400 = vld [vmem:[#allocation8 + $0x430] sm:$0xff]
    %v2401 = vld [vmem:[#allocation8 + $0x438] sm:$0xff]
    %v2402 = vld [vmem:[#allocation8 + $0x440] sm:$0xff]
    %v2403 = vld [vmem:[#allocation8 + $0x448] sm:$0xff]
    %v2404 = vld [vmem:[#allocation8 + $0x450] sm:$0xff]
    %v2405 = vld [vmem:[#allocation8 + $0x458] sm:$0xff]
    %v2406 = vld [vmem:[#allocation8 + $0x460] sm:$0xff]
    %v2407 = vld [vmem:[#allocation8 + $0x468] sm:$0xff]
    %v2408 = vld [vmem:[#allocation8 + $0x470] sm:$0xff]
    %v2409 = vld [vmem:[#allocation8 + $0x478] sm:$0xff]
    %v2410 = vld [vmem:[#allocation8 + $0x480] sm:$0xff]
    %v2411 = vld [vmem:[#allocation8 + $0x488] sm:$0xff]
    %v2412 = vld [vmem:[#allocation8 + $0x490] sm:$0xff]
    %v2413 = vld [vmem:[#allocation8 + $0x498] sm:$0xff]
    %v2414 = vld [vmem:[#allocation8 + $0x4a0] sm:$0xff]
    %v2415 = vld [vmem:[#allocation8 + $0x4a8] sm:$0xff]
    %v2416 = vld [vmem:[#allocation8 + $0x4b0] sm:$0xff]
    %v2417 = vld [vmem:[#allocation8 + $0x4b8] sm:$0xff]
    %v2418 = vld [vmem:[#allocation8 + $0x4c0] sm:$0xff]
    %v2419 = vld [vmem:[#allocation8 + $0x4c8] sm:$0xff]
    %v2420 = vld [vmem:[#allocation8 + $0x4d0] sm:$0xff]
    %v2421 = vld [vmem:[#allocation8 + $0x4d8] sm:$0xff]
    %v2422 = vld [vmem:[#allocation8 + $0x4e0] sm:$0xff]
    %v2423 = vld [vmem:[#allocation8 + $0x4e8] sm:$0xff]
    %v2424 = vld [vmem:[#allocation8 + $0x4f0] sm:$0xff]
    %v2425 = vld [vmem:[#allocation8 + $0x4f8] sm:$0xff]
    %v2426 = vld [vmem:[#allocation8 + $0x500] sm:$0xff]
    %v2427 = vld [vmem:[#allocation8 + $0x508] sm:$0xff]
    %v2428 = vld [vmem:[#allocation8 + $0x510] sm:$0xff]
    %v2429 = vld [vmem:[#allocation8 + $0x518] sm:$0xff]
    %v2430 = vld [vmem:[#allocation8 + $0x520] sm:$0xff]
    %v2431 = vld [vmem:[#allocation8 + $0x528] sm:$0xff]
    %v2432 = vld [vmem:[#allocation8 + $0x530] sm:$0xff]
    %v2433 = vld [vmem:[#allocation8 + $0x538] sm:$0xff]
    %v2434 = vld [vmem:[#allocation8 + $0x540] sm:$0xff]
    %v2435 = vld [vmem:[#allocation8 + $0x548] sm:$0xff]
    %v2436 = vld [vmem:[#allocation8 + $0x550] sm:$0xff]
    %v2437 = vld [vmem:[#allocation8 + $0x558] sm:$0xff]
    %v2438 = vld [vmem:[#allocation8 + $0x560] sm:$0xff]
    %v2439 = vld [vmem:[#allocation8 + $0x568] sm:$0xff]
    %v2440 = vld [vmem:[#allocation8 + $0x570] sm:$0xff]
    %v2441 = vld [vmem:[#allocation8 + $0x578] sm:$0xff]
    %v2442 = vld [vmem:[#allocation8 + $0x580] sm:$0xff]
    %v2443 = vld [vmem:[#allocation8 + $0x588] sm:$0xff]
    %v2444 = vld [vmem:[#allocation8 + $0x590] sm:$0xff]
    %v2445 = vld [vmem:[#allocation8 + $0x598] sm:$0xff]
    %v2446 = vld [vmem:[#allocation8 + $0x5a0] sm:$0xff]
    %v2447 = vld [vmem:[#allocation8 + $0x5a8] sm:$0xff]
    %v2448 = vld [vmem:[#allocation8 + $0x5b0] sm:$0xff]
    %v2449 = vld [vmem:[#allocation8 + $0x5b8] sm:$0xff]
    %v2450 = vld [vmem:[#allocation8 + $0x5c0] sm:$0xff]
    %v2451 = vld [vmem:[#allocation8 + $0x5c8] sm:$0xff]
    %v2452 = vld [vmem:[#allocation8 + $0x5d0] sm:$0xff]
    %v2453 = vld [vmem:[#allocation8 + $0x5d8] sm:$0xff]
    %v2454 = vld [vmem:[#allocation8 + $0x5e0] sm:$0xff]
    %v2455 = vld [vmem:[#allocation8 + $0x5e8] sm:$0xff]
    %v2456 = vld [vmem:[#allocation8 + $0x5f0] sm:$0xff]
    %v2457 = vld [vmem:[#allocation8 + $0x5f8] sm:$0xff]
    %v2458 = vld [vmem:[#allocation8 + $0x600] sm:$0xff]
    %v2459 = vld [vmem:[#allocation8 + $0x608] sm:$0xff]
    %v2460 = vld [vmem:[#allocation8 + $0x610] sm:$0xff]
    %v2461 = vld [vmem:[#allocation8 + $0x618] sm:$0xff]
    %v2462 = vld [vmem:[#allocation8 + $0x620] sm:$0xff]
    %v2463 = vld [vmem:[#allocation8 + $0x628] sm:$0xff]
    %v2464 = vld [vmem:[#allocation8 + $0x630] sm:$0xff]
    %v2465 = vld [vmem:[#allocation8 + $0x638] sm:$0xff]
    %v2466 = vld [vmem:[#allocation8 + $0x640] sm:$0xff]
    %v2467 = vld [vmem:[#allocation8 + $0x648] sm:$0xff]
    %v2468 = vld [vmem:[#allocation8 + $0x650] sm:$0xff]
    %v2469 = vld [vmem:[#allocation8 + $0x658] sm:$0xff]
    %v2470 = vld [vmem:[#allocation8 + $0x660] sm:$0xff]
    %v2471 = vld [vmem:[#allocation8 + $0x668] sm:$0xff]
    %v2472 = vld [vmem:[#allocation8 + $0x670] sm:$0xff]
    %v2473 = vld [vmem:[#allocation8 + $0x678] sm:$0xff]
    %v2474 = vld [vmem:[#allocation8 + $0x680] sm:$0xff]
    %v2475 = vld [vmem:[#allocation8 + $0x688] sm:$0xff]
    %v2476 = vld [vmem:[#allocation8 + $0x690] sm:$0xff]
    %v2477 = vld [vmem:[#allocation8 + $0x698] sm:$0xff]
    %v2478 = vld [vmem:[#allocation8 + $0x6a0] sm:$0xff]
    %v2479 = vld [vmem:[#allocation8 + $0x6a8] sm:$0xff]
    %v2480 = vld [vmem:[#allocation8 + $0x6b0] sm:$0xff]
    %v2481 = vld [vmem:[#allocation8 + $0x6b8] sm:$0xff]
    %v2482 = vld [vmem:[#allocation8 + $0x6c0] sm:$0xff]
    %v2483 = vld [vmem:[#allocation8 + $0x6c8] sm:$0xff]
    %v2484 = vld [vmem:[#allocation8 + $0x6d0] sm:$0xff]
    %v2485 = vld [vmem:[#allocation8 + $0x6d8] sm:$0xff]
    %v2486 = vld [vmem:[#allocation8 + $0x6e0] sm:$0xff]
    %v2487 = vld [vmem:[#allocation8 + $0x6e8] sm:$0xff]
    %v2488 = vld [vmem:[#allocation8 + $0x6f0] sm:$0xff]
    %v2489 = vld [vmem:[#allocation8 + $0x6f8] sm:$0xff]
    %v2490 = vld [vmem:[#allocation8 + $0x700] sm:$0xff]
    %v2491 = vld [vmem:[#allocation8 + $0x708] sm:$0xff]
    %v2492 = vld [vmem:[#allocation8 + $0x710] sm:$0xff]
    %v2493 = vld [vmem:[#allocation8 + $0x718] sm:$0xff]
    %v2494 = vld [vmem:[#allocation8 + $0x720] sm:$0xff]
    %v2495 = vld [vmem:[#allocation8 + $0x728] sm:$0xff]
    %v2496 = vld [vmem:[#allocation8 + $0x730] sm:$0xff]
    %v2497 = vld [vmem:[#allocation8 + $0x738] sm:$0xff]
    %v2498 = vld [vmem:[#allocation8 + $0x740] sm:$0xff]
    %v2499 = vld [vmem:[#allocation8 + $0x748] sm:$0xff]
    %v2500 = vld [vmem:[#allocation8 + $0x750] sm:$0xff]
    %v2501 = vld [vmem:[#allocation8 + $0x758] sm:$0xff]
    %v2502 = vld [vmem:[#allocation8 + $0x760] sm:$0xff]
    %v2503 = vld [vmem:[#allocation8 + $0x768] sm:$0xff]
    %v2504 = vld [vmem:[#allocation8 + $0x770] sm:$0xff]
    %v2505 = vld [vmem:[#allocation8 + $0x778] sm:$0xff]
    %v2506 = vld [vmem:[#allocation8 + $0x780] sm:$0xff]
    %v2507 = vld [vmem:[#allocation8 + $0x788] sm:$0xff]
    %v2508 = vld [vmem:[#allocation8 + $0x790] sm:$0xff]
    %v2509 = vld [vmem:[#allocation8 + $0x798] sm:$0xff]
    %v2510 = vld [vmem:[#allocation8 + $0x7a0] sm:$0xff]
    %v2511 = vld [vmem:[#allocation8 + $0x7a8] sm:$0xff]
    %v2512 = vld [vmem:[#allocation8 + $0x7b0] sm:$0xff]
    %v2513 = vld [vmem:[#allocation8 + $0x7b8] sm:$0xff]
    %v2514 = vld [vmem:[#allocation8 + $0x7c0] sm:$0xff]
    %v2515 = vld [vmem:[#allocation8 + $0x7c8] sm:$0xff]
    %v2516 = vld [vmem:[#allocation8 + $0x7d0] sm:$0xff]
    %v2517 = vld [vmem:[#allocation8 + $0x7d8] sm:$0xff]
    %v2518 = vld [vmem:[#allocation8 + $0x7e0] sm:$0xff]
    %v2519 = vld [vmem:[#allocation8 + $0x7e8] sm:$0xff]
    %v2520 = vld [vmem:[#allocation8 + $0x7f0] sm:$0xff]
    %v2521 = vld [vmem:[#allocation8 + $0x7f8] sm:$0xff]
    %v2522 = vld [vmem:[#allocation8 + $0x800] sm:$0xff]
    %v2523 = vld [vmem:[#allocation8 + $0x808] sm:$0xff]
    %v2524 = vld [vmem:[#allocation8 + $0x810] sm:$0xff]
    %v2525 = vld [vmem:[#allocation8 + $0x818] sm:$0xff]
    %v2526 = vld [vmem:[#allocation8 + $0x820] sm:$0xff]
    %v2527 = vld [vmem:[#allocation8 + $0x828] sm:$0xff]
    %v2528 = vld [vmem:[#allocation8 + $0x830] sm:$0xff]
    %v2529 = vld [vmem:[#allocation8 + $0x838] sm:$0xff]
    %v2530 = vld [vmem:[#allocation8 + $0x840] sm:$0xff]
    %v2531 = vld [vmem:[#allocation8 + $0x848] sm:$0xff]
    %v2532 = vld [vmem:[#allocation8 + $0x850] sm:$0xff]
    %v2533 = vld [vmem:[#allocation8 + $0x858] sm:$0xff]
    %v2534 = vld [vmem:[#allocation8 + $0x860] sm:$0xff]
    %v2535 = vld [vmem:[#allocation8 + $0x868] sm:$0xff]
    %v2536 = vld [vmem:[#allocation8 + $0x870] sm:$0xff]
    %v2537 = vld [vmem:[#allocation8 + $0x878] sm:$0xff]
    %v2538 = vld [vmem:[#allocation8 + $0x880] sm:$0xff]
    %v2539 = vld [vmem:[#allocation8 + $0x888] sm:$0xff]
    %v2540 = vld [vmem:[#allocation8 + $0x890] sm:$0xff]
    %v2541 = vld [vmem:[#allocation8 + $0x898] sm:$0xff]
    %v2542 = vld [vmem:[#allocation8 + $0x8a0] sm:$0xff]
    %v2543 = vld [vmem:[#allocation8 + $0x8a8] sm:$0xff]
    %v2544 = vld [vmem:[#allocation8 + $0x8b0] sm:$0xff]
    %v2545 = vld [vmem:[#allocation8 + $0x8b8] sm:$0xff]
    %v2546 = vld [vmem:[#allocation8 + $0x8c0] sm:$0xff]
    %v2547 = vld [vmem:[#allocation8 + $0x8c8] sm:$0xff]
    %v2548 = vld [vmem:[#allocation8 + $0x8d0] sm:$0xff]
    %v2549 = vld [vmem:[#allocation8 + $0x8d8] sm:$0xff]
    %v2550 = vld [vmem:[#allocation8 + $0x8e0] sm:$0xff]
    %v2551 = vld [vmem:[#allocation8 + $0x8e8] sm:$0xff]
    %v2552 = vld [vmem:[#allocation8 + $0x8f0] sm:$0xff]
    %v2553 = vld [vmem:[#allocation8 + $0x8f8] sm:$0xff]
    %v2554 = vld [vmem:[#allocation8 + $0x900] sm:$0xff]
    %v2555 = vld [vmem:[#allocation8 + $0x908] sm:$0xff]
    %v2556 = vld [vmem:[#allocation8 + $0x910] sm:$0xff]
    %v2557 = vld [vmem:[#allocation8 + $0x918] sm:$0xff]
    %v2558 = vld [vmem:[#allocation8 + $0x920] sm:$0xff]
    %v2559 = vld [vmem:[#allocation8 + $0x928] sm:$0xff]
    %v2560 = vld [vmem:[#allocation8 + $0x930] sm:$0xff]
    %v2561 = vld [vmem:[#allocation8 + $0x938] sm:$0xff]
    %v2562 = vld [vmem:[#allocation8 + $0x940] sm:$0xff]
    %v2563 = vld [vmem:[#allocation8 + $0x948] sm:$0xff]
    %v2564 = vld [vmem:[#allocation8 + $0x950] sm:$0xff]
    %v2565 = vld [vmem:[#allocation8 + $0x958] sm:$0xff]
    %v2566 = vld [vmem:[#allocation8 + $0x960] sm:$0xff]
    %v2567 = vld [vmem:[#allocation8 + $0x968] sm:$0xff]
    %v2568 = vld [vmem:[#allocation8 + $0x970] sm:$0xff]
    %v2569 = vld [vmem:[#allocation8 + $0x978] sm:$0xff]
    %v2570 = vld [vmem:[#allocation8 + $0x980] sm:$0xff]
    %v2571 = vld [vmem:[#allocation8 + $0x988] sm:$0xff]
    %v2572 = vld [vmem:[#allocation8 + $0x990] sm:$0xff]
    %v2573 = vld [vmem:[#allocation8 + $0x998] sm:$0xff]
    %v2574 = vld [vmem:[#allocation8 + $0x9a0] sm:$0xff]
    %v2575 = vld [vmem:[#allocation8 + $0x9a8] sm:$0xff]
    %v2576 = vld [vmem:[#allocation8 + $0x9b0] sm:$0xff]
    %v2577 = vld [vmem:[#allocation8 + $0x9b8] sm:$0xff]
    %v2578 = vld [vmem:[#allocation8 + $0x9c0] sm:$0xff]
    %v2579 = vld [vmem:[#allocation8 + $0x9c8] sm:$0xff]
    %v2580 = vld [vmem:[#allocation8 + $0x9d0] sm:$0xff]
    %v2581 = vld [vmem:[#allocation8 + $0x9d8] sm:$0xff]
    %v2582 = vld [vmem:[#allocation8 + $0x9e0] sm:$0xff]
    %v2583 = vld [vmem:[#allocation8 + $0x9e8] sm:$0xff]
    %v2584 = vld [vmem:[#allocation8 + $0x9f0] sm:$0xff]
    %v2585 = vld [vmem:[#allocation8 + $0x9f8] sm:$0xff]
    %v2586 = vld [vmem:[#allocation8 + $0xa00] sm:$0xff]
    %v2587 = vld [vmem:[#allocation8 + $0xa08] sm:$0xff]
    %v2588 = vld [vmem:[#allocation8 + $0xa10] sm:$0xff]
    %v2589 = vld [vmem:[#allocation8 + $0xa18] sm:$0xff]
    %v2590 = vld [vmem:[#allocation8 + $0xa20] sm:$0xff]
    %v2591 = vld [vmem:[#allocation8 + $0xa28] sm:$0xff]
    %v2592 = vld [vmem:[#allocation8 + $0xa30] sm:$0xff]
    %v2593 = vld [vmem:[#allocation8 + $0xa38] sm:$0xff]
    %v2594 = vld [vmem:[#allocation8 + $0xa40] sm:$0xff]
    %v2595 = vld [vmem:[#allocation8 + $0xa48] sm:$0xff]
    %v2596 = vld [vmem:[#allocation8 + $0xa50] sm:$0xff]
    %v2597 = vld [vmem:[#allocation8 + $0xa58] sm:$0xff]
    %v2598 = vld [vmem:[#allocation8 + $0xa60] sm:$0xff]
    %v2599 = vld [vmem:[#allocation8 + $0xa68] sm:$0xff]
    %v2600 = vld [vmem:[#allocation8 + $0xa70] sm:$0xff]
    %v2601 = vld [vmem:[#allocation8 + $0xa78] sm:$0xff]
    %v2602 = vld [vmem:[#allocation8 + $0xa80] sm:$0xff]
    %v2603 = vld [vmem:[#allocation8 + $0xa88] sm:$0xff]
    %v2604 = vld [vmem:[#allocation8 + $0xa90] sm:$0xff]
    %v2605 = vld [vmem:[#allocation8 + $0xa98] sm:$0xff]
    %v2606 = vld [vmem:[#allocation8 + $0xaa0] sm:$0xff]
    %v2607 = vld [vmem:[#allocation8 + $0xaa8] sm:$0xff]
    %v2608 = vld [vmem:[#allocation8 + $0xab0] sm:$0xff]
    %v2609 = vld [vmem:[#allocation8 + $0xab8] sm:$0xff]
    %v2610 = vld [vmem:[#allocation8 + $0xac0] sm:$0xff]
    %v2611 = vld [vmem:[#allocation8 + $0xac8] sm:$0xff]
    %v2612 = vld [vmem:[#allocation8 + $0xad0] sm:$0xff]
    %v2613 = vld [vmem:[#allocation8 + $0xad8] sm:$0xff]
    %v2614 = vld [vmem:[#allocation8 + $0xae0] sm:$0xff]
    %v2615 = vld [vmem:[#allocation8 + $0xae8] sm:$0xff]
    %v2616 = vld [vmem:[#allocation8 + $0xaf0] sm:$0xff]
    %v2617 = vld [vmem:[#allocation8 + $0xaf8] sm:$0xff]
    %v2618 = vld [vmem:[#allocation8 + $0xb00] sm:$0xff]
    %v2619 = vld [vmem:[#allocation8 + $0xb08] sm:$0xff]
    %v2620 = vld [vmem:[#allocation8 + $0xb10] sm:$0xff]
    %v2621 = vld [vmem:[#allocation8 + $0xb18] sm:$0xff]
    %v2622 = vld [vmem:[#allocation8 + $0xb20] sm:$0xff]
    %v2623 = vld [vmem:[#allocation8 + $0xb28] sm:$0xff]
    %v2624 = vld [vmem:[#allocation8 + $0xb30] sm:$0xff]
    %v2625 = vld [vmem:[#allocation8 + $0xb38] sm:$0xff]
    %v2626 = vld [vmem:[#allocation8 + $0xb40] sm:$0xff]
    %v2627 = vld [vmem:[#allocation8 + $0xb48] sm:$0xff]
    %v2628 = vld [vmem:[#allocation8 + $0xb50] sm:$0xff]
    %v2629 = vld [vmem:[#allocation8 + $0xb58] sm:$0xff]
    %v2630 = vld [vmem:[#allocation8 + $0xb60] sm:$0xff]
    %v2631 = vld [vmem:[#allocation8 + $0xb68] sm:$0xff]
    %v2632 = vld [vmem:[#allocation8 + $0xb70] sm:$0xff]
    %v2633 = vld [vmem:[#allocation8 + $0xb78] sm:$0xff]
    %v2634 = vld [vmem:[#allocation8 + $0xb80] sm:$0xff]
    %v2635 = vld [vmem:[#allocation8 + $0xb88] sm:$0xff]
    %v2636 = vld [vmem:[#allocation8 + $0xb90] sm:$0xff]
    %v2637 = vld [vmem:[#allocation8 + $0xb98] sm:$0xff]
    %v2638 = vld [vmem:[#allocation8 + $0xba0] sm:$0xff]
    %v2639 = vld [vmem:[#allocation8 + $0xba8] sm:$0xff]
    %v2640 = vld [vmem:[#allocation8 + $0xbb0] sm:$0xff]
    %v2641 = vld [vmem:[#allocation8 + $0xbb8] sm:$0xff]
    %v2642 = vld [vmem:[#allocation8 + $0xbc0] sm:$0xff]
    %v2643 = vld [vmem:[#allocation8 + $0xbc8] sm:$0xff]
    %v2644 = vld [vmem:[#allocation8 + $0xbd0] sm:$0xff]
    %v2645 = vld [vmem:[#allocation8 + $0xbd8] sm:$0xff]
    %v2646 = vld [vmem:[#allocation8 + $0xbe0] sm:$0xff]
    %v2647 = vld [vmem:[#allocation8 + $0xbe8] sm:$0xff]
    %v2648 = vld [vmem:[#allocation8 + $0xbf0] sm:$0xff]
    %v2649 = vld [vmem:[#allocation8 + $0xbf8] sm:$0xff]
    %v2650 = vld [vmem:[#allocation8 + $0xc00] sm:$0xff]
    %v2651 = vld [vmem:[#allocation8 + $0xc08] sm:$0xff]
    %v2652 = vld [vmem:[#allocation8 + $0xc10] sm:$0xff]
    %v2653 = vld [vmem:[#allocation8 + $0xc18] sm:$0xff]
    %v2654 = vld [vmem:[#allocation8 + $0xc20] sm:$0xff]
    %v2655 = vld [vmem:[#allocation8 + $0xc28] sm:$0xff]
    %v2656 = vld [vmem:[#allocation8 + $0xc30] sm:$0xff]
    %v2657 = vld [vmem:[#allocation8 + $0xc38] sm:$0xff]
    %v2658 = vld [vmem:[#allocation8 + $0xc40] sm:$0xff]
    %v2659 = vld [vmem:[#allocation8 + $0xc48] sm:$0xff]
    %v2660 = vld [vmem:[#allocation8 + $0xc50] sm:$0xff]
    %v2661 = vld [vmem:[#allocation8 + $0xc58] sm:$0xff]
    %v2662 = vld [vmem:[#allocation8 + $0xc60] sm:$0xff]
    %v2663 = vld [vmem:[#allocation8 + $0xc68] sm:$0xff]
    %v2664 = vld [vmem:[#allocation8 + $0xc70] sm:$0xff]
    %v2665 = vld [vmem:[#allocation8 + $0xc78] sm:$0xff]
    %v2666 = vld [vmem:[#allocation8 + $0xc80] sm:$0xff]
    %v2667 = vld [vmem:[#allocation8 + $0xc88] sm:$0xff]
    %v2668 = vld [vmem:[#allocation8 + $0xc90] sm:$0xff]
    %v2669 = vld [vmem:[#allocation8 + $0xc98] sm:$0xff]
    %v2670 = vld [vmem:[#allocation8 + $0xca0] sm:$0xff]
    %v2671 = vld [vmem:[#allocation8 + $0xca8] sm:$0xff]
    %v2672 = vld [vmem:[#allocation8 + $0xcb0] sm:$0xff]
    %v2673 = vld [vmem:[#allocation8 + $0xcb8] sm:$0xff]
    %v2674 = vld [vmem:[#allocation8 + $0xcc0] sm:$0xff]
    %v2675 = vld [vmem:[#allocation8 + $0xcc8] sm:$0xff]
    %v2676 = vld [vmem:[#allocation8 + $0xcd0] sm:$0xff]
    %v2677 = vld [vmem:[#allocation8 + $0xcd8] sm:$0xff]
    %v2678 = vld [vmem:[#allocation8 + $0xce0] sm:$0xff]
    %v2679 = vld [vmem:[#allocation8 + $0xce8] sm:$0xff]
    %v2680 = vld [vmem:[#allocation8 + $0xcf0] sm:$0xff]
    %v2681 = vld [vmem:[#allocation8 + $0xcf8] sm:$0xff]
    %v2682 = vld [vmem:[#allocation8 + $0xd00] sm:$0xff]
    %v2683 = vld [vmem:[#allocation8 + $0xd08] sm:$0xff]
    %v2684 = vld [vmem:[#allocation8 + $0xd10] sm:$0xff]
    %v2685 = vld [vmem:[#allocation8 + $0xd18] sm:$0xff]
    %v2686 = vld [vmem:[#allocation8 + $0xd20] sm:$0xff]
    %v2687 = vld [vmem:[#allocation8 + $0xd28] sm:$0xff]
    %v2688 = vld [vmem:[#allocation8 + $0xd30] sm:$0xff]
    %v2689 = vld [vmem:[#allocation8 + $0xd38] sm:$0xff]
    %v2690 = vld [vmem:[#allocation8 + $0xd40] sm:$0xff]
    %v2691 = vld [vmem:[#allocation8 + $0xd48] sm:$0xff]
    %v2692 = vld [vmem:[#allocation8 + $0xd50] sm:$0xff]
    %v2693 = vld [vmem:[#allocation8 + $0xd58] sm:$0xff]
    %v2694 = vld [vmem:[#allocation8 + $0xd60] sm:$0xff]
    %v2695 = vld [vmem:[#allocation8 + $0xd68] sm:$0xff]
    %v2696 = vld [vmem:[#allocation8 + $0xd70] sm:$0xff]
    %v2697 = vld [vmem:[#allocation8 + $0xd78] sm:$0xff]
    %v2698 = vld [vmem:[#allocation8 + $0xd80] sm:$0xff]
    %v2699 = vld [vmem:[#allocation8 + $0xd88] sm:$0xff]
    %v2700 = vld [vmem:[#allocation8 + $0xd90] sm:$0xff]
    %v2701 = vld [vmem:[#allocation8 + $0xd98] sm:$0xff]
    %v2702 = vld [vmem:[#allocation8 + $0xda0] sm:$0xff]
    %v2703 = vld [vmem:[#allocation8 + $0xda8] sm:$0xff]
    %v2704 = vld [vmem:[#allocation8 + $0xdb0] sm:$0xff]
    %v2705 = vld [vmem:[#allocation8 + $0xdb8] sm:$0xff]
    %v2706 = vld [vmem:[#allocation8 + $0xdc0] sm:$0xff]
    %v2707 = vld [vmem:[#allocation8 + $0xdc8] sm:$0xff]
    %v2708 = vld [vmem:[#allocation8 + $0xdd0] sm:$0xff]
    %v2709 = vld [vmem:[#allocation8 + $0xdd8] sm:$0xff]
    %v2710 = vld [vmem:[#allocation8 + $0xde0] sm:$0xff]
    %v2711 = vld [vmem:[#allocation8 + $0xde8] sm:$0xff]
    %v2712 = vld [vmem:[#allocation8 + $0xdf0] sm:$0xff]
    %v2713 = vld [vmem:[#allocation8 + $0xdf8] sm:$0xff]
    %v2714 = vld [vmem:[#allocation8 + $0xe00] sm:$0xff]
    %v2715 = vld [vmem:[#allocation8 + $0xe08] sm:$0xff]
    %v2716 = vld [vmem:[#allocation8 + $0xe10] sm:$0xff]
    %v2717 = vld [vmem:[#allocation8 + $0xe18] sm:$0xff]
    %v2718 = vld [vmem:[#allocation8 + $0xe20] sm:$0xff]
    %v2719 = vld [vmem:[#allocation8 + $0xe28] sm:$0xff]
    %v2720 = vld [vmem:[#allocation8 + $0xe30] sm:$0xff]
    %v2721 = vld [vmem:[#allocation8 + $0xe38] sm:$0xff]
    %v2722 = vld [vmem:[#allocation8 + $0xe40] sm:$0xff]
    %v2723 = vld [vmem:[#allocation8 + $0xe48] sm:$0xff]
    %v2724 = vld [vmem:[#allocation8 + $0xe50] sm:$0xff]
    %v2725 = vld [vmem:[#allocation8 + $0xe58] sm:$0xff]
    %v2726 = vld [vmem:[#allocation8 + $0xe60] sm:$0xff]
    %v2727 = vld [vmem:[#allocation8 + $0xe68] sm:$0xff]
    %v2728 = vld [vmem:[#allocation8 + $0xe70] sm:$0xff]
    %v2729 = vld [vmem:[#allocation8 + $0xe78] sm:$0xff]
    %v2730 = vld [vmem:[#allocation8 + $0xe80] sm:$0xff]
    %v2731 = vld [vmem:[#allocation8 + $0xe88] sm:$0xff]
    %v2732 = vld [vmem:[#allocation8 + $0xe90] sm:$0xff]
    %v2733 = vld [vmem:[#allocation8 + $0xe98] sm:$0xff]
    %v2734 = vld [vmem:[#allocation8 + $0xea0] sm:$0xff]
    %v2735 = vld [vmem:[#allocation8 + $0xea8] sm:$0xff]
    %v2736 = vld [vmem:[#allocation8 + $0xeb0] sm:$0xff]
    %v2737 = vld [vmem:[#allocation8 + $0xeb8] sm:$0xff]
    %v2738 = vld [vmem:[#allocation8 + $0xec0] sm:$0xff]
    %v2739 = vld [vmem:[#allocation8 + $0xec8] sm:$0xff]
    %v2740 = vld [vmem:[#allocation8 + $0xed0] sm:$0xff]
    %v2741 = vld [vmem:[#allocation8 + $0xed8] sm:$0xff]
    %v2742 = vld [vmem:[#allocation8 + $0xee0] sm:$0xff]
    %v2743 = vld [vmem:[#allocation8 + $0xee8] sm:$0xff]
    %v2744 = vld [vmem:[#allocation8 + $0xef0] sm:$0xff]
    %v2745 = vld [vmem:[#allocation8 + $0xef8] sm:$0xff]
    %v2746 = vld [vmem:[#allocation8 + $0xf00] sm:$0xff]
    %v2747 = vld [vmem:[#allocation8 + $0xf08] sm:$0xff]
    %v2748 = vld [vmem:[#allocation8 + $0xf10] sm:$0xff]
    %v2749 = vld [vmem:[#allocation8 + $0xf18] sm:$0xff]
    %v2750 = vld [vmem:[#allocation8 + $0xf20] sm:$0xff]
    %v2751 = vld [vmem:[#allocation8 + $0xf28] sm:$0xff]
    %v2752 = vld [vmem:[#allocation8 + $0xf30] sm:$0xff]
    %v2753 = vld [vmem:[#allocation8 + $0xf38] sm:$0xff]
    %v2754 = vld [vmem:[#allocation8 + $0xf40] sm:$0xff]
    %v2755 = vld [vmem:[#allocation8 + $0xf48] sm:$0xff]
    %v2756 = vld [vmem:[#allocation8 + $0xf50] sm:$0xff]
    %v2757 = vld [vmem:[#allocation8 + $0xf58] sm:$0xff]
    %v2758 = vld [vmem:[#allocation8 + $0xf60] sm:$0xff]
    %v2759 = vld [vmem:[#allocation8 + $0xf68] sm:$0xff]
    %v2760 = vld [vmem:[#allocation8 + $0xf70] sm:$0xff]
    %v2761 = vld [vmem:[#allocation8 + $0xf78] sm:$0xff]
    %v2762 = vld [vmem:[#allocation8 + $0xf80] sm:$0xff]
    %v2763 = vld [vmem:[#allocation8 + $0xf88] sm:$0xff]
    %v2764 = vld [vmem:[#allocation8 + $0xf90] sm:$0xff]
    %v2765 = vld [vmem:[#allocation8 + $0xf98] sm:$0xff]
    %v2766 = vld [vmem:[#allocation8 + $0xfa0] sm:$0xff]
    %v2767 = vld [vmem:[#allocation8 + $0xfa8] sm:$0xff]
    %v2768 = vld [vmem:[#allocation8 + $0xfb0] sm:$0xff]
    %v2769 = vld [vmem:[#allocation8 + $0xfb8] sm:$0xff]
    %v2770 = vld [vmem:[#allocation8 + $0xfc0] sm:$0xff]
    %v2771 = vld [vmem:[#allocation8 + $0xfc8] sm:$0xff]
    %v2772 = vld [vmem:[#allocation8 + $0xfd0] sm:$0xff]
    %v2773 = vld [vmem:[#allocation8 + $0xfd8] sm:$0xff]
    %v2774 = vld [vmem:[#allocation8 + $0xfe0] sm:$0xff]
    %v2775 = vld [vmem:[#allocation8 + $0xfe8] sm:$0xff]
    %v2776 = vld [vmem:[#allocation8 + $0xff0] sm:$0xff]
    %v2777 = vld [vmem:[#allocation8 + $0xff8] sm:$0xff]
    %v2778 = vld [vmem:[#allocation9] sm:$0xf]
    %v2780 = vlaneseq
    %v2781 = vshrl.u32 %v2780, 7
    %v2782 = vsub.s32 0, %v2781
    %v2783 = vrot.slane %v2778, %v2782
    %v2784 = vlaneseq
    %v2785 = vshrl.u32 %v2784, 7
    %v2786 = vsub.s32 1, %v2785
    %v2787 = vrot.slane %v2778, %v2786
    %v2788 = vlaneseq
    %v2789 = vshrl.u32 %v2788, 7
    %v2790 = vsub.s32 2, %v2789
    %v2791 = vrot.slane %v2778, %v2790
    %v2792 = vlaneseq
    %v2793 = vshrl.u32 %v2792, 7
    %v2794 = vsub.s32 3, %v2793
    %v2795 = vrot.slane %v2778, %v2794
    %v3312 = vunpack.c.l.b16 %v2266
    %v3313 = vunpack.c.h.b16 %v2266
    %v3314 = vunpack.c.l.b16 %v2267
    %v3315 = vunpack.c.h.b16 %v2267
    %v3316 = vunpack.c.l.b16 %v2268
    %v3317 = vunpack.c.h.b16 %v2268
    %v3318 = vunpack.c.l.b16 %v2269
    %v3319 = vunpack.c.h.b16 %v2269
    %v3320 = vunpack.c.l.b16 %v2270
    %v3321 = vunpack.c.h.b16 %v2270
    %v3322 = vunpack.c.l.b16 %v2271
    %v3323 = vunpack.c.h.b16 %v2271
    %v3324 = vunpack.c.l.b16 %v2272
    %v3325 = vunpack.c.h.b16 %v2272
    %v3326 = vunpack.c.l.b16 %v2273
    %v3327 = vunpack.c.h.b16 %v2273
    %v3328 = vunpack.c.l.b16 %v2274
    %v3329 = vunpack.c.h.b16 %v2274
    %v3330 = vunpack.c.l.b16 %v2275
    %v3331 = vunpack.c.h.b16 %v2275
    %v3332 = vunpack.c.l.b16 %v2276
    %v3333 = vunpack.c.h.b16 %v2276
    %v3334 = vunpack.c.l.b16 %v2277
    %v3335 = vunpack.c.h.b16 %v2277
    %v3336 = vunpack.c.l.b16 %v2278
    %v3337 = vunpack.c.h.b16 %v2278
    %v3338 = vunpack.c.l.b16 %v2279
    %v3339 = vunpack.c.h.b16 %v2279
    %v3340 = vunpack.c.l.b16 %v2280
    %v3341 = vunpack.c.h.b16 %v2280
    %v3342 = vunpack.c.l.b16 %v2281
    %v3343 = vunpack.c.h.b16 %v2281
    %v3344 = vunpack.c.l.b16 %v2282
    %v3345 = vunpack.c.h.b16 %v2282
    %v3346 = vunpack.c.l.b16 %v2283
    %v3347 = vunpack.c.h.b16 %v2283
    %v3348 = vunpack.c.l.b16 %v2284
    %v3349 = vunpack.c.h.b16 %v2284
    %v3350 = vunpack.c.l.b16 %v2285
    %v3351 = vunpack.c.h.b16 %v2285
    %v3352 = vunpack.c.l.b16 %v2286
    %v3353 = vunpack.c.h.b16 %v2286
    %v3354 = vunpack.c.l.b16 %v2287
    %v3355 = vunpack.c.h.b16 %v2287
    %v3356 = vunpack.c.l.b16 %v2288
    %v3357 = vunpack.c.h.b16 %v2288
    %v3358 = vunpack.c.l.b16 %v2289
    %v3359 = vunpack.c.h.b16 %v2289
    %v3360 = vunpack.c.l.b16 %v2290
    %v3361 = vunpack.c.h.b16 %v2290
    %v3362 = vunpack.c.l.b16 %v2291
    %v3363 = vunpack.c.h.b16 %v2291
    %v3364 = vunpack.c.l.b16 %v2292
    %v3365 = vunpack.c.h.b16 %v2292
    %v3366 = vunpack.c.l.b16 %v2293
    %v3367 = vunpack.c.h.b16 %v2293
    %v3368 = vunpack.c.l.b16 %v2294
    %v3369 = vunpack.c.h.b16 %v2294
    %v3370 = vunpack.c.l.b16 %v2295
    %v3371 = vunpack.c.h.b16 %v2295
    %v3372 = vunpack.c.l.b16 %v2296
    %v3373 = vunpack.c.h.b16 %v2296
    %v3374 = vunpack.c.l.b16 %v2297
    %v3375 = vunpack.c.h.b16 %v2297
    %v3376 = vunpack.c.l.b16 %v2298
    %v3377 = vunpack.c.h.b16 %v2298
    %v3378 = vunpack.c.l.b16 %v2299
    %v3379 = vunpack.c.h.b16 %v2299
    %v3380 = vunpack.c.l.b16 %v2300
    %v3381 = vunpack.c.h.b16 %v2300
    %v3382 = vunpack.c.l.b16 %v2301
    %v3383 = vunpack.c.h.b16 %v2301
    %v3384 = vunpack.c.l.b16 %v2302
    %v3385 = vunpack.c.h.b16 %v2302
    %v3386 = vunpack.c.l.b16 %v2303
    %v3387 = vunpack.c.h.b16 %v2303
    %v3388 = vunpack.c.l.b16 %v2304
    %v3389 = vunpack.c.h.b16 %v2304
    %v3390 = vunpack.c.l.b16 %v2305
    %v3391 = vunpack.c.h.b16 %v2305
    %v3392 = vunpack.c.l.b16 %v2306
    %v3393 = vunpack.c.h.b16 %v2306
    %v3394 = vunpack.c.l.b16 %v2307
    %v3395 = vunpack.c.h.b16 %v2307
    %v3396 = vunpack.c.l.b16 %v2308
    %v3397 = vunpack.c.h.b16 %v2308
    %v3398 = vunpack.c.l.b16 %v2309
    %v3399 = vunpack.c.h.b16 %v2309
    %v3400 = vunpack.c.l.b16 %v2310
    %v3401 = vunpack.c.h.b16 %v2310
    %v3402 = vunpack.c.l.b16 %v2311
    %v3403 = vunpack.c.h.b16 %v2311
    %v3404 = vunpack.c.l.b16 %v2312
    %v3405 = vunpack.c.h.b16 %v2312
    %v3406 = vunpack.c.l.b16 %v2313
    %v3407 = vunpack.c.h.b16 %v2313
    %v3408 = vunpack.c.l.b16 %v2314
    %v3409 = vunpack.c.h.b16 %v2314
    %v3410 = vunpack.c.l.b16 %v2315
    %v3411 = vunpack.c.h.b16 %v2315
    %v3412 = vunpack.c.l.b16 %v2316
    %v3413 = vunpack.c.h.b16 %v2316
    %v3414 = vunpack.c.l.b16 %v2317
    %v3415 = vunpack.c.h.b16 %v2317
    %v3416 = vunpack.c.l.b16 %v2318
    %v3417 = vunpack.c.h.b16 %v2318
    %v3418 = vunpack.c.l.b16 %v2319
    %v3419 = vunpack.c.h.b16 %v2319
    %v3420 = vunpack.c.l.b16 %v2320
    %v3421 = vunpack.c.h.b16 %v2320
    %v3422 = vunpack.c.l.b16 %v2321
    %v3423 = vunpack.c.h.b16 %v2321
    %v3424 = vunpack.c.l.b16 %v2322
    %v3425 = vunpack.c.h.b16 %v2322
    %v3426 = vunpack.c.l.b16 %v2323
    %v3427 = vunpack.c.h.b16 %v2323
    %v3428 = vunpack.c.l.b16 %v2324
    %v3429 = vunpack.c.h.b16 %v2324
    %v3430 = vunpack.c.l.b16 %v2325
    %v3431 = vunpack.c.h.b16 %v2325
    %v3432 = vunpack.c.l.b16 %v2326
    %v3433 = vunpack.c.h.b16 %v2326
    %v3434 = vunpack.c.l.b16 %v2327
    %v3435 = vunpack.c.h.b16 %v2327
    %v3436 = vunpack.c.l.b16 %v2328
    %v3437 = vunpack.c.h.b16 %v2328
    %v3438 = vunpack.c.l.b16 %v2329
    %v3439 = vunpack.c.h.b16 %v2329
    %v3440 = vunpack.c.l.b16 %v2330
    %v3441 = vunpack.c.h.b16 %v2330
    %v3442 = vunpack.c.l.b16 %v2331
    %v3443 = vunpack.c.h.b16 %v2331
    %v3444 = vunpack.c.l.b16 %v2332
    %v3445 = vunpack.c.h.b16 %v2332
    %v3446 = vunpack.c.l.b16 %v2333
    %v3447 = vunpack.c.h.b16 %v2333
    %v3448 = vunpack.c.l.b16 %v2334
    %v3449 = vunpack.c.h.b16 %v2334
    %v3450 = vunpack.c.l.b16 %v2335
    %v3451 = vunpack.c.h.b16 %v2335
    %v3452 = vunpack.c.l.b16 %v2336
    %v3453 = vunpack.c.h.b16 %v2336
    %v3454 = vunpack.c.l.b16 %v2337
    %v3455 = vunpack.c.h.b16 %v2337
    %v3456 = vunpack.c.l.b16 %v2338
    %v3457 = vunpack.c.h.b16 %v2338
    %v3458 = vunpack.c.l.b16 %v2339
    %v3459 = vunpack.c.h.b16 %v2339
    %v3460 = vunpack.c.l.b16 %v2340
    %v3461 = vunpack.c.h.b16 %v2340
    %v3462 = vunpack.c.l.b16 %v2341
    %v3463 = vunpack.c.h.b16 %v2341
    %v3464 = vunpack.c.l.b16 %v2342
    %v3465 = vunpack.c.h.b16 %v2342
    %v3466 = vunpack.c.l.b16 %v2343
    %v3467 = vunpack.c.h.b16 %v2343
    %v3468 = vunpack.c.l.b16 %v2344
    %v3469 = vunpack.c.h.b16 %v2344
    %v3470 = vunpack.c.l.b16 %v2345
    %v3471 = vunpack.c.h.b16 %v2345
    %v3472 = vunpack.c.l.b16 %v2346
    %v3473 = vunpack.c.h.b16 %v2346
    %v3474 = vunpack.c.l.b16 %v2347
    %v3475 = vunpack.c.h.b16 %v2347
    %v3476 = vunpack.c.l.b16 %v2348
    %v3477 = vunpack.c.h.b16 %v2348
    %v3478 = vunpack.c.l.b16 %v2349
    %v3479 = vunpack.c.h.b16 %v2349
    %v3480 = vunpack.c.l.b16 %v2350
    %v3481 = vunpack.c.h.b16 %v2350
    %v3482 = vunpack.c.l.b16 %v2351
    %v3483 = vunpack.c.h.b16 %v2351
    %v3484 = vunpack.c.l.b16 %v2352
    %v3485 = vunpack.c.h.b16 %v2352
    %v3486 = vunpack.c.l.b16 %v2353
    %v3487 = vunpack.c.h.b16 %v2353
    %v3488 = vunpack.c.l.b16 %v2354
    %v3489 = vunpack.c.h.b16 %v2354
    %v3490 = vunpack.c.l.b16 %v2355
    %v3491 = vunpack.c.h.b16 %v2355
    %v3492 = vunpack.c.l.b16 %v2356
    %v3493 = vunpack.c.h.b16 %v2356
    %v3494 = vunpack.c.l.b16 %v2357
    %v3495 = vunpack.c.h.b16 %v2357
    %v3496 = vunpack.c.l.b16 %v2358
    %v3497 = vunpack.c.h.b16 %v2358
    %v3498 = vunpack.c.l.b16 %v2359
    %v3499 = vunpack.c.h.b16 %v2359
    %v3500 = vunpack.c.l.b16 %v2360
    %v3501 = vunpack.c.h.b16 %v2360
    %v3502 = vunpack.c.l.b16 %v2361
    %v3503 = vunpack.c.h.b16 %v2361
    %v3504 = vunpack.c.l.b16 %v2362
    %v3505 = vunpack.c.h.b16 %v2362
    %v3506 = vunpack.c.l.b16 %v2363
    %v3507 = vunpack.c.h.b16 %v2363
    %v3508 = vunpack.c.l.b16 %v2364
    %v3509 = vunpack.c.h.b16 %v2364
    %v3510 = vunpack.c.l.b16 %v2365
    %v3511 = vunpack.c.h.b16 %v2365
    %v3512 = vunpack.c.l.b16 %v2366
    %v3513 = vunpack.c.h.b16 %v2366
    %v3514 = vunpack.c.l.b16 %v2367
    %v3515 = vunpack.c.h.b16 %v2367
    %v3516 = vunpack.c.l.b16 %v2368
    %v3517 = vunpack.c.h.b16 %v2368
    %v3518 = vunpack.c.l.b16 %v2369
    %v3519 = vunpack.c.h.b16 %v2369
    %v3520 = vunpack.c.l.b16 %v2370
    %v3521 = vunpack.c.h.b16 %v2370
    %v3522 = vunpack.c.l.b16 %v2371
    %v3523 = vunpack.c.h.b16 %v2371
    %v3524 = vunpack.c.l.b16 %v2372
    %v3525 = vunpack.c.h.b16 %v2372
    %v3526 = vunpack.c.l.b16 %v2373
    %v3527 = vunpack.c.h.b16 %v2373
    %v3528 = vunpack.c.l.b16 %v2374
    %v3529 = vunpack.c.h.b16 %v2374
    %v3530 = vunpack.c.l.b16 %v2375
    %v3531 = vunpack.c.h.b16 %v2375
    %v3532 = vunpack.c.l.b16 %v2376
    %v3533 = vunpack.c.h.b16 %v2376
    %v3534 = vunpack.c.l.b16 %v2377
    %v3535 = vunpack.c.h.b16 %v2377
    %v3536 = vunpack.c.l.b16 %v2378
    %v3537 = vunpack.c.h.b16 %v2378
    %v3538 = vunpack.c.l.b16 %v2379
    %v3539 = vunpack.c.h.b16 %v2379
    %v3540 = vunpack.c.l.b16 %v2380
    %v3541 = vunpack.c.h.b16 %v2380
    %v3542 = vunpack.c.l.b16 %v2381
    %v3543 = vunpack.c.h.b16 %v2381
    %v3544 = vunpack.c.l.b16 %v2382
    %v3545 = vunpack.c.h.b16 %v2382
    %v3546 = vunpack.c.l.b16 %v2383
    %v3547 = vunpack.c.h.b16 %v2383
    %v3548 = vunpack.c.l.b16 %v2384
    %v3549 = vunpack.c.h.b16 %v2384
    %v3550 = vunpack.c.l.b16 %v2385
    %v3551 = vunpack.c.h.b16 %v2385
    %v3552 = vunpack.c.l.b16 %v2386
    %v3553 = vunpack.c.h.b16 %v2386
    %v3554 = vunpack.c.l.b16 %v2387
    %v3555 = vunpack.c.h.b16 %v2387
    %v3556 = vunpack.c.l.b16 %v2388
    %v3557 = vunpack.c.h.b16 %v2388
    %v3558 = vunpack.c.l.b16 %v2389
    %v3559 = vunpack.c.h.b16 %v2389
    %v3560 = vunpack.c.l.b16 %v2390
    %v3561 = vunpack.c.h.b16 %v2390
    %v3562 = vunpack.c.l.b16 %v2391
    %v3563 = vunpack.c.h.b16 %v2391
    %v3564 = vunpack.c.l.b16 %v2392
    %v3565 = vunpack.c.h.b16 %v2392
    %v3566 = vunpack.c.l.b16 %v2393
    %v3567 = vunpack.c.h.b16 %v2393
    %v3568 = vunpack.c.l.b16 %v2394
    %v3569 = vunpack.c.h.b16 %v2394
    %v3570 = vunpack.c.l.b16 %v2395
    %v3571 = vunpack.c.h.b16 %v2395
    %v3572 = vunpack.c.l.b16 %v2396
    %v3573 = vunpack.c.h.b16 %v2396
    %v3574 = vunpack.c.l.b16 %v2397
    %v3575 = vunpack.c.h.b16 %v2397
    %v3576 = vunpack.c.l.b16 %v2398
    %v3577 = vunpack.c.h.b16 %v2398
    %v3578 = vunpack.c.l.b16 %v2399
    %v3579 = vunpack.c.h.b16 %v2399
    %v3580 = vunpack.c.l.b16 %v2400
    %v3581 = vunpack.c.h.b16 %v2400
    %v3582 = vunpack.c.l.b16 %v2401
    %v3583 = vunpack.c.h.b16 %v2401
    %v3584 = vunpack.c.l.b16 %v2402
    %v3585 = vunpack.c.h.b16 %v2402
    %v3586 = vunpack.c.l.b16 %v2403
    %v3587 = vunpack.c.h.b16 %v2403
    %v3588 = vunpack.c.l.b16 %v2404
    %v3589 = vunpack.c.h.b16 %v2404
    %v3590 = vunpack.c.l.b16 %v2405
    %v3591 = vunpack.c.h.b16 %v2405
    %v3592 = vunpack.c.l.b16 %v2406
    %v3593 = vunpack.c.h.b16 %v2406
    %v3594 = vunpack.c.l.b16 %v2407
    %v3595 = vunpack.c.h.b16 %v2407
    %v3596 = vunpack.c.l.b16 %v2408
    %v3597 = vunpack.c.h.b16 %v2408
    %v3598 = vunpack.c.l.b16 %v2409
    %v3599 = vunpack.c.h.b16 %v2409
    %v3600 = vunpack.c.l.b16 %v2410
    %v3601 = vunpack.c.h.b16 %v2410
    %v3602 = vunpack.c.l.b16 %v2411
    %v3603 = vunpack.c.h.b16 %v2411
    %v3604 = vunpack.c.l.b16 %v2412
    %v3605 = vunpack.c.h.b16 %v2412
    %v3606 = vunpack.c.l.b16 %v2413
    %v3607 = vunpack.c.h.b16 %v2413
    %v3608 = vunpack.c.l.b16 %v2414
    %v3609 = vunpack.c.h.b16 %v2414
    %v3610 = vunpack.c.l.b16 %v2415
    %v3611 = vunpack.c.h.b16 %v2415
    %v3612 = vunpack.c.l.b16 %v2416
    %v3613 = vunpack.c.h.b16 %v2416
    %v3614 = vunpack.c.l.b16 %v2417
    %v3615 = vunpack.c.h.b16 %v2417
    %v3616 = vunpack.c.l.b16 %v2418
    %v3617 = vunpack.c.h.b16 %v2418
    %v3618 = vunpack.c.l.b16 %v2419
    %v3619 = vunpack.c.h.b16 %v2419
    %v3620 = vunpack.c.l.b16 %v2420
    %v3621 = vunpack.c.h.b16 %v2420
    %v3622 = vunpack.c.l.b16 %v2421
    %v3623 = vunpack.c.h.b16 %v2421
    %v3624 = vunpack.c.l.b16 %v2422
    %v3625 = vunpack.c.h.b16 %v2422
    %v3626 = vunpack.c.l.b16 %v2423
    %v3627 = vunpack.c.h.b16 %v2423
    %v3628 = vunpack.c.l.b16 %v2424
    %v3629 = vunpack.c.h.b16 %v2424
    %v3630 = vunpack.c.l.b16 %v2425
    %v3631 = vunpack.c.h.b16 %v2425
    %v3632 = vunpack.c.l.b16 %v2426
    %v3633 = vunpack.c.h.b16 %v2426
    %v3634 = vunpack.c.l.b16 %v2427
    %v3635 = vunpack.c.h.b16 %v2427
    %v3636 = vunpack.c.l.b16 %v2428
    %v3637 = vunpack.c.h.b16 %v2428
    %v3638 = vunpack.c.l.b16 %v2429
    %v3639 = vunpack.c.h.b16 %v2429
    %v3640 = vunpack.c.l.b16 %v2430
    %v3641 = vunpack.c.h.b16 %v2430
    %v3642 = vunpack.c.l.b16 %v2431
    %v3643 = vunpack.c.h.b16 %v2431
    %v3644 = vunpack.c.l.b16 %v2432
    %v3645 = vunpack.c.h.b16 %v2432
    %v3646 = vunpack.c.l.b16 %v2433
    %v3647 = vunpack.c.h.b16 %v2433
    %v3648 = vunpack.c.l.b16 %v2434
    %v3649 = vunpack.c.h.b16 %v2434
    %v3650 = vunpack.c.l.b16 %v2435
    %v3651 = vunpack.c.h.b16 %v2435
    %v3652 = vunpack.c.l.b16 %v2436
    %v3653 = vunpack.c.h.b16 %v2436
    %v3654 = vunpack.c.l.b16 %v2437
    %v3655 = vunpack.c.h.b16 %v2437
    %v3656 = vunpack.c.l.b16 %v2438
    %v3657 = vunpack.c.h.b16 %v2438
    %v3658 = vunpack.c.l.b16 %v2439
    %v3659 = vunpack.c.h.b16 %v2439
    %v3660 = vunpack.c.l.b16 %v2440
    %v3661 = vunpack.c.h.b16 %v2440
    %v3662 = vunpack.c.l.b16 %v2441
    %v3663 = vunpack.c.h.b16 %v2441
    %v3664 = vunpack.c.l.b16 %v2442
    %v3665 = vunpack.c.h.b16 %v2442
    %v3666 = vunpack.c.l.b16 %v2443
    %v3667 = vunpack.c.h.b16 %v2443
    %v3668 = vunpack.c.l.b16 %v2444
    %v3669 = vunpack.c.h.b16 %v2444
    %v3670 = vunpack.c.l.b16 %v2445
    %v3671 = vunpack.c.h.b16 %v2445
    %v3672 = vunpack.c.l.b16 %v2446
    %v3673 = vunpack.c.h.b16 %v2446
    %v3674 = vunpack.c.l.b16 %v2447
    %v3675 = vunpack.c.h.b16 %v2447
    %v3676 = vunpack.c.l.b16 %v2448
    %v3677 = vunpack.c.h.b16 %v2448
    %v3678 = vunpack.c.l.b16 %v2449
    %v3679 = vunpack.c.h.b16 %v2449
    %v3680 = vunpack.c.l.b16 %v2450
    %v3681 = vunpack.c.h.b16 %v2450
    %v3682 = vunpack.c.l.b16 %v2451
    %v3683 = vunpack.c.h.b16 %v2451
    %v3684 = vunpack.c.l.b16 %v2452
    %v3685 = vunpack.c.h.b16 %v2452
    %v3686 = vunpack.c.l.b16 %v2453
    %v3687 = vunpack.c.h.b16 %v2453
    %v3688 = vunpack.c.l.b16 %v2454
    %v3689 = vunpack.c.h.b16 %v2454
    %v3690 = vunpack.c.l.b16 %v2455
    %v3691 = vunpack.c.h.b16 %v2455
    %v3692 = vunpack.c.l.b16 %v2456
    %v3693 = vunpack.c.h.b16 %v2456
    %v3694 = vunpack.c.l.b16 %v2457
    %v3695 = vunpack.c.h.b16 %v2457
    %v3696 = vunpack.c.l.b16 %v2458
    %v3697 = vunpack.c.h.b16 %v2458
    %v3698 = vunpack.c.l.b16 %v2459
    %v3699 = vunpack.c.h.b16 %v2459
    %v3700 = vunpack.c.l.b16 %v2460
    %v3701 = vunpack.c.h.b16 %v2460
    %v3702 = vunpack.c.l.b16 %v2461
    %v3703 = vunpack.c.h.b16 %v2461
    %v3704 = vunpack.c.l.b16 %v2462
    %v3705 = vunpack.c.h.b16 %v2462
    %v3706 = vunpack.c.l.b16 %v2463
    %v3707 = vunpack.c.h.b16 %v2463
    %v3708 = vunpack.c.l.b16 %v2464
    %v3709 = vunpack.c.h.b16 %v2464
    %v3710 = vunpack.c.l.b16 %v2465
    %v3711 = vunpack.c.h.b16 %v2465
    %v3712 = vunpack.c.l.b16 %v2466
    %v3713 = vunpack.c.h.b16 %v2466
    %v3714 = vunpack.c.l.b16 %v2467
    %v3715 = vunpack.c.h.b16 %v2467
    %v3716 = vunpack.c.l.b16 %v2468
    %v3717 = vunpack.c.h.b16 %v2468
    %v3718 = vunpack.c.l.b16 %v2469
    %v3719 = vunpack.c.h.b16 %v2469
    %v3720 = vunpack.c.l.b16 %v2470
    %v3721 = vunpack.c.h.b16 %v2470
    %v3722 = vunpack.c.l.b16 %v2471
    %v3723 = vunpack.c.h.b16 %v2471
    %v3724 = vunpack.c.l.b16 %v2472
    %v3725 = vunpack.c.h.b16 %v2472
    %v3726 = vunpack.c.l.b16 %v2473
    %v3727 = vunpack.c.h.b16 %v2473
    %v3728 = vunpack.c.l.b16 %v2474
    %v3729 = vunpack.c.h.b16 %v2474
    %v3730 = vunpack.c.l.b16 %v2475
    %v3731 = vunpack.c.h.b16 %v2475
    %v3732 = vunpack.c.l.b16 %v2476
    %v3733 = vunpack.c.h.b16 %v2476
    %v3734 = vunpack.c.l.b16 %v2477
    %v3735 = vunpack.c.h.b16 %v2477
    %v3736 = vunpack.c.l.b16 %v2478
    %v3737 = vunpack.c.h.b16 %v2478
    %v3738 = vunpack.c.l.b16 %v2479
    %v3739 = vunpack.c.h.b16 %v2479
    %v3740 = vunpack.c.l.b16 %v2480
    %v3741 = vunpack.c.h.b16 %v2480
    %v3742 = vunpack.c.l.b16 %v2481
    %v3743 = vunpack.c.h.b16 %v2481
    %v3744 = vunpack.c.l.b16 %v2482
    %v3745 = vunpack.c.h.b16 %v2482
    %v3746 = vunpack.c.l.b16 %v2483
    %v3747 = vunpack.c.h.b16 %v2483
    %v3748 = vunpack.c.l.b16 %v2484
    %v3749 = vunpack.c.h.b16 %v2484
    %v3750 = vunpack.c.l.b16 %v2485
    %v3751 = vunpack.c.h.b16 %v2485
    %v3752 = vunpack.c.l.b16 %v2486
    %v3753 = vunpack.c.h.b16 %v2486
    %v3754 = vunpack.c.l.b16 %v2487
    %v3755 = vunpack.c.h.b16 %v2487
    %v3756 = vunpack.c.l.b16 %v2488
    %v3757 = vunpack.c.h.b16 %v2488
    %v3758 = vunpack.c.l.b16 %v2489
    %v3759 = vunpack.c.h.b16 %v2489
    %v3760 = vunpack.c.l.b16 %v2490
    %v3761 = vunpack.c.h.b16 %v2490
    %v3762 = vunpack.c.l.b16 %v2491
    %v3763 = vunpack.c.h.b16 %v2491
    %v3764 = vunpack.c.l.b16 %v2492
    %v3765 = vunpack.c.h.b16 %v2492
    %v3766 = vunpack.c.l.b16 %v2493
    %v3767 = vunpack.c.h.b16 %v2493
    %v3768 = vunpack.c.l.b16 %v2494
    %v3769 = vunpack.c.h.b16 %v2494
    %v3770 = vunpack.c.l.b16 %v2495
    %v3771 = vunpack.c.h.b16 %v2495
    %v3772 = vunpack.c.l.b16 %v2496
    %v3773 = vunpack.c.h.b16 %v2496
    %v3774 = vunpack.c.l.b16 %v2497
    %v3775 = vunpack.c.h.b16 %v2497
    %v3776 = vunpack.c.l.b16 %v2498
    %v3777 = vunpack.c.h.b16 %v2498
    %v3778 = vunpack.c.l.b16 %v2499
    %v3779 = vunpack.c.h.b16 %v2499
    %v3780 = vunpack.c.l.b16 %v2500
    %v3781 = vunpack.c.h.b16 %v2500
    %v3782 = vunpack.c.l.b16 %v2501
    %v3783 = vunpack.c.h.b16 %v2501
    %v3784 = vunpack.c.l.b16 %v2502
    %v3785 = vunpack.c.h.b16 %v2502
    %v3786 = vunpack.c.l.b16 %v2503
    %v3787 = vunpack.c.h.b16 %v2503
    %v3788 = vunpack.c.l.b16 %v2504
    %v3789 = vunpack.c.h.b16 %v2504
    %v3790 = vunpack.c.l.b16 %v2505
    %v3791 = vunpack.c.h.b16 %v2505
    %v3792 = vunpack.c.l.b16 %v2506
    %v3793 = vunpack.c.h.b16 %v2506
    %v3794 = vunpack.c.l.b16 %v2507
    %v3795 = vunpack.c.h.b16 %v2507
    %v3796 = vunpack.c.l.b16 %v2508
    %v3797 = vunpack.c.h.b16 %v2508
    %v3798 = vunpack.c.l.b16 %v2509
    %v3799 = vunpack.c.h.b16 %v2509
    %v3800 = vunpack.c.l.b16 %v2510
    %v3801 = vunpack.c.h.b16 %v2510
    %v3802 = vunpack.c.l.b16 %v2511
    %v3803 = vunpack.c.h.b16 %v2511
    %v3804 = vunpack.c.l.b16 %v2512
    %v3805 = vunpack.c.h.b16 %v2512
    %v3806 = vunpack.c.l.b16 %v2513
    %v3807 = vunpack.c.h.b16 %v2513
    %v3808 = vunpack.c.l.b16 %v2514
    %v3809 = vunpack.c.h.b16 %v2514
    %v3810 = vunpack.c.l.b16 %v2515
    %v3811 = vunpack.c.h.b16 %v2515
    %v3812 = vunpack.c.l.b16 %v2516
    %v3813 = vunpack.c.h.b16 %v2516
    %v3814 = vunpack.c.l.b16 %v2517
    %v3815 = vunpack.c.h.b16 %v2517
    %v3816 = vunpack.c.l.b16 %v2518
    %v3817 = vunpack.c.h.b16 %v2518
    %v3818 = vunpack.c.l.b16 %v2519
    %v3819 = vunpack.c.h.b16 %v2519
    %v3820 = vunpack.c.l.b16 %v2520
    %v3821 = vunpack.c.h.b16 %v2520
    %v3822 = vunpack.c.l.b16 %v2521
    %v3823 = vunpack.c.h.b16 %v2521
    %v3824 = vunpack.c.l.b16 %v2522
    %v3825 = vunpack.c.h.b16 %v2522
    %v3826 = vunpack.c.l.b16 %v2523
    %v3827 = vunpack.c.h.b16 %v2523
    %v3828 = vunpack.c.l.b16 %v2524
    %v3829 = vunpack.c.h.b16 %v2524
    %v3830 = vunpack.c.l.b16 %v2525
    %v3831 = vunpack.c.h.b16 %v2525
    %v3832 = vunpack.c.l.b16 %v2526
    %v3833 = vunpack.c.h.b16 %v2526
    %v3834 = vunpack.c.l.b16 %v2527
    %v3835 = vunpack.c.h.b16 %v2527
    %v3836 = vunpack.c.l.b16 %v2528
    %v3837 = vunpack.c.h.b16 %v2528
    %v3838 = vunpack.c.l.b16 %v2529
    %v3839 = vunpack.c.h.b16 %v2529
    %v3840 = vunpack.c.l.b16 %v2530
    %v3841 = vunpack.c.h.b16 %v2530
    %v3842 = vunpack.c.l.b16 %v2531
    %v3843 = vunpack.c.h.b16 %v2531
    %v3844 = vunpack.c.l.b16 %v2532
    %v3845 = vunpack.c.h.b16 %v2532
    %v3846 = vunpack.c.l.b16 %v2533
    %v3847 = vunpack.c.h.b16 %v2533
    %v3848 = vunpack.c.l.b16 %v2534
    %v3849 = vunpack.c.h.b16 %v2534
    %v3850 = vunpack.c.l.b16 %v2535
    %v3851 = vunpack.c.h.b16 %v2535
    %v3852 = vunpack.c.l.b16 %v2536
    %v3853 = vunpack.c.h.b16 %v2536
    %v3854 = vunpack.c.l.b16 %v2537
    %v3855 = vunpack.c.h.b16 %v2537
    %v3856 = vunpack.c.l.b16 %v2538
    %v3857 = vunpack.c.h.b16 %v2538
    %v3858 = vunpack.c.l.b16 %v2539
    %v3859 = vunpack.c.h.b16 %v2539
    %v3860 = vunpack.c.l.b16 %v2540
    %v3861 = vunpack.c.h.b16 %v2540
    %v3862 = vunpack.c.l.b16 %v2541
    %v3863 = vunpack.c.h.b16 %v2541
    %v3864 = vunpack.c.l.b16 %v2542
    %v3865 = vunpack.c.h.b16 %v2542
    %v3866 = vunpack.c.l.b16 %v2543
    %v3867 = vunpack.c.h.b16 %v2543
    %v3868 = vunpack.c.l.b16 %v2544
    %v3869 = vunpack.c.h.b16 %v2544
    %v3870 = vunpack.c.l.b16 %v2545
    %v3871 = vunpack.c.h.b16 %v2545
    %v3872 = vunpack.c.l.b16 %v2546
    %v3873 = vunpack.c.h.b16 %v2546
    %v3874 = vunpack.c.l.b16 %v2547
    %v3875 = vunpack.c.h.b16 %v2547
    %v3876 = vunpack.c.l.b16 %v2548
    %v3877 = vunpack.c.h.b16 %v2548
    %v3878 = vunpack.c.l.b16 %v2549
    %v3879 = vunpack.c.h.b16 %v2549
    %v3880 = vunpack.c.l.b16 %v2550
    %v3881 = vunpack.c.h.b16 %v2550
    %v3882 = vunpack.c.l.b16 %v2551
    %v3883 = vunpack.c.h.b16 %v2551
    %v3884 = vunpack.c.l.b16 %v2552
    %v3885 = vunpack.c.h.b16 %v2552
    %v3886 = vunpack.c.l.b16 %v2553
    %v3887 = vunpack.c.h.b16 %v2553
    %v3888 = vunpack.c.l.b16 %v2554
    %v3889 = vunpack.c.h.b16 %v2554
    %v3890 = vunpack.c.l.b16 %v2555
    %v3891 = vunpack.c.h.b16 %v2555
    %v3892 = vunpack.c.l.b16 %v2556
    %v3893 = vunpack.c.h.b16 %v2556
    %v3894 = vunpack.c.l.b16 %v2557
    %v3895 = vunpack.c.h.b16 %v2557
    %v3896 = vunpack.c.l.b16 %v2558
    %v3897 = vunpack.c.h.b16 %v2558
    %v3898 = vunpack.c.l.b16 %v2559
    %v3899 = vunpack.c.h.b16 %v2559
    %v3900 = vunpack.c.l.b16 %v2560
    %v3901 = vunpack.c.h.b16 %v2560
    %v3902 = vunpack.c.l.b16 %v2561
    %v3903 = vunpack.c.h.b16 %v2561
    %v3904 = vunpack.c.l.b16 %v2562
    %v3905 = vunpack.c.h.b16 %v2562
    %v3906 = vunpack.c.l.b16 %v2563
    %v3907 = vunpack.c.h.b16 %v2563
    %v3908 = vunpack.c.l.b16 %v2564
    %v3909 = vunpack.c.h.b16 %v2564
    %v3910 = vunpack.c.l.b16 %v2565
    %v3911 = vunpack.c.h.b16 %v2565
    %v3912 = vunpack.c.l.b16 %v2566
    %v3913 = vunpack.c.h.b16 %v2566
    %v3914 = vunpack.c.l.b16 %v2567
    %v3915 = vunpack.c.h.b16 %v2567
    %v3916 = vunpack.c.l.b16 %v2568
    %v3917 = vunpack.c.h.b16 %v2568
    %v3918 = vunpack.c.l.b16 %v2569
    %v3919 = vunpack.c.h.b16 %v2569
    %v3920 = vunpack.c.l.b16 %v2570
    %v3921 = vunpack.c.h.b16 %v2570
    %v3922 = vunpack.c.l.b16 %v2571
    %v3923 = vunpack.c.h.b16 %v2571
    %v3924 = vunpack.c.l.b16 %v2572
    %v3925 = vunpack.c.h.b16 %v2572
    %v3926 = vunpack.c.l.b16 %v2573
    %v3927 = vunpack.c.h.b16 %v2573
    %v3928 = vunpack.c.l.b16 %v2574
    %v3929 = vunpack.c.h.b16 %v2574
    %v3930 = vunpack.c.l.b16 %v2575
    %v3931 = vunpack.c.h.b16 %v2575
    %v3932 = vunpack.c.l.b16 %v2576
    %v3933 = vunpack.c.h.b16 %v2576
    %v3934 = vunpack.c.l.b16 %v2577
    %v3935 = vunpack.c.h.b16 %v2577
    %v3936 = vunpack.c.l.b16 %v2578
    %v3937 = vunpack.c.h.b16 %v2578
    %v3938 = vunpack.c.l.b16 %v2579
    %v3939 = vunpack.c.h.b16 %v2579
    %v3940 = vunpack.c.l.b16 %v2580
    %v3941 = vunpack.c.h.b16 %v2580
    %v3942 = vunpack.c.l.b16 %v2581
    %v3943 = vunpack.c.h.b16 %v2581
    %v3944 = vunpack.c.l.b16 %v2582
    %v3945 = vunpack.c.h.b16 %v2582
    %v3946 = vunpack.c.l.b16 %v2583
    %v3947 = vunpack.c.h.b16 %v2583
    %v3948 = vunpack.c.l.b16 %v2584
    %v3949 = vunpack.c.h.b16 %v2584
    %v3950 = vunpack.c.l.b16 %v2585
    %v3951 = vunpack.c.h.b16 %v2585
    %v3952 = vunpack.c.l.b16 %v2586
    %v3953 = vunpack.c.h.b16 %v2586
    %v3954 = vunpack.c.l.b16 %v2587
    %v3955 = vunpack.c.h.b16 %v2587
    %v3956 = vunpack.c.l.b16 %v2588
    %v3957 = vunpack.c.h.b16 %v2588
    %v3958 = vunpack.c.l.b16 %v2589
    %v3959 = vunpack.c.h.b16 %v2589
    %v3960 = vunpack.c.l.b16 %v2590
    %v3961 = vunpack.c.h.b16 %v2590
    %v3962 = vunpack.c.l.b16 %v2591
    %v3963 = vunpack.c.h.b16 %v2591
    %v3964 = vunpack.c.l.b16 %v2592
    %v3965 = vunpack.c.h.b16 %v2592
    %v3966 = vunpack.c.l.b16 %v2593
    %v3967 = vunpack.c.h.b16 %v2593
    %v3968 = vunpack.c.l.b16 %v2594
    %v3969 = vunpack.c.h.b16 %v2594
    %v3970 = vunpack.c.l.b16 %v2595
    %v3971 = vunpack.c.h.b16 %v2595
    %v3972 = vunpack.c.l.b16 %v2596
    %v3973 = vunpack.c.h.b16 %v2596
    %v3974 = vunpack.c.l.b16 %v2597
    %v3975 = vunpack.c.h.b16 %v2597
    %v3976 = vunpack.c.l.b16 %v2598
    %v3977 = vunpack.c.h.b16 %v2598
    %v3978 = vunpack.c.l.b16 %v2599
    %v3979 = vunpack.c.h.b16 %v2599
    %v3980 = vunpack.c.l.b16 %v2600
    %v3981 = vunpack.c.h.b16 %v2600
    %v3982 = vunpack.c.l.b16 %v2601
    %v3983 = vunpack.c.h.b16 %v2601
    %v3984 = vunpack.c.l.b16 %v2602
    %v3985 = vunpack.c.h.b16 %v2602
    %v3986 = vunpack.c.l.b16 %v2603
    %v3987 = vunpack.c.h.b16 %v2603
    %v3988 = vunpack.c.l.b16 %v2604
    %v3989 = vunpack.c.h.b16 %v2604
    %v3990 = vunpack.c.l.b16 %v2605
    %v3991 = vunpack.c.h.b16 %v2605
    %v3992 = vunpack.c.l.b16 %v2606
    %v3993 = vunpack.c.h.b16 %v2606
    %v3994 = vunpack.c.l.b16 %v2607
    %v3995 = vunpack.c.h.b16 %v2607
    %v3996 = vunpack.c.l.b16 %v2608
    %v3997 = vunpack.c.h.b16 %v2608
    %v3998 = vunpack.c.l.b16 %v2609
    %v3999 = vunpack.c.h.b16 %v2609
    %v4000 = vunpack.c.l.b16 %v2610
    %v4001 = vunpack.c.h.b16 %v2610
    %v4002 = vunpack.c.l.b16 %v2611
    %v4003 = vunpack.c.h.b16 %v2611
    %v4004 = vunpack.c.l.b16 %v2612
    %v4005 = vunpack.c.h.b16 %v2612
    %v4006 = vunpack.c.l.b16 %v2613
    %v4007 = vunpack.c.h.b16 %v2613
    %v4008 = vunpack.c.l.b16 %v2614
    %v4009 = vunpack.c.h.b16 %v2614
    %v4010 = vunpack.c.l.b16 %v2615
    %v4011 = vunpack.c.h.b16 %v2615
    %v4012 = vunpack.c.l.b16 %v2616
    %v4013 = vunpack.c.h.b16 %v2616
    %v4014 = vunpack.c.l.b16 %v2617
    %v4015 = vunpack.c.h.b16 %v2617
    %v4016 = vunpack.c.l.b16 %v2618
    %v4017 = vunpack.c.h.b16 %v2618
    %v4018 = vunpack.c.l.b16 %v2619
    %v4019 = vunpack.c.h.b16 %v2619
    %v4020 = vunpack.c.l.b16 %v2620
    %v4021 = vunpack.c.h.b16 %v2620
    %v4022 = vunpack.c.l.b16 %v2621
    %v4023 = vunpack.c.h.b16 %v2621
    %v4024 = vunpack.c.l.b16 %v2622
    %v4025 = vunpack.c.h.b16 %v2622
    %v4026 = vunpack.c.l.b16 %v2623
    %v4027 = vunpack.c.h.b16 %v2623
    %v4028 = vunpack.c.l.b16 %v2624
    %v4029 = vunpack.c.h.b16 %v2624
    %v4030 = vunpack.c.l.b16 %v2625
    %v4031 = vunpack.c.h.b16 %v2625
    %v4032 = vunpack.c.l.b16 %v2626
    %v4033 = vunpack.c.h.b16 %v2626
    %v4034 = vunpack.c.l.b16 %v2627
    %v4035 = vunpack.c.h.b16 %v2627
    %v4036 = vunpack.c.l.b16 %v2628
    %v4037 = vunpack.c.h.b16 %v2628
    %v4038 = vunpack.c.l.b16 %v2629
    %v4039 = vunpack.c.h.b16 %v2629
    %v4040 = vunpack.c.l.b16 %v2630
    %v4041 = vunpack.c.h.b16 %v2630
    %v4042 = vunpack.c.l.b16 %v2631
    %v4043 = vunpack.c.h.b16 %v2631
    %v4044 = vunpack.c.l.b16 %v2632
    %v4045 = vunpack.c.h.b16 %v2632
    %v4046 = vunpack.c.l.b16 %v2633
    %v4047 = vunpack.c.h.b16 %v2633
    %v4048 = vunpack.c.l.b16 %v2634
    %v4049 = vunpack.c.h.b16 %v2634
    %v4050 = vunpack.c.l.b16 %v2635
    %v4051 = vunpack.c.h.b16 %v2635
    %v4052 = vunpack.c.l.b16 %v2636
    %v4053 = vunpack.c.h.b16 %v2636
    %v4054 = vunpack.c.l.b16 %v2637
    %v4055 = vunpack.c.h.b16 %v2637
    %v4056 = vunpack.c.l.b16 %v2638
    %v4057 = vunpack.c.h.b16 %v2638
    %v4058 = vunpack.c.l.b16 %v2639
    %v4059 = vunpack.c.h.b16 %v2639
    %v4060 = vunpack.c.l.b16 %v2640
    %v4061 = vunpack.c.h.b16 %v2640
    %v4062 = vunpack.c.l.b16 %v2641
    %v4063 = vunpack.c.h.b16 %v2641
    %v4064 = vunpack.c.l.b16 %v2642
    %v4065 = vunpack.c.h.b16 %v2642
    %v4066 = vunpack.c.l.b16 %v2643
    %v4067 = vunpack.c.h.b16 %v2643
    %v4068 = vunpack.c.l.b16 %v2644
    %v4069 = vunpack.c.h.b16 %v2644
    %v4070 = vunpack.c.l.b16 %v2645
    %v4071 = vunpack.c.h.b16 %v2645
    %v4072 = vunpack.c.l.b16 %v2646
    %v4073 = vunpack.c.h.b16 %v2646
    %v4074 = vunpack.c.l.b16 %v2647
    %v4075 = vunpack.c.h.b16 %v2647
    %v4076 = vunpack.c.l.b16 %v2648
    %v4077 = vunpack.c.h.b16 %v2648
    %v4078 = vunpack.c.l.b16 %v2649
    %v4079 = vunpack.c.h.b16 %v2649
    %v4080 = vunpack.c.l.b16 %v2650
    %v4081 = vunpack.c.h.b16 %v2650
    %v4082 = vunpack.c.l.b16 %v2651
    %v4083 = vunpack.c.h.b16 %v2651
    %v4084 = vunpack.c.l.b16 %v2652
    %v4085 = vunpack.c.h.b16 %v2652
    %v4086 = vunpack.c.l.b16 %v2653
    %v4087 = vunpack.c.h.b16 %v2653
    %v4088 = vunpack.c.l.b16 %v2654
    %v4089 = vunpack.c.h.b16 %v2654
    %v4090 = vunpack.c.l.b16 %v2655
    %v4091 = vunpack.c.h.b16 %v2655
    %v4092 = vunpack.c.l.b16 %v2656
    %v4093 = vunpack.c.h.b16 %v2656
    %v4094 = vunpack.c.l.b16 %v2657
    %v4095 = vunpack.c.h.b16 %v2657
    %v4096 = vunpack.c.l.b16 %v2658
    %v4097 = vunpack.c.h.b16 %v2658
    %v4098 = vunpack.c.l.b16 %v2659
    %v4099 = vunpack.c.h.b16 %v2659
    %v4100 = vunpack.c.l.b16 %v2660
    %v4101 = vunpack.c.h.b16 %v2660
    %v4102 = vunpack.c.l.b16 %v2661
    %v4103 = vunpack.c.h.b16 %v2661
    %v4104 = vunpack.c.l.b16 %v2662
    %v4105 = vunpack.c.h.b16 %v2662
    %v4106 = vunpack.c.l.b16 %v2663
    %v4107 = vunpack.c.h.b16 %v2663
    %v4108 = vunpack.c.l.b16 %v2664
    %v4109 = vunpack.c.h.b16 %v2664
    %v4110 = vunpack.c.l.b16 %v2665
    %v4111 = vunpack.c.h.b16 %v2665
    %v4112 = vunpack.c.l.b16 %v2666
    %v4113 = vunpack.c.h.b16 %v2666
    %v4114 = vunpack.c.l.b16 %v2667
    %v4115 = vunpack.c.h.b16 %v2667
    %v4116 = vunpack.c.l.b16 %v2668
    %v4117 = vunpack.c.h.b16 %v2668
    %v4118 = vunpack.c.l.b16 %v2669
    %v4119 = vunpack.c.h.b16 %v2669
    %v4120 = vunpack.c.l.b16 %v2670
    %v4121 = vunpack.c.h.b16 %v2670
    %v4122 = vunpack.c.l.b16 %v2671
    %v4123 = vunpack.c.h.b16 %v2671
    %v4124 = vunpack.c.l.b16 %v2672
    %v4125 = vunpack.c.h.b16 %v2672
    %v4126 = vunpack.c.l.b16 %v2673
    %v4127 = vunpack.c.h.b16 %v2673
    %v4128 = vunpack.c.l.b16 %v2674
    %v4129 = vunpack.c.h.b16 %v2674
    %v4130 = vunpack.c.l.b16 %v2675
    %v4131 = vunpack.c.h.b16 %v2675
    %v4132 = vunpack.c.l.b16 %v2676
    %v4133 = vunpack.c.h.b16 %v2676
    %v4134 = vunpack.c.l.b16 %v2677
    %v4135 = vunpack.c.h.b16 %v2677
    %v4136 = vunpack.c.l.b16 %v2678
    %v4137 = vunpack.c.h.b16 %v2678
    %v4138 = vunpack.c.l.b16 %v2679
    %v4139 = vunpack.c.h.b16 %v2679
    %v4140 = vunpack.c.l.b16 %v2680
    %v4141 = vunpack.c.h.b16 %v2680
    %v4142 = vunpack.c.l.b16 %v2681
    %v4143 = vunpack.c.h.b16 %v2681
    %v4144 = vunpack.c.l.b16 %v2682
    %v4145 = vunpack.c.h.b16 %v2682
    %v4146 = vunpack.c.l.b16 %v2683
    %v4147 = vunpack.c.h.b16 %v2683
    %v4148 = vunpack.c.l.b16 %v2684
    %v4149 = vunpack.c.h.b16 %v2684
    %v4150 = vunpack.c.l.b16 %v2685
    %v4151 = vunpack.c.h.b16 %v2685
    %v4152 = vunpack.c.l.b16 %v2686
    %v4153 = vunpack.c.h.b16 %v2686
    %v4154 = vunpack.c.l.b16 %v2687
    %v4155 = vunpack.c.h.b16 %v2687
    %v4156 = vunpack.c.l.b16 %v2688
    %v4157 = vunpack.c.h.b16 %v2688
    %v4158 = vunpack.c.l.b16 %v2689
    %v4159 = vunpack.c.h.b16 %v2689
    %v4160 = vunpack.c.l.b16 %v2690
    %v4161 = vunpack.c.h.b16 %v2690
    %v4162 = vunpack.c.l.b16 %v2691
    %v4163 = vunpack.c.h.b16 %v2691
    %v4164 = vunpack.c.l.b16 %v2692
    %v4165 = vunpack.c.h.b16 %v2692
    %v4166 = vunpack.c.l.b16 %v2693
    %v4167 = vunpack.c.h.b16 %v2693
    %v4168 = vunpack.c.l.b16 %v2694
    %v4169 = vunpack.c.h.b16 %v2694
    %v4170 = vunpack.c.l.b16 %v2695
    %v4171 = vunpack.c.h.b16 %v2695
    %v4172 = vunpack.c.l.b16 %v2696
    %v4173 = vunpack.c.h.b16 %v2696
    %v4174 = vunpack.c.l.b16 %v2697
    %v4175 = vunpack.c.h.b16 %v2697
    %v4176 = vunpack.c.l.b16 %v2698
    %v4177 = vunpack.c.h.b16 %v2698
    %v4178 = vunpack.c.l.b16 %v2699
    %v4179 = vunpack.c.h.b16 %v2699
    %v4180 = vunpack.c.l.b16 %v2700
    %v4181 = vunpack.c.h.b16 %v2700
    %v4182 = vunpack.c.l.b16 %v2701
    %v4183 = vunpack.c.h.b16 %v2701
    %v4184 = vunpack.c.l.b16 %v2702
    %v4185 = vunpack.c.h.b16 %v2702
    %v4186 = vunpack.c.l.b16 %v2703
    %v4187 = vunpack.c.h.b16 %v2703
    %v4188 = vunpack.c.l.b16 %v2704
    %v4189 = vunpack.c.h.b16 %v2704
    %v4190 = vunpack.c.l.b16 %v2705
    %v4191 = vunpack.c.h.b16 %v2705
    %v4192 = vunpack.c.l.b16 %v2706
    %v4193 = vunpack.c.h.b16 %v2706
    %v4194 = vunpack.c.l.b16 %v2707
    %v4195 = vunpack.c.h.b16 %v2707
    %v4196 = vunpack.c.l.b16 %v2708
    %v4197 = vunpack.c.h.b16 %v2708
    %v4198 = vunpack.c.l.b16 %v2709
    %v4199 = vunpack.c.h.b16 %v2709
    %v4200 = vunpack.c.l.b16 %v2710
    %v4201 = vunpack.c.h.b16 %v2710
    %v4202 = vunpack.c.l.b16 %v2711
    %v4203 = vunpack.c.h.b16 %v2711
    %v4204 = vunpack.c.l.b16 %v2712
    %v4205 = vunpack.c.h.b16 %v2712
    %v4206 = vunpack.c.l.b16 %v2713
    %v4207 = vunpack.c.h.b16 %v2713
    %v4208 = vunpack.c.l.b16 %v2714
    %v4209 = vunpack.c.h.b16 %v2714
    %v4210 = vunpack.c.l.b16 %v2715
    %v4211 = vunpack.c.h.b16 %v2715
    %v4212 = vunpack.c.l.b16 %v2716
    %v4213 = vunpack.c.h.b16 %v2716
    %v4214 = vunpack.c.l.b16 %v2717
    %v4215 = vunpack.c.h.b16 %v2717
    %v4216 = vunpack.c.l.b16 %v2718
    %v4217 = vunpack.c.h.b16 %v2718
    %v4218 = vunpack.c.l.b16 %v2719
    %v4219 = vunpack.c.h.b16 %v2719
    %v4220 = vunpack.c.l.b16 %v2720
    %v4221 = vunpack.c.h.b16 %v2720
    %v4222 = vunpack.c.l.b16 %v2721
    %v4223 = vunpack.c.h.b16 %v2721
    %v4224 = vunpack.c.l.b16 %v2722
    %v4225 = vunpack.c.h.b16 %v2722
    %v4226 = vunpack.c.l.b16 %v2723
    %v4227 = vunpack.c.h.b16 %v2723
    %v4228 = vunpack.c.l.b16 %v2724
    %v4229 = vunpack.c.h.b16 %v2724
    %v4230 = vunpack.c.l.b16 %v2725
    %v4231 = vunpack.c.h.b16 %v2725
    %v4232 = vunpack.c.l.b16 %v2726
    %v4233 = vunpack.c.h.b16 %v2726
    %v4234 = vunpack.c.l.b16 %v2727
    %v4235 = vunpack.c.h.b16 %v2727
    %v4236 = vunpack.c.l.b16 %v2728
    %v4237 = vunpack.c.h.b16 %v2728
    %v4238 = vunpack.c.l.b16 %v2729
    %v4239 = vunpack.c.h.b16 %v2729
    %v4240 = vunpack.c.l.b16 %v2730
    %v4241 = vunpack.c.h.b16 %v2730
    %v4242 = vunpack.c.l.b16 %v2731
    %v4243 = vunpack.c.h.b16 %v2731
    %v4244 = vunpack.c.l.b16 %v2732
    %v4245 = vunpack.c.h.b16 %v2732
    %v4246 = vunpack.c.l.b16 %v2733
    %v4247 = vunpack.c.h.b16 %v2733
    %v4248 = vunpack.c.l.b16 %v2734
    %v4249 = vunpack.c.h.b16 %v2734
    %v4250 = vunpack.c.l.b16 %v2735
    %v4251 = vunpack.c.h.b16 %v2735
    %v4252 = vunpack.c.l.b16 %v2736
    %v4253 = vunpack.c.h.b16 %v2736
    %v4254 = vunpack.c.l.b16 %v2737
    %v4255 = vunpack.c.h.b16 %v2737
    %v4256 = vunpack.c.l.b16 %v2738
    %v4257 = vunpack.c.h.b16 %v2738
    %v4258 = vunpack.c.l.b16 %v2739
    %v4259 = vunpack.c.h.b16 %v2739
    %v4260 = vunpack.c.l.b16 %v2740
    %v4261 = vunpack.c.h.b16 %v2740
    %v4262 = vunpack.c.l.b16 %v2741
    %v4263 = vunpack.c.h.b16 %v2741
    %v4264 = vunpack.c.l.b16 %v2742
    %v4265 = vunpack.c.h.b16 %v2742
    %v4266 = vunpack.c.l.b16 %v2743
    %v4267 = vunpack.c.h.b16 %v2743
    %v4268 = vunpack.c.l.b16 %v2744
    %v4269 = vunpack.c.h.b16 %v2744
    %v4270 = vunpack.c.l.b16 %v2745
    %v4271 = vunpack.c.h.b16 %v2745
    %v4272 = vunpack.c.l.b16 %v2746
    %v4273 = vunpack.c.h.b16 %v2746
    %v4274 = vunpack.c.l.b16 %v2747
    %v4275 = vunpack.c.h.b16 %v2747
    %v4276 = vunpack.c.l.b16 %v2748
    %v4277 = vunpack.c.h.b16 %v2748
    %v4278 = vunpack.c.l.b16 %v2749
    %v4279 = vunpack.c.h.b16 %v2749
    %v4280 = vunpack.c.l.b16 %v2750
    %v4281 = vunpack.c.h.b16 %v2750
    %v4282 = vunpack.c.l.b16 %v2751
    %v4283 = vunpack.c.h.b16 %v2751
    %v4284 = vunpack.c.l.b16 %v2752
    %v4285 = vunpack.c.h.b16 %v2752
    %v4286 = vunpack.c.l.b16 %v2753
    %v4287 = vunpack.c.h.b16 %v2753
    %v4288 = vunpack.c.l.b16 %v2754
    %v4289 = vunpack.c.h.b16 %v2754
    %v4290 = vunpack.c.l.b16 %v2755
    %v4291 = vunpack.c.h.b16 %v2755
    %v4292 = vunpack.c.l.b16 %v2756
    %v4293 = vunpack.c.h.b16 %v2756
    %v4294 = vunpack.c.l.b16 %v2757
    %v4295 = vunpack.c.h.b16 %v2757
    %v4296 = vunpack.c.l.b16 %v2758
    %v4297 = vunpack.c.h.b16 %v2758
    %v4298 = vunpack.c.l.b16 %v2759
    %v4299 = vunpack.c.h.b16 %v2759
    %v4300 = vunpack.c.l.b16 %v2760
    %v4301 = vunpack.c.h.b16 %v2760
    %v4302 = vunpack.c.l.b16 %v2761
    %v4303 = vunpack.c.h.b16 %v2761
    %v4304 = vunpack.c.l.b16 %v2762
    %v4305 = vunpack.c.h.b16 %v2762
    %v4306 = vunpack.c.l.b16 %v2763
    %v4307 = vunpack.c.h.b16 %v2763
    %v4308 = vunpack.c.l.b16 %v2764
    %v4309 = vunpack.c.h.b16 %v2764
    %v4310 = vunpack.c.l.b16 %v2765
    %v4311 = vunpack.c.h.b16 %v2765
    %v4312 = vunpack.c.l.b16 %v2766
    %v4313 = vunpack.c.h.b16 %v2766
    %v4314 = vunpack.c.l.b16 %v2767
    %v4315 = vunpack.c.h.b16 %v2767
    %v4316 = vunpack.c.l.b16 %v2768
    %v4317 = vunpack.c.h.b16 %v2768
    %v4318 = vunpack.c.l.b16 %v2769
    %v4319 = vunpack.c.h.b16 %v2769
    %v4320 = vunpack.c.l.b16 %v2770
    %v4321 = vunpack.c.h.b16 %v2770
    %v4322 = vunpack.c.l.b16 %v2771
    %v4323 = vunpack.c.h.b16 %v2771
    %v4324 = vunpack.c.l.b16 %v2772
    %v4325 = vunpack.c.h.b16 %v2772
    %v4326 = vunpack.c.l.b16 %v2773
    %v4327 = vunpack.c.h.b16 %v2773
    %v4328 = vunpack.c.l.b16 %v2774
    %v4329 = vunpack.c.h.b16 %v2774
    %v4330 = vunpack.c.l.b16 %v2775
    %v4331 = vunpack.c.h.b16 %v2775
    %v4332 = vunpack.c.l.b16 %v2776
    %v4333 = vunpack.c.h.b16 %v2776
    %v4334 = vunpack.c.l.b16 %v2777
    %v4335 = vunpack.c.h.b16 %v2777
    %v4336 = vpack.c.b16 %v3316, %v3312
    %v4337 = vpack.c.b16 %v3317, %v3313
    %v4338 = vpack.c.b16 %v3318, %v3314
    %v4339 = vpack.c.b16 %v3319, %v3315
    %v4340 = vpack.c.b16 %v3324, %v3320
    %v4341 = vpack.c.b16 %v3325, %v3321
    %v4342 = vpack.c.b16 %v3326, %v3322
    %v4343 = vpack.c.b16 %v3327, %v3323
    %v4344 = vpack.c.b16 %v3332, %v3328
    %v4345 = vpack.c.b16 %v3333, %v3329
    %v4346 = vpack.c.b16 %v3334, %v3330
    %v4347 = vpack.c.b16 %v3335, %v3331
    %v4348 = vpack.c.b16 %v3340, %v3336
    %v4349 = vpack.c.b16 %v3341, %v3337
    %v4350 = vpack.c.b16 %v3342, %v3338
    %v4351 = vpack.c.b16 %v3343, %v3339
    %v4352 = vpack.c.b16 %v3348, %v3344
    %v4353 = vpack.c.b16 %v3349, %v3345
    %v4354 = vpack.c.b16 %v3350, %v3346
    %v4355 = vpack.c.b16 %v3351, %v3347
    %v4356 = vpack.c.b16 %v3356, %v3352
    %v4357 = vpack.c.b16 %v3357, %v3353
    %v4358 = vpack.c.b16 %v3358, %v3354
    %v4359 = vpack.c.b16 %v3359, %v3355
    %v4360 = vpack.c.b16 %v3364, %v3360
    %v4361 = vpack.c.b16 %v3365, %v3361
    %v4362 = vpack.c.b16 %v3366, %v3362
    %v4363 = vpack.c.b16 %v3367, %v3363
    %v4364 = vpack.c.b16 %v3372, %v3368
    %v4365 = vpack.c.b16 %v3373, %v3369
    %v4366 = vpack.c.b16 %v3374, %v3370
    %v4367 = vpack.c.b16 %v3375, %v3371
    %v4368 = vpack.c.b16 %v3380, %v3376
    %v4369 = vpack.c.b16 %v3381, %v3377
    %v4370 = vpack.c.b16 %v3382, %v3378
    %v4371 = vpack.c.b16 %v3383, %v3379
    %v4372 = vpack.c.b16 %v3388, %v3384
    %v4373 = vpack.c.b16 %v3389, %v3385
    %v4374 = vpack.c.b16 %v3390, %v3386
    %v4375 = vpack.c.b16 %v3391, %v3387
    %v4376 = vpack.c.b16 %v3396, %v3392
    %v4377 = vpack.c.b16 %v3397, %v3393
    %v4378 = vpack.c.b16 %v3398, %v3394
    %v4379 = vpack.c.b16 %v3399, %v3395
    %v4380 = vpack.c.b16 %v3404, %v3400
    %v4381 = vpack.c.b16 %v3405, %v3401
    %v4382 = vpack.c.b16 %v3406, %v3402
    %v4383 = vpack.c.b16 %v3407, %v3403
    %v4384 = vpack.c.b16 %v3412, %v3408
    %v4385 = vpack.c.b16 %v3413, %v3409
    %v4386 = vpack.c.b16 %v3414, %v3410
    %v4387 = vpack.c.b16 %v3415, %v3411
    %v4388 = vpack.c.b16 %v3420, %v3416
    %v4389 = vpack.c.b16 %v3421, %v3417
    %v4390 = vpack.c.b16 %v3422, %v3418
    %v4391 = vpack.c.b16 %v3423, %v3419
    %v4392 = vpack.c.b16 %v3428, %v3424
    %v4393 = vpack.c.b16 %v3429, %v3425
    %v4394 = vpack.c.b16 %v3430, %v3426
    %v4395 = vpack.c.b16 %v3431, %v3427
    %v4396 = vpack.c.b16 %v3436, %v3432
    %v4397 = vpack.c.b16 %v3437, %v3433
    %v4398 = vpack.c.b16 %v3438, %v3434
    %v4399 = vpack.c.b16 %v3439, %v3435
    %v4400 = vpack.c.b16 %v3444, %v3440
    %v4401 = vpack.c.b16 %v3445, %v3441
    %v4402 = vpack.c.b16 %v3446, %v3442
    %v4403 = vpack.c.b16 %v3447, %v3443
    %v4404 = vpack.c.b16 %v3452, %v3448
    %v4405 = vpack.c.b16 %v3453, %v3449
    %v4406 = vpack.c.b16 %v3454, %v3450
    %v4407 = vpack.c.b16 %v3455, %v3451
    %v4408 = vpack.c.b16 %v3460, %v3456
    %v4409 = vpack.c.b16 %v3461, %v3457
    %v4410 = vpack.c.b16 %v3462, %v3458
    %v4411 = vpack.c.b16 %v3463, %v3459
    %v4412 = vpack.c.b16 %v3468, %v3464
    %v4413 = vpack.c.b16 %v3469, %v3465
    %v4414 = vpack.c.b16 %v3470, %v3466
    %v4415 = vpack.c.b16 %v3471, %v3467
    %v4416 = vpack.c.b16 %v3476, %v3472
    %v4417 = vpack.c.b16 %v3477, %v3473
    %v4418 = vpack.c.b16 %v3478, %v3474
    %v4419 = vpack.c.b16 %v3479, %v3475
    %v4420 = vpack.c.b16 %v3484, %v3480
    %v4421 = vpack.c.b16 %v3485, %v3481
    %v4422 = vpack.c.b16 %v3486, %v3482
    %v4423 = vpack.c.b16 %v3487, %v3483
    %v4424 = vpack.c.b16 %v3492, %v3488
    %v4425 = vpack.c.b16 %v3493, %v3489
    %v4426 = vpack.c.b16 %v3494, %v3490
    %v4427 = vpack.c.b16 %v3495, %v3491
    %v4428 = vpack.c.b16 %v3500, %v3496
    %v4429 = vpack.c.b16 %v3501, %v3497
    %v4430 = vpack.c.b16 %v3502, %v3498
    %v4431 = vpack.c.b16 %v3503, %v3499
    %v4432 = vpack.c.b16 %v3508, %v3504
    %v4433 = vpack.c.b16 %v3509, %v3505
    %v4434 = vpack.c.b16 %v3510, %v3506
    %v4435 = vpack.c.b16 %v3511, %v3507
    %v4436 = vpack.c.b16 %v3516, %v3512
    %v4437 = vpack.c.b16 %v3517, %v3513
    %v4438 = vpack.c.b16 %v3518, %v3514
    %v4439 = vpack.c.b16 %v3519, %v3515
    %v4440 = vpack.c.b16 %v3524, %v3520
    %v4441 = vpack.c.b16 %v3525, %v3521
    %v4442 = vpack.c.b16 %v3526, %v3522
    %v4443 = vpack.c.b16 %v3527, %v3523
    %v4444 = vpack.c.b16 %v3532, %v3528
    %v4445 = vpack.c.b16 %v3533, %v3529
    %v4446 = vpack.c.b16 %v3534, %v3530
    %v4447 = vpack.c.b16 %v3535, %v3531
    %v4448 = vpack.c.b16 %v3540, %v3536
    %v4449 = vpack.c.b16 %v3541, %v3537
    %v4450 = vpack.c.b16 %v3542, %v3538
    %v4451 = vpack.c.b16 %v3543, %v3539
    %v4452 = vpack.c.b16 %v3548, %v3544
    %v4453 = vpack.c.b16 %v3549, %v3545
    %v4454 = vpack.c.b16 %v3550, %v3546
    %v4455 = vpack.c.b16 %v3551, %v3547
    %v4456 = vpack.c.b16 %v3556, %v3552
    %v4457 = vpack.c.b16 %v3557, %v3553
    %v4458 = vpack.c.b16 %v3558, %v3554
    %v4459 = vpack.c.b16 %v3559, %v3555
    %v4460 = vpack.c.b16 %v3564, %v3560
    %v4461 = vpack.c.b16 %v3565, %v3561
    %v4462 = vpack.c.b16 %v3566, %v3562
    %v4463 = vpack.c.b16 %v3567, %v3563
    %v4464 = vpack.c.b16 %v3572, %v3568
    %v4465 = vpack.c.b16 %v3573, %v3569
    %v4466 = vpack.c.b16 %v3574, %v3570
    %v4467 = vpack.c.b16 %v3575, %v3571
    %v4468 = vpack.c.b16 %v3580, %v3576
    %v4469 = vpack.c.b16 %v3581, %v3577
    %v4470 = vpack.c.b16 %v3582, %v3578
    %v4471 = vpack.c.b16 %v3583, %v3579
    %v4472 = vpack.c.b16 %v3588, %v3584
    %v4473 = vpack.c.b16 %v3589, %v3585
    %v4474 = vpack.c.b16 %v3590, %v3586
    %v4475 = vpack.c.b16 %v3591, %v3587
    %v4476 = vpack.c.b16 %v3596, %v3592
    %v4477 = vpack.c.b16 %v3597, %v3593
    %v4478 = vpack.c.b16 %v3598, %v3594
    %v4479 = vpack.c.b16 %v3599, %v3595
    %v4480 = vpack.c.b16 %v3604, %v3600
    %v4481 = vpack.c.b16 %v3605, %v3601
    %v4482 = vpack.c.b16 %v3606, %v3602
    %v4483 = vpack.c.b16 %v3607, %v3603
    %v4484 = vpack.c.b16 %v3612, %v3608
    %v4485 = vpack.c.b16 %v3613, %v3609
    %v4486 = vpack.c.b16 %v3614, %v3610
    %v4487 = vpack.c.b16 %v3615, %v3611
    %v4488 = vpack.c.b16 %v3620, %v3616
    %v4489 = vpack.c.b16 %v3621, %v3617
    %v4490 = vpack.c.b16 %v3622, %v3618
    %v4491 = vpack.c.b16 %v3623, %v3619
    %v4492 = vpack.c.b16 %v3628, %v3624
    %v4493 = vpack.c.b16 %v3629, %v3625
    %v4494 = vpack.c.b16 %v3630, %v3626
    %v4495 = vpack.c.b16 %v3631, %v3627
    %v4496 = vpack.c.b16 %v3636, %v3632
    %v4497 = vpack.c.b16 %v3637, %v3633
    %v4498 = vpack.c.b16 %v3638, %v3634
    %v4499 = vpack.c.b16 %v3639, %v3635
    %v4500 = vpack.c.b16 %v3644, %v3640
    %v4501 = vpack.c.b16 %v3645, %v3641
    %v4502 = vpack.c.b16 %v3646, %v3642
    %v4503 = vpack.c.b16 %v3647, %v3643
    %v4504 = vpack.c.b16 %v3652, %v3648
    %v4505 = vpack.c.b16 %v3653, %v3649
    %v4506 = vpack.c.b16 %v3654, %v3650
    %v4507 = vpack.c.b16 %v3655, %v3651
    %v4508 = vpack.c.b16 %v3660, %v3656
    %v4509 = vpack.c.b16 %v3661, %v3657
    %v4510 = vpack.c.b16 %v3662, %v3658
    %v4511 = vpack.c.b16 %v3663, %v3659
    %v4512 = vpack.c.b16 %v3668, %v3664
    %v4513 = vpack.c.b16 %v3669, %v3665
    %v4514 = vpack.c.b16 %v3670, %v3666
    %v4515 = vpack.c.b16 %v3671, %v3667
    %v4516 = vpack.c.b16 %v3676, %v3672
    %v4517 = vpack.c.b16 %v3677, %v3673
    %v4518 = vpack.c.b16 %v3678, %v3674
    %v4519 = vpack.c.b16 %v3679, %v3675
    %v4520 = vpack.c.b16 %v3684, %v3680
    %v4521 = vpack.c.b16 %v3685, %v3681
    %v4522 = vpack.c.b16 %v3686, %v3682
    %v4523 = vpack.c.b16 %v3687, %v3683
    %v4524 = vpack.c.b16 %v3692, %v3688
    %v4525 = vpack.c.b16 %v3693, %v3689
    %v4526 = vpack.c.b16 %v3694, %v3690
    %v4527 = vpack.c.b16 %v3695, %v3691
    %v4528 = vpack.c.b16 %v3700, %v3696
    %v4529 = vpack.c.b16 %v3701, %v3697
    %v4530 = vpack.c.b16 %v3702, %v3698
    %v4531 = vpack.c.b16 %v3703, %v3699
    %v4532 = vpack.c.b16 %v3708, %v3704
    %v4533 = vpack.c.b16 %v3709, %v3705
    %v4534 = vpack.c.b16 %v3710, %v3706
    %v4535 = vpack.c.b16 %v3711, %v3707
    %v4536 = vpack.c.b16 %v3716, %v3712
    %v4537 = vpack.c.b16 %v3717, %v3713
    %v4538 = vpack.c.b16 %v3718, %v3714
    %v4539 = vpack.c.b16 %v3719, %v3715
    %v4540 = vpack.c.b16 %v3724, %v3720
    %v4541 = vpack.c.b16 %v3725, %v3721
    %v4542 = vpack.c.b16 %v3726, %v3722
    %v4543 = vpack.c.b16 %v3727, %v3723
    %v4544 = vpack.c.b16 %v3732, %v3728
    %v4545 = vpack.c.b16 %v3733, %v3729
    %v4546 = vpack.c.b16 %v3734, %v3730
    %v4547 = vpack.c.b16 %v3735, %v3731
    %v4548 = vpack.c.b16 %v3740, %v3736
    %v4549 = vpack.c.b16 %v3741, %v3737
    %v4550 = vpack.c.b16 %v3742, %v3738
    %v4551 = vpack.c.b16 %v3743, %v3739
    %v4552 = vpack.c.b16 %v3748, %v3744
    %v4553 = vpack.c.b16 %v3749, %v3745
    %v4554 = vpack.c.b16 %v3750, %v3746
    %v4555 = vpack.c.b16 %v3751, %v3747
    %v4556 = vpack.c.b16 %v3756, %v3752
    %v4557 = vpack.c.b16 %v3757, %v3753
    %v4558 = vpack.c.b16 %v3758, %v3754
    %v4559 = vpack.c.b16 %v3759, %v3755
    %v4560 = vpack.c.b16 %v3764, %v3760
    %v4561 = vpack.c.b16 %v3765, %v3761
    %v4562 = vpack.c.b16 %v3766, %v3762
    %v4563 = vpack.c.b16 %v3767, %v3763
    %v4564 = vpack.c.b16 %v3772, %v3768
    %v4565 = vpack.c.b16 %v3773, %v3769
    %v4566 = vpack.c.b16 %v3774, %v3770
    %v4567 = vpack.c.b16 %v3775, %v3771
    %v4568 = vpack.c.b16 %v3780, %v3776
    %v4569 = vpack.c.b16 %v3781, %v3777
    %v4570 = vpack.c.b16 %v3782, %v3778
    %v4571 = vpack.c.b16 %v3783, %v3779
    %v4572 = vpack.c.b16 %v3788, %v3784
    %v4573 = vpack.c.b16 %v3789, %v3785
    %v4574 = vpack.c.b16 %v3790, %v3786
    %v4575 = vpack.c.b16 %v3791, %v3787
    %v4576 = vpack.c.b16 %v3796, %v3792
    %v4577 = vpack.c.b16 %v3797, %v3793
    %v4578 = vpack.c.b16 %v3798, %v3794
    %v4579 = vpack.c.b16 %v3799, %v3795
    %v4580 = vpack.c.b16 %v3804, %v3800
    %v4581 = vpack.c.b16 %v3805, %v3801
    %v4582 = vpack.c.b16 %v3806, %v3802
    %v4583 = vpack.c.b16 %v3807, %v3803
    %v4584 = vpack.c.b16 %v3812, %v3808
    %v4585 = vpack.c.b16 %v3813, %v3809
    %v4586 = vpack.c.b16 %v3814, %v3810
    %v4587 = vpack.c.b16 %v3815, %v3811
    %v4588 = vpack.c.b16 %v3820, %v3816
    %v4589 = vpack.c.b16 %v3821, %v3817
    %v4590 = vpack.c.b16 %v3822, %v3818
    %v4591 = vpack.c.b16 %v3823, %v3819
    %v4592 = vpack.c.b16 %v3828, %v3824
    %v4593 = vpack.c.b16 %v3829, %v3825
    %v4594 = vpack.c.b16 %v3830, %v3826
    %v4595 = vpack.c.b16 %v3831, %v3827
    %v4596 = vpack.c.b16 %v3836, %v3832
    %v4597 = vpack.c.b16 %v3837, %v3833
    %v4598 = vpack.c.b16 %v3838, %v3834
    %v4599 = vpack.c.b16 %v3839, %v3835
    %v4600 = vpack.c.b16 %v3844, %v3840
    %v4601 = vpack.c.b16 %v3845, %v3841
    %v4602 = vpack.c.b16 %v3846, %v3842
    %v4603 = vpack.c.b16 %v3847, %v3843
    %v4604 = vpack.c.b16 %v3852, %v3848
    %v4605 = vpack.c.b16 %v3853, %v3849
    %v4606 = vpack.c.b16 %v3854, %v3850
    %v4607 = vpack.c.b16 %v3855, %v3851
    %v4608 = vpack.c.b16 %v3860, %v3856
    %v4609 = vpack.c.b16 %v3861, %v3857
    %v4610 = vpack.c.b16 %v3862, %v3858
    %v4611 = vpack.c.b16 %v3863, %v3859
    %v4612 = vpack.c.b16 %v3868, %v3864
    %v4613 = vpack.c.b16 %v3869, %v3865
    %v4614 = vpack.c.b16 %v3870, %v3866
    %v4615 = vpack.c.b16 %v3871, %v3867
    %v4616 = vpack.c.b16 %v3876, %v3872
    %v4617 = vpack.c.b16 %v3877, %v3873
    %v4618 = vpack.c.b16 %v3878, %v3874
    %v4619 = vpack.c.b16 %v3879, %v3875
    %v4620 = vpack.c.b16 %v3884, %v3880
    %v4621 = vpack.c.b16 %v3885, %v3881
    %v4622 = vpack.c.b16 %v3886, %v3882
    %v4623 = vpack.c.b16 %v3887, %v3883
    %v4624 = vpack.c.b16 %v3892, %v3888
    %v4625 = vpack.c.b16 %v3893, %v3889
    %v4626 = vpack.c.b16 %v3894, %v3890
    %v4627 = vpack.c.b16 %v3895, %v3891
    %v4628 = vpack.c.b16 %v3900, %v3896
    %v4629 = vpack.c.b16 %v3901, %v3897
    %v4630 = vpack.c.b16 %v3902, %v3898
    %v4631 = vpack.c.b16 %v3903, %v3899
    %v4632 = vpack.c.b16 %v3908, %v3904
    %v4633 = vpack.c.b16 %v3909, %v3905
    %v4634 = vpack.c.b16 %v3910, %v3906
    %v4635 = vpack.c.b16 %v3911, %v3907
    %v4636 = vpack.c.b16 %v3916, %v3912
    %v4637 = vpack.c.b16 %v3917, %v3913
    %v4638 = vpack.c.b16 %v3918, %v3914
    %v4639 = vpack.c.b16 %v3919, %v3915
    %v4640 = vpack.c.b16 %v3924, %v3920
    %v4641 = vpack.c.b16 %v3925, %v3921
    %v4642 = vpack.c.b16 %v3926, %v3922
    %v4643 = vpack.c.b16 %v3927, %v3923
    %v4644 = vpack.c.b16 %v3932, %v3928
    %v4645 = vpack.c.b16 %v3933, %v3929
    %v4646 = vpack.c.b16 %v3934, %v3930
    %v4647 = vpack.c.b16 %v3935, %v3931
    %v4648 = vpack.c.b16 %v3940, %v3936
    %v4649 = vpack.c.b16 %v3941, %v3937
    %v4650 = vpack.c.b16 %v3942, %v3938
    %v4651 = vpack.c.b16 %v3943, %v3939
    %v4652 = vpack.c.b16 %v3948, %v3944
    %v4653 = vpack.c.b16 %v3949, %v3945
    %v4654 = vpack.c.b16 %v3950, %v3946
    %v4655 = vpack.c.b16 %v3951, %v3947
    %v4656 = vpack.c.b16 %v3956, %v3952
    %v4657 = vpack.c.b16 %v3957, %v3953
    %v4658 = vpack.c.b16 %v3958, %v3954
    %v4659 = vpack.c.b16 %v3959, %v3955
    %v4660 = vpack.c.b16 %v3964, %v3960
    %v4661 = vpack.c.b16 %v3965, %v3961
    %v4662 = vpack.c.b16 %v3966, %v3962
    %v4663 = vpack.c.b16 %v3967, %v3963
    %v4664 = vpack.c.b16 %v3972, %v3968
    %v4665 = vpack.c.b16 %v3973, %v3969
    %v4666 = vpack.c.b16 %v3974, %v3970
    %v4667 = vpack.c.b16 %v3975, %v3971
    %v4668 = vpack.c.b16 %v3980, %v3976
    %v4669 = vpack.c.b16 %v3981, %v3977
    %v4670 = vpack.c.b16 %v3982, %v3978
    %v4671 = vpack.c.b16 %v3983, %v3979
    %v4672 = vpack.c.b16 %v3988, %v3984
    %v4673 = vpack.c.b16 %v3989, %v3985
    %v4674 = vpack.c.b16 %v3990, %v3986
    %v4675 = vpack.c.b16 %v3991, %v3987
    %v4676 = vpack.c.b16 %v3996, %v3992
    %v4677 = vpack.c.b16 %v3997, %v3993
    %v4678 = vpack.c.b16 %v3998, %v3994
    %v4679 = vpack.c.b16 %v3999, %v3995
    %v4680 = vpack.c.b16 %v4004, %v4000
    %v4681 = vpack.c.b16 %v4005, %v4001
    %v4682 = vpack.c.b16 %v4006, %v4002
    %v4683 = vpack.c.b16 %v4007, %v4003
    %v4684 = vpack.c.b16 %v4012, %v4008
    %v4685 = vpack.c.b16 %v4013, %v4009
    %v4686 = vpack.c.b16 %v4014, %v4010
    %v4687 = vpack.c.b16 %v4015, %v4011
    %v4688 = vpack.c.b16 %v4020, %v4016
    %v4689 = vpack.c.b16 %v4021, %v4017
    %v4690 = vpack.c.b16 %v4022, %v4018
    %v4691 = vpack.c.b16 %v4023, %v4019
    %v4692 = vpack.c.b16 %v4028, %v4024
    %v4693 = vpack.c.b16 %v4029, %v4025
    %v4694 = vpack.c.b16 %v4030, %v4026
    %v4695 = vpack.c.b16 %v4031, %v4027
    %v4696 = vpack.c.b16 %v4036, %v4032
    %v4697 = vpack.c.b16 %v4037, %v4033
    %v4698 = vpack.c.b16 %v4038, %v4034
    %v4699 = vpack.c.b16 %v4039, %v4035
    %v4700 = vpack.c.b16 %v4044, %v4040
    %v4701 = vpack.c.b16 %v4045, %v4041
    %v4702 = vpack.c.b16 %v4046, %v4042
    %v4703 = vpack.c.b16 %v4047, %v4043
    %v4704 = vpack.c.b16 %v4052, %v4048
    %v4705 = vpack.c.b16 %v4053, %v4049
    %v4706 = vpack.c.b16 %v4054, %v4050
    %v4707 = vpack.c.b16 %v4055, %v4051
    %v4708 = vpack.c.b16 %v4060, %v4056
    %v4709 = vpack.c.b16 %v4061, %v4057
    %v4710 = vpack.c.b16 %v4062, %v4058
    %v4711 = vpack.c.b16 %v4063, %v4059
    %v4712 = vpack.c.b16 %v4068, %v4064
    %v4713 = vpack.c.b16 %v4069, %v4065
    %v4714 = vpack.c.b16 %v4070, %v4066
    %v4715 = vpack.c.b16 %v4071, %v4067
    %v4716 = vpack.c.b16 %v4076, %v4072
    %v4717 = vpack.c.b16 %v4077, %v4073
    %v4718 = vpack.c.b16 %v4078, %v4074
    %v4719 = vpack.c.b16 %v4079, %v4075
    %v4720 = vpack.c.b16 %v4084, %v4080
    %v4721 = vpack.c.b16 %v4085, %v4081
    %v4722 = vpack.c.b16 %v4086, %v4082
    %v4723 = vpack.c.b16 %v4087, %v4083
    %v4724 = vpack.c.b16 %v4092, %v4088
    %v4725 = vpack.c.b16 %v4093, %v4089
    %v4726 = vpack.c.b16 %v4094, %v4090
    %v4727 = vpack.c.b16 %v4095, %v4091
    %v4728 = vpack.c.b16 %v4100, %v4096
    %v4729 = vpack.c.b16 %v4101, %v4097
    %v4730 = vpack.c.b16 %v4102, %v4098
    %v4731 = vpack.c.b16 %v4103, %v4099
    %v4732 = vpack.c.b16 %v4108, %v4104
    %v4733 = vpack.c.b16 %v4109, %v4105
    %v4734 = vpack.c.b16 %v4110, %v4106
    %v4735 = vpack.c.b16 %v4111, %v4107
    %v4736 = vpack.c.b16 %v4116, %v4112
    %v4737 = vpack.c.b16 %v4117, %v4113
    %v4738 = vpack.c.b16 %v4118, %v4114
    %v4739 = vpack.c.b16 %v4119, %v4115
    %v4740 = vpack.c.b16 %v4124, %v4120
    %v4741 = vpack.c.b16 %v4125, %v4121
    %v4742 = vpack.c.b16 %v4126, %v4122
    %v4743 = vpack.c.b16 %v4127, %v4123
    %v4744 = vpack.c.b16 %v4132, %v4128
    %v4745 = vpack.c.b16 %v4133, %v4129
    %v4746 = vpack.c.b16 %v4134, %v4130
    %v4747 = vpack.c.b16 %v4135, %v4131
    %v4748 = vpack.c.b16 %v4140, %v4136
    %v4749 = vpack.c.b16 %v4141, %v4137
    %v4750 = vpack.c.b16 %v4142, %v4138
    %v4751 = vpack.c.b16 %v4143, %v4139
    %v4752 = vpack.c.b16 %v4148, %v4144
    %v4753 = vpack.c.b16 %v4149, %v4145
    %v4754 = vpack.c.b16 %v4150, %v4146
    %v4755 = vpack.c.b16 %v4151, %v4147
    %v4756 = vpack.c.b16 %v4156, %v4152
    %v4757 = vpack.c.b16 %v4157, %v4153
    %v4758 = vpack.c.b16 %v4158, %v4154
    %v4759 = vpack.c.b16 %v4159, %v4155
    %v4760 = vpack.c.b16 %v4164, %v4160
    %v4761 = vpack.c.b16 %v4165, %v4161
    %v4762 = vpack.c.b16 %v4166, %v4162
    %v4763 = vpack.c.b16 %v4167, %v4163
    %v4764 = vpack.c.b16 %v4172, %v4168
    %v4765 = vpack.c.b16 %v4173, %v4169
    %v4766 = vpack.c.b16 %v4174, %v4170
    %v4767 = vpack.c.b16 %v4175, %v4171
    %v4768 = vpack.c.b16 %v4180, %v4176
    %v4769 = vpack.c.b16 %v4181, %v4177
    %v4770 = vpack.c.b16 %v4182, %v4178
    %v4771 = vpack.c.b16 %v4183, %v4179
    %v4772 = vpack.c.b16 %v4188, %v4184
    %v4773 = vpack.c.b16 %v4189, %v4185
    %v4774 = vpack.c.b16 %v4190, %v4186
    %v4775 = vpack.c.b16 %v4191, %v4187
    %v4776 = vpack.c.b16 %v4196, %v4192
    %v4777 = vpack.c.b16 %v4197, %v4193
    %v4778 = vpack.c.b16 %v4198, %v4194
    %v4779 = vpack.c.b16 %v4199, %v4195
    %v4780 = vpack.c.b16 %v4204, %v4200
    %v4781 = vpack.c.b16 %v4205, %v4201
    %v4782 = vpack.c.b16 %v4206, %v4202
    %v4783 = vpack.c.b16 %v4207, %v4203
    %v4784 = vpack.c.b16 %v4212, %v4208
    %v4785 = vpack.c.b16 %v4213, %v4209
    %v4786 = vpack.c.b16 %v4214, %v4210
    %v4787 = vpack.c.b16 %v4215, %v4211
    %v4788 = vpack.c.b16 %v4220, %v4216
    %v4789 = vpack.c.b16 %v4221, %v4217
    %v4790 = vpack.c.b16 %v4222, %v4218
    %v4791 = vpack.c.b16 %v4223, %v4219
    %v4792 = vpack.c.b16 %v4228, %v4224
    %v4793 = vpack.c.b16 %v4229, %v4225
    %v4794 = vpack.c.b16 %v4230, %v4226
    %v4795 = vpack.c.b16 %v4231, %v4227
    %v4796 = vpack.c.b16 %v4236, %v4232
    %v4797 = vpack.c.b16 %v4237, %v4233
    %v4798 = vpack.c.b16 %v4238, %v4234
    %v4799 = vpack.c.b16 %v4239, %v4235
    %v4800 = vpack.c.b16 %v4244, %v4240
    %v4801 = vpack.c.b16 %v4245, %v4241
    %v4802 = vpack.c.b16 %v4246, %v4242
    %v4803 = vpack.c.b16 %v4247, %v4243
    %v4804 = vpack.c.b16 %v4252, %v4248
    %v4805 = vpack.c.b16 %v4253, %v4249
    %v4806 = vpack.c.b16 %v4254, %v4250
    %v4807 = vpack.c.b16 %v4255, %v4251
    %v4808 = vpack.c.b16 %v4260, %v4256
    %v4809 = vpack.c.b16 %v4261, %v4257
    %v4810 = vpack.c.b16 %v4262, %v4258
    %v4811 = vpack.c.b16 %v4263, %v4259
    %v4812 = vpack.c.b16 %v4268, %v4264
    %v4813 = vpack.c.b16 %v4269, %v4265
    %v4814 = vpack.c.b16 %v4270, %v4266
    %v4815 = vpack.c.b16 %v4271, %v4267
    %v4816 = vpack.c.b16 %v4276, %v4272
    %v4817 = vpack.c.b16 %v4277, %v4273
    %v4818 = vpack.c.b16 %v4278, %v4274
    %v4819 = vpack.c.b16 %v4279, %v4275
    %v4820 = vpack.c.b16 %v4284, %v4280
    %v4821 = vpack.c.b16 %v4285, %v4281
    %v4822 = vpack.c.b16 %v4286, %v4282
    %v4823 = vpack.c.b16 %v4287, %v4283
    %v4824 = vpack.c.b16 %v4292, %v4288
    %v4825 = vpack.c.b16 %v4293, %v4289
    %v4826 = vpack.c.b16 %v4294, %v4290
    %v4827 = vpack.c.b16 %v4295, %v4291
    %v4828 = vpack.c.b16 %v4300, %v4296
    %v4829 = vpack.c.b16 %v4301, %v4297
    %v4830 = vpack.c.b16 %v4302, %v4298
    %v4831 = vpack.c.b16 %v4303, %v4299
    %v4832 = vpack.c.b16 %v4308, %v4304
    %v4833 = vpack.c.b16 %v4309, %v4305
    %v4834 = vpack.c.b16 %v4310, %v4306
    %v4835 = vpack.c.b16 %v4311, %v4307
    %v4836 = vpack.c.b16 %v4316, %v4312
    %v4837 = vpack.c.b16 %v4317, %v4313
    %v4838 = vpack.c.b16 %v4318, %v4314
    %v4839 = vpack.c.b16 %v4319, %v4315
    %v4840 = vpack.c.b16 %v4324, %v4320
    %v4841 = vpack.c.b16 %v4325, %v4321
    %v4842 = vpack.c.b16 %v4326, %v4322
    %v4843 = vpack.c.b16 %v4327, %v4323
    %v4844 = vpack.c.b16 %v4332, %v4328
    %v4845 = vpack.c.b16 %v4333, %v4329
    %v4846 = vpack.c.b16 %v4334, %v4330
    %v4847 = vpack.c.b16 %v4335, %v4331
    %5360 = vmatprep.subr.bf16.mxu0 %v4337
    %5361 = vmatpush1.bf16.msra.mxu0 %v4336
    %5362 = vmatprep.subr.bf16.mxu0 %v4341
    %5363 = vmatpush1.bf16.msra.mxu0 %v4340
    %5364 = vmatprep.subr.bf16.mxu0 %v4345
    %5365 = vmatpush1.bf16.msra.mxu0 %v4344
    %5366 = vmatprep.subr.bf16.mxu0 %v4349
    %5367 = vmatpush1.bf16.msra.mxu0 %v4348
    %5368 = vmatprep.subr.bf16.mxu0 %v4353
    %5369 = vmatpush1.bf16.msra.mxu0 %v4352
    %5370 = vmatprep.subr.bf16.mxu0 %v4357
    %5371 = vmatpush1.bf16.msra.mxu0 %v4356
    %5372 = vmatprep.subr.bf16.mxu0 %v4361
    %5373 = vmatpush1.bf16.msra.mxu0 %v4360
    %5374 = vmatprep.subr.bf16.mxu0 %v4365
    %5375 = vmatpush1.bf16.msra.mxu0 %v4364
    %5376 = vmatprep.subr.bf16.mxu0 %v4369
    %5377 = vmatpush1.bf16.msra.mxu0 %v4368
    %5378 = vmatprep.subr.bf16.mxu0 %v4373
    %5379 = vmatpush1.bf16.msra.mxu0 %v4372
    %5380 = vmatprep.subr.bf16.mxu0 %v4377
    %5381 = vmatpush1.bf16.msra.mxu0 %v4376
    %5382 = vmatprep.subr.bf16.mxu0 %v4381
    %5383 = vmatpush1.bf16.msra.mxu0 %v4380
    %5384 = vmatprep.subr.bf16.mxu0 %v4385
    %5385 = vmatpush1.bf16.msra.mxu0 %v4384
    %5386 = vmatprep.subr.bf16.mxu0 %v4389
    %5387 = vmatpush1.bf16.msra.mxu0 %v4388
    %5388 = vmatprep.subr.bf16.mxu0 %v4393
    %5389 = vmatpush1.bf16.msra.mxu0 %v4392
    %5390 = vmatprep.subr.bf16.mxu0 %v4397
    %5391 = vmatpush1.bf16.msra.mxu0 %v4396
    %5392 = vmatprep.mubr.bf16.mxu0 %v2251
    %5393 = vmatmul.mubr.bf16.gmra.mrb[0].mxu0 %v2250
    %v5394 = vpop.f32.mrb[0].mxu0
    %v5395 = vadd.f32 %v2783, %v5394
    %v5396 = vpop.f32.mrb[0].mxu0
    %v5397 = vadd.f32 %v2787, %v5396
    %v5398 = vpop.f32.mrb[0].mxu0
    %v5399 = vpop.f32.mrb[0].mxu0
    %5400 = vdwg.mxu0
    %5401 = vmatprep.subr.bf16.mxu0 %v4401
    %5402 = vmatpush1.bf16.msra.mxu0 %v4400
    %5403 = vmatprep.subr.bf16.mxu0 %v4405
    %5404 = vmatpush1.bf16.msra.mxu0 %v4404
    %5405 = vmatprep.subr.bf16.mxu0 %v4409
    %5406 = vmatpush1.bf16.msra.mxu0 %v4408
    %5407 = vmatprep.subr.bf16.mxu0 %v4413
    %5408 = vmatpush1.bf16.msra.mxu0 %v4412
    %5409 = vmatprep.subr.bf16.mxu0 %v4417
    %5410 = vmatpush1.bf16.msra.mxu0 %v4416
    %5411 = vmatprep.subr.bf16.mxu0 %v4421
    %5412 = vmatpush1.bf16.msra.mxu0 %v4420
    %5413 = vmatprep.subr.bf16.mxu0 %v4425
    %5414 = vmatpush1.bf16.msra.mxu0 %v4424
    %5415 = vmatprep.subr.bf16.mxu0 %v4429
    %5416 = vmatpush1.bf16.msra.mxu0 %v4428
    %5417 = vmatprep.subr.bf16.mxu0 %v4433
    %5418 = vmatpush1.bf16.msra.mxu0 %v4432
    %5419 = vmatprep.subr.bf16.mxu0 %v4437
    %5420 = vmatpush1.bf16.msra.mxu0 %v4436
    %5421 = vmatprep.subr.bf16.mxu0 %v4441
    %5422 = vmatpush1.bf16.msra.mxu0 %v4440
    %5423 = vmatprep.subr.bf16.mxu0 %v4445
    %5424 = vmatpush1.bf16.msra.mxu0 %v4444
    %5425 = vmatprep.subr.bf16.mxu0 %v4449
    %5426 = vmatpush1.bf16.msra.mxu0 %v4448
    %5427 = vmatprep.subr.bf16.mxu0 %v4453
    %5428 = vmatpush1.bf16.msra.mxu0 %v4452
    %5429 = vmatprep.subr.bf16.mxu0 %v4457
    %5430 = vmatpush1.bf16.msra.mxu0 %v4456
    %5431 = vmatprep.subr.bf16.mxu0 %v4461
    %5432 = vmatpush1.bf16.msra.mxu0 %v4460
    %5433 = vmatprep.mubr.bf16.mxu0 %v2253
    %5434 = vmatmul.mubr.bf16.gmra.mrb[0].mxu0 %v2252
    %v5435 = vpop.f32.mrb[0].mxu0
    %v5436 = vadd.f32 %v5395, %v5435
    %v5437 = vpop.f32.mrb[0].mxu0
    %v5438 = vadd.f32 %v5397, %v5437
    %v5439 = vpop.f32.mrb[0].mxu0
    %v5440 = vpop.f32.mrb[0].mxu0
    %5441 = vdwg.mxu0
    %5442 = vmatprep.subr.bf16.mxu0 %v4465
    %5443 = vmatpush1.bf16.msra.mxu0 %v4464
    %5444 = vmatprep.subr.bf16.mxu0 %v4469
    %5445 = vmatpush1.bf16.msra.mxu0 %v4468
    %5446 = vmatprep.subr.bf16.mxu0 %v4473
    %5447 = vmatpush1.bf16.msra.mxu0 %v4472
    %5448 = vmatprep.subr.bf16.mxu0 %v4477
    %5449 = vmatpush1.bf16.msra.mxu0 %v4476
    %5450 = vmatprep.subr.bf16.mxu0 %v4481
    %5451 = vmatpush1.bf16.msra.mxu0 %v4480
    %5452 = vmatprep.subr.bf16.mxu0 %v4485
    %5453 = vmatpush1.bf16.msra.mxu0 %v4484
    %5454 = vmatprep.subr.bf16.mxu0 %v4489
    %5455 = vmatpush1.bf16.msra.mxu0 %v4488
    %5456 = vmatprep.subr.bf16.mxu0 %v4493
    %5457 = vmatpush1.bf16.msra.mxu0 %v4492
    %5458 = vmatprep.subr.bf16.mxu0 %v4497
    %5459 = vmatpush1.bf16.msra.mxu0 %v4496
    %5460 = vmatprep.subr.bf16.mxu0 %v4501
    %5461 = vmatpush1.bf16.msra.mxu0 %v4500
    %5462 = vmatprep.subr.bf16.mxu0 %v4505
    %5463 = vmatpush1.bf16.msra.mxu0 %v4504
    %5464 = vmatprep.subr.bf16.mxu0 %v4509
    %5465 = vmatpush1.bf16.msra.mxu0 %v4508
    %5466 = vmatprep.subr.bf16.mxu0 %v4513
    %5467 = vmatpush1.bf16.msra.mxu0 %v4512
    %5468 = vmatprep.subr.bf16.mxu0 %v4517
    %5469 = vmatpush1.bf16.msra.mxu0 %v4516
    %5470 = vmatprep.subr.bf16.mxu0 %v4521
    %5471 = vmatpush1.bf16.msra.mxu0 %v4520
    %5472 = vmatprep.subr.bf16.mxu0 %v4525
    %5473 = vmatpush1.bf16.msra.mxu0 %v4524
    %5474 = vmatprep.mubr.bf16.mxu0 %v2255
    %5475 = vmatmul.mubr.bf16.gmra.mrb[0].mxu0 %v2254
    %v5476 = vpop.f32.mrb[0].mxu0
    %v5477 = vadd.f32 %v5436, %v5476
    %v5478 = vpop.f32.mrb[0].mxu0
    %v5479 = vadd.f32 %v5438, %v5478
    %v5480 = vpop.f32.mrb[0].mxu0
    %v5481 = vpop.f32.mrb[0].mxu0
    %5482 = vdwg.mxu0
    %5483 = vmatprep.subr.bf16.mxu0 %v4529
    %5484 = vmatpush1.bf16.msra.mxu0 %v4528
    %5485 = vmatprep.subr.bf16.mxu0 %v4533
    %5486 = vmatpush1.bf16.msra.mxu0 %v4532
    %5487 = vmatprep.subr.bf16.mxu0 %v4537
    %5488 = vmatpush1.bf16.msra.mxu0 %v4536
    %5489 = vmatprep.subr.bf16.mxu0 %v4541
    %5490 = vmatpush1.bf16.msra.mxu0 %v4540
    %5491 = vmatprep.subr.bf16.mxu0 %v4545
    %5492 = vmatpush1.bf16.msra.mxu0 %v4544
    %5493 = vmatprep.subr.bf16.mxu0 %v4549
    %5494 = vmatpush1.bf16.msra.mxu0 %v4548
    %5495 = vmatprep.subr.bf16.mxu0 %v4553
    %5496 = vmatpush1.bf16.msra.mxu0 %v4552
    %5497 = vmatprep.subr.bf16.mxu0 %v4557
    %5498 = vmatpush1.bf16.msra.mxu0 %v4556
    %5499 = vmatprep.subr.bf16.mxu0 %v4561
    %5500 = vmatpush1.bf16.msra.mxu0 %v4560
    %5501 = vmatprep.subr.bf16.mxu0 %v4565
    %5502 = vmatpush1.bf16.msra.mxu0 %v4564
    %5503 = vmatprep.subr.bf16.mxu0 %v4569
    %5504 = vmatpush1.bf16.msra.mxu0 %v4568
    %5505 = vmatprep.subr.bf16.mxu0 %v4573
    %5506 = vmatpush1.bf16.msra.mxu0 %v4572
    %5507 = vmatprep.subr.bf16.mxu0 %v4577
    %5508 = vmatpush1.bf16.msra.mxu0 %v4576
    %5509 = vmatprep.subr.bf16.mxu0 %v4581
    %5510 = vmatpush1.bf16.msra.mxu0 %v4580
    %5511 = vmatprep.subr.bf16.mxu0 %v4585
    %5512 = vmatpush1.bf16.msra.mxu0 %v4584
    %5513 = vmatprep.subr.bf16.mxu0 %v4589
    %5514 = vmatpush1.bf16.msra.mxu0 %v4588
    %5515 = vmatprep.mubr.bf16.mxu0 %v2257
    %5516 = vmatmul.mubr.bf16.gmra.mrb[0].mxu0 %v2256
    %v5517 = vpop.f32.mrb[0].mxu0
    %v5518 = vadd.f32 %v5477, %v5517
    %v5519 = vpop.f32.mrb[0].mxu0
    %v5520 = vadd.f32 %v5479, %v5519
    %v5521 = vpop.f32.mrb[0].mxu0
    %v5522 = vpop.f32.mrb[0].mxu0
    %5523 = vdwg.mxu0
    %5524 = vmatprep.subr.bf16.mxu0 %v4593
    %5525 = vmatpush1.bf16.msra.mxu0 %v4592
    %5526 = vmatprep.subr.bf16.mxu0 %v4597
    %5527 = vmatpush1.bf16.msra.mxu0 %v4596
    %5528 = vmatprep.subr.bf16.mxu0 %v4601
    %5529 = vmatpush1.bf16.msra.mxu0 %v4600
    %5530 = vmatprep.subr.bf16.mxu0 %v4605
    %5531 = vmatpush1.bf16.msra.mxu0 %v4604
    %5532 = vmatprep.subr.bf16.mxu0 %v4609
    %5533 = vmatpush1.bf16.msra.mxu0 %v4608
    %5534 = vmatprep.subr.bf16.mxu0 %v4613
    %5535 = vmatpush1.bf16.msra.mxu0 %v4612
    %5536 = vmatprep.subr.bf16.mxu0 %v4617
    %5537 = vmatpush1.bf16.msra.mxu0 %v4616
    %5538 = vmatprep.subr.bf16.mxu0 %v4621
    %5539 = vmatpush1.bf16.msra.mxu0 %v4620
    %5540 = vmatprep.subr.bf16.mxu0 %v4625
    %5541 = vmatpush1.bf16.msra.mxu0 %v4624
    %5542 = vmatprep.subr.bf16.mxu0 %v4629
    %5543 = vmatpush1.bf16.msra.mxu0 %v4628
    %5544 = vmatprep.subr.bf16.mxu0 %v4633
    %5545 = vmatpush1.bf16.msra.mxu0 %v4632
    %5546 = vmatprep.subr.bf16.mxu0 %v4637
    %5547 = vmatpush1.bf16.msra.mxu0 %v4636
    %5548 = vmatprep.subr.bf16.mxu0 %v4641
    %5549 = vmatpush1.bf16.msra.mxu0 %v4640
    %5550 = vmatprep.subr.bf16.mxu0 %v4645
    %5551 = vmatpush1.bf16.msra.mxu0 %v4644
    %5552 = vmatprep.subr.bf16.mxu0 %v4649
    %5553 = vmatpush1.bf16.msra.mxu0 %v4648
    %5554 = vmatprep.subr.bf16.mxu0 %v4653
    %5555 = vmatpush1.bf16.msra.mxu0 %v4652
    %5556 = vmatprep.mubr.bf16.mxu0 %v2259
    %5557 = vmatmul.mubr.bf16.gmra.mrb[0].mxu0 %v2258
    %v5558 = vpop.f32.mrb[0].mxu0
    %v5559 = vadd.f32 %v5518, %v5558
    %v5560 = vpop.f32.mrb[0].mxu0
    %v5561 = vadd.f32 %v5520, %v5560
    %v5562 = vpop.f32.mrb[0].mxu0
    %v5563 = vpop.f32.mrb[0].mxu0
    %5564 = vdwg.mxu0
    %5565 = vmatprep.subr.bf16.mxu0 %v4657
    %5566 = vmatpush1.bf16.msra.mxu0 %v4656
    %5567 = vmatprep.subr.bf16.mxu0 %v4661
    %5568 = vmatpush1.bf16.msra.mxu0 %v4660
    %5569 = vmatprep.subr.bf16.mxu0 %v4665
    %5570 = vmatpush1.bf16.msra.mxu0 %v4664
    %5571 = vmatprep.subr.bf16.mxu0 %v4669
    %5572 = vmatpush1.bf16.msra.mxu0 %v4668
    %5573 = vmatprep.subr.bf16.mxu0 %v4673
    %5574 = vmatpush1.bf16.msra.mxu0 %v4672
    %5575 = vmatprep.subr.bf16.mxu0 %v4677
    %5576 = vmatpush1.bf16.msra.mxu0 %v4676
    %5577 = vmatprep.subr.bf16.mxu0 %v4681
    %5578 = vmatpush1.bf16.msra.mxu0 %v4680
    %5579 = vmatprep.subr.bf16.mxu0 %v4685
    %5580 = vmatpush1.bf16.msra.mxu0 %v4684
    %5581 = vmatprep.subr.bf16.mxu0 %v4689
    %5582 = vmatpush1.bf16.msra.mxu0 %v4688
    %5583 = vmatprep.subr.bf16.mxu0 %v4693
    %5584 = vmatpush1.bf16.msra.mxu0 %v4692
    %5585 = vmatprep.subr.bf16.mxu0 %v4697
    %5586 = vmatpush1.bf16.msra.mxu0 %v4696
    %5587 = vmatprep.subr.bf16.mxu0 %v4701
    %5588 = vmatpush1.bf16.msra.mxu0 %v4700
    %5589 = vmatprep.subr.bf16.mxu0 %v4705
    %5590 = vmatpush1.bf16.msra.mxu0 %v4704
    %5591 = vmatprep.subr.bf16.mxu0 %v4709
    %5592 = vmatpush1.bf16.msra.mxu0 %v4708
    %5593 = vmatprep.subr.bf16.mxu0 %v4713
    %5594 = vmatpush1.bf16.msra.mxu0 %v4712
    %5595 = vmatprep.subr.bf16.mxu0 %v4717
    %5596 = vmatpush1.bf16.msra.mxu0 %v4716
    %5597 = vmatprep.mubr.bf16.mxu0 %v2261
    %5598 = vmatmul.mubr.bf16.gmra.mrb[0].mxu0 %v2260
    %v5599 = vpop.f32.mrb[0].mxu0
    %v5600 = vadd.f32 %v5559, %v5599
    %v5601 = vpop.f32.mrb[0].mxu0
    %v5602 = vadd.f32 %v5561, %v5601
    %v5603 = vpop.f32.mrb[0].mxu0
    %v5604 = vpop.f32.mrb[0].mxu0
    %5605 = vdwg.mxu0
    %5606 = vmatprep.subr.bf16.mxu0 %v4721
    %5607 = vmatpush1.bf16.msra.mxu0 %v4720
    %5608 = vmatprep.subr.bf16.mxu0 %v4725
    %5609 = vmatpush1.bf16.msra.mxu0 %v4724
    %5610 = vmatprep.subr.bf16.mxu0 %v4729
    %5611 = vmatpush1.bf16.msra.mxu0 %v4728
    %5612 = vmatprep.subr.bf16.mxu0 %v4733
    %5613 = vmatpush1.bf16.msra.mxu0 %v4732
    %5614 = vmatprep.subr.bf16.mxu0 %v4737
    %5615 = vmatpush1.bf16.msra.mxu0 %v4736
    %5616 = vmatprep.subr.bf16.mxu0 %v4741
    %5617 = vmatpush1.bf16.msra.mxu0 %v4740
    %5618 = vmatprep.subr.bf16.mxu0 %v4745
    %5619 = vmatpush1.bf16.msra.mxu0 %v4744
    %5620 = vmatprep.subr.bf16.mxu0 %v4749
    %5621 = vmatpush1.bf16.msra.mxu0 %v4748
    %5622 = vmatprep.subr.bf16.mxu0 %v4753
    %5623 = vmatpush1.bf16.msra.mxu0 %v4752
    %5624 = vmatprep.subr.bf16.mxu0 %v4757
    %5625 = vmatpush1.bf16.msra.mxu0 %v4756
    %5626 = vmatprep.subr.bf16.mxu0 %v4761
    %5627 = vmatpush1.bf16.msra.mxu0 %v4760
    %5628 = vmatprep.subr.bf16.mxu0 %v4765
    %5629 = vmatpush1.bf16.msra.mxu0 %v4764
    %5630 = vmatprep.subr.bf16.mxu0 %v4769
    %5631 = vmatpush1.bf16.msra.mxu0 %v4768
    %5632 = vmatprep.subr.bf16.mxu0 %v4773
    %5633 = vmatpush1.bf16.msra.mxu0 %v4772
    %5634 = vmatprep.subr.bf16.mxu0 %v4777
    %5635 = vmatpush1.bf16.msra.mxu0 %v4776
    %5636 = vmatprep.subr.bf16.mxu0 %v4781
    %5637 = vmatpush1.bf16.msra.mxu0 %v4780
    %5638 = vmatprep.mubr.bf16.mxu0 %v2263
    %5639 = vmatmul.mubr.bf16.gmra.mrb[0].mxu0 %v2262
    %v5640 = vpop.f32.mrb[0].mxu0
    %v5641 = vadd.f32 %v5600, %v5640
    %v5642 = vpop.f32.mrb[0].mxu0
    %v5643 = vadd.f32 %v5602, %v5642
    %v5644 = vpop.f32.mrb[0].mxu0
    %v5645 = vpop.f32.mrb[0].mxu0
    %5646 = vdwg.mxu0
    %5647 = vmatprep.subr.bf16.mxu0 %v4785
    %5648 = vmatpush1.bf16.msra.mxu0 %v4784
    %5649 = vmatprep.subr.bf16.mxu0 %v4789
    %5650 = vmatpush1.bf16.msra.mxu0 %v4788
    %5651 = vmatprep.subr.bf16.mxu0 %v4793
    %5652 = vmatpush1.bf16.msra.mxu0 %v4792
    %5653 = vmatprep.subr.bf16.mxu0 %v4797
    %5654 = vmatpush1.bf16.msra.mxu0 %v4796
    %5655 = vmatprep.subr.bf16.mxu0 %v4801
    %5656 = vmatpush1.bf16.msra.mxu0 %v4800
    %5657 = vmatprep.subr.bf16.mxu0 %v4805
    %5658 = vmatpush1.bf16.msra.mxu0 %v4804
    %5659 = vmatprep.subr.bf16.mxu0 %v4809
    %5660 = vmatpush1.bf16.msra.mxu0 %v4808
    %5661 = vmatprep.subr.bf16.mxu0 %v4813
    %5662 = vmatpush1.bf16.msra.mxu0 %v4812
    %5663 = vmatprep.subr.bf16.mxu0 %v4817
    %5664 = vmatpush1.bf16.msra.mxu0 %v4816
    %5665 = vmatprep.subr.bf16.mxu0 %v4821
    %5666 = vmatpush1.bf16.msra.mxu0 %v4820
    %5667 = vmatprep.subr.bf16.mxu0 %v4825
    %5668 = vmatpush1.bf16.msra.mxu0 %v4824
    %5669 = vmatprep.subr.bf16.mxu0 %v4829
    %5670 = vmatpush1.bf16.msra.mxu0 %v4828
    %5671 = vmatprep.subr.bf16.mxu0 %v4833
    %5672 = vmatpush1.bf16.msra.mxu0 %v4832
    %5673 = vmatprep.subr.bf16.mxu0 %v4837
    %5674 = vmatpush1.bf16.msra.mxu0 %v4836
    %5675 = vmatprep.subr.bf16.mxu0 %v4841
    %5676 = vmatpush1.bf16.msra.mxu0 %v4840
    %5677 = vmatprep.subr.bf16.mxu0 %v4845
    %5678 = vmatpush1.bf16.msra.mxu0 %v4844
    %5679 = vmatprep.mubr.bf16.mxu0 %v2265
    %5680 = vmatmul.mubr.bf16.gmra.mrb[0].mxu0 %v2264
    %v5681 = vpop.f32.mrb[0].mxu0
    %v5682 = vadd.f32 %v5641, %v5681
    %v5683 = vpop.f32.mrb[0].mxu0
    %v5684 = vadd.f32 %v5643, %v5683
    %v5685 = vpop.f32.mrb[0].mxu0
    %v5686 = vpop.f32.mrb[0].mxu0
    %5687 = vdwg.mxu0
    %5688 = vmatprep.subr.bf16.mxu0 %v4339
    %5689 = vmatpush1.bf16.msra.mxu0 %v4338
    %5690 = vmatprep.subr.bf16.mxu0 %v4343
    %5691 = vmatpush1.bf16.msra.mxu0 %v4342
    %5692 = vmatprep.subr.bf16.mxu0 %v4347
    %5693 = vmatpush1.bf16.msra.mxu0 %v4346
    %5694 = vmatprep.subr.bf16.mxu0 %v4351
    %5695 = vmatpush1.bf16.msra.mxu0 %v4350
    %5696 = vmatprep.subr.bf16.mxu0 %v4355
    %5697 = vmatpush1.bf16.msra.mxu0 %v4354
    %5698 = vmatprep.subr.bf16.mxu0 %v4359
    %5699 = vmatpush1.bf16.msra.mxu0 %v4358
    %5700 = vmatprep.subr.bf16.mxu0 %v4363
    %5701 = vmatpush1.bf16.msra.mxu0 %v4362
    %5702 = vmatprep.subr.bf16.mxu0 %v4367
    %5703 = vmatpush1.bf16.msra.mxu0 %v4366
    %5704 = vmatprep.subr.bf16.mxu0 %v4371
    %5705 = vmatpush1.bf16.msra.mxu0 %v4370
    %5706 = vmatprep.subr.bf16.mxu0 %v4375
    %5707 = vmatpush1.bf16.msra.mxu0 %v4374
    %5708 = vmatprep.subr.bf16.mxu0 %v4379
    %5709 = vmatpush1.bf16.msra.mxu0 %v4378
    %5710 = vmatprep.subr.bf16.mxu0 %v4383
    %5711 = vmatpush1.bf16.msra.mxu0 %v4382
    %5712 = vmatprep.subr.bf16.mxu0 %v4387
    %5713 = vmatpush1.bf16.msra.mxu0 %v4386
    %5714 = vmatprep.subr.bf16.mxu0 %v4391
    %5715 = vmatpush1.bf16.msra.mxu0 %v4390
    %5716 = vmatprep.subr.bf16.mxu0 %v4395
    %5717 = vmatpush1.bf16.msra.mxu0 %v4394
    %5718 = vmatprep.subr.bf16.mxu0 %v4399
    %5719 = vmatpush1.bf16.msra.mxu0 %v4398
    %5720 = vmatprep.mubr.bf16.mxu0 %v2251
    %5721 = vmatmul.mubr.bf16.gmra.mrb[0].mxu0 %v2250
    %v5722 = vpop.f32.mrb[0].mxu0
    %v5723 = vadd.f32 %v2791, %v5722
    %v5724 = vpop.f32.mrb[0].mxu0
    %v5725 = vadd.f32 %v2795, %v5724
    %v5726 = vpop.f32.mrb[0].mxu0
    %v5727 = vpop.f32.mrb[0].mxu0
    %5728 = vdwg.mxu0
    %5729 = vmatprep.subr.bf16.mxu0 %v4403
    %5730 = vmatpush1.bf16.msra.mxu0 %v4402
    %5731 = vmatprep.subr.bf16.mxu0 %v4407
    %5732 = vmatpush1.bf16.msra.mxu0 %v4406
    %5733 = vmatprep.subr.bf16.mxu0 %v4411
    %5734 = vmatpush1.bf16.msra.mxu0 %v4410
    %5735 = vmatprep.subr.bf16.mxu0 %v4415
    %5736 = vmatpush1.bf16.msra.mxu0 %v4414
    %5737 = vmatprep.subr.bf16.mxu0 %v4419
    %5738 = vmatpush1.bf16.msra.mxu0 %v4418
    %5739 = vmatprep.subr.bf16.mxu0 %v4423
    %5740 = vmatpush1.bf16.msra.mxu0 %v4422
    %5741 = vmatprep.subr.bf16.mxu0 %v4427
    %5742 = vmatpush1.bf16.msra.mxu0 %v4426
    %5743 = vmatprep.subr.bf16.mxu0 %v4431
    %5744 = vmatpush1.bf16.msra.mxu0 %v4430
    %5745 = vmatprep.subr.bf16.mxu0 %v4435
    %5746 = vmatpush1.bf16.msra.mxu0 %v4434
    %5747 = vmatprep.subr.bf16.mxu0 %v4439
    %5748 = vmatpush1.bf16.msra.mxu0 %v4438
    %5749 = vmatprep.subr.bf16.mxu0 %v4443
    %5750 = vmatpush1.bf16.msra.mxu0 %v4442
    %5751 = vmatprep.subr.bf16.mxu0 %v4447
    %5752 = vmatpush1.bf16.msra.mxu0 %v4446
    %5753 = vmatprep.subr.bf16.mxu0 %v4451
    %5754 = vmatpush1.bf16.msra.mxu0 %v4450
    %5755 = vmatprep.subr.bf16.mxu0 %v4455
    %5756 = vmatpush1.bf16.msra.mxu0 %v4454
    %5757 = vmatprep.subr.bf16.mxu0 %v4459
    %5758 = vmatpush1.bf16.msra.mxu0 %v4458
    %5759 = vmatprep.subr.bf16.mxu0 %v4463
    %5760 = vmatpush1.bf16.msra.mxu0 %v4462
    %5761 = vmatprep.mubr.bf16.mxu0 %v2253
    %5762 = vmatmul.mubr.bf16.gmra.mrb[0].mxu0 %v2252
    %v5763 = vpop.f32.mrb[0].mxu0
    %v5764 = vadd.f32 %v5723, %v5763
    %v5765 = vpop.f32.mrb[0].mxu0
    %v5766 = vadd.f32 %v5725, %v5765
    %v5767 = vpop.f32.mrb[0].mxu0
    %v5768 = vpop.f32.mrb[0].mxu0
    %5769 = vdwg.mxu0
    %5770 = vmatprep.subr.bf16.mxu0 %v4467
    %5771 = vmatpush1.bf16.msra.mxu0 %v4466
    %5772 = vmatprep.subr.bf16.mxu0 %v4471
    %5773 = vmatpush1.bf16.msra.mxu0 %v4470
    %5774 = vmatprep.subr.bf16.mxu0 %v4475
    %5775 = vmatpush1.bf16.msra.mxu0 %v4474
    %5776 = vmatprep.subr.bf16.mxu0 %v4479
    %5777 = vmatpush1.bf16.msra.mxu0 %v4478
    %5778 = vmatprep.subr.bf16.mxu0 %v4483
    %5779 = vmatpush1.bf16.msra.mxu0 %v4482
    %5780 = vmatprep.subr.bf16.mxu0 %v4487
    %5781 = vmatpush1.bf16.msra.mxu0 %v4486
    %5782 = vmatprep.subr.bf16.mxu0 %v4491
    %5783 = vmatpush1.bf16.msra.mxu0 %v4490
    %5784 = vmatprep.subr.bf16.mxu0 %v4495
    %5785 = vmatpush1.bf16.msra.mxu0 %v4494
    %5786 = vmatprep.subr.bf16.mxu0 %v4499
    %5787 = vmatpush1.bf16.msra.mxu0 %v4498
    %5788 = vmatprep.subr.bf16.mxu0 %v4503
    %5789 = vmatpush1.bf16.msra.mxu0 %v4502
    %5790 = vmatprep.subr.bf16.mxu0 %v4507
    %5791 = vmatpush1.bf16.msra.mxu0 %v4506
    %5792 = vmatprep.subr.bf16.mxu0 %v4511
    %5793 = vmatpush1.bf16.msra.mxu0 %v4510
    %5794 = vmatprep.subr.bf16.mxu0 %v4515
    %5795 = vmatpush1.bf16.msra.mxu0 %v4514
    %5796 = vmatprep.subr.bf16.mxu0 %v4519
    %5797 = vmatpush1.bf16.msra.mxu0 %v4518
    %5798 = vmatprep.subr.bf16.mxu0 %v4523
    %5799 = vmatpush1.bf16.msra.mxu0 %v4522
    %5800 = vmatprep.subr.bf16.mxu0 %v4527
    %5801 = vmatpush1.bf16.msra.mxu0 %v4526
    %5802 = vmatprep.mubr.bf16.mxu0 %v2255
    %5803 = vmatmul.mubr.bf16.gmra.mrb[0].mxu0 %v2254
    %v5804 = vpop.f32.mrb[0].mxu0
    %v5805 = vadd.f32 %v5764, %v5804
    %v5806 = vpop.f32.mrb[0].mxu0
    %v5807 = vadd.f32 %v5766, %v5806
    %v5808 = vpop.f32.mrb[0].mxu0
    %v5809 = vpop.f32.mrb[0].mxu0
    %5810 = vdwg.mxu0
    %5811 = vmatprep.subr.bf16.mxu0 %v4531
    %5812 = vmatpush1.bf16.msra.mxu0 %v4530
    %5813 = vmatprep.subr.bf16.mxu0 %v4535
    %5814 = vmatpush1.bf16.msra.mxu0 %v4534
    %5815 = vmatprep.subr.bf16.mxu0 %v4539
    %5816 = vmatpush1.bf16.msra.mxu0 %v4538
    %5817 = vmatprep.subr.bf16.mxu0 %v4543
    %5818 = vmatpush1.bf16.msra.mxu0 %v4542
    %5819 = vmatprep.subr.bf16.mxu0 %v4547
    %5820 = vmatpush1.bf16.msra.mxu0 %v4546
    %5821 = vmatprep.subr.bf16.mxu0 %v4551
    %5822 = vmatpush1.bf16.msra.mxu0 %v4550
    %5823 = vmatprep.subr.bf16.mxu0 %v4555
    %5824 = vmatpush1.bf16.msra.mxu0 %v4554
    %5825 = vmatprep.subr.bf16.mxu0 %v4559
    %5826 = vmatpush1.bf16.msra.mxu0 %v4558
    %5827 = vmatprep.subr.bf16.mxu0 %v4563
    %5828 = vmatpush1.bf16.msra.mxu0 %v4562
    %5829 = vmatprep.subr.bf16.mxu0 %v4567
    %5830 = vmatpush1.bf16.msra.mxu0 %v4566
    %5831 = vmatprep.subr.bf16.mxu0 %v4571
    %5832 = vmatpush1.bf16.msra.mxu0 %v4570
    %5833 = vmatprep.subr.bf16.mxu0 %v4575
    %5834 = vmatpush1.bf16.msra.mxu0 %v4574
    %5835 = vmatprep.subr.bf16.mxu0 %v4579
    %5836 = vmatpush1.bf16.msra.mxu0 %v4578
    %5837 = vmatprep.subr.bf16.mxu0 %v4583
    %5838 = vmatpush1.bf16.msra.mxu0 %v4582
    %5839 = vmatprep.subr.bf16.mxu0 %v4587
    %5840 = vmatpush1.bf16.msra.mxu0 %v4586
    %5841 = vmatprep.subr.bf16.mxu0 %v4591
    %5842 = vmatpush1.bf16.msra.mxu0 %v4590
    %5843 = vmatprep.mubr.bf16.mxu0 %v2257
    %5844 = vmatmul.mubr.bf16.gmra.mrb[0].mxu0 %v2256
    %v5845 = vpop.f32.mrb[0].mxu0
    %v5846 = vadd.f32 %v5805, %v5845
    %v5847 = vpop.f32.mrb[0].mxu0
    %v5848 = vadd.f32 %v5807, %v5847
    %v5849 = vpop.f32.mrb[0].mxu0
    %v5850 = vpop.f32.mrb[0].mxu0
    %5851 = vdwg.mxu0
    %5852 = vmatprep.subr.bf16.mxu0 %v4595
    %5853 = vmatpush1.bf16.msra.mxu0 %v4594
    %5854 = vmatprep.subr.bf16.mxu0 %v4599
    %5855 = vmatpush1.bf16.msra.mxu0 %v4598
    %5856 = vmatprep.subr.bf16.mxu0 %v4603
    %5857 = vmatpush1.bf16.msra.mxu0 %v4602
    %5858 = vmatprep.subr.bf16.mxu0 %v4607
    %5859 = vmatpush1.bf16.msra.mxu0 %v4606
    %5860 = vmatprep.subr.bf16.mxu0 %v4611
    %5861 = vmatpush1.bf16.msra.mxu0 %v4610
    %5862 = vmatprep.subr.bf16.mxu0 %v4615
    %5863 = vmatpush1.bf16.msra.mxu0 %v4614
    %5864 = vmatprep.subr.bf16.mxu0 %v4619
    %5865 = vmatpush1.bf16.msra.mxu0 %v4618
    %5866 = vmatprep.subr.bf16.mxu0 %v4623
    %5867 = vmatpush1.bf16.msra.mxu0 %v4622
    %5868 = vmatprep.subr.bf16.mxu0 %v4627
    %5869 = vmatpush1.bf16.msra.mxu0 %v4626
    %5870 = vmatprep.subr.bf16.mxu0 %v4631
    %5871 = vmatpush1.bf16.msra.mxu0 %v4630
    %5872 = vmatprep.subr.bf16.mxu0 %v4635
    %5873 = vmatpush1.bf16.msra.mxu0 %v4634
    %5874 = vmatprep.subr.bf16.mxu0 %v4639
    %5875 = vmatpush1.bf16.msra.mxu0 %v4638
    %5876 = vmatprep.subr.bf16.mxu0 %v4643
    %5877 = vmatpush1.bf16.msra.mxu0 %v4642
    %5878 = vmatprep.subr.bf16.mxu0 %v4647
    %5879 = vmatpush1.bf16.msra.mxu0 %v4646
    %5880 = vmatprep.subr.bf16.mxu0 %v4651
    %5881 = vmatpush1.bf16.msra.mxu0 %v4650
    %5882 = vmatprep.subr.bf16.mxu0 %v4655
    %5883 = vmatpush1.bf16.msra.mxu0 %v4654
    %5884 = vmatprep.mubr.bf16.mxu0 %v2259
    %5885 = vmatmul.mubr.bf16.gmra.mrb[0].mxu0 %v2258
    %v5886 = vpop.f32.mrb[0].mxu0
    %v5887 = vadd.f32 %v5846, %v5886
    %v5888 = vpop.f32.mrb[0].mxu0
    %v5889 = vadd.f32 %v5848, %v5888
    %v5890 = vpop.f32.mrb[0].mxu0
    %v5891 = vpop.f32.mrb[0].mxu0
    %5892 = vdwg.mxu0
    %5893 = vmatprep.subr.bf16.mxu0 %v4659
    %5894 = vmatpush1.bf16.msra.mxu0 %v4658
    %5895 = vmatprep.subr.bf16.mxu0 %v4663
    %5896 = vmatpush1.bf16.msra.mxu0 %v4662
    %5897 = vmatprep.subr.bf16.mxu0 %v4667
    %5898 = vmatpush1.bf16.msra.mxu0 %v4666
    %5899 = vmatprep.subr.bf16.mxu0 %v4671
    %5900 = vmatpush1.bf16.msra.mxu0 %v4670
    %5901 = vmatprep.subr.bf16.mxu0 %v4675
    %5902 = vmatpush1.bf16.msra.mxu0 %v4674
    %5903 = vmatprep.subr.bf16.mxu0 %v4679
    %5904 = vmatpush1.bf16.msra.mxu0 %v4678
    %5905 = vmatprep.subr.bf16.mxu0 %v4683
    %5906 = vmatpush1.bf16.msra.mxu0 %v4682
    %5907 = vmatprep.subr.bf16.mxu0 %v4687
    %5908 = vmatpush1.bf16.msra.mxu0 %v4686
    %5909 = vmatprep.subr.bf16.mxu0 %v4691
    %5910 = vmatpush1.bf16.msra.mxu0 %v4690
    %5911 = vmatprep.subr.bf16.mxu0 %v4695
    %5912 = vmatpush1.bf16.msra.mxu0 %v4694
    %5913 = vmatprep.subr.bf16.mxu0 %v4699
    %5914 = vmatpush1.bf16.msra.mxu0 %v4698
    %5915 = vmatprep.subr.bf16.mxu0 %v4703
    %5916 = vmatpush1.bf16.msra.mxu0 %v4702
    %5917 = vmatprep.subr.bf16.mxu0 %v4707
    %5918 = vmatpush1.bf16.msra.mxu0 %v4706
    %5919 = vmatprep.subr.bf16.mxu0 %v4711
    %5920 = vmatpush1.bf16.msra.mxu0 %v4710
    %5921 = vmatprep.subr.bf16.mxu0 %v4715
    %5922 = vmatpush1.bf16.msra.mxu0 %v4714
    %5923 = vmatprep.subr.bf16.mxu0 %v4719
    %5924 = vmatpush1.bf16.msra.mxu0 %v4718
    %5925 = vmatprep.mubr.bf16.mxu0 %v2261
    %5926 = vmatmul.mubr.bf16.gmra.mrb[0].mxu0 %v2260
    %v5927 = vpop.f32.mrb[0].mxu0
    %v5928 = vadd.f32 %v5887, %v5927
    %v5929 = vpop.f32.mrb[0].mxu0
    %v5930 = vadd.f32 %v5889, %v5929
    %v5931 = vpop.f32.mrb[0].mxu0
    %v5932 = vpop.f32.mrb[0].mxu0
    %5933 = vdwg.mxu0
    %5934 = vmatprep.subr.bf16.mxu0 %v4723
    %5935 = vmatpush1.bf16.msra.mxu0 %v4722
    %5936 = vmatprep.subr.bf16.mxu0 %v4727
    %5937 = vmatpush1.bf16.msra.mxu0 %v4726
    %5938 = vmatprep.subr.bf16.mxu0 %v4731
    %5939 = vmatpush1.bf16.msra.mxu0 %v4730
    %5940 = vmatprep.subr.bf16.mxu0 %v4735
    %5941 = vmatpush1.bf16.msra.mxu0 %v4734
    %5942 = vmatprep.subr.bf16.mxu0 %v4739
    %5943 = vmatpush1.bf16.msra.mxu0 %v4738
    %5944 = vmatprep.subr.bf16.mxu0 %v4743
    %5945 = vmatpush1.bf16.msra.mxu0 %v4742
    %5946 = vmatprep.subr.bf16.mxu0 %v4747
    %5947 = vmatpush1.bf16.msra.mxu0 %v4746
    %5948 = vmatprep.subr.bf16.mxu0 %v4751
    %5949 = vmatpush1.bf16.msra.mxu0 %v4750
    %5950 = vmatprep.subr.bf16.mxu0 %v4755
    %5951 = vmatpush1.bf16.msra.mxu0 %v4754
    %5952 = vmatprep.subr.bf16.mxu0 %v4759
    %5953 = vmatpush1.bf16.msra.mxu0 %v4758
    %5954 = vmatprep.subr.bf16.mxu0 %v4763
    %5955 = vmatpush1.bf16.msra.mxu0 %v4762
    %5956 = vmatprep.subr.bf16.mxu0 %v4767
    %5957 = vmatpush1.bf16.msra.mxu0 %v4766
    %5958 = vmatprep.subr.bf16.mxu0 %v4771
    %5959 = vmatpush1.bf16.msra.mxu0 %v4770
    %5960 = vmatprep.subr.bf16.mxu0 %v4775
    %5961 = vmatpush1.bf16.msra.mxu0 %v4774
    %5962 = vmatprep.subr.bf16.mxu0 %v4779
    %5963 = vmatpush1.bf16.msra.mxu0 %v4778
    %5964 = vmatprep.subr.bf16.mxu0 %v4783
    %5965 = vmatpush1.bf16.msra.mxu0 %v4782
    %5966 = vmatprep.mubr.bf16.mxu0 %v2263
    %5967 = vmatmul.mubr.bf16.gmra.mrb[0].mxu0 %v2262
    %v5968 = vpop.f32.mrb[0].mxu0
    %v5969 = vadd.f32 %v5928, %v5968
    %v5970 = vpop.f32.mrb[0].mxu0
    %v5971 = vadd.f32 %v5930, %v5970
    %v5972 = vpop.f32.mrb[0].mxu0
    %v5973 = vpop.f32.mrb[0].mxu0
    %5974 = vdwg.mxu0
    %5975 = vmatprep.subr.bf16.mxu0 %v4787
    %5976 = vmatpush1.bf16.msra.mxu0 %v4786
    %5977 = vmatprep.subr.bf16.mxu0 %v4791
    %5978 = vmatpush1.bf16.msra.mxu0 %v4790
    %5979 = vmatprep.subr.bf16.mxu0 %v4795
    %5980 = vmatpush1.bf16.msra.mxu0 %v4794
    %5981 = vmatprep.subr.bf16.mxu0 %v4799
    %5982 = vmatpush1.bf16.msra.mxu0 %v4798
    %5983 = vmatprep.subr.bf16.mxu0 %v4803
    %5984 = vmatpush1.bf16.msra.mxu0 %v4802
    %5985 = vmatprep.subr.bf16.mxu0 %v4807
    %5986 = vmatpush1.bf16.msra.mxu0 %v4806
    %5987 = vmatprep.subr.bf16.mxu0 %v4811
    %5988 = vmatpush1.bf16.msra.mxu0 %v4810
    %5989 = vmatprep.subr.bf16.mxu0 %v4815
    %5990 = vmatpush1.bf16.msra.mxu0 %v4814
    %5991 = vmatprep.subr.bf16.mxu0 %v4819
    %5992 = vmatpush1.bf16.msra.mxu0 %v4818
    %5993 = vmatprep.subr.bf16.mxu0 %v4823
    %5994 = vmatpush1.bf16.msra.mxu0 %v4822
    %5995 = vmatprep.subr.bf16.mxu0 %v4827
    %5996 = vmatpush1.bf16.msra.mxu0 %v4826
    %5997 = vmatprep.subr.bf16.mxu0 %v4831
    %5998 = vmatpush1.bf16.msra.mxu0 %v4830
    %5999 = vmatprep.subr.bf16.mxu0 %v4835
    %6000 = vmatpush1.bf16.msra.mxu0 %v4834
    %6001 = vmatprep.subr.bf16.mxu0 %v4839
    %6002 = vmatpush1.bf16.msra.mxu0 %v4838
    %6003 = vmatprep.subr.bf16.mxu0 %v4843
    %6004 = vmatpush1.bf16.msra.mxu0 %v4842
    %6005 = vmatprep.subr.bf16.mxu0 %v4847
    %6006 = vmatpush1.bf16.msra.mxu0 %v4846
    %6007 = vmatprep.mubr.bf16.mxu0 %v2265
    %6008 = vmatmul.mubr.bf16.gmra.mrb[0].mxu0 %v2264
    %v6009 = vpop.f32.mrb[0].mxu0
    %v6010 = vadd.f32 %v5969, %v6009
    %v6011 = vpop.f32.mrb[0].mxu0
    %v6012 = vadd.f32 %v5971, %v6011
    %v6013 = vpop.f32.mrb[0].mxu0
    %v6014 = vpop.f32.mrb[0].mxu0
    %6015 = vdwg.mxu0
    %v6016 = vmax.f32 %v5682, 0.0
    %v6017 = vmax.f32 %v5684, 0.0
    %v6018 = vmax.f32 %v6010, 0.0
    %v6019 = vmax.f32 %v6012, 0.0
    %v6020 = vpack.c.bf16 %v6016, %v6016
    %v6021 = vpack.c.bf16 %v6017, %v6017
    %v6022 = vpack.c.bf16 %v6018, %v6018
    %v6023 = vpack.c.bf16 %v6019, %v6019
    %v6024 = vld [vmem:[#allocation11] sm:$0xf]
    %v6025 = vld [vmem:[#allocation11 + $0x4] sm:$0xf]
    %v6026 = vld [vmem:[#allocation11 + $0x8] sm:$0xf]
    %v6027 = vld [vmem:[#allocation11 + $0xc] sm:$0xf]
    %v6028 = vld [vmem:[#allocation11 + $0x10] sm:$0xf]
    %v6029 = vld [vmem:[#allocation11 + $0x14] sm:$0xf]
    %v6030 = vld [vmem:[#allocation11 + $0x18] sm:$0xf]
    %v6031 = vld [vmem:[#allocation11 + $0x1c] sm:$0xf]
    %v6032 = vld [vmem:[#allocation11 + $0x20] sm:$0xf]
    %v6033 = vld [vmem:[#allocation11 + $0x24] sm:$0xf]
    %v6034 = vld [vmem:[#allocation11 + $0x28] sm:$0xf]
    %v6035 = vld [vmem:[#allocation11 + $0x2c] sm:$0xf]
    %v6036 = vld [vmem:[#allocation11 + $0x30] sm:$0xf]
    %v6037 = vld [vmem:[#allocation11 + $0x34] sm:$0xf]
    %v6038 = vld [vmem:[#allocation11 + $0x38] sm:$0xf]
    %v6039 = vld [vmem:[#allocation11 + $0x3c] sm:$0xf]
    %v6040 = vld [vmem:[#allocation11 + $0x40] sm:$0xf]
    %v6041 = vld [vmem:[#allocation11 + $0x44] sm:$0xf]
    %v6042 = vld [vmem:[#allocation11 + $0x48] sm:$0xf]
    %v6043 = vld [vmem:[#allocation11 + $0x4c] sm:$0xf]
    %v6044 = vld [vmem:[#allocation11 + $0x50] sm:$0xf]
    %v6045 = vld [vmem:[#allocation11 + $0x54] sm:$0xf]
    %v6046 = vld [vmem:[#allocation11 + $0x58] sm:$0xf]
    %v6047 = vld [vmem:[#allocation11 + $0x5c] sm:$0xf]
    %v6048 = vld [vmem:[#allocation11 + $0x60] sm:$0xf]
    %v6049 = vld [vmem:[#allocation11 + $0x64] sm:$0xf]
    %v6050 = vld [vmem:[#allocation11 + $0x68] sm:$0xf]
    %v6051 = vld [vmem:[#allocation11 + $0x6c] sm:$0xf]
    %v6052 = vld [vmem:[#allocation11 + $0x70] sm:$0xf]
    %v6053 = vld [vmem:[#allocation11 + $0x74] sm:$0xf]
    %v6054 = vld [vmem:[#allocation11 + $0x78] sm:$0xf]
    %v6055 = vld [vmem:[#allocation11 + $0x7c] sm:$0xf]
    %v6056 = vld [vmem:[#allocation11 + $0x80] sm:$0xf]
    %v6057 = vld [vmem:[#allocation11 + $0x84] sm:$0xf]
    %v6058 = vld [vmem:[#allocation11 + $0x88] sm:$0xf]
    %v6059 = vld [vmem:[#allocation11 + $0x8c] sm:$0xf]
    %v6060 = vld [vmem:[#allocation11 + $0x90] sm:$0xf]
    %v6061 = vld [vmem:[#allocation11 + $0x94] sm:$0xf]
    %v6062 = vld [vmem:[#allocation11 + $0x98] sm:$0xf]
    %v6063 = vld [vmem:[#allocation11 + $0x9c] sm:$0xf]
    %v6064 = vld [vmem:[#allocation11 + $0xa0] sm:$0xf]
    %v6065 = vld [vmem:[#allocation11 + $0xa4] sm:$0xf]
    %v6066 = vld [vmem:[#allocation11 + $0xa8] sm:$0xf]
    %v6067 = vld [vmem:[#allocation11 + $0xac] sm:$0xf]
    %v6068 = vld [vmem:[#allocation11 + $0xb0] sm:$0xf]
    %v6069 = vld [vmem:[#allocation11 + $0xb4] sm:$0xf]
    %v6070 = vld [vmem:[#allocation11 + $0xb8] sm:$0xf]
    %v6071 = vld [vmem:[#allocation11 + $0xbc] sm:$0xf]
    %v6072 = vld [vmem:[#allocation11 + $0xc0] sm:$0xf]
    %v6073 = vld [vmem:[#allocation11 + $0xc4] sm:$0xf]
    %v6074 = vld [vmem:[#allocation11 + $0xc8] sm:$0xf]
    %v6075 = vld [vmem:[#allocation11 + $0xcc] sm:$0xf]
    %v6076 = vld [vmem:[#allocation11 + $0xd0] sm:$0xf]
    %v6077 = vld [vmem:[#allocation11 + $0xd4] sm:$0xf]
    %v6078 = vld [vmem:[#allocation11 + $0xd8] sm:$0xf]
    %v6079 = vld [vmem:[#allocation11 + $0xdc] sm:$0xf]
    %v6080 = vld [vmem:[#allocation11 + $0xe0] sm:$0xf]
    %v6081 = vld [vmem:[#allocation11 + $0xe4] sm:$0xf]
    %v6082 = vld [vmem:[#allocation11 + $0xe8] sm:$0xf]
    %v6083 = vld [vmem:[#allocation11 + $0xec] sm:$0xf]
    %v6084 = vld [vmem:[#allocation11 + $0xf0] sm:$0xf]
    %v6085 = vld [vmem:[#allocation11 + $0xf4] sm:$0xf]
    %v6086 = vld [vmem:[#allocation11 + $0xf8] sm:$0xf]
    %v6087 = vld [vmem:[#allocation11 + $0xfc] sm:$0xf]
    %v6088 = vld [vmem:[#allocation12] sm:$0x1]
    %v6090 = vlaneseq
    %v6091 = vshrl.u32 %v6090, 7
    %v6092 = vsub.s32 0, %v6091
    %v6093 = vrot.slane %v6088, %v6092
    %v6159 = vunpack.c.l.b16 %v6024
    %v6160 = vunpack.c.l.b16 %v6025
    %v6161 = vunpack.c.l.b16 %v6026
    %v6162 = vunpack.c.l.b16 %v6027
    %v6163 = vunpack.c.l.b16 %v6028
    %v6164 = vunpack.c.l.b16 %v6029
    %v6165 = vunpack.c.l.b16 %v6030
    %v6166 = vunpack.c.l.b16 %v6031
    %v6167 = vunpack.c.l.b16 %v6032
    %v6168 = vunpack.c.l.b16 %v6033
    %v6169 = vunpack.c.l.b16 %v6034
    %v6170 = vunpack.c.l.b16 %v6035
    %v6171 = vunpack.c.l.b16 %v6036
    %v6172 = vunpack.c.l.b16 %v6037
    %v6173 = vunpack.c.l.b16 %v6038
    %v6174 = vunpack.c.l.b16 %v6039
    %v6175 = vunpack.c.l.b16 %v6040
    %v6176 = vunpack.c.l.b16 %v6041
    %v6177 = vunpack.c.l.b16 %v6042
    %v6178 = vunpack.c.l.b16 %v6043
    %v6179 = vunpack.c.l.b16 %v6044
    %v6180 = vunpack.c.l.b16 %v6045
    %v6181 = vunpack.c.l.b16 %v6046
    %v6182 = vunpack.c.l.b16 %v6047
    %v6183 = vunpack.c.l.b16 %v6048
    %v6184 = vunpack.c.l.b16 %v6049
    %v6185 = vunpack.c.l.b16 %v6050
    %v6186 = vunpack.c.l.b16 %v6051
    %v6187 = vunpack.c.l.b16 %v6052
    %v6188 = vunpack.c.l.b16 %v6053
    %v6189 = vunpack.c.l.b16 %v6054
    %v6190 = vunpack.c.l.b16 %v6055
    %v6191 = vunpack.c.l.b16 %v6056
    %v6192 = vunpack.c.l.b16 %v6057
    %v6193 = vunpack.c.l.b16 %v6058
    %v6194 = vunpack.c.l.b16 %v6059
    %v6195 = vunpack.c.l.b16 %v6060
    %v6196 = vunpack.c.l.b16 %v6061
    %v6197 = vunpack.c.l.b16 %v6062
    %v6198 = vunpack.c.l.b16 %v6063
    %v6199 = vunpack.c.l.b16 %v6064
    %v6200 = vunpack.c.l.b16 %v6065
    %v6201 = vunpack.c.l.b16 %v6066
    %v6202 = vunpack.c.l.b16 %v6067
    %v6203 = vunpack.c.l.b16 %v6068
    %v6204 = vunpack.c.l.b16 %v6069
    %v6205 = vunpack.c.l.b16 %v6070
    %v6206 = vunpack.c.l.b16 %v6071
    %v6207 = vunpack.c.l.b16 %v6072
    %v6208 = vunpack.c.l.b16 %v6073
    %v6209 = vunpack.c.l.b16 %v6074
    %v6210 = vunpack.c.l.b16 %v6075
    %v6211 = vunpack.c.l.b16 %v6076
    %v6212 = vunpack.c.l.b16 %v6077
    %v6213 = vunpack.c.l.b16 %v6078
    %v6214 = vunpack.c.l.b16 %v6079
    %v6215 = vunpack.c.l.b16 %v6080
    %v6216 = vunpack.c.l.b16 %v6081
    %v6217 = vunpack.c.l.b16 %v6082
    %v6218 = vunpack.c.l.b16 %v6083
    %v6219 = vunpack.c.l.b16 %v6084
    %v6220 = vunpack.c.l.b16 %v6085
    %v6221 = vunpack.c.l.b16 %v6086
    %v6222 = vunpack.c.l.b16 %v6087
    %v6223 = vpack.c.b16 %v6160, %v6159
    %v6224 = vpack.c.b16 %v6162, %v6161
    %v6225 = vpack.c.b16 %v6164, %v6163
    %v6226 = vpack.c.b16 %v6166, %v6165
    %v6227 = vpack.c.b16 %v6168, %v6167
    %v6228 = vpack.c.b16 %v6170, %v6169
    %v6229 = vpack.c.b16 %v6172, %v6171
    %v6230 = vpack.c.b16 %v6174, %v6173
    %v6231 = vpack.c.b16 %v6176, %v6175
    %v6232 = vpack.c.b16 %v6178, %v6177
    %v6233 = vpack.c.b16 %v6180, %v6179
    %v6234 = vpack.c.b16 %v6182, %v6181
    %v6235 = vpack.c.b16 %v6184, %v6183
    %v6236 = vpack.c.b16 %v6186, %v6185
    %v6237 = vpack.c.b16 %v6188, %v6187
    %v6238 = vpack.c.b16 %v6190, %v6189
    %v6239 = vpack.c.b16 %v6192, %v6191
    %v6240 = vpack.c.b16 %v6194, %v6193
    %v6241 = vpack.c.b16 %v6196, %v6195
    %v6242 = vpack.c.b16 %v6198, %v6197
    %v6243 = vpack.c.b16 %v6200, %v6199
    %v6244 = vpack.c.b16 %v6202, %v6201
    %v6245 = vpack.c.b16 %v6204, %v6203
    %v6246 = vpack.c.b16 %v6206, %v6205
    %v6247 = vpack.c.b16 %v6208, %v6207
    %v6248 = vpack.c.b16 %v6210, %v6209
    %v6249 = vpack.c.b16 %v6212, %v6211
    %v6250 = vpack.c.b16 %v6214, %v6213
    %v6251 = vpack.c.b16 %v6216, %v6215
    %v6252 = vpack.c.b16 %v6218, %v6217
    %v6253 = vpack.c.b16 %v6220, %v6219
    %v6254 = vpack.c.b16 %v6222, %v6221
    %6287 = vmatprep.subr.bf16.mxu0 0
    %6288 = vmatpush1.bf16.msra.mxu0 %v6223
    %6289 = vmatprep.subr.bf16.mxu0 0
    %6290 = vmatpush1.bf16.msra.mxu0 %v6224
    %6291 = vmatprep.subr.bf16.mxu0 0
    %6292 = vmatpush1.bf16.msra.mxu0 %v6225
    %6293 = vmatprep.subr.bf16.mxu0 0
    %6294 = vmatpush1.bf16.msra.mxu0 %v6226
    %6295 = vmatprep.subr.bf16.mxu0 0
    %6296 = vmatpush1.bf16.msra.mxu0 %v6227
    %6297 = vmatprep.subr.bf16.mxu0 0
    %6298 = vmatpush1.bf16.msra.mxu0 %v6228
    %6299 = vmatprep.subr.bf16.mxu0 0
    %6300 = vmatpush1.bf16.msra.mxu0 %v6229
    %6301 = vmatprep.subr.bf16.mxu0 0
    %6302 = vmatpush1.bf16.msra.mxu0 %v6230
    %6303 = vmatprep.subr.bf16.mxu0 0
    %6304 = vmatpush1.bf16.msra.mxu0 %v6231
    %6305 = vmatprep.subr.bf16.mxu0 0
    %6306 = vmatpush1.bf16.msra.mxu0 %v6232
    %6307 = vmatprep.subr.bf16.mxu0 0
    %6308 = vmatpush1.bf16.msra.mxu0 %v6233
    %6309 = vmatprep.subr.bf16.mxu0 0
    %6310 = vmatpush1.bf16.msra.mxu0 %v6234
    %6311 = vmatprep.subr.bf16.mxu0 0
    %6312 = vmatpush1.bf16.msra.mxu0 %v6235
    %6313 = vmatprep.subr.bf16.mxu0 0
    %6314 = vmatpush1.bf16.msra.mxu0 %v6236
    %6315 = vmatprep.subr.bf16.mxu0 0
    %6316 = vmatpush1.bf16.msra.mxu0 %v6237
    %6317 = vmatprep.subr.bf16.mxu0 0
    %6318 = vmatpush1.bf16.msra.mxu0 %v6238
    %6319 = vmatprep.mubr.bf16.mxu0 %v6021
    %6320 = vmatmul.mubr.bf16.gmra.mrb[0].mxu0 %v6020
    %v6321 = vpop.f32.mrb[0].mxu0
    %v6322 = vadd.f32 %v6093, %v6321
    %v6323 = vpop.f32.mrb[0].mxu0
    %v6324 = vpop.f32.mrb[0].mxu0
    %v6325 = vpop.f32.mrb[0].mxu0
    %6326 = vdwg.mxu0
    %6327 = vmatprep.subr.bf16.mxu0 0
    %6328 = vmatpush1.bf16.msra.mxu0 %v6239
    %6329 = vmatprep.subr.bf16.mxu0 0
    %6330 = vmatpush1.bf16.msra.mxu0 %v6240
    %6331 = vmatprep.subr.bf16.mxu0 0
    %6332 = vmatpush1.bf16.msra.mxu0 %v6241
    %6333 = vmatprep.subr.bf16.mxu0 0
    %6334 = vmatpush1.bf16.msra.mxu0 %v6242
    %6335 = vmatprep.subr.bf16.mxu0 0
    %6336 = vmatpush1.bf16.msra.mxu0 %v6243
    %6337 = vmatprep.subr.bf16.mxu0 0
    %6338 = vmatpush1.bf16.msra.mxu0 %v6244
    %6339 = vmatprep.subr.bf16.mxu0 0
    %6340 = vmatpush1.bf16.msra.mxu0 %v6245
    %6341 = vmatprep.subr.bf16.mxu0 0
    %6342 = vmatpush1.bf16.msra.mxu0 %v6246
    %6343 = vmatprep.subr.bf16.mxu0 0
    %6344 = vmatpush1.bf16.msra.mxu0 %v6247
    %6345 = vmatprep.subr.bf16.mxu0 0
    %6346 = vmatpush1.bf16.msra.mxu0 %v6248
    %6347 = vmatprep.subr.bf16.mxu0 0
    %6348 = vmatpush1.bf16.msra.mxu0 %v6249
    %6349 = vmatprep.subr.bf16.mxu0 0
    %6350 = vmatpush1.bf16.msra.mxu0 %v6250
    %6351 = vmatprep.subr.bf16.mxu0 0
    %6352 = vmatpush1.bf16.msra.mxu0 %v6251
    %6353 = vmatprep.subr.bf16.mxu0 0
    %6354 = vmatpush1.bf16.msra.mxu0 %v6252
    %6355 = vmatprep.subr.bf16.mxu0 0
    %6356 = vmatpush1.bf16.msra.mxu0 %v6253
    %6357 = vmatprep.subr.bf16.mxu0 0
    %6358 = vmatpush1.bf16.msra.mxu0 %v6254
    %6359 = vmatprep.mubr.bf16.mxu0 %v6023
    %6360 = vmatmul.mubr.bf16.gmra.mrb[0].mxu0 %v6022
    %v6361 = vpop.f32.mrb[0].mxu0
    %v6362 = vadd.f32 %v6322, %v6361
    %v6363 = vpop.f32.mrb[0].mxu0
    %v6364 = vpop.f32.mrb[0].mxu0
    %v6365 = vpop.f32.mrb[0].mxu0
    %6366 = vdwg.mxu0
    %v6367 = vmax.f32 %v6362, 0.0
    %v6368 = vpack.c.bf16 %v6367, %v6367
    %v6369 = vld [vmem:[%s7] sm:$0xf]
    %v6370 = vld [vmem:[%s7 + $0x4] sm:$0xf]
    %v6371 = vld [vmem:[%s7 + $0x8] sm:$0xf]
    %v6372 = vld [vmem:[%s7 + $0xc] sm:$0xf]
    %v6373 = vld [vmem:[%s7 + $0x10] sm:$0xf]
    %v6374 = vld [vmem:[%s7 + $0x14] sm:$0xf]
    %v6375 = vld [vmem:[%s7 + $0x18] sm:$0xf]
    %v6376 = vld [vmem:[%s7 + $0x1c] sm:$0xf]
    %v6377 = vld [vmem:[%s7 + $0x20] sm:$0xf]
    %v6378 = vld [vmem:[%s7 + $0x24] sm:$0xf]
    %v6379 = vld [vmem:[%s7 + $0x28] sm:$0xf]
    %v6380 = vld [vmem:[%s7 + $0x2c] sm:$0xf]
    %v6381 = vld [vmem:[%s7 + $0x30] sm:$0xf]
    %v6382 = vld [vmem:[%s7 + $0x34] sm:$0xf]
    %v6383 = vld [vmem:[%s7 + $0x38] sm:$0xf]
    %v6384 = vld [vmem:[%s7 + $0x3c] sm:$0xf]
    %v6385 = vld [vmem:[#allocation14] sm:$0x1]
    %v6387 = vlaneseq
    %v6388 = vshrl.u32 %v6387, 7
    %v6389 = vsub.s32 0, %v6388
    %v6390 = vrot.slane %v6385, %v6389
    %v6408 = vunpack.c.l.b16 %v6369
    %v6409 = vunpack.c.l.b16 %v6370
    %v6410 = vunpack.c.l.b16 %v6371
    %v6411 = vunpack.c.l.b16 %v6372
    %v6412 = vunpack.c.l.b16 %v6373
    %v6413 = vunpack.c.l.b16 %v6374
    %v6414 = vunpack.c.l.b16 %v6375
    %v6415 = vunpack.c.l.b16 %v6376
    %v6416 = vunpack.c.l.b16 %v6377
    %v6417 = vunpack.c.l.b16 %v6378
    %v6418 = vunpack.c.l.b16 %v6379
    %v6419 = vunpack.c.l.b16 %v6380
    %v6420 = vunpack.c.l.b16 %v6381
    %v6421 = vunpack.c.l.b16 %v6382
    %v6422 = vunpack.c.l.b16 %v6383
    %v6423 = vunpack.c.l.b16 %v6384
    %v6424 = vpack.c.b16 %v6409, %v6408
    %v6425 = vpack.c.b16 %v6411, %v6410
    %v6426 = vpack.c.b16 %v6413, %v6412
    %v6427 = vpack.c.b16 %v6415, %v6414
    %v6428 = vpack.c.b16 %v6417, %v6416
    %v6429 = vpack.c.b16 %v6419, %v6418
    %v6430 = vpack.c.b16 %v6421, %v6420
    %v6431 = vpack.c.b16 %v6423, %v6422
    %6440 = vmatprep.subr.bf16.mxu0 0
    %6441 = vmatpush1.bf16.msra.mxu0 %v6424
    %6442 = vmatprep.subr.bf16.mxu0 0
    %6443 = vmatpush1.bf16.msra.mxu0 %v6425
    %6444 = vmatprep.subr.bf16.mxu0 0
    %6445 = vmatpush1.bf16.msra.mxu0 %v6426
    %6446 = vmatprep.subr.bf16.mxu0 0
    %6447 = vmatpush1.bf16.msra.mxu0 %v6427
    %6448 = vmatprep.subr.bf16.mxu0 0
    %6449 = vmatpush1.bf16.msra.mxu0 %v6428
    %6450 = vmatprep.subr.bf16.mxu0 0
    %6451 = vmatpush1.bf16.msra.mxu0 %v6429
    %6452 = vmatprep.subr.bf16.mxu0 0
    %6453 = vmatpush1.bf16.msra.mxu0 %v6430
    %6454 = vmatprep.subr.bf16.mxu0 0
    %6455 = vmatpush1.bf16.msra.mxu0 %v6431
    %6456 = vmatprep.subr.bf16.mxu0 0
    %6457 = vmatpush1.bf16.msra.mxu0 0
    %6458 = vmatprep.subr.bf16.mxu0 0
    %6459 = vmatpush1.bf16.msra.mxu0 0
    %6460 = vmatprep.subr.bf16.mxu0 0
    %6461 = vmatpush1.bf16.msra.mxu0 0
    %6462 = vmatprep.subr.bf16.mxu0 0
    %6463 = vmatpush1.bf16.msra.mxu0 0
    %6464 = vmatprep.subr.bf16.mxu0 0
    %6465 = vmatpush1.bf16.msra.mxu0 0
    %6466 = vmatprep.subr.bf16.mxu0 0
    %6467 = vmatpush1.bf16.msra.mxu0 0
    %6468 = vmatprep.subr.bf16.mxu0 0
    %6469 = vmatpush1.bf16.msra.mxu0 0
    %6470 = vmatprep.subr.bf16.mxu0 0
    %6471 = vmatpush1.bf16.msra.mxu0 0
    %6472 = vmatprep.mubr.bf16.mxu0 0
    %6473 = vmatmul.mubr.bf16.gmra.mrb[0].mxu0 %v6368
    %v6474 = vpop.f32.mrb[0].mxu0
    %v6475 = vadd.f32 %v6390, %v6474
    %v6476 = vpop.f32.mrb[0].mxu0
    %v6477 = vpop.f32.mrb[0].mxu0
    %v6478 = vpop.f32.mrb[0].mxu0
    %6479 = vdwg.mxu0
    %v6480 = vmax.f32 %v6475, 0.0
    %v6481 = vpack.c.bf16 %v6480, %v6480
    %v6482 = vld [vmem:[#allocation15] sm:$0xf]
    %v6483 = vld [vmem:[#allocation15 + $0x4] sm:$0x1]
    %v6484 = vld [vmem:[#allocation17] sm:$0x1]
    %v6486 = vlaneseq
    %v6487 = vshrl.u32 %v6486, 7
    %v6488 = vsub.s32 0, %v6487
    %v6489 = vrot.slane %v6484, %v6488
    %v6493 = vunpack.c.l.b16 %v6482
    %v6494 = vunpack.c.l.b16 %v6483
    %v6495 = vpack.c.b16 %v6494, %v6493
    %vm6496 = vcmask 80896
    %v6498 = vsel %vm6496, %v6481, 0
    %vm6500 = vcmask 1044480
    %v6502 = vsel %vm6500, %v6495, 0
    %6504 = vmatprep.subr.bf16.mxu0 0
    %6505 = vmatpush1.bf16.msra.mxu0 %v6502
    %6506 = vmatprep.subr.bf16.mxu0 0
    %6507 = vmatpush1.bf16.msra.mxu0 0
    %6508 = vmatprep.subr.bf16.mxu0 0
    %6509 = vmatpush1.bf16.msra.mxu0 0
    %6510 = vmatprep.subr.bf16.mxu0 0
    %6511 = vmatpush1.bf16.msra.mxu0 0
    %6512 = vmatprep.subr.bf16.mxu0 0
    %6513 = vmatpush1.bf16.msra.mxu0 0
    %6514 = vmatprep.subr.bf16.mxu0 0
    %6515 = vmatpush1.bf16.msra.mxu0 0
    %6516 = vmatprep.subr.bf16.mxu0 0
    %6517 = vmatpush1.bf16.msra.mxu0 0
    %6518 = vmatprep.subr.bf16.mxu0 0
    %6519 = vmatpush1.bf16.msra.mxu0 0
    %6520 = vmatprep.subr.bf16.mxu0 0
    %6521 = vmatpush1.bf16.msra.mxu0 0
    %6522 = vmatprep.subr.bf16.mxu0 0
    %6523 = vmatpush1.bf16.msra.mxu0 0
    %6524 = vmatprep.subr.bf16.mxu0 0
    %6525 = vmatpush1.bf16.msra.mxu0 0
    %6526 = vmatprep.subr.bf16.mxu0 0
    %6527 = vmatpush1.bf16.msra.mxu0 0
    %6528 = vmatprep.subr.bf16.mxu0 0
    %6529 = vmatpush1.bf16.msra.mxu0 0
    %6530 = vmatprep.subr.bf16.mxu0 0
    %6531 = vmatpush1.bf16.msra.mxu0 0
    %6532 = vmatprep.subr.bf16.mxu0 0
    %6533 = vmatpush1.bf16.msra.mxu0 0
    %6534 = vmatprep.subr.bf16.mxu0 0
    %6535 = vmatpush1.bf16.msra.mxu0 0
    %6536 = vmatprep.mubr.bf16.mxu0 0
    %6537 = vmatmul.mubr.bf16.gmra.mrb[0].mxu0 %v6498
    %v6538 = vpop.f32.mrb[0].mxu0
    %v6539 = vadd.f32 %v6489, %v6538
    %v6540 = vpop.f32.mrb[0].mxu0
    %v6541 = vpop.f32.mrb[0].mxu0
    %v6542 = vpop.f32.mrb[0].mxu0
    %6543 = vdwg.mxu0
    %v6544 = vmax.f32 %v6539, 0.0
    %v6545 = vpack.c.bf16 %v6544, %v6544
    %v6546 = vld [vmem:[#allocation18] sm:$0xff]
    %v6547 = vld [vmem:[#allocation18 + $0x8] sm:$0xff]
    %v6548 = vld [vmem:[#allocation18 + $0x10] sm:$0xff]
    %v6549 = vld [vmem:[#allocation18 + $0x18] sm:$0xff]
    %v6550 = vld [vmem:[#allocation18 + $0x20] sm:$0xff]
    %v6551 = vld [vmem:[#allocation18 + $0x28] sm:$0xff]
    %v6552 = vld [vmem:[#allocation18 + $0x30] sm:$0xff]
    %v6553 = vld [vmem:[#allocation18 + $0x38] sm:$0xff]
    %v6554 = vld [vmem:[#allocation18 + $0x40] sm:$0xff]
    %v6555 = vld [vmem:[#allocation18 + $0x48] sm:$0xff]
    %v6556 = vld [vmem:[#allocation18 + $0x50] sm:$0xff]
    %v6557 = vld [vmem:[#allocation18 + $0x58] sm:$0xff]
    %v6558 = vld [vmem:[#allocation18 + $0x60] sm:$0xff]
    %v6559 = vld [vmem:[#allocation18 + $0x68] sm:$0xff]
    %v6560 = vld [vmem:[#allocation18 + $0x70] sm:$0xff]
    %v6561 = vld [vmem:[#allocation18 + $0x78] sm:$0xff]
    %v6562 = vld [vmem:[#allocation18 + $0x80] sm:$0xff]
    %v6563 = vld [vmem:[#allocation18 + $0x88] sm:$0xff]
    %v6564 = vld [vmem:[#allocation18 + $0x90] sm:$0xff]
    %v6565 = vld [vmem:[#allocation18 + $0x98] sm:$0xff]
    %v6566 = vld [vmem:[#allocation18 + $0xa0] sm:$0xff]
    %v6567 = vld [vmem:[#allocation18 + $0xa8] sm:$0xff]
    %v6568 = vld [vmem:[#allocation18 + $0xb0] sm:$0xff]
    %v6569 = vld [vmem:[#allocation18 + $0xb8] sm:$0xff]
    %v6570 = vld [vmem:[#allocation18 + $0xc0] sm:$0xff]
    %v6571 = vld [vmem:[#allocation18 + $0xc8] sm:$0xff]
    %v6572 = vld [vmem:[#allocation18 + $0xd0] sm:$0xff]
    %v6573 = vld [vmem:[#allocation18 + $0xd8] sm:$0xff]
    %v6574 = vld [vmem:[#allocation18 + $0xe0] sm:$0xff]
    %v6575 = vld [vmem:[#allocation18 + $0xe8] sm:$0xff]
    %v6576 = vld [vmem:[#allocation18 + $0xf0] sm:$0xff]
    %v6577 = vld [vmem:[#allocation18 + $0xf8] sm:$0xff]
    %v6578 = vld [vmem:[#allocation20] sm:$0xf]
    %v6580 = vlaneseq
    %v6581 = vshrl.u32 %v6580, 7
    %v6582 = vsub.s32 0, %v6581
    %v6583 = vrot.slane %v6578, %v6582
    %v6584 = vlaneseq
    %v6585 = vshrl.u32 %v6584, 7
    %v6586 = vsub.s32 1, %v6585
    %v6587 = vrot.slane %v6578, %v6586
    %v6588 = vlaneseq
    %v6589 = vshrl.u32 %v6588, 7
    %v6590 = vsub.s32 2, %v6589
    %v6591 = vrot.slane %v6578, %v6590
    %v6592 = vlaneseq
    %v6593 = vshrl.u32 %v6592, 7
    %v6594 = vsub.s32 3, %v6593
    %v6595 = vrot.slane %v6578, %v6594
    %v6632 = vunpack.c.l.b16 %v6546
    %v6633 = vunpack.c.h.b16 %v6546
    %v6634 = vunpack.c.l.b16 %v6547
    %v6635 = vunpack.c.h.b16 %v6547
    %v6636 = vunpack.c.l.b16 %v6548
    %v6637 = vunpack.c.h.b16 %v6548
    %v6638 = vunpack.c.l.b16 %v6549
    %v6639 = vunpack.c.h.b16 %v6549
    %v6640 = vunpack.c.l.b16 %v6550
    %v6641 = vunpack.c.h.b16 %v6550
    %v6642 = vunpack.c.l.b16 %v6551
    %v6643 = vunpack.c.h.b16 %v6551
    %v6644 = vunpack.c.l.b16 %v6552
    %v6645 = vunpack.c.h.b16 %v6552
    %v6646 = vunpack.c.l.b16 %v6553
    %v6647 = vunpack.c.h.b16 %v6553
    %v6648 = vunpack.c.l.b16 %v6554
    %v6649 = vunpack.c.h.b16 %v6554
    %v6650 = vunpack.c.l.b16 %v6555
    %v6651 = vunpack.c.h.b16 %v6555
    %v6652 = vunpack.c.l.b16 %v6556
    %v6653 = vunpack.c.h.b16 %v6556
    %v6654 = vunpack.c.l.b16 %v6557
    %v6655 = vunpack.c.h.b16 %v6557
    %v6656 = vunpack.c.l.b16 %v6558
    %v6657 = vunpack.c.h.b16 %v6558
    %v6658 = vunpack.c.l.b16 %v6559
    %v6659 = vunpack.c.h.b16 %v6559
    %v6660 = vunpack.c.l.b16 %v6560
    %v6661 = vunpack.c.h.b16 %v6560
    %v6662 = vunpack.c.l.b16 %v6561
    %v6663 = vunpack.c.h.b16 %v6561
    %v6664 = vunpack.c.l.b16 %v6562
    %v6665 = vunpack.c.h.b16 %v6562
    %v6666 = vunpack.c.l.b16 %v6563
    %v6667 = vunpack.c.h.b16 %v6563
    %v6668 = vunpack.c.l.b16 %v6564
    %v6669 = vunpack.c.h.b16 %v6564
    %v6670 = vunpack.c.l.b16 %v6565
    %v6671 = vunpack.c.h.b16 %v6565
    %v6672 = vunpack.c.l.b16 %v6566
    %v6673 = vunpack.c.h.b16 %v6566
    %v6674 = vunpack.c.l.b16 %v6567
    %v6675 = vunpack.c.h.b16 %v6567
    %v6676 = vunpack.c.l.b16 %v6568
    %v6677 = vunpack.c.h.b16 %v6568
    %v6678 = vunpack.c.l.b16 %v6569
    %v6679 = vunpack.c.h.b16 %v6569
    %v6680 = vunpack.c.l.b16 %v6570
    %v6681 = vunpack.c.h.b16 %v6570
    %v6682 = vunpack.c.l.b16 %v6571
    %v6683 = vunpack.c.h.b16 %v6571
    %v6684 = vunpack.c.l.b16 %v6572
    %v6685 = vunpack.c.h.b16 %v6572
    %v6686 = vunpack.c.l.b16 %v6573
    %v6687 = vunpack.c.h.b16 %v6573
    %v6688 = vunpack.c.l.b16 %v6574
    %v6689 = vunpack.c.h.b16 %v6574
    %v6690 = vunpack.c.l.b16 %v6575
    %v6691 = vunpack.c.h.b16 %v6575
    %v6692 = vunpack.c.l.b16 %v6576
    %v6693 = vunpack.c.h.b16 %v6576
    %v6694 = vunpack.c.l.b16 %v6577
    %v6695 = vunpack.c.h.b16 %v6577
    %v6696 = vpack.c.b16 %v6636, %v6632
    %v6697 = vpack.c.b16 %v6637, %v6633
    %v6698 = vpack.c.b16 %v6638, %v6634
    %v6699 = vpack.c.b16 %v6639, %v6635
    %v6700 = vpack.c.b16 %v6644, %v6640
    %v6701 = vpack.c.b16 %v6645, %v6641
    %v6702 = vpack.c.b16 %v6646, %v6642
    %v6703 = vpack.c.b16 %v6647, %v6643
    %v6704 = vpack.c.b16 %v6652, %v6648
    %v6705 = vpack.c.b16 %v6653, %v6649
    %v6706 = vpack.c.b16 %v6654, %v6650
    %v6707 = vpack.c.b16 %v6655, %v6651
    %v6708 = vpack.c.b16 %v6660, %v6656
    %v6709 = vpack.c.b16 %v6661, %v6657
    %v6710 = vpack.c.b16 %v6662, %v6658
    %v6711 = vpack.c.b16 %v6663, %v6659
    %v6712 = vpack.c.b16 %v6668, %v6664
    %v6713 = vpack.c.b16 %v6669, %v6665
    %v6714 = vpack.c.b16 %v6670, %v6666
    %v6715 = vpack.c.b16 %v6671, %v6667
    %v6716 = vpack.c.b16 %v6676, %v6672
    %v6717 = vpack.c.b16 %v6677, %v6673
    %v6718 = vpack.c.b16 %v6678, %v6674
    %v6719 = vpack.c.b16 %v6679, %v6675
    %v6720 = vpack.c.b16 %v6684, %v6680
    %v6721 = vpack.c.b16 %v6685, %v6681
    %v6722 = vpack.c.b16 %v6686, %v6682
    %v6723 = vpack.c.b16 %v6687, %v6683
    %v6724 = vpack.c.b16 %v6692, %v6688
    %v6725 = vpack.c.b16 %v6693, %v6689
    %v6726 = vpack.c.b16 %v6694, %v6690
    %v6727 = vpack.c.b16 %v6695, %v6691
    %6760 = vmatprep.subr.bf16.mxu0 %v6697
    %6761 = vmatpush1.bf16.msra.mxu0 %v6696
    %6762 = vmatprep.subr.bf16.mxu0 %v6701
    %6763 = vmatpush1.bf16.msra.mxu0 %v6700
    %6764 = vmatprep.subr.bf16.mxu0 %v6705
    %6765 = vmatpush1.bf16.msra.mxu0 %v6704
    %6766 = vmatprep.subr.bf16.mxu0 %v6709
    %6767 = vmatpush1.bf16.msra.mxu0 %v6708
    %6768 = vmatprep.subr.bf16.mxu0 %v6713
    %6769 = vmatpush1.bf16.msra.mxu0 %v6712
    %6770 = vmatprep.subr.bf16.mxu0 %v6717
    %6771 = vmatpush1.bf16.msra.mxu0 %v6716
    %6772 = vmatprep.subr.bf16.mxu0 %v6721
    %6773 = vmatpush1.bf16.msra.mxu0 %v6720
    %6774 = vmatprep.subr.bf16.mxu0 %v6725
    %6775 = vmatpush1.bf16.msra.mxu0 %v6724
    %6776 = vmatprep.subr.bf16.mxu0 0
    %6777 = vmatpush1.bf16.msra.mxu0 0
    %6778 = vmatprep.subr.bf16.mxu0 0
    %6779 = vmatpush1.bf16.msra.mxu0 0
    %6780 = vmatprep.subr.bf16.mxu0 0
    %6781 = vmatpush1.bf16.msra.mxu0 0
    %6782 = vmatprep.subr.bf16.mxu0 0
    %6783 = vmatpush1.bf16.msra.mxu0 0
    %6784 = vmatprep.subr.bf16.mxu0 0
    %6785 = vmatpush1.bf16.msra.mxu0 0
    %6786 = vmatprep.subr.bf16.mxu0 0
    %6787 = vmatpush1.bf16.msra.mxu0 0
    %6788 = vmatprep.subr.bf16.mxu0 0
    %6789 = vmatpush1.bf16.msra.mxu0 0
    %6790 = vmatprep.subr.bf16.mxu0 0
    %6791 = vmatpush1.bf16.msra.mxu0 0
    %6792 = vmatprep.mubr.bf16.mxu0 0
    %6793 = vmatmul.mubr.bf16.gmra.mrb[0].mxu0 %v6545
    %v6794 = vpop.f32.mrb[0].mxu0
    %v6795 = vadd.f32 %v6583, %v6794
    %v6796 = vpop.f32.mrb[0].mxu0
    %v6797 = vadd.f32 %v6587, %v6796
    %v6798 = vpop.f32.mrb[0].mxu0
    %v6799 = vpop.f32.mrb[0].mxu0
    %6800 = vdwg.mxu0
    %6801 = vmatprep.subr.bf16.mxu0 %v6699
    %6802 = vmatpush1.bf16.msra.mxu0 %v6698
    %6803 = vmatprep.subr.bf16.mxu0 %v6703
    %6804 = vmatpush1.bf16.msra.mxu0 %v6702
    %6805 = vmatprep.subr.bf16.mxu0 %v6707
    %6806 = vmatpush1.bf16.msra.mxu0 %v6706
    %6807 = vmatprep.subr.bf16.mxu0 %v6711
    %6808 = vmatpush1.bf16.msra.mxu0 %v6710
    %6809 = vmatprep.subr.bf16.mxu0 %v6715
    %6810 = vmatpush1.bf16.msra.mxu0 %v6714
    %6811 = vmatprep.subr.bf16.mxu0 %v6719
    %6812 = vmatpush1.bf16.msra.mxu0 %v6718
    %6813 = vmatprep.subr.bf16.mxu0 %v6723
    %6814 = vmatpush1.bf16.msra.mxu0 %v6722
    %6815 = vmatprep.subr.bf16.mxu0 %v6727
    %6816 = vmatpush1.bf16.msra.mxu0 %v6726
    %6817 = vmatprep.subr.bf16.mxu0 0
    %6818 = vmatpush1.bf16.msra.mxu0 0
    %6819 = vmatprep.subr.bf16.mxu0 0
    %6820 = vmatpush1.bf16.msra.mxu0 0
    %6821 = vmatprep.subr.bf16.mxu0 0
    %6822 = vmatpush1.bf16.msra.mxu0 0
    %6823 = vmatprep.subr.bf16.mxu0 0
    %6824 = vmatpush1.bf16.msra.mxu0 0
    %6825 = vmatprep.subr.bf16.mxu0 0
    %6826 = vmatpush1.bf16.msra.mxu0 0
    %6827 = vmatprep.subr.bf16.mxu0 0
    %6828 = vmatpush1.bf16.msra.mxu0 0
    %6829 = vmatprep.subr.bf16.mxu0 0
    %6830 = vmatpush1.bf16.msra.mxu0 0
    %6831 = vmatprep.subr.bf16.mxu0 0
    %6832 = vmatpush1.bf16.msra.mxu0 0
    %6833 = vmatprep.mubr.bf16.mxu0 0
    %6834 = vmatmul.mubr.bf16.gmra.mrb[0].mxu0 %v6545
    %v6835 = vpop.f32.mrb[0].mxu0
    %v6836 = vadd.f32 %v6591, %v6835
    %v6837 = vpop.f32.mrb[0].mxu0
    %v6838 = vadd.f32 %v6595, %v6837
    %v6839 = vpop.f32.mrb[0].mxu0
    %v6840 = vpop.f32.mrb[0].mxu0
    %6841 = vdwg.mxu0
    %v6842 = vmax.f32 %v6795, 0.0
    %v6843 = vmax.f32 %v6797, 0.0
    %v6844 = vmax.f32 %v6836, 0.0
    %v6845 = vmax.f32 %v6838, 0.0
    %v6846 = vpack.c.bf16 %v6842, %v6842
    %v6847 = vpack.c.bf16 %v6843, %v6843
    %v6848 = vpack.c.bf16 %v6844, %v6844
    %v6849 = vpack.c.bf16 %v6845, %v6845
    %v6850 = vld [vmem:[#allocation21] sm:$0xff]
    %v6851 = vld [vmem:[#allocation21 + $0x8] sm:$0xff]
    %v6852 = vld [vmem:[#allocation21 + $0x10] sm:$0xff]
    %v6853 = vld [vmem:[#allocation21 + $0x18] sm:$0xff]
    %v6854 = vld [vmem:[#allocation21 + $0x20] sm:$0xff]
    %v6855 = vld [vmem:[#allocation21 + $0x28] sm:$0xff]
    %v6856 = vld [vmem:[#allocation21 + $0x30] sm:$0xff]
    %v6857 = vld [vmem:[#allocation21 + $0x38] sm:$0xff]
    %v6858 = vld [vmem:[#allocation21 + $0x40] sm:$0xff]
    %v6859 = vld [vmem:[#allocation21 + $0x48] sm:$0xff]
    %v6860 = vld [vmem:[#allocation21 + $0x50] sm:$0xff]
    %v6861 = vld [vmem:[#allocation21 + $0x58] sm:$0xff]
    %v6862 = vld [vmem:[#allocation21 + $0x60] sm:$0xff]
    %v6863 = vld [vmem:[#allocation21 + $0x68] sm:$0xff]
    %v6864 = vld [vmem:[#allocation21 + $0x70] sm:$0xff]
    %v6865 = vld [vmem:[#allocation21 + $0x78] sm:$0xff]
    %v6866 = vld [vmem:[#allocation21 + $0x80] sm:$0xff]
    %v6867 = vld [vmem:[#allocation21 + $0x88] sm:$0xff]
    %v6868 = vld [vmem:[#allocation21 + $0x90] sm:$0xff]
    %v6869 = vld [vmem:[#allocation21 + $0x98] sm:$0xff]
    %v6870 = vld [vmem:[#allocation21 + $0xa0] sm:$0xff]
    %v6871 = vld [vmem:[#allocation21 + $0xa8] sm:$0xff]
    %v6872 = vld [vmem:[#allocation21 + $0xb0] sm:$0xff]
    %v6873 = vld [vmem:[#allocation21 + $0xb8] sm:$0xff]
    %v6874 = vld [vmem:[#allocation21 + $0xc0] sm:$0xff]
    %v6875 = vld [vmem:[#allocation21 + $0xc8] sm:$0xff]
    %v6876 = vld [vmem:[#allocation21 + $0xd0] sm:$0xff]
    %v6877 = vld [vmem:[#allocation21 + $0xd8] sm:$0xff]
    %v6878 = vld [vmem:[#allocation21 + $0xe0] sm:$0xff]
    %v6879 = vld [vmem:[#allocation21 + $0xe8] sm:$0xff]
    %v6880 = vld [vmem:[#allocation21 + $0xf0] sm:$0xff]
    %v6881 = vld [vmem:[#allocation21 + $0xf8] sm:$0xff]
    %v6882 = vld [vmem:[#allocation21 + $0x100] sm:$0xff]
    %v6883 = vld [vmem:[#allocation21 + $0x108] sm:$0xff]
    %v6884 = vld [vmem:[#allocation21 + $0x110] sm:$0xff]
    %v6885 = vld [vmem:[#allocation21 + $0x118] sm:$0xff]
    %v6886 = vld [vmem:[#allocation21 + $0x120] sm:$0xff]
    %v6887 = vld [vmem:[#allocation21 + $0x128] sm:$0xff]
    %v6888 = vld [vmem:[#allocation21 + $0x130] sm:$0xff]
    %v6889 = vld [vmem:[#allocation21 + $0x138] sm:$0xff]
    %v6890 = vld [vmem:[#allocation21 + $0x140] sm:$0xff]
    %v6891 = vld [vmem:[#allocation21 + $0x148] sm:$0xff]
    %v6892 = vld [vmem:[#allocation21 + $0x150] sm:$0xff]
    %v6893 = vld [vmem:[#allocation21 + $0x158] sm:$0xff]
    %v6894 = vld [vmem:[#allocation21 + $0x160] sm:$0xff]
    %v6895 = vld [vmem:[#allocation21 + $0x168] sm:$0xff]
    %v6896 = vld [vmem:[#allocation21 + $0x170] sm:$0xff]
    %v6897 = vld [vmem:[#allocation21 + $0x178] sm:$0xff]
    %v6898 = vld [vmem:[#allocation21 + $0x180] sm:$0xff]
    %v6899 = vld [vmem:[#allocation21 + $0x188] sm:$0xff]
    %v6900 = vld [vmem:[#allocation21 + $0x190] sm:$0xff]
    %v6901 = vld [vmem:[#allocation21 + $0x198] sm:$0xff]
    %v6902 = vld [vmem:[#allocation21 + $0x1a0] sm:$0xff]
    %v6903 = vld [vmem:[#allocation21 + $0x1a8] sm:$0xff]
    %v6904 = vld [vmem:[#allocation21 + $0x1b0] sm:$0xff]
    %v6905 = vld [vmem:[#allocation21 + $0x1b8] sm:$0xff]
    %v6906 = vld [vmem:[#allocation21 + $0x1c0] sm:$0xff]
    %v6907 = vld [vmem:[#allocation21 + $0x1c8] sm:$0xff]
    %v6908 = vld [vmem:[#allocation21 + $0x1d0] sm:$0xff]
    %v6909 = vld [vmem:[#allocation21 + $0x1d8] sm:$0xff]
    %v6910 = vld [vmem:[#allocation21 + $0x1e0] sm:$0xff]
    %v6911 = vld [vmem:[#allocation21 + $0x1e8] sm:$0xff]
    %v6912 = vld [vmem:[#allocation21 + $0x1f0] sm:$0xff]
    %v6913 = vld [vmem:[#allocation21 + $0x1f8] sm:$0xff]
    %v6914 = vld [vmem:[#allocation21 + $0x200] sm:$0xff]
    %v6915 = vld [vmem:[#allocation21 + $0x208] sm:$0xff]
    %v6916 = vld [vmem:[#allocation21 + $0x210] sm:$0xff]
    %v6917 = vld [vmem:[#allocation21 + $0x218] sm:$0xff]
    %v6918 = vld [vmem:[#allocation21 + $0x220] sm:$0xff]
    %v6919 = vld [vmem:[#allocation21 + $0x228] sm:$0xff]
    %v6920 = vld [vmem:[#allocation21 + $0x230] sm:$0xff]
    %v6921 = vld [vmem:[#allocation21 + $0x238] sm:$0xff]
    %v6922 = vld [vmem:[#allocation21 + $0x240] sm:$0xff]
    %v6923 = vld [vmem:[#allocation21 + $0x248] sm:$0xff]
    %v6924 = vld [vmem:[#allocation21 + $0x250] sm:$0xff]
    %v6925 = vld [vmem:[#allocation21 + $0x258] sm:$0xff]
    %v6926 = vld [vmem:[#allocation21 + $0x260] sm:$0xff]
    %v6927 = vld [vmem:[#allocation21 + $0x268] sm:$0xff]
    %v6928 = vld [vmem:[#allocation21 + $0x270] sm:$0xff]
    %v6929 = vld [vmem:[#allocation21 + $0x278] sm:$0xff]
    %v6930 = vld [vmem:[#allocation21 + $0x280] sm:$0xff]
    %v6931 = vld [vmem:[#allocation21 + $0x288] sm:$0xff]
    %v6932 = vld [vmem:[#allocation21 + $0x290] sm:$0xff]
    %v6933 = vld [vmem:[#allocation21 + $0x298] sm:$0xff]
    %v6934 = vld [vmem:[#allocation21 + $0x2a0] sm:$0xff]
    %v6935 = vld [vmem:[#allocation21 + $0x2a8] sm:$0xff]
    %v6936 = vld [vmem:[#allocation21 + $0x2b0] sm:$0xff]
    %v6937 = vld [vmem:[#allocation21 + $0x2b8] sm:$0xff]
    %v6938 = vld [vmem:[#allocation21 + $0x2c0] sm:$0xff]
    %v6939 = vld [vmem:[#allocation21 + $0x2c8] sm:$0xff]
    %v6940 = vld [vmem:[#allocation21 + $0x2d0] sm:$0xff]
    %v6941 = vld [vmem:[#allocation21 + $0x2d8] sm:$0xff]
    %v6942 = vld [vmem:[#allocation21 + $0x2e0] sm:$0xff]
    %v6943 = vld [vmem:[#allocation21 + $0x2e8] sm:$0xff]
    %v6944 = vld [vmem:[#allocation21 + $0x2f0] sm:$0xff]
    %v6945 = vld [vmem:[#allocation21 + $0x2f8] sm:$0xff]
    %v6946 = vld [vmem:[#allocation21 + $0x300] sm:$0xff]
    %v6947 = vld [vmem:[#allocation21 + $0x308] sm:$0xff]
    %v6948 = vld [vmem:[#allocation21 + $0x310] sm:$0xff]
    %v6949 = vld [vmem:[#allocation21 + $0x318] sm:$0xff]
    %v6950 = vld [vmem:[#allocation21 + $0x320] sm:$0xff]
    %v6951 = vld [vmem:[#allocation21 + $0x328] sm:$0xff]
    %v6952 = vld [vmem:[#allocation21 + $0x330] sm:$0xff]
    %v6953 = vld [vmem:[#allocation21 + $0x338] sm:$0xff]
    %v6954 = vld [vmem:[#allocation21 + $0x340] sm:$0xff]
    %v6955 = vld [vmem:[#allocation21 + $0x348] sm:$0xff]
    %v6956 = vld [vmem:[#allocation21 + $0x350] sm:$0xff]
    %v6957 = vld [vmem:[#allocation21 + $0x358] sm:$0xff]
    %v6958 = vld [vmem:[#allocation21 + $0x360] sm:$0xff]
    %v6959 = vld [vmem:[#allocation21 + $0x368] sm:$0xff]
    %v6960 = vld [vmem:[#allocation21 + $0x370] sm:$0xff]
    %v6961 = vld [vmem:[#allocation21 + $0x378] sm:$0xff]
    %v6962 = vld [vmem:[#allocation21 + $0x380] sm:$0xff]
    %v6963 = vld [vmem:[#allocation21 + $0x388] sm:$0xff]
    %v6964 = vld [vmem:[#allocation21 + $0x390] sm:$0xff]
    %v6965 = vld [vmem:[#allocation21 + $0x398] sm:$0xff]
    %v6966 = vld [vmem:[#allocation21 + $0x3a0] sm:$0xff]
    %v6967 = vld [vmem:[#allocation21 + $0x3a8] sm:$0xff]
    %v6968 = vld [vmem:[#allocation21 + $0x3b0] sm:$0xff]
    %v6969 = vld [vmem:[#allocation21 + $0x3b8] sm:$0xff]
    %v6970 = vld [vmem:[#allocation21 + $0x3c0] sm:$0xff]
    %v6971 = vld [vmem:[#allocation21 + $0x3c8] sm:$0xff]
    %v6972 = vld [vmem:[#allocation21 + $0x3d0] sm:$0xff]
    %v6973 = vld [vmem:[#allocation21 + $0x3d8] sm:$0xff]
    %v6974 = vld [vmem:[#allocation21 + $0x3e0] sm:$0xff]
    %v6975 = vld [vmem:[#allocation21 + $0x3e8] sm:$0xff]
    %v6976 = vld [vmem:[#allocation21 + $0x3f0] sm:$0xff]
    %v6977 = vld [vmem:[#allocation21 + $0x3f8] sm:$0xff]
    %v6978 = vld [vmem:[#allocation21 + $0x400] sm:$0xff]
    %v6979 = vld [vmem:[#allocation21 + $0x408] sm:$0xff]
    %v6980 = vld [vmem:[#allocation21 + $0x410] sm:$0xff]
    %v6981 = vld [vmem:[#allocation21 + $0x418] sm:$0xff]
    %v6982 = vld [vmem:[#allocation21 + $0x420] sm:$0xff]
    %v6983 = vld [vmem:[#allocation21 + $0x428] sm:$0xff]
    %v6984 = vld [vmem:[#allocation21 + $0x430] sm:$0xff]
    %v6985 = vld [vmem:[#allocation21 + $0x438] sm:$0xff]
    %v6986 = vld [vmem:[#allocation21 + $0x440] sm:$0xff]
    %v6987 = vld [vmem:[#allocation21 + $0x448] sm:$0xff]
    %v6988 = vld [vmem:[#allocation21 + $0x450] sm:$0xff]
    %v6989 = vld [vmem:[#allocation21 + $0x458] sm:$0xff]
    %v6990 = vld [vmem:[#allocation21 + $0x460] sm:$0xff]
    %v6991 = vld [vmem:[#allocation21 + $0x468] sm:$0xff]
    %v6992 = vld [vmem:[#allocation21 + $0x470] sm:$0xff]
    %v6993 = vld [vmem:[#allocation21 + $0x478] sm:$0xff]
    %v6994 = vld [vmem:[#allocation21 + $0x480] sm:$0xff]
    %v6995 = vld [vmem:[#allocation21 + $0x488] sm:$0xff]
    %v6996 = vld [vmem:[#allocation21 + $0x490] sm:$0xff]
    %v6997 = vld [vmem:[#allocation21 + $0x498] sm:$0xff]
    %v6998 = vld [vmem:[#allocation21 + $0x4a0] sm:$0xff]
    %v6999 = vld [vmem:[#allocation21 + $0x4a8] sm:$0xff]
    %v7000 = vld [vmem:[#allocation21 + $0x4b0] sm:$0xff]
    %v7001 = vld [vmem:[#allocation21 + $0x4b8] sm:$0xff]
    %v7002 = vld [vmem:[#allocation21 + $0x4c0] sm:$0xff]
    %v7003 = vld [vmem:[#allocation21 + $0x4c8] sm:$0xff]
    %v7004 = vld [vmem:[#allocation21 + $0x4d0] sm:$0xff]
    %v7005 = vld [vmem:[#allocation21 + $0x4d8] sm:$0xff]
    %v7006 = vld [vmem:[#allocation21 + $0x4e0] sm:$0xff]
    %v7007 = vld [vmem:[#allocation21 + $0x4e8] sm:$0xff]
    %v7008 = vld [vmem:[#allocation21 + $0x4f0] sm:$0xff]
    %v7009 = vld [vmem:[#allocation21 + $0x4f8] sm:$0xff]
    %v7010 = vld [vmem:[#allocation21 + $0x500] sm:$0xff]
    %v7011 = vld [vmem:[#allocation21 + $0x508] sm:$0xff]
    %v7012 = vld [vmem:[#allocation21 + $0x510] sm:$0xff]
    %v7013 = vld [vmem:[#allocation21 + $0x518] sm:$0xff]
    %v7014 = vld [vmem:[#allocation21 + $0x520] sm:$0xff]
    %v7015 = vld [vmem:[#allocation21 + $0x528] sm:$0xff]
    %v7016 = vld [vmem:[#allocation21 + $0x530] sm:$0xff]
    %v7017 = vld [vmem:[#allocation21 + $0x538] sm:$0xff]
    %v7018 = vld [vmem:[#allocation21 + $0x540] sm:$0xff]
    %v7019 = vld [vmem:[#allocation21 + $0x548] sm:$0xff]
    %v7020 = vld [vmem:[#allocation21 + $0x550] sm:$0xff]
    %v7021 = vld [vmem:[#allocation21 + $0x558] sm:$0xff]
    %v7022 = vld [vmem:[#allocation21 + $0x560] sm:$0xff]
    %v7023 = vld [vmem:[#allocation21 + $0x568] sm:$0xff]
    %v7024 = vld [vmem:[#allocation21 + $0x570] sm:$0xff]
    %v7025 = vld [vmem:[#allocation21 + $0x578] sm:$0xff]
    %v7026 = vld [vmem:[#allocation21 + $0x580] sm:$0xff]
    %v7027 = vld [vmem:[#allocation21 + $0x588] sm:$0xff]
    %v7028 = vld [vmem:[#allocation21 + $0x590] sm:$0xff]
    %v7029 = vld [vmem:[#allocation21 + $0x598] sm:$0xff]
    %v7030 = vld [vmem:[#allocation21 + $0x5a0] sm:$0xff]
    %v7031 = vld [vmem:[#allocation21 + $0x5a8] sm:$0xff]
    %v7032 = vld [vmem:[#allocation21 + $0x5b0] sm:$0xff]
    %v7033 = vld [vmem:[#allocation21 + $0x5b8] sm:$0xff]
    %v7034 = vld [vmem:[#allocation21 + $0x5c0] sm:$0xff]
    %v7035 = vld [vmem:[#allocation21 + $0x5c8] sm:$0xff]
    %v7036 = vld [vmem:[#allocation21 + $0x5d0] sm:$0xff]
    %v7037 = vld [vmem:[#allocation21 + $0x5d8] sm:$0xff]
    %v7038 = vld [vmem:[#allocation21 + $0x5e0] sm:$0xff]
    %v7039 = vld [vmem:[#allocation21 + $0x5e8] sm:$0xff]
    %v7040 = vld [vmem:[#allocation21 + $0x5f0] sm:$0xff]
    %v7041 = vld [vmem:[#allocation21 + $0x5f8] sm:$0xff]
    %v7042 = vld [vmem:[#allocation21 + $0x600] sm:$0xff]
    %v7043 = vld [vmem:[#allocation21 + $0x608] sm:$0xff]
    %v7044 = vld [vmem:[#allocation21 + $0x610] sm:$0xff]
    %v7045 = vld [vmem:[#allocation21 + $0x618] sm:$0xff]
    %v7046 = vld [vmem:[#allocation21 + $0x620] sm:$0xff]
    %v7047 = vld [vmem:[#allocation21 + $0x628] sm:$0xff]
    %v7048 = vld [vmem:[#allocation21 + $0x630] sm:$0xff]
    %v7049 = vld [vmem:[#allocation21 + $0x638] sm:$0xff]
    %v7050 = vld [vmem:[#allocation21 + $0x640] sm:$0xff]
    %v7051 = vld [vmem:[#allocation21 + $0x648] sm:$0xff]
    %v7052 = vld [vmem:[#allocation21 + $0x650] sm:$0xff]
    %v7053 = vld [vmem:[#allocation21 + $0x658] sm:$0xff]
    %v7054 = vld [vmem:[#allocation21 + $0x660] sm:$0xff]
    %v7055 = vld [vmem:[#allocation21 + $0x668] sm:$0xff]
    %v7056 = vld [vmem:[#allocation21 + $0x670] sm:$0xff]
    %v7057 = vld [vmem:[#allocation21 + $0x678] sm:$0xff]
    %v7058 = vld [vmem:[#allocation21 + $0x680] sm:$0xff]
    %v7059 = vld [vmem:[#allocation21 + $0x688] sm:$0xff]
    %v7060 = vld [vmem:[#allocation21 + $0x690] sm:$0xff]
    %v7061 = vld [vmem:[#allocation21 + $0x698] sm:$0xff]
    %v7062 = vld [vmem:[#allocation21 + $0x6a0] sm:$0xff]
    %v7063 = vld [vmem:[#allocation21 + $0x6a8] sm:$0xff]
    %v7064 = vld [vmem:[#allocation21 + $0x6b0] sm:$0xff]
    %v7065 = vld [vmem:[#allocation21 + $0x6b8] sm:$0xff]
    %v7066 = vld [vmem:[#allocation21 + $0x6c0] sm:$0xff]
    %v7067 = vld [vmem:[#allocation21 + $0x6c8] sm:$0xff]
    %v7068 = vld [vmem:[#allocation21 + $0x6d0] sm:$0xff]
    %v7069 = vld [vmem:[#allocation21 + $0x6d8] sm:$0xff]
    %v7070 = vld [vmem:[#allocation21 + $0x6e0] sm:$0xff]
    %v7071 = vld [vmem:[#allocation21 + $0x6e8] sm:$0xff]
    %v7072 = vld [vmem:[#allocation21 + $0x6f0] sm:$0xff]
    %v7073 = vld [vmem:[#allocation21 + $0x6f8] sm:$0xff]
    %v7074 = vld [vmem:[#allocation21 + $0x700] sm:$0xff]
    %v7075 = vld [vmem:[#allocation21 + $0x708] sm:$0xff]
    %v7076 = vld [vmem:[#allocation21 + $0x710] sm:$0xff]
    %v7077 = vld [vmem:[#allocation21 + $0x718] sm:$0xff]
    %v7078 = vld [vmem:[#allocation21 + $0x720] sm:$0xff]
    %v7079 = vld [vmem:[#allocation21 + $0x728] sm:$0xff]
    %v7080 = vld [vmem:[#allocation21 + $0x730] sm:$0xff]
    %v7081 = vld [vmem:[#allocation21 + $0x738] sm:$0xff]
    %v7082 = vld [vmem:[#allocation21 + $0x740] sm:$0xff]
    %v7083 = vld [vmem:[#allocation21 + $0x748] sm:$0xff]
    %v7084 = vld [vmem:[#allocation21 + $0x750] sm:$0xff]
    %v7085 = vld [vmem:[#allocation21 + $0x758] sm:$0xff]
    %v7086 = vld [vmem:[#allocation21 + $0x760] sm:$0xff]
    %v7087 = vld [vmem:[#allocation21 + $0x768] sm:$0xff]
    %v7088 = vld [vmem:[#allocation21 + $0x770] sm:$0xff]
    %v7089 = vld [vmem:[#allocation21 + $0x778] sm:$0xff]
    %v7090 = vld [vmem:[#allocation21 + $0x780] sm:$0xff]
    %v7091 = vld [vmem:[#allocation21 + $0x788] sm:$0xff]
    %v7092 = vld [vmem:[#allocation21 + $0x790] sm:$0xff]
    %v7093 = vld [vmem:[#allocation21 + $0x798] sm:$0xff]
    %v7094 = vld [vmem:[#allocation21 + $0x7a0] sm:$0xff]
    %v7095 = vld [vmem:[#allocation21 + $0x7a8] sm:$0xff]
    %v7096 = vld [vmem:[#allocation21 + $0x7b0] sm:$0xff]
    %v7097 = vld [vmem:[#allocation21 + $0x7b8] sm:$0xff]
    %v7098 = vld [vmem:[#allocation21 + $0x7c0] sm:$0xff]
    %v7099 = vld [vmem:[#allocation21 + $0x7c8] sm:$0xff]
    %v7100 = vld [vmem:[#allocation21 + $0x7d0] sm:$0xff]
    %v7101 = vld [vmem:[#allocation21 + $0x7d8] sm:$0xff]
    %v7102 = vld [vmem:[#allocation21 + $0x7e0] sm:$0xff]
    %v7103 = vld [vmem:[#allocation21 + $0x7e8] sm:$0xff]
    %v7104 = vld [vmem:[#allocation21 + $0x7f0] sm:$0xff]
    %v7105 = vld [vmem:[#allocation21 + $0x7f8] sm:$0xff]
    %v7106 = vld [vmem:[#allocation21 + $0x800] sm:$0xff]
    %v7107 = vld [vmem:[#allocation21 + $0x808] sm:$0xff]
    %v7108 = vld [vmem:[#allocation21 + $0x810] sm:$0xff]
    %v7109 = vld [vmem:[#allocation21 + $0x818] sm:$0xff]
    %v7110 = vld [vmem:[#allocation21 + $0x820] sm:$0xff]
    %v7111 = vld [vmem:[#allocation21 + $0x828] sm:$0xff]
    %v7112 = vld [vmem:[#allocation21 + $0x830] sm:$0xff]
    %v7113 = vld [vmem:[#allocation21 + $0x838] sm:$0xff]
    %v7114 = vld [vmem:[#allocation21 + $0x840] sm:$0xff]
    %v7115 = vld [vmem:[#allocation21 + $0x848] sm:$0xff]
    %v7116 = vld [vmem:[#allocation21 + $0x850] sm:$0xff]
    %v7117 = vld [vmem:[#allocation21 + $0x858] sm:$0xff]
    %v7118 = vld [vmem:[#allocation21 + $0x860] sm:$0xff]
    %v7119 = vld [vmem:[#allocation21 + $0x868] sm:$0xff]
    %v7120 = vld [vmem:[#allocation21 + $0x870] sm:$0xff]
    %v7121 = vld [vmem:[#allocation21 + $0x878] sm:$0xff]
    %v7122 = vld [vmem:[#allocation21 + $0x880] sm:$0xff]
    %v7123 = vld [vmem:[#allocation21 + $0x888] sm:$0xff]
    %v7124 = vld [vmem:[#allocation21 + $0x890] sm:$0xff]
    %v7125 = vld [vmem:[#allocation21 + $0x898] sm:$0xff]
    %v7126 = vld [vmem:[#allocation21 + $0x8a0] sm:$0xff]
    %v7127 = vld [vmem:[#allocation21 + $0x8a8] sm:$0xff]
    %v7128 = vld [vmem:[#allocation21 + $0x8b0] sm:$0xff]
    %v7129 = vld [vmem:[#allocation21 + $0x8b8] sm:$0xff]
    %v7130 = vld [vmem:[#allocation21 + $0x8c0] sm:$0xff]
    %v7131 = vld [vmem:[#allocation21 + $0x8c8] sm:$0xff]
    %v7132 = vld [vmem:[#allocation21 + $0x8d0] sm:$0xff]
    %v7133 = vld [vmem:[#allocation21 + $0x8d8] sm:$0xff]
    %v7134 = vld [vmem:[#allocation21 + $0x8e0] sm:$0xff]
    %v7135 = vld [vmem:[#allocation21 + $0x8e8] sm:$0xff]
    %v7136 = vld [vmem:[#allocation21 + $0x8f0] sm:$0xff]
    %v7137 = vld [vmem:[#allocation21 + $0x8f8] sm:$0xff]
    %v7138 = vld [vmem:[#allocation21 + $0x900] sm:$0xff]
    %v7139 = vld [vmem:[#allocation21 + $0x908] sm:$0xff]
    %v7140 = vld [vmem:[#allocation21 + $0x910] sm:$0xff]
    %v7141 = vld [vmem:[#allocation21 + $0x918] sm:$0xff]
    %v7142 = vld [vmem:[#allocation21 + $0x920] sm:$0xff]
    %v7143 = vld [vmem:[#allocation21 + $0x928] sm:$0xff]
    %v7144 = vld [vmem:[#allocation21 + $0x930] sm:$0xff]
    %v7145 = vld [vmem:[#allocation21 + $0x938] sm:$0xff]
    %v7146 = vld [vmem:[#allocation21 + $0x940] sm:$0xff]
    %v7147 = vld [vmem:[#allocation21 + $0x948] sm:$0xff]
    %v7148 = vld [vmem:[#allocation21 + $0x950] sm:$0xff]
    %v7149 = vld [vmem:[#allocation21 + $0x958] sm:$0xff]
    %v7150 = vld [vmem:[#allocation21 + $0x960] sm:$0xff]
    %v7151 = vld [vmem:[#allocation21 + $0x968] sm:$0xff]
    %v7152 = vld [vmem:[#allocation21 + $0x970] sm:$0xff]
    %v7153 = vld [vmem:[#allocation21 + $0x978] sm:$0xff]
    %v7154 = vld [vmem:[#allocation21 + $0x980] sm:$0xff]
    %v7155 = vld [vmem:[#allocation21 + $0x988] sm:$0xff]
    %v7156 = vld [vmem:[#allocation21 + $0x990] sm:$0xff]
    %v7157 = vld [vmem:[#allocation21 + $0x998] sm:$0xff]
    %v7158 = vld [vmem:[#allocation21 + $0x9a0] sm:$0xff]
    %v7159 = vld [vmem:[#allocation21 + $0x9a8] sm:$0xff]
    %v7160 = vld [vmem:[#allocation21 + $0x9b0] sm:$0xff]
    %v7161 = vld [vmem:[#allocation21 + $0x9b8] sm:$0xff]
    %v7162 = vld [vmem:[#allocation21 + $0x9c0] sm:$0xff]
    %v7163 = vld [vmem:[#allocation21 + $0x9c8] sm:$0xff]
    %v7164 = vld [vmem:[#allocation21 + $0x9d0] sm:$0xff]
    %v7165 = vld [vmem:[#allocation21 + $0x9d8] sm:$0xff]
    %v7166 = vld [vmem:[#allocation21 + $0x9e0] sm:$0xff]
    %v7167 = vld [vmem:[#allocation21 + $0x9e8] sm:$0xff]
    %v7168 = vld [vmem:[#allocation21 + $0x9f0] sm:$0xff]
    %v7169 = vld [vmem:[#allocation21 + $0x9f8] sm:$0xff]
    %v7170 = vld [vmem:[#allocation21 + $0xa00] sm:$0xff]
    %v7171 = vld [vmem:[#allocation21 + $0xa08] sm:$0xff]
    %v7172 = vld [vmem:[#allocation21 + $0xa10] sm:$0xff]
    %v7173 = vld [vmem:[#allocation21 + $0xa18] sm:$0xff]
    %v7174 = vld [vmem:[#allocation21 + $0xa20] sm:$0xff]
    %v7175 = vld [vmem:[#allocation21 + $0xa28] sm:$0xff]
    %v7176 = vld [vmem:[#allocation21 + $0xa30] sm:$0xff]
    %v7177 = vld [vmem:[#allocation21 + $0xa38] sm:$0xff]
    %v7178 = vld [vmem:[#allocation21 + $0xa40] sm:$0xff]
    %v7179 = vld [vmem:[#allocation21 + $0xa48] sm:$0xff]
    %v7180 = vld [vmem:[#allocation21 + $0xa50] sm:$0xff]
    %v7181 = vld [vmem:[#allocation21 + $0xa58] sm:$0xff]
    %v7182 = vld [vmem:[#allocation21 + $0xa60] sm:$0xff]
    %v7183 = vld [vmem:[#allocation21 + $0xa68] sm:$0xff]
    %v7184 = vld [vmem:[#allocation21 + $0xa70] sm:$0xff]
    %v7185 = vld [vmem:[#allocation21 + $0xa78] sm:$0xff]
    %v7186 = vld [vmem:[#allocation21 + $0xa80] sm:$0xff]
    %v7187 = vld [vmem:[#allocation21 + $0xa88] sm:$0xff]
    %v7188 = vld [vmem:[#allocation21 + $0xa90] sm:$0xff]
    %v7189 = vld [vmem:[#allocation21 + $0xa98] sm:$0xff]
    %v7190 = vld [vmem:[#allocation21 + $0xaa0] sm:$0xff]
    %v7191 = vld [vmem:[#allocation21 + $0xaa8] sm:$0xff]
    %v7192 = vld [vmem:[#allocation21 + $0xab0] sm:$0xff]
    %v7193 = vld [vmem:[#allocation21 + $0xab8] sm:$0xff]
    %v7194 = vld [vmem:[#allocation21 + $0xac0] sm:$0xff]
    %v7195 = vld [vmem:[#allocation21 + $0xac8] sm:$0xff]
    %v7196 = vld [vmem:[#allocation21 + $0xad0] sm:$0xff]
    %v7197 = vld [vmem:[#allocation21 + $0xad8] sm:$0xff]
    %v7198 = vld [vmem:[#allocation21 + $0xae0] sm:$0xff]
    %v7199 = vld [vmem:[#allocation21 + $0xae8] sm:$0xff]
    %v7200 = vld [vmem:[#allocation21 + $0xaf0] sm:$0xff]
    %v7201 = vld [vmem:[#allocation21 + $0xaf8] sm:$0xff]
    %v7202 = vld [vmem:[#allocation21 + $0xb00] sm:$0xff]
    %v7203 = vld [vmem:[#allocation21 + $0xb08] sm:$0xff]
    %v7204 = vld [vmem:[#allocation21 + $0xb10] sm:$0xff]
    %v7205 = vld [vmem:[#allocation21 + $0xb18] sm:$0xff]
    %v7206 = vld [vmem:[#allocation21 + $0xb20] sm:$0xff]
    %v7207 = vld [vmem:[#allocation21 + $0xb28] sm:$0xff]
    %v7208 = vld [vmem:[#allocation21 + $0xb30] sm:$0xff]
    %v7209 = vld [vmem:[#allocation21 + $0xb38] sm:$0xff]
    %v7210 = vld [vmem:[#allocation21 + $0xb40] sm:$0xff]
    %v7211 = vld [vmem:[#allocation21 + $0xb48] sm:$0xff]
    %v7212 = vld [vmem:[#allocation21 + $0xb50] sm:$0xff]
    %v7213 = vld [vmem:[#allocation21 + $0xb58] sm:$0xff]
    %v7214 = vld [vmem:[#allocation21 + $0xb60] sm:$0xff]
    %v7215 = vld [vmem:[#allocation21 + $0xb68] sm:$0xff]
    %v7216 = vld [vmem:[#allocation21 + $0xb70] sm:$0xff]
    %v7217 = vld [vmem:[#allocation21 + $0xb78] sm:$0xff]
    %v7218 = vld [vmem:[#allocation21 + $0xb80] sm:$0xff]
    %v7219 = vld [vmem:[#allocation21 + $0xb88] sm:$0xff]
    %v7220 = vld [vmem:[#allocation21 + $0xb90] sm:$0xff]
    %v7221 = vld [vmem:[#allocation21 + $0xb98] sm:$0xff]
    %v7222 = vld [vmem:[#allocation21 + $0xba0] sm:$0xff]
    %v7223 = vld [vmem:[#allocation21 + $0xba8] sm:$0xff]
    %v7224 = vld [vmem:[#allocation21 + $0xbb0] sm:$0xff]
    %v7225 = vld [vmem:[#allocation21 + $0xbb8] sm:$0xff]
    %v7226 = vld [vmem:[#allocation21 + $0xbc0] sm:$0xff]
    %v7227 = vld [vmem:[#allocation21 + $0xbc8] sm:$0xff]
    %v7228 = vld [vmem:[#allocation21 + $0xbd0] sm:$0xff]
    %v7229 = vld [vmem:[#allocation21 + $0xbd8] sm:$0xff]
    %v7230 = vld [vmem:[#allocation21 + $0xbe0] sm:$0xff]
    %v7231 = vld [vmem:[#allocation21 + $0xbe8] sm:$0xff]
    %v7232 = vld [vmem:[#allocation21 + $0xbf0] sm:$0xff]
    %v7233 = vld [vmem:[#allocation21 + $0xbf8] sm:$0xff]
    %v7234 = vld [vmem:[#allocation21 + $0xc00] sm:$0xff]
    %v7235 = vld [vmem:[#allocation21 + $0xc08] sm:$0xff]
    %v7236 = vld [vmem:[#allocation21 + $0xc10] sm:$0xff]
    %v7237 = vld [vmem:[#allocation21 + $0xc18] sm:$0xff]
    %v7238 = vld [vmem:[#allocation21 + $0xc20] sm:$0xff]
    %v7239 = vld [vmem:[#allocation21 + $0xc28] sm:$0xff]
    %v7240 = vld [vmem:[#allocation21 + $0xc30] sm:$0xff]
    %v7241 = vld [vmem:[#allocation21 + $0xc38] sm:$0xff]
    %v7242 = vld [vmem:[#allocation21 + $0xc40] sm:$0xff]
    %v7243 = vld [vmem:[#allocation21 + $0xc48] sm:$0xff]
    %v7244 = vld [vmem:[#allocation21 + $0xc50] sm:$0xff]
    %v7245 = vld [vmem:[#allocation21 + $0xc58] sm:$0xff]
    %v7246 = vld [vmem:[#allocation21 + $0xc60] sm:$0xff]
    %v7247 = vld [vmem:[#allocation21 + $0xc68] sm:$0xff]
    %v7248 = vld [vmem:[#allocation21 + $0xc70] sm:$0xff]
    %v7249 = vld [vmem:[#allocation21 + $0xc78] sm:$0xff]
    %v7250 = vld [vmem:[#allocation21 + $0xc80] sm:$0xff]
    %v7251 = vld [vmem:[#allocation21 + $0xc88] sm:$0xff]
    %v7252 = vld [vmem:[#allocation21 + $0xc90] sm:$0xff]
    %v7253 = vld [vmem:[#allocation21 + $0xc98] sm:$0xff]
    %v7254 = vld [vmem:[#allocation21 + $0xca0] sm:$0xff]
    %v7255 = vld [vmem:[#allocation21 + $0xca8] sm:$0xff]
    %v7256 = vld [vmem:[#allocation21 + $0xcb0] sm:$0xff]
    %v7257 = vld [vmem:[#allocation21 + $0xcb8] sm:$0xff]
    %v7258 = vld [vmem:[#allocation21 + $0xcc0] sm:$0xff]
    %v7259 = vld [vmem:[#allocation21 + $0xcc8] sm:$0xff]
    %v7260 = vld [vmem:[#allocation21 + $0xcd0] sm:$0xff]
    %v7261 = vld [vmem:[#allocation21 + $0xcd8] sm:$0xff]
    %v7262 = vld [vmem:[#allocation21 + $0xce0] sm:$0xff]
    %v7263 = vld [vmem:[#allocation21 + $0xce8] sm:$0xff]
    %v7264 = vld [vmem:[#allocation21 + $0xcf0] sm:$0xff]
    %v7265 = vld [vmem:[#allocation21 + $0xcf8] sm:$0xff]
    %v7266 = vld [vmem:[#allocation21 + $0xd00] sm:$0xff]
    %v7267 = vld [vmem:[#allocation21 + $0xd08] sm:$0xff]
    %v7268 = vld [vmem:[#allocation21 + $0xd10] sm:$0xff]
    %v7269 = vld [vmem:[#allocation21 + $0xd18] sm:$0xff]
    %v7270 = vld [vmem:[#allocation21 + $0xd20] sm:$0xff]
    %v7271 = vld [vmem:[#allocation21 + $0xd28] sm:$0xff]
    %v7272 = vld [vmem:[#allocation21 + $0xd30] sm:$0xff]
    %v7273 = vld [vmem:[#allocation21 + $0xd38] sm:$0xff]
    %v7274 = vld [vmem:[#allocation21 + $0xd40] sm:$0xff]
    %v7275 = vld [vmem:[#allocation21 + $0xd48] sm:$0xff]
    %v7276 = vld [vmem:[#allocation21 + $0xd50] sm:$0xff]
    %v7277 = vld [vmem:[#allocation21 + $0xd58] sm:$0xff]
    %v7278 = vld [vmem:[#allocation21 + $0xd60] sm:$0xff]
    %v7279 = vld [vmem:[#allocation21 + $0xd68] sm:$0xff]
    %v7280 = vld [vmem:[#allocation21 + $0xd70] sm:$0xff]
    %v7281 = vld [vmem:[#allocation21 + $0xd78] sm:$0xff]
    %v7282 = vld [vmem:[#allocation21 + $0xd80] sm:$0xff]
    %v7283 = vld [vmem:[#allocation21 + $0xd88] sm:$0xff]
    %v7284 = vld [vmem:[#allocation21 + $0xd90] sm:$0xff]
    %v7285 = vld [vmem:[#allocation21 + $0xd98] sm:$0xff]
    %v7286 = vld [vmem:[#allocation21 + $0xda0] sm:$0xff]
    %v7287 = vld [vmem:[#allocation21 + $0xda8] sm:$0xff]
    %v7288 = vld [vmem:[#allocation21 + $0xdb0] sm:$0xff]
    %v7289 = vld [vmem:[#allocation21 + $0xdb8] sm:$0xff]
    %v7290 = vld [vmem:[#allocation21 + $0xdc0] sm:$0xff]
    %v7291 = vld [vmem:[#allocation21 + $0xdc8] sm:$0xff]
    %v7292 = vld [vmem:[#allocation21 + $0xdd0] sm:$0xff]
    %v7293 = vld [vmem:[#allocation21 + $0xdd8] sm:$0xff]
    %v7294 = vld [vmem:[#allocation21 + $0xde0] sm:$0xff]
    %v7295 = vld [vmem:[#allocation21 + $0xde8] sm:$0xff]
    %v7296 = vld [vmem:[#allocation21 + $0xdf0] sm:$0xff]
    %v7297 = vld [vmem:[#allocation21 + $0xdf8] sm:$0xff]
    %v7298 = vld [vmem:[#allocation21 + $0xe00] sm:$0xff]
    %v7299 = vld [vmem:[#allocation21 + $0xe08] sm:$0xff]
    %v7300 = vld [vmem:[#allocation21 + $0xe10] sm:$0xff]
    %v7301 = vld [vmem:[#allocation21 + $0xe18] sm:$0xff]
    %v7302 = vld [vmem:[#allocation21 + $0xe20] sm:$0xff]
    %v7303 = vld [vmem:[#allocation21 + $0xe28] sm:$0xff]
    %v7304 = vld [vmem:[#allocation21 + $0xe30] sm:$0xff]
    %v7305 = vld [vmem:[#allocation21 + $0xe38] sm:$0xff]
    %v7306 = vld [vmem:[#allocation21 + $0xe40] sm:$0xff]
    %v7307 = vld [vmem:[#allocation21 + $0xe48] sm:$0xff]
    %v7308 = vld [vmem:[#allocation21 + $0xe50] sm:$0xff]
    %v7309 = vld [vmem:[#allocation21 + $0xe58] sm:$0xff]
    %v7310 = vld [vmem:[#allocation21 + $0xe60] sm:$0xff]
    %v7311 = vld [vmem:[#allocation21 + $0xe68] sm:$0xff]
    %v7312 = vld [vmem:[#allocation21 + $0xe70] sm:$0xff]
    %v7313 = vld [vmem:[#allocation21 + $0xe78] sm:$0xff]
    %v7314 = vld [vmem:[#allocation21 + $0xe80] sm:$0xff]
    %v7315 = vld [vmem:[#allocation21 + $0xe88] sm:$0xff]
    %v7316 = vld [vmem:[#allocation21 + $0xe90] sm:$0xff]
    %v7317 = vld [vmem:[#allocation21 + $0xe98] sm:$0xff]
    %v7318 = vld [vmem:[#allocation21 + $0xea0] sm:$0xff]
    %v7319 = vld [vmem:[#allocation21 + $0xea8] sm:$0xff]
    %v7320 = vld [vmem:[#allocation21 + $0xeb0] sm:$0xff]
    %v7321 = vld [vmem:[#allocation21 + $0xeb8] sm:$0xff]
    %v7322 = vld [vmem:[#allocation21 + $0xec0] sm:$0xff]
    %v7323 = vld [vmem:[#allocation21 + $0xec8] sm:$0xff]
    %v7324 = vld [vmem:[#allocation21 + $0xed0] sm:$0xff]
    %v7325 = vld [vmem:[#allocation21 + $0xed8] sm:$0xff]
    %v7326 = vld [vmem:[#allocation21 + $0xee0] sm:$0xff]
    %v7327 = vld [vmem:[#allocation21 + $0xee8] sm:$0xff]
    %v7328 = vld [vmem:[#allocation21 + $0xef0] sm:$0xff]
    %v7329 = vld [vmem:[#allocation21 + $0xef8] sm:$0xff]
    %v7330 = vld [vmem:[#allocation21 + $0xf00] sm:$0xff]
    %v7331 = vld [vmem:[#allocation21 + $0xf08] sm:$0xff]
    %v7332 = vld [vmem:[#allocation21 + $0xf10] sm:$0xff]
    %v7333 = vld [vmem:[#allocation21 + $0xf18] sm:$0xff]
    %v7334 = vld [vmem:[#allocation21 + $0xf20] sm:$0xff]
    %v7335 = vld [vmem:[#allocation21 + $0xf28] sm:$0xff]
    %v7336 = vld [vmem:[#allocation21 + $0xf30] sm:$0xff]
    %v7337 = vld [vmem:[#allocation21 + $0xf38] sm:$0xff]
    %v7338 = vld [vmem:[#allocation21 + $0xf40] sm:$0xff]
    %v7339 = vld [vmem:[#allocation21 + $0xf48] sm:$0xff]
    %v7340 = vld [vmem:[#allocation21 + $0xf50] sm:$0xff]
    %v7341 = vld [vmem:[#allocation21 + $0xf58] sm:$0xff]
    %v7342 = vld [vmem:[#allocation21 + $0xf60] sm:$0xff]
    %v7343 = vld [vmem:[#allocation21 + $0xf68] sm:$0xff]
    %v7344 = vld [vmem:[#allocation21 + $0xf70] sm:$0xff]
    %v7345 = vld [vmem:[#allocation21 + $0xf78] sm:$0xff]
    %v7346 = vld [vmem:[#allocation21 + $0xf80] sm:$0xff]
    %v7347 = vld [vmem:[#allocation21 + $0xf88] sm:$0xff]
    %v7348 = vld [vmem:[#allocation21 + $0xf90] sm:$0xff]
    %v7349 = vld [vmem:[#allocation21 + $0xf98] sm:$0xff]
    %v7350 = vld [vmem:[#allocation21 + $0xfa0] sm:$0xff]
    %v7351 = vld [vmem:[#allocation21 + $0xfa8] sm:$0xff]
    %v7352 = vld [vmem:[#allocation21 + $0xfb0] sm:$0xff]
    %v7353 = vld [vmem:[#allocation21 + $0xfb8] sm:$0xff]
    %v7354 = vld [vmem:[#allocation21 + $0xfc0] sm:$0xff]
    %v7355 = vld [vmem:[#allocation21 + $0xfc8] sm:$0xff]
    %v7356 = vld [vmem:[#allocation21 + $0xfd0] sm:$0xff]
    %v7357 = vld [vmem:[#allocation21 + $0xfd8] sm:$0xff]
    %v7358 = vld [vmem:[#allocation21 + $0xfe0] sm:$0xff]
    %v7359 = vld [vmem:[#allocation21 + $0xfe8] sm:$0xff]
    %v7360 = vld [vmem:[#allocation21 + $0xff0] sm:$0xff]
    %v7361 = vld [vmem:[#allocation21 + $0xff8] sm:$0xff]
    %v7362 = vld [vmem:[#allocation23] sm:$0xff]
    %v7363 = vld [vmem:[#allocation23 + $0x8] sm:$0xff]
    %v7366 = vlaneseq
    %v7367 = vshrl.u32 %v7366, 7
    %v7368 = vsub.s32 0, %v7367
    %v7369 = vrot.slane %v7362, %v7368
    %v7370 = vlaneseq
    %v7371 = vshrl.u32 %v7370, 7
    %v7372 = vsub.s32 1, %v7371
    %v7373 = vrot.slane %v7362, %v7372
    %v7374 = vlaneseq
    %v7375 = vshrl.u32 %v7374, 7
    %v7376 = vsub.s32 2, %v7375
    %v7377 = vrot.slane %v7362, %v7376
    %v7378 = vlaneseq
    %v7379 = vshrl.u32 %v7378, 7
    %v7380 = vsub.s32 3, %v7379
    %v7381 = vrot.slane %v7362, %v7380
    %v7382 = vlaneseq
    %v7383 = vshrl.u32 %v7382, 7
    %v7384 = vsub.s32 4, %v7383
    %v7385 = vrot.slane %v7362, %v7384
    %v7386 = vlaneseq
    %v7387 = vshrl.u32 %v7386, 7
    %v7388 = vsub.s32 5, %v7387
    %v7389 = vrot.slane %v7362, %v7388
    %v7390 = vlaneseq
    %v7391 = vshrl.u32 %v7390, 7
    %v7392 = vsub.s32 6, %v7391
    %v7393 = vrot.slane %v7362, %v7392
    %v7394 = vlaneseq
    %v7395 = vshrl.u32 %v7394, 7
    %v7396 = vsub.s32 7, %v7395
    %v7397 = vrot.slane %v7362, %v7396
    %v7398 = vlaneseq
    %v7399 = vshrl.u32 %v7398, 7
    %v7400 = vsub.s32 0, %v7399
    %v7401 = vrot.slane %v7363, %v7400
    %v7402 = vlaneseq
    %v7403 = vshrl.u32 %v7402, 7
    %v7404 = vsub.s32 1, %v7403
    %v7405 = vrot.slane %v7363, %v7404
    %v7406 = vlaneseq
    %v7407 = vshrl.u32 %v7406, 7
    %v7408 = vsub.s32 2, %v7407
    %v7409 = vrot.slane %v7363, %v7408
    %v7410 = vlaneseq
    %v7411 = vshrl.u32 %v7410, 7
    %v7412 = vsub.s32 3, %v7411
    %v7413 = vrot.slane %v7363, %v7412
    %v7414 = vlaneseq
    %v7415 = vshrl.u32 %v7414, 7
    %v7416 = vsub.s32 4, %v7415
    %v7417 = vrot.slane %v7363, %v7416
    %v7418 = vlaneseq
    %v7419 = vshrl.u32 %v7418, 7
    %v7420 = vsub.s32 5, %v7419
    %v7421 = vrot.slane %v7363, %v7420
    %v7422 = vlaneseq
    %v7423 = vshrl.u32 %v7422, 7
    %v7424 = vsub.s32 6, %v7423
    %v7425 = vrot.slane %v7363, %v7424
    %v7426 = vlaneseq
    %v7427 = vshrl.u32 %v7426, 7
    %v7428 = vsub.s32 7, %v7427
    %v7429 = vrot.slane %v7363, %v7428
    %v7958 = vunpack.c.l.b16 %v6850
    %v7959 = vunpack.c.h.b16 %v6850
    %v7960 = vunpack.c.l.b16 %v6851
    %v7961 = vunpack.c.h.b16 %v6851
    %v7962 = vunpack.c.l.b16 %v6852
    %v7963 = vunpack.c.h.b16 %v6852
    %v7964 = vunpack.c.l.b16 %v6853
    %v7965 = vunpack.c.h.b16 %v6853
    %v7966 = vunpack.c.l.b16 %v6854
    %v7967 = vunpack.c.h.b16 %v6854
    %v7968 = vunpack.c.l.b16 %v6855
    %v7969 = vunpack.c.h.b16 %v6855
    %v7970 = vunpack.c.l.b16 %v6856
    %v7971 = vunpack.c.h.b16 %v6856
    %v7972 = vunpack.c.l.b16 %v6857
    %v7973 = vunpack.c.h.b16 %v6857
    %v7974 = vunpack.c.l.b16 %v6858
    %v7975 = vunpack.c.h.b16 %v6858
    %v7976 = vunpack.c.l.b16 %v6859
    %v7977 = vunpack.c.h.b16 %v6859
    %v7978 = vunpack.c.l.b16 %v6860
    %v7979 = vunpack.c.h.b16 %v6860
    %v7980 = vunpack.c.l.b16 %v6861
    %v7981 = vunpack.c.h.b16 %v6861
    %v7982 = vunpack.c.l.b16 %v6862
    %v7983 = vunpack.c.h.b16 %v6862
    %v7984 = vunpack.c.l.b16 %v6863
    %v7985 = vunpack.c.h.b16 %v6863
    %v7986 = vunpack.c.l.b16 %v6864
    %v7987 = vunpack.c.h.b16 %v6864
    %v7988 = vunpack.c.l.b16 %v6865
    %v7989 = vunpack.c.h.b16 %v6865
    %v7990 = vunpack.c.l.b16 %v6866
    %v7991 = vunpack.c.h.b16 %v6866
    %v7992 = vunpack.c.l.b16 %v6867
    %v7993 = vunpack.c.h.b16 %v6867
    %v7994 = vunpack.c.l.b16 %v6868
    %v7995 = vunpack.c.h.b16 %v6868
    %v7996 = vunpack.c.l.b16 %v6869
    %v7997 = vunpack.c.h.b16 %v6869
    %v7998 = vunpack.c.l.b16 %v6870
    %v7999 = vunpack.c.h.b16 %v6870
    %v8000 = vunpack.c.l.b16 %v6871
    %v8001 = vunpack.c.h.b16 %v6871
    %v8002 = vunpack.c.l.b16 %v6872
    %v8003 = vunpack.c.h.b16 %v6872
    %v8004 = vunpack.c.l.b16 %v6873
    %v8005 = vunpack.c.h.b16 %v6873
    %v8006 = vunpack.c.l.b16 %v6874
    %v8007 = vunpack.c.h.b16 %v6874
    %v8008 = vunpack.c.l.b16 %v6875
    %v8009 = vunpack.c.h.b16 %v6875
    %v8010 = vunpack.c.l.b16 %v6876
    %v8011 = vunpack.c.h.b16 %v6876
    %v8012 = vunpack.c.l.b16 %v6877
    %v8013 = vunpack.c.h.b16 %v6877
    %v8014 = vunpack.c.l.b16 %v6878
    %v8015 = vunpack.c.h.b16 %v6878
    %v8016 = vunpack.c.l.b16 %v6879
    %v8017 = vunpack.c.h.b16 %v6879
    %v8018 = vunpack.c.l.b16 %v6880
    %v8019 = vunpack.c.h.b16 %v6880
    %v8020 = vunpack.c.l.b16 %v6881
    %v8021 = vunpack.c.h.b16 %v6881
    %v8022 = vunpack.c.l.b16 %v6882
    %v8023 = vunpack.c.h.b16 %v6882
    %v8024 = vunpack.c.l.b16 %v6883
    %v8025 = vunpack.c.h.b16 %v6883
    %v8026 = vunpack.c.l.b16 %v6884
    %v8027 = vunpack.c.h.b16 %v6884
    %v8028 = vunpack.c.l.b16 %v6885
    %v8029 = vunpack.c.h.b16 %v6885
    %v8030 = vunpack.c.l.b16 %v6886
    %v8031 = vunpack.c.h.b16 %v6886
    %v8032 = vunpack.c.l.b16 %v6887
    %v8033 = vunpack.c.h.b16 %v6887
    %v8034 = vunpack.c.l.b16 %v6888
    %v8035 = vunpack.c.h.b16 %v6888
    %v8036 = vunpack.c.l.b16 %v6889
    %v8037 = vunpack.c.h.b16 %v6889
    %v8038 = vunpack.c.l.b16 %v6890
    %v8039 = vunpack.c.h.b16 %v6890
    %v8040 = vunpack.c.l.b16 %v6891
    %v8041 = vunpack.c.h.b16 %v6891
    %v8042 = vunpack.c.l.b16 %v6892
    %v8043 = vunpack.c.h.b16 %v6892
    %v8044 = vunpack.c.l.b16 %v6893
    %v8045 = vunpack.c.h.b16 %v6893
    %v8046 = vunpack.c.l.b16 %v6894
    %v8047 = vunpack.c.h.b16 %v6894
    %v8048 = vunpack.c.l.b16 %v6895
    %v8049 = vunpack.c.h.b16 %v6895
    %v8050 = vunpack.c.l.b16 %v6896
    %v8051 = vunpack.c.h.b16 %v6896
    %v8052 = vunpack.c.l.b16 %v6897
    %v8053 = vunpack.c.h.b16 %v6897
    %v8054 = vunpack.c.l.b16 %v6898
    %v8055 = vunpack.c.h.b16 %v6898
    %v8056 = vunpack.c.l.b16 %v6899
    %v8057 = vunpack.c.h.b16 %v6899
    %v8058 = vunpack.c.l.b16 %v6900
    %v8059 = vunpack.c.h.b16 %v6900
    %v8060 = vunpack.c.l.b16 %v6901
    %v8061 = vunpack.c.h.b16 %v6901
    %v8062 = vunpack.c.l.b16 %v6902
    %v8063 = vunpack.c.h.b16 %v6902
    %v8064 = vunpack.c.l.b16 %v6903
    %v8065 = vunpack.c.h.b16 %v6903
    %v8066 = vunpack.c.l.b16 %v6904
    %v8067 = vunpack.c.h.b16 %v6904
    %v8068 = vunpack.c.l.b16 %v6905
    %v8069 = vunpack.c.h.b16 %v6905
    %v8070 = vunpack.c.l.b16 %v6906
    %v8071 = vunpack.c.h.b16 %v6906
    %v8072 = vunpack.c.l.b16 %v6907
    %v8073 = vunpack.c.h.b16 %v6907
    %v8074 = vunpack.c.l.b16 %v6908
    %v8075 = vunpack.c.h.b16 %v6908
    %v8076 = vunpack.c.l.b16 %v6909
    %v8077 = vunpack.c.h.b16 %v6909
    %v8078 = vunpack.c.l.b16 %v6910
    %v8079 = vunpack.c.h.b16 %v6910
    %v8080 = vunpack.c.l.b16 %v6911
    %v8081 = vunpack.c.h.b16 %v6911
    %v8082 = vunpack.c.l.b16 %v6912
    %v8083 = vunpack.c.h.b16 %v6912
    %v8084 = vunpack.c.l.b16 %v6913
    %v8085 = vunpack.c.h.b16 %v6913
    %v8086 = vunpack.c.l.b16 %v6914
    %v8087 = vunpack.c.h.b16 %v6914
    %v8088 = vunpack.c.l.b16 %v6915
    %v8089 = vunpack.c.h.b16 %v6915
    %v8090 = vunpack.c.l.b16 %v6916
    %v8091 = vunpack.c.h.b16 %v6916
    %v8092 = vunpack.c.l.b16 %v6917
    %v8093 = vunpack.c.h.b16 %v6917
    %v8094 = vunpack.c.l.b16 %v6918
    %v8095 = vunpack.c.h.b16 %v6918
    %v8096 = vunpack.c.l.b16 %v6919
    %v8097 = vunpack.c.h.b16 %v6919
    %v8098 = vunpack.c.l.b16 %v6920
    %v8099 = vunpack.c.h.b16 %v6920
    %v8100 = vunpack.c.l.b16 %v6921
    %v8101 = vunpack.c.h.b16 %v6921
    %v8102 = vunpack.c.l.b16 %v6922
    %v8103 = vunpack.c.h.b16 %v6922
    %v8104 = vunpack.c.l.b16 %v6923
    %v8105 = vunpack.c.h.b16 %v6923
    %v8106 = vunpack.c.l.b16 %v6924
    %v8107 = vunpack.c.h.b16 %v6924
    %v8108 = vunpack.c.l.b16 %v6925
    %v8109 = vunpack.c.h.b16 %v6925
    %v8110 = vunpack.c.l.b16 %v6926
    %v8111 = vunpack.c.h.b16 %v6926
    %v8112 = vunpack.c.l.b16 %v6927
    %v8113 = vunpack.c.h.b16 %v6927
    %v8114 = vunpack.c.l.b16 %v6928
    %v8115 = vunpack.c.h.b16 %v6928
    %v8116 = vunpack.c.l.b16 %v6929
    %v8117 = vunpack.c.h.b16 %v6929
    %v8118 = vunpack.c.l.b16 %v6930
    %v8119 = vunpack.c.h.b16 %v6930
    %v8120 = vunpack.c.l.b16 %v6931
    %v8121 = vunpack.c.h.b16 %v6931
    %v8122 = vunpack.c.l.b16 %v6932
    %v8123 = vunpack.c.h.b16 %v6932
    %v8124 = vunpack.c.l.b16 %v6933
    %v8125 = vunpack.c.h.b16 %v6933
    %v8126 = vunpack.c.l.b16 %v6934
    %v8127 = vunpack.c.h.b16 %v6934
    %v8128 = vunpack.c.l.b16 %v6935
    %v8129 = vunpack.c.h.b16 %v6935
    %v8130 = vunpack.c.l.b16 %v6936
    %v8131 = vunpack.c.h.b16 %v6936
    %v8132 = vunpack.c.l.b16 %v6937
    %v8133 = vunpack.c.h.b16 %v6937
    %v8134 = vunpack.c.l.b16 %v6938
    %v8135 = vunpack.c.h.b16 %v6938
    %v8136 = vunpack.c.l.b16 %v6939
    %v8137 = vunpack.c.h.b16 %v6939
    %v8138 = vunpack.c.l.b16 %v6940
    %v8139 = vunpack.c.h.b16 %v6940
    %v8140 = vunpack.c.l.b16 %v6941
    %v8141 = vunpack.c.h.b16 %v6941
    %v8142 = vunpack.c.l.b16 %v6942
    %v8143 = vunpack.c.h.b16 %v6942
    %v8144 = vunpack.c.l.b16 %v6943
    %v8145 = vunpack.c.h.b16 %v6943
    %v8146 = vunpack.c.l.b16 %v6944
    %v8147 = vunpack.c.h.b16 %v6944
    %v8148 = vunpack.c.l.b16 %v6945
    %v8149 = vunpack.c.h.b16 %v6945
    %v8150 = vunpack.c.l.b16 %v6946
    %v8151 = vunpack.c.h.b16 %v6946
    %v8152 = vunpack.c.l.b16 %v6947
    %v8153 = vunpack.c.h.b16 %v6947
    %v8154 = vunpack.c.l.b16 %v6948
    %v8155 = vunpack.c.h.b16 %v6948
    %v8156 = vunpack.c.l.b16 %v6949
    %v8157 = vunpack.c.h.b16 %v6949
    %v8158 = vunpack.c.l.b16 %v6950
    %v8159 = vunpack.c.h.b16 %v6950
    %v8160 = vunpack.c.l.b16 %v6951
    %v8161 = vunpack.c.h.b16 %v6951
    %v8162 = vunpack.c.l.b16 %v6952
    %v8163 = vunpack.c.h.b16 %v6952
    %v8164 = vunpack.c.l.b16 %v6953
    %v8165 = vunpack.c.h.b16 %v6953
    %v8166 = vunpack.c.l.b16 %v6954
    %v8167 = vunpack.c.h.b16 %v6954
    %v8168 = vunpack.c.l.b16 %v6955
    %v8169 = vunpack.c.h.b16 %v6955
    %v8170 = vunpack.c.l.b16 %v6956
    %v8171 = vunpack.c.h.b16 %v6956
    %v8172 = vunpack.c.l.b16 %v6957
    %v8173 = vunpack.c.h.b16 %v6957
    %v8174 = vunpack.c.l.b16 %v6958
    %v8175 = vunpack.c.h.b16 %v6958
    %v8176 = vunpack.c.l.b16 %v6959
    %v8177 = vunpack.c.h.b16 %v6959
    %v8178 = vunpack.c.l.b16 %v6960
    %v8179 = vunpack.c.h.b16 %v6960
    %v8180 = vunpack.c.l.b16 %v6961
    %v8181 = vunpack.c.h.b16 %v6961
    %v8182 = vunpack.c.l.b16 %v6962
    %v8183 = vunpack.c.h.b16 %v6962
    %v8184 = vunpack.c.l.b16 %v6963
    %v8185 = vunpack.c.h.b16 %v6963
    %v8186 = vunpack.c.l.b16 %v6964
    %v8187 = vunpack.c.h.b16 %v6964
    %v8188 = vunpack.c.l.b16 %v6965
    %v8189 = vunpack.c.h.b16 %v6965
    %v8190 = vunpack.c.l.b16 %v6966
    %v8191 = vunpack.c.h.b16 %v6966
    %v8192 = vunpack.c.l.b16 %v6967
    %v8193 = vunpack.c.h.b16 %v6967
    %v8194 = vunpack.c.l.b16 %v6968
    %v8195 = vunpack.c.h.b16 %v6968
    %v8196 = vunpack.c.l.b16 %v6969
    %v8197 = vunpack.c.h.b16 %v6969
    %v8198 = vunpack.c.l.b16 %v6970
    %v8199 = vunpack.c.h.b16 %v6970
    %v8200 = vunpack.c.l.b16 %v6971
    %v8201 = vunpack.c.h.b16 %v6971
    %v8202 = vunpack.c.l.b16 %v6972
    %v8203 = vunpack.c.h.b16 %v6972
    %v8204 = vunpack.c.l.b16 %v6973
    %v8205 = vunpack.c.h.b16 %v6973
    %v8206 = vunpack.c.l.b16 %v6974
    %v8207 = vunpack.c.h.b16 %v6974
    %v8208 = vunpack.c.l.b16 %v6975
    %v8209 = vunpack.c.h.b16 %v6975
    %v8210 = vunpack.c.l.b16 %v6976
    %v8211 = vunpack.c.h.b16 %v6976
    %v8212 = vunpack.c.l.b16 %v6977
    %v8213 = vunpack.c.h.b16 %v6977
    %v8214 = vunpack.c.l.b16 %v6978
    %v8215 = vunpack.c.h.b16 %v6978
    %v8216 = vunpack.c.l.b16 %v6979
    %v8217 = vunpack.c.h.b16 %v6979
    %v8218 = vunpack.c.l.b16 %v6980
    %v8219 = vunpack.c.h.b16 %v6980
    %v8220 = vunpack.c.l.b16 %v6981
    %v8221 = vunpack.c.h.b16 %v6981
    %v8222 = vunpack.c.l.b16 %v6982
    %v8223 = vunpack.c.h.b16 %v6982
    %v8224 = vunpack.c.l.b16 %v6983
    %v8225 = vunpack.c.h.b16 %v6983
    %v8226 = vunpack.c.l.b16 %v6984
    %v8227 = vunpack.c.h.b16 %v6984
    %v8228 = vunpack.c.l.b16 %v6985
    %v8229 = vunpack.c.h.b16 %v6985
    %v8230 = vunpack.c.l.b16 %v6986
    %v8231 = vunpack.c.h.b16 %v6986
    %v8232 = vunpack.c.l.b16 %v6987
    %v8233 = vunpack.c.h.b16 %v6987
    %v8234 = vunpack.c.l.b16 %v6988
    %v8235 = vunpack.c.h.b16 %v6988
    %v8236 = vunpack.c.l.b16 %v6989
    %v8237 = vunpack.c.h.b16 %v6989
    %v8238 = vunpack.c.l.b16 %v6990
    %v8239 = vunpack.c.h.b16 %v6990
    %v8240 = vunpack.c.l.b16 %v6991
    %v8241 = vunpack.c.h.b16 %v6991
    %v8242 = vunpack.c.l.b16 %v6992
    %v8243 = vunpack.c.h.b16 %v6992
    %v8244 = vunpack.c.l.b16 %v6993
    %v8245 = vunpack.c.h.b16 %v6993
    %v8246 = vunpack.c.l.b16 %v6994
    %v8247 = vunpack.c.h.b16 %v6994
    %v8248 = vunpack.c.l.b16 %v6995
    %v8249 = vunpack.c.h.b16 %v6995
    %v8250 = vunpack.c.l.b16 %v6996
    %v8251 = vunpack.c.h.b16 %v6996
    %v8252 = vunpack.c.l.b16 %v6997
    %v8253 = vunpack.c.h.b16 %v6997
    %v8254 = vunpack.c.l.b16 %v6998
    %v8255 = vunpack.c.h.b16 %v6998
    %v8256 = vunpack.c.l.b16 %v6999
    %v8257 = vunpack.c.h.b16 %v6999
    %v8258 = vunpack.c.l.b16 %v7000
    %v8259 = vunpack.c.h.b16 %v7000
    %v8260 = vunpack.c.l.b16 %v7001
    %v8261 = vunpack.c.h.b16 %v7001
    %v8262 = vunpack.c.l.b16 %v7002
    %v8263 = vunpack.c.h.b16 %v7002
    %v8264 = vunpack.c.l.b16 %v7003
    %v8265 = vunpack.c.h.b16 %v7003
    %v8266 = vunpack.c.l.b16 %v7004
    %v8267 = vunpack.c.h.b16 %v7004
    %v8268 = vunpack.c.l.b16 %v7005
    %v8269 = vunpack.c.h.b16 %v7005
    %v8270 = vunpack.c.l.b16 %v7006
    %v8271 = vunpack.c.h.b16 %v7006
    %v8272 = vunpack.c.l.b16 %v7007
    %v8273 = vunpack.c.h.b16 %v7007
    %v8274 = vunpack.c.l.b16 %v7008
    %v8275 = vunpack.c.h.b16 %v7008
    %v8276 = vunpack.c.l.b16 %v7009
    %v8277 = vunpack.c.h.b16 %v7009
    %v8278 = vunpack.c.l.b16 %v7010
    %v8279 = vunpack.c.h.b16 %v7010
    %v8280 = vunpack.c.l.b16 %v7011
    %v8281 = vunpack.c.h.b16 %v7011
    %v8282 = vunpack.c.l.b16 %v7012
    %v8283 = vunpack.c.h.b16 %v7012
    %v8284 = vunpack.c.l.b16 %v7013
    %v8285 = vunpack.c.h.b16 %v7013
    %v8286 = vunpack.c.l.b16 %v7014
    %v8287 = vunpack.c.h.b16 %v7014
    %v8288 = vunpack.c.l.b16 %v7015
    %v8289 = vunpack.c.h.b16 %v7015
    %v8290 = vunpack.c.l.b16 %v7016
    %v8291 = vunpack.c.h.b16 %v7016
    %v8292 = vunpack.c.l.b16 %v7017
    %v8293 = vunpack.c.h.b16 %v7017
    %v8294 = vunpack.c.l.b16 %v7018
    %v8295 = vunpack.c.h.b16 %v7018
    %v8296 = vunpack.c.l.b16 %v7019
    %v8297 = vunpack.c.h.b16 %v7019
    %v8298 = vunpack.c.l.b16 %v7020
    %v8299 = vunpack.c.h.b16 %v7020
    %v8300 = vunpack.c.l.b16 %v7021
    %v8301 = vunpack.c.h.b16 %v7021
    %v8302 = vunpack.c.l.b16 %v7022
    %v8303 = vunpack.c.h.b16 %v7022
    %v8304 = vunpack.c.l.b16 %v7023
    %v8305 = vunpack.c.h.b16 %v7023
    %v8306 = vunpack.c.l.b16 %v7024
    %v8307 = vunpack.c.h.b16 %v7024
    %v8308 = vunpack.c.l.b16 %v7025
    %v8309 = vunpack.c.h.b16 %v7025
    %v8310 = vunpack.c.l.b16 %v7026
    %v8311 = vunpack.c.h.b16 %v7026
    %v8312 = vunpack.c.l.b16 %v7027
    %v8313 = vunpack.c.h.b16 %v7027
    %v8314 = vunpack.c.l.b16 %v7028
    %v8315 = vunpack.c.h.b16 %v7028
    %v8316 = vunpack.c.l.b16 %v7029
    %v8317 = vunpack.c.h.b16 %v7029
    %v8318 = vunpack.c.l.b16 %v7030
    %v8319 = vunpack.c.h.b16 %v7030
    %v8320 = vunpack.c.l.b16 %v7031
    %v8321 = vunpack.c.h.b16 %v7031
    %v8322 = vunpack.c.l.b16 %v7032
    %v8323 = vunpack.c.h.b16 %v7032
    %v8324 = vunpack.c.l.b16 %v7033
    %v8325 = vunpack.c.h.b16 %v7033
    %v8326 = vunpack.c.l.b16 %v7034
    %v8327 = vunpack.c.h.b16 %v7034
    %v8328 = vunpack.c.l.b16 %v7035
    %v8329 = vunpack.c.h.b16 %v7035
    %v8330 = vunpack.c.l.b16 %v7036
    %v8331 = vunpack.c.h.b16 %v7036
    %v8332 = vunpack.c.l.b16 %v7037
    %v8333 = vunpack.c.h.b16 %v7037
    %v8334 = vunpack.c.l.b16 %v7038
    %v8335 = vunpack.c.h.b16 %v7038
    %v8336 = vunpack.c.l.b16 %v7039
    %v8337 = vunpack.c.h.b16 %v7039
    %v8338 = vunpack.c.l.b16 %v7040
    %v8339 = vunpack.c.h.b16 %v7040
    %v8340 = vunpack.c.l.b16 %v7041
    %v8341 = vunpack.c.h.b16 %v7041
    %v8342 = vunpack.c.l.b16 %v7042
    %v8343 = vunpack.c.h.b16 %v7042
    %v8344 = vunpack.c.l.b16 %v7043
    %v8345 = vunpack.c.h.b16 %v7043
    %v8346 = vunpack.c.l.b16 %v7044
    %v8347 = vunpack.c.h.b16 %v7044
    %v8348 = vunpack.c.l.b16 %v7045
    %v8349 = vunpack.c.h.b16 %v7045
    %v8350 = vunpack.c.l.b16 %v7046
    %v8351 = vunpack.c.h.b16 %v7046
    %v8352 = vunpack.c.l.b16 %v7047
    %v8353 = vunpack.c.h.b16 %v7047
    %v8354 = vunpack.c.l.b16 %v7048
    %v8355 = vunpack.c.h.b16 %v7048
    %v8356 = vunpack.c.l.b16 %v7049
    %v8357 = vunpack.c.h.b16 %v7049
    %v8358 = vunpack.c.l.b16 %v7050
    %v8359 = vunpack.c.h.b16 %v7050
    %v8360 = vunpack.c.l.b16 %v7051
    %v8361 = vunpack.c.h.b16 %v7051
    %v8362 = vunpack.c.l.b16 %v7052
    %v8363 = vunpack.c.h.b16 %v7052
    %v8364 = vunpack.c.l.b16 %v7053
    %v8365 = vunpack.c.h.b16 %v7053
    %v8366 = vunpack.c.l.b16 %v7054
    %v8367 = vunpack.c.h.b16 %v7054
    %v8368 = vunpack.c.l.b16 %v7055
    %v8369 = vunpack.c.h.b16 %v7055
    %v8370 = vunpack.c.l.b16 %v7056
    %v8371 = vunpack.c.h.b16 %v7056
    %v8372 = vunpack.c.l.b16 %v7057
    %v8373 = vunpack.c.h.b16 %v7057
    %v8374 = vunpack.c.l.b16 %v7058
    %v8375 = vunpack.c.h.b16 %v7058
    %v8376 = vunpack.c.l.b16 %v7059
    %v8377 = vunpack.c.h.b16 %v7059
    %v8378 = vunpack.c.l.b16 %v7060
    %v8379 = vunpack.c.h.b16 %v7060
    %v8380 = vunpack.c.l.b16 %v7061
    %v8381 = vunpack.c.h.b16 %v7061
    %v8382 = vunpack.c.l.b16 %v7062
    %v8383 = vunpack.c.h.b16 %v7062
    %v8384 = vunpack.c.l.b16 %v7063
    %v8385 = vunpack.c.h.b16 %v7063
    %v8386 = vunpack.c.l.b16 %v7064
    %v8387 = vunpack.c.h.b16 %v7064
    %v8388 = vunpack.c.l.b16 %v7065
    %v8389 = vunpack.c.h.b16 %v7065
    %v8390 = vunpack.c.l.b16 %v7066
    %v8391 = vunpack.c.h.b16 %v7066
    %v8392 = vunpack.c.l.b16 %v7067
    %v8393 = vunpack.c.h.b16 %v7067
    %v8394 = vunpack.c.l.b16 %v7068
    %v8395 = vunpack.c.h.b16 %v7068
    %v8396 = vunpack.c.l.b16 %v7069
    %v8397 = vunpack.c.h.b16 %v7069
    %v8398 = vunpack.c.l.b16 %v7070
    %v8399 = vunpack.c.h.b16 %v7070
    %v8400 = vunpack.c.l.b16 %v7071
    %v8401 = vunpack.c.h.b16 %v7071
    %v8402 = vunpack.c.l.b16 %v7072
    %v8403 = vunpack.c.h.b16 %v7072
    %v8404 = vunpack.c.l.b16 %v7073
    %v8405 = vunpack.c.h.b16 %v7073
    %v8406 = vunpack.c.l.b16 %v7074
    %v8407 = vunpack.c.h.b16 %v7074
    %v8408 = vunpack.c.l.b16 %v7075
    %v8409 = vunpack.c.h.b16 %v7075
    %v8410 = vunpack.c.l.b16 %v7076
    %v8411 = vunpack.c.h.b16 %v7076
    %v8412 = vunpack.c.l.b16 %v7077
    %v8413 = vunpack.c.h.b16 %v7077
    %v8414 = vunpack.c.l.b16 %v7078
    %v8415 = vunpack.c.h.b16 %v7078
    %v8416 = vunpack.c.l.b16 %v7079
    %v8417 = vunpack.c.h.b16 %v7079
    %v8418 = vunpack.c.l.b16 %v7080
    %v8419 = vunpack.c.h.b16 %v7080
    %v8420 = vunpack.c.l.b16 %v7081
    %v8421 = vunpack.c.h.b16 %v7081
    %v8422 = vunpack.c.l.b16 %v7082
    %v8423 = vunpack.c.h.b16 %v7082
    %v8424 = vunpack.c.l.b16 %v7083
    %v8425 = vunpack.c.h.b16 %v7083
    %v8426 = vunpack.c.l.b16 %v7084
    %v8427 = vunpack.c.h.b16 %v7084
    %v8428 = vunpack.c.l.b16 %v7085
    %v8429 = vunpack.c.h.b16 %v7085
    %v8430 = vunpack.c.l.b16 %v7086
    %v8431 = vunpack.c.h.b16 %v7086
    %v8432 = vunpack.c.l.b16 %v7087
    %v8433 = vunpack.c.h.b16 %v7087
    %v8434 = vunpack.c.l.b16 %v7088
    %v8435 = vunpack.c.h.b16 %v7088
    %v8436 = vunpack.c.l.b16 %v7089
    %v8437 = vunpack.c.h.b16 %v7089
    %v8438 = vunpack.c.l.b16 %v7090
    %v8439 = vunpack.c.h.b16 %v7090
    %v8440 = vunpack.c.l.b16 %v7091
    %v8441 = vunpack.c.h.b16 %v7091
    %v8442 = vunpack.c.l.b16 %v7092
    %v8443 = vunpack.c.h.b16 %v7092
    %v8444 = vunpack.c.l.b16 %v7093
    %v8445 = vunpack.c.h.b16 %v7093
    %v8446 = vunpack.c.l.b16 %v7094
    %v8447 = vunpack.c.h.b16 %v7094
    %v8448 = vunpack.c.l.b16 %v7095
    %v8449 = vunpack.c.h.b16 %v7095
    %v8450 = vunpack.c.l.b16 %v7096
    %v8451 = vunpack.c.h.b16 %v7096
    %v8452 = vunpack.c.l.b16 %v7097
    %v8453 = vunpack.c.h.b16 %v7097
    %v8454 = vunpack.c.l.b16 %v7098
    %v8455 = vunpack.c.h.b16 %v7098
    %v8456 = vunpack.c.l.b16 %v7099
    %v8457 = vunpack.c.h.b16 %v7099
    %v8458 = vunpack.c.l.b16 %v7100
    %v8459 = vunpack.c.h.b16 %v7100
    %v8460 = vunpack.c.l.b16 %v7101
    %v8461 = vunpack.c.h.b16 %v7101
    %v8462 = vunpack.c.l.b16 %v7102
    %v8463 = vunpack.c.h.b16 %v7102
    %v8464 = vunpack.c.l.b16 %v7103
    %v8465 = vunpack.c.h.b16 %v7103
    %v8466 = vunpack.c.l.b16 %v7104
    %v8467 = vunpack.c.h.b16 %v7104
    %v8468 = vunpack.c.l.b16 %v7105
    %v8469 = vunpack.c.h.b16 %v7105
    %v8470 = vunpack.c.l.b16 %v7106
    %v8471 = vunpack.c.h.b16 %v7106
    %v8472 = vunpack.c.l.b16 %v7107
    %v8473 = vunpack.c.h.b16 %v7107
    %v8474 = vunpack.c.l.b16 %v7108
    %v8475 = vunpack.c.h.b16 %v7108
    %v8476 = vunpack.c.l.b16 %v7109
    %v8477 = vunpack.c.h.b16 %v7109
    %v8478 = vunpack.c.l.b16 %v7110
    %v8479 = vunpack.c.h.b16 %v7110
    %v8480 = vunpack.c.l.b16 %v7111
    %v8481 = vunpack.c.h.b16 %v7111
    %v8482 = vunpack.c.l.b16 %v7112
    %v8483 = vunpack.c.h.b16 %v7112
    %v8484 = vunpack.c.l.b16 %v7113
    %v8485 = vunpack.c.h.b16 %v7113
    %v8486 = vunpack.c.l.b16 %v7114
    %v8487 = vunpack.c.h.b16 %v7114
    %v8488 = vunpack.c.l.b16 %v7115
    %v8489 = vunpack.c.h.b16 %v7115
    %v8490 = vunpack.c.l.b16 %v7116
    %v8491 = vunpack.c.h.b16 %v7116
    %v8492 = vunpack.c.l.b16 %v7117
    %v8493 = vunpack.c.h.b16 %v7117
    %v8494 = vunpack.c.l.b16 %v7118
    %v8495 = vunpack.c.h.b16 %v7118
    %v8496 = vunpack.c.l.b16 %v7119
    %v8497 = vunpack.c.h.b16 %v7119
    %v8498 = vunpack.c.l.b16 %v7120
    %v8499 = vunpack.c.h.b16 %v7120
    %v8500 = vunpack.c.l.b16 %v7121
    %v8501 = vunpack.c.h.b16 %v7121
    %v8502 = vunpack.c.l.b16 %v7122
    %v8503 = vunpack.c.h.b16 %v7122
    %v8504 = vunpack.c.l.b16 %v7123
    %v8505 = vunpack.c.h.b16 %v7123
    %v8506 = vunpack.c.l.b16 %v7124
    %v8507 = vunpack.c.h.b16 %v7124
    %v8508 = vunpack.c.l.b16 %v7125
    %v8509 = vunpack.c.h.b16 %v7125
    %v8510 = vunpack.c.l.b16 %v7126
    %v8511 = vunpack.c.h.b16 %v7126
    %v8512 = vunpack.c.l.b16 %v7127
    %v8513 = vunpack.c.h.b16 %v7127
    %v8514 = vunpack.c.l.b16 %v7128
    %v8515 = vunpack.c.h.b16 %v7128
    %v8516 = vunpack.c.l.b16 %v7129
    %v8517 = vunpack.c.h.b16 %v7129
    %v8518 = vunpack.c.l.b16 %v7130
    %v8519 = vunpack.c.h.b16 %v7130
    %v8520 = vunpack.c.l.b16 %v7131
    %v8521 = vunpack.c.h.b16 %v7131
    %v8522 = vunpack.c.l.b16 %v7132
    %v8523 = vunpack.c.h.b16 %v7132
    %v8524 = vunpack.c.l.b16 %v7133
    %v8525 = vunpack.c.h.b16 %v7133
    %v8526 = vunpack.c.l.b16 %v7134
    %v8527 = vunpack.c.h.b16 %v7134
    %v8528 = vunpack.c.l.b16 %v7135
    %v8529 = vunpack.c.h.b16 %v7135
    %v8530 = vunpack.c.l.b16 %v7136
    %v8531 = vunpack.c.h.b16 %v7136
    %v8532 = vunpack.c.l.b16 %v7137
    %v8533 = vunpack.c.h.b16 %v7137
    %v8534 = vunpack.c.l.b16 %v7138
    %v8535 = vunpack.c.h.b16 %v7138
    %v8536 = vunpack.c.l.b16 %v7139
    %v8537 = vunpack.c.h.b16 %v7139
    %v8538 = vunpack.c.l.b16 %v7140
    %v8539 = vunpack.c.h.b16 %v7140
    %v8540 = vunpack.c.l.b16 %v7141
    %v8541 = vunpack.c.h.b16 %v7141
    %v8542 = vunpack.c.l.b16 %v7142
    %v8543 = vunpack.c.h.b16 %v7142
    %v8544 = vunpack.c.l.b16 %v7143
    %v8545 = vunpack.c.h.b16 %v7143
    %v8546 = vunpack.c.l.b16 %v7144
    %v8547 = vunpack.c.h.b16 %v7144
    %v8548 = vunpack.c.l.b16 %v7145
    %v8549 = vunpack.c.h.b16 %v7145
    %v8550 = vunpack.c.l.b16 %v7146
    %v8551 = vunpack.c.h.b16 %v7146
    %v8552 = vunpack.c.l.b16 %v7147
    %v8553 = vunpack.c.h.b16 %v7147
    %v8554 = vunpack.c.l.b16 %v7148
    %v8555 = vunpack.c.h.b16 %v7148
    %v8556 = vunpack.c.l.b16 %v7149
    %v8557 = vunpack.c.h.b16 %v7149
    %v8558 = vunpack.c.l.b16 %v7150
    %v8559 = vunpack.c.h.b16 %v7150
    %v8560 = vunpack.c.l.b16 %v7151
    %v8561 = vunpack.c.h.b16 %v7151
    %v8562 = vunpack.c.l.b16 %v7152
    %v8563 = vunpack.c.h.b16 %v7152
    %v8564 = vunpack.c.l.b16 %v7153
    %v8565 = vunpack.c.h.b16 %v7153
    %v8566 = vunpack.c.l.b16 %v7154
    %v8567 = vunpack.c.h.b16 %v7154
    %v8568 = vunpack.c.l.b16 %v7155
    %v8569 = vunpack.c.h.b16 %v7155
    %v8570 = vunpack.c.l.b16 %v7156
    %v8571 = vunpack.c.h.b16 %v7156
    %v8572 = vunpack.c.l.b16 %v7157
    %v8573 = vunpack.c.h.b16 %v7157
    %v8574 = vunpack.c.l.b16 %v7158
    %v8575 = vunpack.c.h.b16 %v7158
    %v8576 = vunpack.c.l.b16 %v7159
    %v8577 = vunpack.c.h.b16 %v7159
    %v8578 = vunpack.c.l.b16 %v7160
    %v8579 = vunpack.c.h.b16 %v7160
    %v8580 = vunpack.c.l.b16 %v7161
    %v8581 = vunpack.c.h.b16 %v7161
    %v8582 = vunpack.c.l.b16 %v7162
    %v8583 = vunpack.c.h.b16 %v7162
    %v8584 = vunpack.c.l.b16 %v7163
    %v8585 = vunpack.c.h.b16 %v7163
    %v8586 = vunpack.c.l.b16 %v7164
    %v8587 = vunpack.c.h.b16 %v7164
    %v8588 = vunpack.c.l.b16 %v7165
    %v8589 = vunpack.c.h.b16 %v7165
    %v8590 = vunpack.c.l.b16 %v7166
    %v8591 = vunpack.c.h.b16 %v7166
    %v8592 = vunpack.c.l.b16 %v7167
    %v8593 = vunpack.c.h.b16 %v7167
    %v8594 = vunpack.c.l.b16 %v7168
    %v8595 = vunpack.c.h.b16 %v7168
    %v8596 = vunpack.c.l.b16 %v7169
    %v8597 = vunpack.c.h.b16 %v7169
    %v8598 = vunpack.c.l.b16 %v7170
    %v8599 = vunpack.c.h.b16 %v7170
    %v8600 = vunpack.c.l.b16 %v7171
    %v8601 = vunpack.c.h.b16 %v7171
    %v8602 = vunpack.c.l.b16 %v7172
    %v8603 = vunpack.c.h.b16 %v7172
    %v8604 = vunpack.c.l.b16 %v7173
    %v8605 = vunpack.c.h.b16 %v7173
    %v8606 = vunpack.c.l.b16 %v7174
    %v8607 = vunpack.c.h.b16 %v7174
    %v8608 = vunpack.c.l.b16 %v7175
    %v8609 = vunpack.c.h.b16 %v7175
    %v8610 = vunpack.c.l.b16 %v7176
    %v8611 = vunpack.c.h.b16 %v7176
    %v8612 = vunpack.c.l.b16 %v7177
    %v8613 = vunpack.c.h.b16 %v7177
    %v8614 = vunpack.c.l.b16 %v7178
    %v8615 = vunpack.c.h.b16 %v7178
    %v8616 = vunpack.c.l.b16 %v7179
    %v8617 = vunpack.c.h.b16 %v7179
    %v8618 = vunpack.c.l.b16 %v7180
    %v8619 = vunpack.c.h.b16 %v7180
    %v8620 = vunpack.c.l.b16 %v7181
    %v8621 = vunpack.c.h.b16 %v7181
    %v8622 = vunpack.c.l.b16 %v7182
    %v8623 = vunpack.c.h.b16 %v7182
    %v8624 = vunpack.c.l.b16 %v7183
    %v8625 = vunpack.c.h.b16 %v7183
    %v8626 = vunpack.c.l.b16 %v7184
    %v8627 = vunpack.c.h.b16 %v7184
    %v8628 = vunpack.c.l.b16 %v7185
    %v8629 = vunpack.c.h.b16 %v7185
    %v8630 = vunpack.c.l.b16 %v7186
    %v8631 = vunpack.c.h.b16 %v7186
    %v8632 = vunpack.c.l.b16 %v7187
    %v8633 = vunpack.c.h.b16 %v7187
    %v8634 = vunpack.c.l.b16 %v7188
    %v8635 = vunpack.c.h.b16 %v7188
    %v8636 = vunpack.c.l.b16 %v7189
    %v8637 = vunpack.c.h.b16 %v7189
    %v8638 = vunpack.c.l.b16 %v7190
    %v8639 = vunpack.c.h.b16 %v7190
    %v8640 = vunpack.c.l.b16 %v7191
    %v8641 = vunpack.c.h.b16 %v7191
    %v8642 = vunpack.c.l.b16 %v7192
    %v8643 = vunpack.c.h.b16 %v7192
    %v8644 = vunpack.c.l.b16 %v7193
    %v8645 = vunpack.c.h.b16 %v7193
    %v8646 = vunpack.c.l.b16 %v7194
    %v8647 = vunpack.c.h.b16 %v7194
    %v8648 = vunpack.c.l.b16 %v7195
    %v8649 = vunpack.c.h.b16 %v7195
    %v8650 = vunpack.c.l.b16 %v7196
    %v8651 = vunpack.c.h.b16 %v7196
    %v8652 = vunpack.c.l.b16 %v7197
    %v8653 = vunpack.c.h.b16 %v7197
    %v8654 = vunpack.c.l.b16 %v7198
    %v8655 = vunpack.c.h.b16 %v7198
    %v8656 = vunpack.c.l.b16 %v7199
    %v8657 = vunpack.c.h.b16 %v7199
    %v8658 = vunpack.c.l.b16 %v7200
    %v8659 = vunpack.c.h.b16 %v7200
    %v8660 = vunpack.c.l.b16 %v7201
    %v8661 = vunpack.c.h.b16 %v7201
    %v8662 = vunpack.c.l.b16 %v7202
    %v8663 = vunpack.c.h.b16 %v7202
    %v8664 = vunpack.c.l.b16 %v7203
    %v8665 = vunpack.c.h.b16 %v7203
    %v8666 = vunpack.c.l.b16 %v7204
    %v8667 = vunpack.c.h.b16 %v7204
    %v8668 = vunpack.c.l.b16 %v7205
    %v8669 = vunpack.c.h.b16 %v7205
    %v8670 = vunpack.c.l.b16 %v7206
    %v8671 = vunpack.c.h.b16 %v7206
    %v8672 = vunpack.c.l.b16 %v7207
    %v8673 = vunpack.c.h.b16 %v7207
    %v8674 = vunpack.c.l.b16 %v7208
    %v8675 = vunpack.c.h.b16 %v7208
    %v8676 = vunpack.c.l.b16 %v7209
    %v8677 = vunpack.c.h.b16 %v7209
    %v8678 = vunpack.c.l.b16 %v7210
    %v8679 = vunpack.c.h.b16 %v7210
    %v8680 = vunpack.c.l.b16 %v7211
    %v8681 = vunpack.c.h.b16 %v7211
    %v8682 = vunpack.c.l.b16 %v7212
    %v8683 = vunpack.c.h.b16 %v7212
    %v8684 = vunpack.c.l.b16 %v7213
    %v8685 = vunpack.c.h.b16 %v7213
    %v8686 = vunpack.c.l.b16 %v7214
    %v8687 = vunpack.c.h.b16 %v7214
    %v8688 = vunpack.c.l.b16 %v7215
    %v8689 = vunpack.c.h.b16 %v7215
    %v8690 = vunpack.c.l.b16 %v7216
    %v8691 = vunpack.c.h.b16 %v7216
    %v8692 = vunpack.c.l.b16 %v7217
    %v8693 = vunpack.c.h.b16 %v7217
    %v8694 = vunpack.c.l.b16 %v7218
    %v8695 = vunpack.c.h.b16 %v7218
    %v8696 = vunpack.c.l.b16 %v7219
    %v8697 = vunpack.c.h.b16 %v7219
    %v8698 = vunpack.c.l.b16 %v7220
    %v8699 = vunpack.c.h.b16 %v7220
    %v8700 = vunpack.c.l.b16 %v7221
    %v8701 = vunpack.c.h.b16 %v7221
    %v8702 = vunpack.c.l.b16 %v7222
    %v8703 = vunpack.c.h.b16 %v7222
    %v8704 = vunpack.c.l.b16 %v7223
    %v8705 = vunpack.c.h.b16 %v7223
    %v8706 = vunpack.c.l.b16 %v7224
    %v8707 = vunpack.c.h.b16 %v7224
    %v8708 = vunpack.c.l.b16 %v7225
    %v8709 = vunpack.c.h.b16 %v7225
    %v8710 = vunpack.c.l.b16 %v7226
    %v8711 = vunpack.c.h.b16 %v7226
    %v8712 = vunpack.c.l.b16 %v7227
    %v8713 = vunpack.c.h.b16 %v7227
    %v8714 = vunpack.c.l.b16 %v7228
    %v8715 = vunpack.c.h.b16 %v7228
    %v8716 = vunpack.c.l.b16 %v7229
    %v8717 = vunpack.c.h.b16 %v7229
    %v8718 = vunpack.c.l.b16 %v7230
    %v8719 = vunpack.c.h.b16 %v7230
    %v8720 = vunpack.c.l.b16 %v7231
    %v8721 = vunpack.c.h.b16 %v7231
    %v8722 = vunpack.c.l.b16 %v7232
    %v8723 = vunpack.c.h.b16 %v7232
    %v8724 = vunpack.c.l.b16 %v7233
    %v8725 = vunpack.c.h.b16 %v7233
    %v8726 = vunpack.c.l.b16 %v7234
    %v8727 = vunpack.c.h.b16 %v7234
    %v8728 = vunpack.c.l.b16 %v7235
    %v8729 = vunpack.c.h.b16 %v7235
    %v8730 = vunpack.c.l.b16 %v7236
    %v8731 = vunpack.c.h.b16 %v7236
    %v8732 = vunpack.c.l.b16 %v7237
    %v8733 = vunpack.c.h.b16 %v7237
    %v8734 = vunpack.c.l.b16 %v7238
    %v8735 = vunpack.c.h.b16 %v7238
    %v8736 = vunpack.c.l.b16 %v7239
    %v8737 = vunpack.c.h.b16 %v7239
    %v8738 = vunpack.c.l.b16 %v7240
    %v8739 = vunpack.c.h.b16 %v7240
    %v8740 = vunpack.c.l.b16 %v7241
    %v8741 = vunpack.c.h.b16 %v7241
    %v8742 = vunpack.c.l.b16 %v7242
    %v8743 = vunpack.c.h.b16 %v7242
    %v8744 = vunpack.c.l.b16 %v7243
    %v8745 = vunpack.c.h.b16 %v7243
    %v8746 = vunpack.c.l.b16 %v7244
    %v8747 = vunpack.c.h.b16 %v7244
    %v8748 = vunpack.c.l.b16 %v7245
    %v8749 = vunpack.c.h.b16 %v7245
    %v8750 = vunpack.c.l.b16 %v7246
    %v8751 = vunpack.c.h.b16 %v7246
    %v8752 = vunpack.c.l.b16 %v7247
    %v8753 = vunpack.c.h.b16 %v7247
    %v8754 = vunpack.c.l.b16 %v7248
    %v8755 = vunpack.c.h.b16 %v7248
    %v8756 = vunpack.c.l.b16 %v7249
    %v8757 = vunpack.c.h.b16 %v7249
    %v8758 = vunpack.c.l.b16 %v7250
    %v8759 = vunpack.c.h.b16 %v7250
    %v8760 = vunpack.c.l.b16 %v7251
    %v8761 = vunpack.c.h.b16 %v7251
    %v8762 = vunpack.c.l.b16 %v7252
    %v8763 = vunpack.c.h.b16 %v7252
    %v8764 = vunpack.c.l.b16 %v7253
    %v8765 = vunpack.c.h.b16 %v7253
    %v8766 = vunpack.c.l.b16 %v7254
    %v8767 = vunpack.c.h.b16 %v7254
    %v8768 = vunpack.c.l.b16 %v7255
    %v8769 = vunpack.c.h.b16 %v7255
    %v8770 = vunpack.c.l.b16 %v7256
    %v8771 = vunpack.c.h.b16 %v7256
    %v8772 = vunpack.c.l.b16 %v7257
    %v8773 = vunpack.c.h.b16 %v7257
    %v8774 = vunpack.c.l.b16 %v7258
    %v8775 = vunpack.c.h.b16 %v7258
    %v8776 = vunpack.c.l.b16 %v7259
    %v8777 = vunpack.c.h.b16 %v7259
    %v8778 = vunpack.c.l.b16 %v7260
    %v8779 = vunpack.c.h.b16 %v7260
    %v8780 = vunpack.c.l.b16 %v7261
    %v8781 = vunpack.c.h.b16 %v7261
    %v8782 = vunpack.c.l.b16 %v7262
    %v8783 = vunpack.c.h.b16 %v7262
    %v8784 = vunpack.c.l.b16 %v7263
    %v8785 = vunpack.c.h.b16 %v7263
    %v8786 = vunpack.c.l.b16 %v7264
    %v8787 = vunpack.c.h.b16 %v7264
    %v8788 = vunpack.c.l.b16 %v7265
    %v8789 = vunpack.c.h.b16 %v7265
    %v8790 = vunpack.c.l.b16 %v7266
    %v8791 = vunpack.c.h.b16 %v7266
    %v8792 = vunpack.c.l.b16 %v7267
    %v8793 = vunpack.c.h.b16 %v7267
    %v8794 = vunpack.c.l.b16 %v7268
    %v8795 = vunpack.c.h.b16 %v7268
    %v8796 = vunpack.c.l.b16 %v7269
    %v8797 = vunpack.c.h.b16 %v7269
    %v8798 = vunpack.c.l.b16 %v7270
    %v8799 = vunpack.c.h.b16 %v7270
    %v8800 = vunpack.c.l.b16 %v7271
    %v8801 = vunpack.c.h.b16 %v7271
    %v8802 = vunpack.c.l.b16 %v7272
    %v8803 = vunpack.c.h.b16 %v7272
    %v8804 = vunpack.c.l.b16 %v7273
    %v8805 = vunpack.c.h.b16 %v7273
    %v8806 = vunpack.c.l.b16 %v7274
    %v8807 = vunpack.c.h.b16 %v7274
    %v8808 = vunpack.c.l.b16 %v7275
    %v8809 = vunpack.c.h.b16 %v7275
    %v8810 = vunpack.c.l.b16 %v7276
    %v8811 = vunpack.c.h.b16 %v7276
    %v8812 = vunpack.c.l.b16 %v7277
    %v8813 = vunpack.c.h.b16 %v7277
    %v8814 = vunpack.c.l.b16 %v7278
    %v8815 = vunpack.c.h.b16 %v7278
    %v8816 = vunpack.c.l.b16 %v7279
    %v8817 = vunpack.c.h.b16 %v7279
    %v8818 = vunpack.c.l.b16 %v7280
    %v8819 = vunpack.c.h.b16 %v7280
    %v8820 = vunpack.c.l.b16 %v7281
    %v8821 = vunpack.c.h.b16 %v7281
    %v8822 = vunpack.c.l.b16 %v7282
    %v8823 = vunpack.c.h.b16 %v7282
    %v8824 = vunpack.c.l.b16 %v7283
    %v8825 = vunpack.c.h.b16 %v7283
    %v8826 = vunpack.c.l.b16 %v7284
    %v8827 = vunpack.c.h.b16 %v7284
    %v8828 = vunpack.c.l.b16 %v7285
    %v8829 = vunpack.c.h.b16 %v7285
    %v8830 = vunpack.c.l.b16 %v7286
    %v8831 = vunpack.c.h.b16 %v7286
    %v8832 = vunpack.c.l.b16 %v7287
    %v8833 = vunpack.c.h.b16 %v7287
    %v8834 = vunpack.c.l.b16 %v7288
    %v8835 = vunpack.c.h.b16 %v7288
    %v8836 = vunpack.c.l.b16 %v7289
    %v8837 = vunpack.c.h.b16 %v7289
    %v8838 = vunpack.c.l.b16 %v7290
    %v8839 = vunpack.c.h.b16 %v7290
    %v8840 = vunpack.c.l.b16 %v7291
    %v8841 = vunpack.c.h.b16 %v7291
    %v8842 = vunpack.c.l.b16 %v7292
    %v8843 = vunpack.c.h.b16 %v7292
    %v8844 = vunpack.c.l.b16 %v7293
    %v8845 = vunpack.c.h.b16 %v7293
    %v8846 = vunpack.c.l.b16 %v7294
    %v8847 = vunpack.c.h.b16 %v7294
    %v8848 = vunpack.c.l.b16 %v7295
    %v8849 = vunpack.c.h.b16 %v7295
    %v8850 = vunpack.c.l.b16 %v7296
    %v8851 = vunpack.c.h.b16 %v7296
    %v8852 = vunpack.c.l.b16 %v7297
    %v8853 = vunpack.c.h.b16 %v7297
    %v8854 = vunpack.c.l.b16 %v7298
    %v8855 = vunpack.c.h.b16 %v7298
    %v8856 = vunpack.c.l.b16 %v7299
    %v8857 = vunpack.c.h.b16 %v7299
    %v8858 = vunpack.c.l.b16 %v7300
    %v8859 = vunpack.c.h.b16 %v7300
    %v8860 = vunpack.c.l.b16 %v7301
    %v8861 = vunpack.c.h.b16 %v7301
    %v8862 = vunpack.c.l.b16 %v7302
    %v8863 = vunpack.c.h.b16 %v7302
    %v8864 = vunpack.c.l.b16 %v7303
    %v8865 = vunpack.c.h.b16 %v7303
    %v8866 = vunpack.c.l.b16 %v7304
    %v8867 = vunpack.c.h.b16 %v7304
    %v8868 = vunpack.c.l.b16 %v7305
    %v8869 = vunpack.c.h.b16 %v7305
    %v8870 = vunpack.c.l.b16 %v7306
    %v8871 = vunpack.c.h.b16 %v7306
    %v8872 = vunpack.c.l.b16 %v7307
    %v8873 = vunpack.c.h.b16 %v7307
    %v8874 = vunpack.c.l.b16 %v7308
    %v8875 = vunpack.c.h.b16 %v7308
    %v8876 = vunpack.c.l.b16 %v7309
    %v8877 = vunpack.c.h.b16 %v7309
    %v8878 = vunpack.c.l.b16 %v7310
    %v8879 = vunpack.c.h.b16 %v7310
    %v8880 = vunpack.c.l.b16 %v7311
    %v8881 = vunpack.c.h.b16 %v7311
    %v8882 = vunpack.c.l.b16 %v7312
    %v8883 = vunpack.c.h.b16 %v7312
    %v8884 = vunpack.c.l.b16 %v7313
    %v8885 = vunpack.c.h.b16 %v7313
    %v8886 = vunpack.c.l.b16 %v7314
    %v8887 = vunpack.c.h.b16 %v7314
    %v8888 = vunpack.c.l.b16 %v7315
    %v8889 = vunpack.c.h.b16 %v7315
    %v8890 = vunpack.c.l.b16 %v7316
    %v8891 = vunpack.c.h.b16 %v7316
    %v8892 = vunpack.c.l.b16 %v7317
    %v8893 = vunpack.c.h.b16 %v7317
    %v8894 = vunpack.c.l.b16 %v7318
    %v8895 = vunpack.c.h.b16 %v7318
    %v8896 = vunpack.c.l.b16 %v7319
    %v8897 = vunpack.c.h.b16 %v7319
    %v8898 = vunpack.c.l.b16 %v7320
    %v8899 = vunpack.c.h.b16 %v7320
    %v8900 = vunpack.c.l.b16 %v7321
    %v8901 = vunpack.c.h.b16 %v7321
    %v8902 = vunpack.c.l.b16 %v7322
    %v8903 = vunpack.c.h.b16 %v7322
    %v8904 = vunpack.c.l.b16 %v7323
    %v8905 = vunpack.c.h.b16 %v7323
    %v8906 = vunpack.c.l.b16 %v7324
    %v8907 = vunpack.c.h.b16 %v7324
    %v8908 = vunpack.c.l.b16 %v7325
    %v8909 = vunpack.c.h.b16 %v7325
    %v8910 = vunpack.c.l.b16 %v7326
    %v8911 = vunpack.c.h.b16 %v7326
    %v8912 = vunpack.c.l.b16 %v7327
    %v8913 = vunpack.c.h.b16 %v7327
    %v8914 = vunpack.c.l.b16 %v7328
    %v8915 = vunpack.c.h.b16 %v7328
    %v8916 = vunpack.c.l.b16 %v7329
    %v8917 = vunpack.c.h.b16 %v7329
    %v8918 = vunpack.c.l.b16 %v7330
    %v8919 = vunpack.c.h.b16 %v7330
    %v8920 = vunpack.c.l.b16 %v7331
    %v8921 = vunpack.c.h.b16 %v7331
    %v8922 = vunpack.c.l.b16 %v7332
    %v8923 = vunpack.c.h.b16 %v7332
    %v8924 = vunpack.c.l.b16 %v7333
    %v8925 = vunpack.c.h.b16 %v7333
    %v8926 = vunpack.c.l.b16 %v7334
    %v8927 = vunpack.c.h.b16 %v7334
    %v8928 = vunpack.c.l.b16 %v7335
    %v8929 = vunpack.c.h.b16 %v7335
    %v8930 = vunpack.c.l.b16 %v7336
    %v8931 = vunpack.c.h.b16 %v7336
    %v8932 = vunpack.c.l.b16 %v7337
    %v8933 = vunpack.c.h.b16 %v7337
    %v8934 = vunpack.c.l.b16 %v7338
    %v8935 = vunpack.c.h.b16 %v7338
    %v8936 = vunpack.c.l.b16 %v7339
    %v8937 = vunpack.c.h.b16 %v7339
    %v8938 = vunpack.c.l.b16 %v7340
    %v8939 = vunpack.c.h.b16 %v7340
    %v8940 = vunpack.c.l.b16 %v7341
    %v8941 = vunpack.c.h.b16 %v7341
    %v8942 = vunpack.c.l.b16 %v7342
    %v8943 = vunpack.c.h.b16 %v7342
    %v8944 = vunpack.c.l.b16 %v7343
    %v8945 = vunpack.c.h.b16 %v7343
    %v8946 = vunpack.c.l.b16 %v7344
    %v8947 = vunpack.c.h.b16 %v7344
    %v8948 = vunpack.c.l.b16 %v7345
    %v8949 = vunpack.c.h.b16 %v7345
    %v8950 = vunpack.c.l.b16 %v7346
    %v8951 = vunpack.c.h.b16 %v7346
    %v8952 = vunpack.c.l.b16 %v7347
    %v8953 = vunpack.c.h.b16 %v7347
    %v8954 = vunpack.c.l.b16 %v7348
    %v8955 = vunpack.c.h.b16 %v7348
    %v8956 = vunpack.c.l.b16 %v7349
    %v8957 = vunpack.c.h.b16 %v7349
    %v8958 = vunpack.c.l.b16 %v7350
    %v8959 = vunpack.c.h.b16 %v7350
    %v8960 = vunpack.c.l.b16 %v7351
    %v8961 = vunpack.c.h.b16 %v7351
    %v8962 = vunpack.c.l.b16 %v7352
    %v8963 = vunpack.c.h.b16 %v7352
    %v8964 = vunpack.c.l.b16 %v7353
    %v8965 = vunpack.c.h.b16 %v7353
    %v8966 = vunpack.c.l.b16 %v7354
    %v8967 = vunpack.c.h.b16 %v7354
    %v8968 = vunpack.c.l.b16 %v7355
    %v8969 = vunpack.c.h.b16 %v7355
    %v8970 = vunpack.c.l.b16 %v7356
    %v8971 = vunpack.c.h.b16 %v7356
    %v8972 = vunpack.c.l.b16 %v7357
    %v8973 = vunpack.c.h.b16 %v7357
    %v8974 = vunpack.c.l.b16 %v7358
    %v8975 = vunpack.c.h.b16 %v7358
    %v8976 = vunpack.c.l.b16 %v7359
    %v8977 = vunpack.c.h.b16 %v7359
    %v8978 = vunpack.c.l.b16 %v7360
    %v8979 = vunpack.c.h.b16 %v7360
    %v8980 = vunpack.c.l.b16 %v7361
    %v8981 = vunpack.c.h.b16 %v7361
    %v8982 = vpack.c.b16 %v7974, %v7958
    %v8983 = vpack.c.b16 %v7975, %v7959
    %v8984 = vpack.c.b16 %v7976, %v7960
    %v8985 = vpack.c.b16 %v7977, %v7961
    %v8986 = vpack.c.b16 %v7978, %v7962
    %v8987 = vpack.c.b16 %v7979, %v7963
    %v8988 = vpack.c.b16 %v7980, %v7964
    %v8989 = vpack.c.b16 %v7981, %v7965
    %v8990 = vpack.c.b16 %v7982, %v7966
    %v8991 = vpack.c.b16 %v7983, %v7967
    %v8992 = vpack.c.b16 %v7984, %v7968
    %v8993 = vpack.c.b16 %v7985, %v7969
    %v8994 = vpack.c.b16 %v7986, %v7970
    %v8995 = vpack.c.b16 %v7987, %v7971
    %v8996 = vpack.c.b16 %v7988, %v7972
    %v8997 = vpack.c.b16 %v7989, %v7973
    %v8998 = vpack.c.b16 %v8006, %v7990
    %v8999 = vpack.c.b16 %v8007, %v7991
    %v9000 = vpack.c.b16 %v8008, %v7992
    %v9001 = vpack.c.b16 %v8009, %v7993
    %v9002 = vpack.c.b16 %v8010, %v7994
    %v9003 = vpack.c.b16 %v8011, %v7995
    %v9004 = vpack.c.b16 %v8012, %v7996
    %v9005 = vpack.c.b16 %v8013, %v7997
    %v9006 = vpack.c.b16 %v8014, %v7998
    %v9007 = vpack.c.b16 %v8015, %v7999
    %v9008 = vpack.c.b16 %v8016, %v8000
    %v9009 = vpack.c.b16 %v8017, %v8001
    %v9010 = vpack.c.b16 %v8018, %v8002
    %v9011 = vpack.c.b16 %v8019, %v8003
    %v9012 = vpack.c.b16 %v8020, %v8004
    %v9013 = vpack.c.b16 %v8021, %v8005
    %v9014 = vpack.c.b16 %v8038, %v8022
    %v9015 = vpack.c.b16 %v8039, %v8023
    %v9016 = vpack.c.b16 %v8040, %v8024
    %v9017 = vpack.c.b16 %v8041, %v8025
    %v9018 = vpack.c.b16 %v8042, %v8026
    %v9019 = vpack.c.b16 %v8043, %v8027
    %v9020 = vpack.c.b16 %v8044, %v8028
    %v9021 = vpack.c.b16 %v8045, %v8029
    %v9022 = vpack.c.b16 %v8046, %v8030
    %v9023 = vpack.c.b16 %v8047, %v8031
    %v9024 = vpack.c.b16 %v8048, %v8032
    %v9025 = vpack.c.b16 %v8049, %v8033
    %v9026 = vpack.c.b16 %v8050, %v8034
    %v9027 = vpack.c.b16 %v8051, %v8035
    %v9028 = vpack.c.b16 %v8052, %v8036
    %v9029 = vpack.c.b16 %v8053, %v8037
    %v9030 = vpack.c.b16 %v8070, %v8054
    %v9031 = vpack.c.b16 %v8071, %v8055
    %v9032 = vpack.c.b16 %v8072, %v8056
    %v9033 = vpack.c.b16 %v8073, %v8057
    %v9034 = vpack.c.b16 %v8074, %v8058
    %v9035 = vpack.c.b16 %v8075, %v8059
    %v9036 = vpack.c.b16 %v8076, %v8060
    %v9037 = vpack.c.b16 %v8077, %v8061
    %v9038 = vpack.c.b16 %v8078, %v8062
    %v9039 = vpack.c.b16 %v8079, %v8063
    %v9040 = vpack.c.b16 %v8080, %v8064
    %v9041 = vpack.c.b16 %v8081, %v8065
    %v9042 = vpack.c.b16 %v8082, %v8066
    %v9043 = vpack.c.b16 %v8083, %v8067
    %v9044 = vpack.c.b16 %v8084, %v8068
    %v9045 = vpack.c.b16 %v8085, %v8069
    %v9046 = vpack.c.b16 %v8102, %v8086
    %v9047 = vpack.c.b16 %v8103, %v8087
    %v9048 = vpack.c.b16 %v8104, %v8088
    %v9049 = vpack.c.b16 %v8105, %v8089
    %v9050 = vpack.c.b16 %v8106, %v8090
    %v9051 = vpack.c.b16 %v8107, %v8091
    %v9052 = vpack.c.b16 %v8108, %v8092
    %v9053 = vpack.c.b16 %v8109, %v8093
    %v9054 = vpack.c.b16 %v8110, %v8094
    %v9055 = vpack.c.b16 %v8111, %v8095
    %v9056 = vpack.c.b16 %v8112, %v8096
    %v9057 = vpack.c.b16 %v8113, %v8097
    %v9058 = vpack.c.b16 %v8114, %v8098
    %v9059 = vpack.c.b16 %v8115, %v8099
    %v9060 = vpack.c.b16 %v8116, %v8100
    %v9061 = vpack.c.b16 %v8117, %v8101
    %v9062 = vpack.c.b16 %v8134, %v8118
    %v9063 = vpack.c.b16 %v8135, %v8119
    %v9064 = vpack.c.b16 %v8136, %v8120
    %v9065 = vpack.c.b16 %v8137, %v8121
    %v9066 = vpack.c.b16 %v8138, %v8122
    %v9067 = vpack.c.b16 %v8139, %v8123
    %v9068 = vpack.c.b16 %v8140, %v8124
    %v9069 = vpack.c.b16 %v8141, %v8125
    %v9070 = vpack.c.b16 %v8142, %v8126
    %v9071 = vpack.c.b16 %v8143, %v8127
    %v9072 = vpack.c.b16 %v8144, %v8128
    %v9073 = vpack.c.b16 %v8145, %v8129
    %v9074 = vpack.c.b16 %v8146, %v8130
    %v9075 = vpack.c.b16 %v8147, %v8131
    %v9076 = vpack.c.b16 %v8148, %v8132
    %v9077 = vpack.c.b16 %v8149, %v8133
    %v9078 = vpack.c.b16 %v8166, %v8150
    %v9079 = vpack.c.b16 %v8167, %v8151
    %v9080 = vpack.c.b16 %v8168, %v8152
    %v9081 = vpack.c.b16 %v8169, %v8153
    %v9082 = vpack.c.b16 %v8170, %v8154
    %v9083 = vpack.c.b16 %v8171, %v8155
    %v9084 = vpack.c.b16 %v8172, %v8156
    %v9085 = vpack.c.b16 %v8173, %v8157
    %v9086 = vpack.c.b16 %v8174, %v8158
    %v9087 = vpack.c.b16 %v8175, %v8159
    %v9088 = vpack.c.b16 %v8176, %v8160
    %v9089 = vpack.c.b16 %v8177, %v8161
    %v9090 = vpack.c.b16 %v8178, %v8162
    %v9091 = vpack.c.b16 %v8179, %v8163
    %v9092 = vpack.c.b16 %v8180, %v8164
    %v9093 = vpack.c.b16 %v8181, %v8165
    %v9094 = vpack.c.b16 %v8198, %v8182
    %v9095 = vpack.c.b16 %v8199, %v8183
    %v9096 = vpack.c.b16 %v8200, %v8184
    %v9097 = vpack.c.b16 %v8201, %v8185
    %v9098 = vpack.c.b16 %v8202, %v8186
    %v9099 = vpack.c.b16 %v8203, %v8187
    %v9100 = vpack.c.b16 %v8204, %v8188
    %v9101 = vpack.c.b16 %v8205, %v8189
    %v9102 = vpack.c.b16 %v8206, %v8190
    %v9103 = vpack.c.b16 %v8207, %v8191
    %v9104 = vpack.c.b16 %v8208, %v8192
    %v9105 = vpack.c.b16 %v8209, %v8193
    %v9106 = vpack.c.b16 %v8210, %v8194
    %v9107 = vpack.c.b16 %v8211, %v8195
    %v9108 = vpack.c.b16 %v8212, %v8196
    %v9109 = vpack.c.b16 %v8213, %v8197
    %v9110 = vpack.c.b16 %v8230, %v8214
    %v9111 = vpack.c.b16 %v8231, %v8215
    %v9112 = vpack.c.b16 %v8232, %v8216
    %v9113 = vpack.c.b16 %v8233, %v8217
    %v9114 = vpack.c.b16 %v8234, %v8218
    %v9115 = vpack.c.b16 %v8235, %v8219
    %v9116 = vpack.c.b16 %v8236, %v8220
    %v9117 = vpack.c.b16 %v8237, %v8221
    %v9118 = vpack.c.b16 %v8238, %v8222
    %v9119 = vpack.c.b16 %v8239, %v8223
    %v9120 = vpack.c.b16 %v8240, %v8224
    %v9121 = vpack.c.b16 %v8241, %v8225
    %v9122 = vpack.c.b16 %v8242, %v8226
    %v9123 = vpack.c.b16 %v8243, %v8227
    %v9124 = vpack.c.b16 %v8244, %v8228
    %v9125 = vpack.c.b16 %v8245, %v8229
    %v9126 = vpack.c.b16 %v8262, %v8246
    %v9127 = vpack.c.b16 %v8263, %v8247
    %v9128 = vpack.c.b16 %v8264, %v8248
    %v9129 = vpack.c.b16 %v8265, %v8249
    %v9130 = vpack.c.b16 %v8266, %v8250
    %v9131 = vpack.c.b16 %v8267, %v8251
    %v9132 = vpack.c.b16 %v8268, %v8252
    %v9133 = vpack.c.b16 %v8269, %v8253
    %v9134 = vpack.c.b16 %v8270, %v8254
    %v9135 = vpack.c.b16 %v8271, %v8255
    %v9136 = vpack.c.b16 %v8272, %v8256
    %v9137 = vpack.c.b16 %v8273, %v8257
    %v9138 = vpack.c.b16 %v8274, %v8258
    %v9139 = vpack.c.b16 %v8275, %v8259
    %v9140 = vpack.c.b16 %v8276, %v8260
    %v9141 = vpack.c.b16 %v8277, %v8261
    %v9142 = vpack.c.b16 %v8294, %v8278
    %v9143 = vpack.c.b16 %v8295, %v8279
    %v9144 = vpack.c.b16 %v8296, %v8280
    %v9145 = vpack.c.b16 %v8297, %v8281
    %v9146 = vpack.c.b16 %v8298, %v8282
    %v9147 = vpack.c.b16 %v8299, %v8283
    %v9148 = vpack.c.b16 %v8300, %v8284
    %v9149 = vpack.c.b16 %v8301, %v8285
    %v9150 = vpack.c.b16 %v8302, %v8286
    %v9151 = vpack.c.b16 %v8303, %v8287
    %v9152 = vpack.c.b16 %v8304, %v8288
    %v9153 = vpack.c.b16 %v8305, %v8289
    %v9154 = vpack.c.b16 %v8306, %v8290
    %v9155 = vpack.c.b16 %v8307, %v8291
    %v9156 = vpack.c.b16 %v8308, %v8292
    %v9157 = vpack.c.b16 %v8309, %v8293
    %v9158 = vpack.c.b16 %v8326, %v8310
    %v9159 = vpack.c.b16 %v8327, %v8311
    %v9160 = vpack.c.b16 %v8328, %v8312
    %v9161 = vpack.c.b16 %v8329, %v8313
    %v9162 = vpack.c.b16 %v8330, %v8314
    %v9163 = vpack.c.b16 %v8331, %v8315
    %v9164 = vpack.c.b16 %v8332, %v8316
    %v9165 = vpack.c.b16 %v8333, %v8317
    %v9166 = vpack.c.b16 %v8334, %v8318
    %v9167 = vpack.c.b16 %v8335, %v8319
    %v9168 = vpack.c.b16 %v8336, %v8320
    %v9169 = vpack.c.b16 %v8337, %v8321
    %v9170 = vpack.c.b16 %v8338, %v8322
    %v9171 = vpack.c.b16 %v8339, %v8323
    %v9172 = vpack.c.b16 %v8340, %v8324
    %v9173 = vpack.c.b16 %v8341, %v8325
    %v9174 = vpack.c.b16 %v8358, %v8342
    %v9175 = vpack.c.b16 %v8359, %v8343
    %v9176 = vpack.c.b16 %v8360, %v8344
    %v9177 = vpack.c.b16 %v8361, %v8345
    %v9178 = vpack.c.b16 %v8362, %v8346
    %v9179 = vpack.c.b16 %v8363, %v8347
    %v9180 = vpack.c.b16 %v8364, %v8348
    %v9181 = vpack.c.b16 %v8365, %v8349
    %v9182 = vpack.c.b16 %v8366, %v8350
    %v9183 = vpack.c.b16 %v8367, %v8351
    %v9184 = vpack.c.b16 %v8368, %v8352
    %v9185 = vpack.c.b16 %v8369, %v8353
    %v9186 = vpack.c.b16 %v8370, %v8354
    %v9187 = vpack.c.b16 %v8371, %v8355
    %v9188 = vpack.c.b16 %v8372, %v8356
    %v9189 = vpack.c.b16 %v8373, %v8357
    %v9190 = vpack.c.b16 %v8390, %v8374
    %v9191 = vpack.c.b16 %v8391, %v8375
    %v9192 = vpack.c.b16 %v8392, %v8376
    %v9193 = vpack.c.b16 %v8393, %v8377
    %v9194 = vpack.c.b16 %v8394, %v8378
    %v9195 = vpack.c.b16 %v8395, %v8379
    %v9196 = vpack.c.b16 %v8396, %v8380
    %v9197 = vpack.c.b16 %v8397, %v8381
    %v9198 = vpack.c.b16 %v8398, %v8382
    %v9199 = vpack.c.b16 %v8399, %v8383
    %v9200 = vpack.c.b16 %v8400, %v8384
    %v9201 = vpack.c.b16 %v8401, %v8385
    %v9202 = vpack.c.b16 %v8402, %v8386
    %v9203 = vpack.c.b16 %v8403, %v8387
    %v9204 = vpack.c.b16 %v8404, %v8388
    %v9205 = vpack.c.b16 %v8405, %v8389
    %v9206 = vpack.c.b16 %v8422, %v8406
    %v9207 = vpack.c.b16 %v8423, %v8407
    %v9208 = vpack.c.b16 %v8424, %v8408
    %v9209 = vpack.c.b16 %v8425, %v8409
    %v9210 = vpack.c.b16 %v8426, %v8410
    %v9211 = vpack.c.b16 %v8427, %v8411
    %v9212 = vpack.c.b16 %v8428, %v8412
    %v9213 = vpack.c.b16 %v8429, %v8413
    %v9214 = vpack.c.b16 %v8430, %v8414
    %v9215 = vpack.c.b16 %v8431, %v8415
    %v9216 = vpack.c.b16 %v8432, %v8416
    %v9217 = vpack.c.b16 %v8433, %v8417
    %v9218 = vpack.c.b16 %v8434, %v8418
    %v9219 = vpack.c.b16 %v8435, %v8419
    %v9220 = vpack.c.b16 %v8436, %v8420
    %v9221 = vpack.c.b16 %v8437, %v8421
    %v9222 = vpack.c.b16 %v8454, %v8438
    %v9223 = vpack.c.b16 %v8455, %v8439
    %v9224 = vpack.c.b16 %v8456, %v8440
    %v9225 = vpack.c.b16 %v8457, %v8441
    %v9226 = vpack.c.b16 %v8458, %v8442
    %v9227 = vpack.c.b16 %v8459, %v8443
    %v9228 = vpack.c.b16 %v8460, %v8444
    %v9229 = vpack.c.b16 %v8461, %v8445
    %v9230 = vpack.c.b16 %v8462, %v8446
    %v9231 = vpack.c.b16 %v8463, %v8447
    %v9232 = vpack.c.b16 %v8464, %v8448
    %v9233 = vpack.c.b16 %v8465, %v8449
    %v9234 = vpack.c.b16 %v8466, %v8450
    %v9235 = vpack.c.b16 %v8467, %v8451
    %v9236 = vpack.c.b16 %v8468, %v8452
    %v9237 = vpack.c.b16 %v8469, %v8453
    %v9238 = vpack.c.b16 %v8486, %v8470
    %v9239 = vpack.c.b16 %v8487, %v8471
    %v9240 = vpack.c.b16 %v8488, %v8472
    %v9241 = vpack.c.b16 %v8489, %v8473
    %v9242 = vpack.c.b16 %v8490, %v8474
    %v9243 = vpack.c.b16 %v8491, %v8475
    %v9244 = vpack.c.b16 %v8492, %v8476
    %v9245 = vpack.c.b16 %v8493, %v8477
    %v9246 = vpack.c.b16 %v8494, %v8478
    %v9247 = vpack.c.b16 %v8495, %v8479
    %v9248 = vpack.c.b16 %v8496, %v8480
    %v9249 = vpack.c.b16 %v8497, %v8481
    %v9250 = vpack.c.b16 %v8498, %v8482
    %v9251 = vpack.c.b16 %v8499, %v8483
    %v9252 = vpack.c.b16 %v8500, %v8484
    %v9253 = vpack.c.b16 %v8501, %v8485
    %v9254 = vpack.c.b16 %v8518, %v8502
    %v9255 = vpack.c.b16 %v8519, %v8503
    %v9256 = vpack.c.b16 %v8520, %v8504
    %v9257 = vpack.c.b16 %v8521, %v8505
    %v9258 = vpack.c.b16 %v8522, %v8506
    %v9259 = vpack.c.b16 %v8523, %v8507
    %v9260 = vpack.c.b16 %v8524, %v8508
    %v9261 = vpack.c.b16 %v8525, %v8509
    %v9262 = vpack.c.b16 %v8526, %v8510
    %v9263 = vpack.c.b16 %v8527, %v8511
    %v9264 = vpack.c.b16 %v8528, %v8512
    %v9265 = vpack.c.b16 %v8529, %v8513
    %v9266 = vpack.c.b16 %v8530, %v8514
    %v9267 = vpack.c.b16 %v8531, %v8515
    %v9268 = vpack.c.b16 %v8532, %v8516
    %v9269 = vpack.c.b16 %v8533, %v8517
    %v9270 = vpack.c.b16 %v8550, %v8534
    %v9271 = vpack.c.b16 %v8551, %v8535
    %v9272 = vpack.c.b16 %v8552, %v8536
    %v9273 = vpack.c.b16 %v8553, %v8537
    %v9274 = vpack.c.b16 %v8554, %v8538
    %v9275 = vpack.c.b16 %v8555, %v8539
    %v9276 = vpack.c.b16 %v8556, %v8540
    %v9277 = vpack.c.b16 %v8557, %v8541
    %v9278 = vpack.c.b16 %v8558, %v8542
    %v9279 = vpack.c.b16 %v8559, %v8543
    %v9280 = vpack.c.b16 %v8560, %v8544
    %v9281 = vpack.c.b16 %v8561, %v8545
    %v9282 = vpack.c.b16 %v8562, %v8546
    %v9283 = vpack.c.b16 %v8563, %v8547
    %v9284 = vpack.c.b16 %v8564, %v8548
    %v9285 = vpack.c.b16 %v8565, %v8549
    %v9286 = vpack.c.b16 %v8582, %v8566
    %v9287 = vpack.c.b16 %v8583, %v8567
    %v9288 = vpack.c.b16 %v8584, %v8568
    %v9289 = vpack.c.b16 %v8585, %v8569
    %v9290 = vpack.c.b16 %v8586, %v8570
    %v9291 = vpack.c.b16 %v8587, %v8571
    %v9292 = vpack.c.b16 %v8588, %v8572
    %v9293 = vpack.c.b16 %v8589, %v8573
    %v9294 = vpack.c.b16 %v8590, %v8574
    %v9295 = vpack.c.b16 %v8591, %v8575
    %v9296 = vpack.c.b16 %v8592, %v8576
    %v9297 = vpack.c.b16 %v8593, %v8577
    %v9298 = vpack.c.b16 %v8594, %v8578
    %v9299 = vpack.c.b16 %v8595, %v8579
    %v9300 = vpack.c.b16 %v8596, %v8580
    %v9301 = vpack.c.b16 %v8597, %v8581
    %v9302 = vpack.c.b16 %v8614, %v8598
    %v9303 = vpack.c.b16 %v8615, %v8599
    %v9304 = vpack.c.b16 %v8616, %v8600
    %v9305 = vpack.c.b16 %v8617, %v8601
    %v9306 = vpack.c.b16 %v8618, %v8602
    %v9307 = vpack.c.b16 %v8619, %v8603
    %v9308 = vpack.c.b16 %v8620, %v8604
    %v9309 = vpack.c.b16 %v8621, %v8605
    %v9310 = vpack.c.b16 %v8622, %v8606
    %v9311 = vpack.c.b16 %v8623, %v8607
    %v9312 = vpack.c.b16 %v8624, %v8608
    %v9313 = vpack.c.b16 %v8625, %v8609
    %v9314 = vpack.c.b16 %v8626, %v8610
    %v9315 = vpack.c.b16 %v8627, %v8611
    %v9316 = vpack.c.b16 %v8628, %v8612
    %v9317 = vpack.c.b16 %v8629, %v8613
    %v9318 = vpack.c.b16 %v8646, %v8630
    %v9319 = vpack.c.b16 %v8647, %v8631
    %v9320 = vpack.c.b16 %v8648, %v8632
    %v9321 = vpack.c.b16 %v8649, %v8633
    %v9322 = vpack.c.b16 %v8650, %v8634
    %v9323 = vpack.c.b16 %v8651, %v8635
    %v9324 = vpack.c.b16 %v8652, %v8636
    %v9325 = vpack.c.b16 %v8653, %v8637
    %v9326 = vpack.c.b16 %v8654, %v8638
    %v9327 = vpack.c.b16 %v8655, %v8639
    %v9328 = vpack.c.b16 %v8656, %v8640
    %v9329 = vpack.c.b16 %v8657, %v8641
    %v9330 = vpack.c.b16 %v8658, %v8642
    %v9331 = vpack.c.b16 %v8659, %v8643
    %v9332 = vpack.c.b16 %v8660, %v8644
    %v9333 = vpack.c.b16 %v8661, %v8645
    %v9334 = vpack.c.b16 %v8678, %v8662
    %v9335 = vpack.c.b16 %v8679, %v8663
    %v9336 = vpack.c.b16 %v8680, %v8664
    %v9337 = vpack.c.b16 %v8681, %v8665
    %v9338 = vpack.c.b16 %v8682, %v8666
    %v9339 = vpack.c.b16 %v8683, %v8667
    %v9340 = vpack.c.b16 %v8684, %v8668
    %v9341 = vpack.c.b16 %v8685, %v8669
    %v9342 = vpack.c.b16 %v8686, %v8670
    %v9343 = vpack.c.b16 %v8687, %v8671
    %v9344 = vpack.c.b16 %v8688, %v8672
    %v9345 = vpack.c.b16 %v8689, %v8673
    %v9346 = vpack.c.b16 %v8690, %v8674
    %v9347 = vpack.c.b16 %v8691, %v8675
    %v9348 = vpack.c.b16 %v8692, %v8676
    %v9349 = vpack.c.b16 %v8693, %v8677
    %v9350 = vpack.c.b16 %v8710, %v8694
    %v9351 = vpack.c.b16 %v8711, %v8695
    %v9352 = vpack.c.b16 %v8712, %v8696
    %v9353 = vpack.c.b16 %v8713, %v8697
    %v9354 = vpack.c.b16 %v8714, %v8698
    %v9355 = vpack.c.b16 %v8715, %v8699
    %v9356 = vpack.c.b16 %v8716, %v8700
    %v9357 = vpack.c.b16 %v8717, %v8701
    %v9358 = vpack.c.b16 %v8718, %v8702
    %v9359 = vpack.c.b16 %v8719, %v8703
    %v9360 = vpack.c.b16 %v8720, %v8704
    %v9361 = vpack.c.b16 %v8721, %v8705
    %v9362 = vpack.c.b16 %v8722, %v8706
    %v9363 = vpack.c.b16 %v8723, %v8707
    %v9364 = vpack.c.b16 %v8724, %v8708
    %v9365 = vpack.c.b16 %v8725, %v8709
    %v9366 = vpack.c.b16 %v8742, %v8726
    %v9367 = vpack.c.b16 %v8743, %v8727
    %v9368 = vpack.c.b16 %v8744, %v8728
    %v9369 = vpack.c.b16 %v8745, %v8729
    %v9370 = vpack.c.b16 %v8746, %v8730
    %v9371 = vpack.c.b16 %v8747, %v8731
    %v9372 = vpack.c.b16 %v8748, %v8732
    %v9373 = vpack.c.b16 %v8749, %v8733
    %v9374 = vpack.c.b16 %v8750, %v8734
    %v9375 = vpack.c.b16 %v8751, %v8735
    %v9376 = vpack.c.b16 %v8752, %v8736
    %v9377 = vpack.c.b16 %v8753, %v8737
    %v9378 = vpack.c.b16 %v8754, %v8738
    %v9379 = vpack.c.b16 %v8755, %v8739
    %v9380 = vpack.c.b16 %v8756, %v8740
    %v9381 = vpack.c.b16 %v8757, %v8741
    %v9382 = vpack.c.b16 %v8774, %v8758
    %v9383 = vpack.c.b16 %v8775, %v8759
    %v9384 = vpack.c.b16 %v8776, %v8760
    %v9385 = vpack.c.b16 %v8777, %v8761
    %v9386 = vpack.c.b16 %v8778, %v8762
    %v9387 = vpack.c.b16 %v8779, %v8763
    %v9388 = vpack.c.b16 %v8780, %v8764
    %v9389 = vpack.c.b16 %v8781, %v8765
    %v9390 = vpack.c.b16 %v8782, %v8766
    %v9391 = vpack.c.b16 %v8783, %v8767
    %v9392 = vpack.c.b16 %v8784, %v8768
    %v9393 = vpack.c.b16 %v8785, %v8769
    %v9394 = vpack.c.b16 %v8786, %v8770
    %v9395 = vpack.c.b16 %v8787, %v8771
    %v9396 = vpack.c.b16 %v8788, %v8772
    %v9397 = vpack.c.b16 %v8789, %v8773
    %v9398 = vpack.c.b16 %v8806, %v8790
    %v9399 = vpack.c.b16 %v8807, %v8791
    %v9400 = vpack.c.b16 %v8808, %v8792
    %v9401 = vpack.c.b16 %v8809, %v8793
    %v9402 = vpack.c.b16 %v8810, %v8794
    %v9403 = vpack.c.b16 %v8811, %v8795
    %v9404 = vpack.c.b16 %v8812, %v8796
    %v9405 = vpack.c.b16 %v8813, %v8797
    %v9406 = vpack.c.b16 %v8814, %v8798
    %v9407 = vpack.c.b16 %v8815, %v8799
    %v9408 = vpack.c.b16 %v8816, %v8800
    %v9409 = vpack.c.b16 %v8817, %v8801
    %v9410 = vpack.c.b16 %v8818, %v8802
    %v9411 = vpack.c.b16 %v8819, %v8803
    %v9412 = vpack.c.b16 %v8820, %v8804
    %v9413 = vpack.c.b16 %v8821, %v8805
    %v9414 = vpack.c.b16 %v8838, %v8822
    %v9415 = vpack.c.b16 %v8839, %v8823
    %v9416 = vpack.c.b16 %v8840, %v8824
    %v9417 = vpack.c.b16 %v8841, %v8825
    %v9418 = vpack.c.b16 %v8842, %v8826
    %v9419 = vpack.c.b16 %v8843, %v8827
    %v9420 = vpack.c.b16 %v8844, %v8828
    %v9421 = vpack.c.b16 %v8845, %v8829
    %v9422 = vpack.c.b16 %v8846, %v8830
    %v9423 = vpack.c.b16 %v8847, %v8831
    %v9424 = vpack.c.b16 %v8848, %v8832
    %v9425 = vpack.c.b16 %v8849, %v8833
    %v9426 = vpack.c.b16 %v8850, %v8834
    %v9427 = vpack.c.b16 %v8851, %v8835
    %v9428 = vpack.c.b16 %v8852, %v8836
    %v9429 = vpack.c.b16 %v8853, %v8837
    %v9430 = vpack.c.b16 %v8870, %v8854
    %v9431 = vpack.c.b16 %v8871, %v8855
    %v9432 = vpack.c.b16 %v8872, %v8856
    %v9433 = vpack.c.b16 %v8873, %v8857
    %v9434 = vpack.c.b16 %v8874, %v8858
    %v9435 = vpack.c.b16 %v8875, %v8859
    %v9436 = vpack.c.b16 %v8876, %v8860
    %v9437 = vpack.c.b16 %v8877, %v8861
    %v9438 = vpack.c.b16 %v8878, %v8862
    %v9439 = vpack.c.b16 %v8879, %v8863
    %v9440 = vpack.c.b16 %v8880, %v8864
    %v9441 = vpack.c.b16 %v8881, %v8865
    %v9442 = vpack.c.b16 %v8882, %v8866
    %v9443 = vpack.c.b16 %v8883, %v8867
    %v9444 = vpack.c.b16 %v8884, %v8868
    %v9445 = vpack.c.b16 %v8885, %v8869
    %v9446 = vpack.c.b16 %v8902, %v8886
    %v9447 = vpack.c.b16 %v8903, %v8887
    %v9448 = vpack.c.b16 %v8904, %v8888
    %v9449 = vpack.c.b16 %v8905, %v8889
    %v9450 = vpack.c.b16 %v8906, %v8890
    %v9451 = vpack.c.b16 %v8907, %v8891
    %v9452 = vpack.c.b16 %v8908, %v8892
    %v9453 = vpack.c.b16 %v8909, %v8893
    %v9454 = vpack.c.b16 %v8910, %v8894
    %v9455 = vpack.c.b16 %v8911, %v8895
    %v9456 = vpack.c.b16 %v8912, %v8896
    %v9457 = vpack.c.b16 %v8913, %v8897
    %v9458 = vpack.c.b16 %v8914, %v8898
    %v9459 = vpack.c.b16 %v8915, %v8899
    %v9460 = vpack.c.b16 %v8916, %v8900
    %v9461 = vpack.c.b16 %v8917, %v8901
    %v9462 = vpack.c.b16 %v8934, %v8918
    %v9463 = vpack.c.b16 %v8935, %v8919
    %v9464 = vpack.c.b16 %v8936, %v8920
    %v9465 = vpack.c.b16 %v8937, %v8921
    %v9466 = vpack.c.b16 %v8938, %v8922
    %v9467 = vpack.c.b16 %v8939, %v8923
    %v9468 = vpack.c.b16 %v8940, %v8924
    %v9469 = vpack.c.b16 %v8941, %v8925
    %v9470 = vpack.c.b16 %v8942, %v8926
    %v9471 = vpack.c.b16 %v8943, %v8927
    %v9472 = vpack.c.b16 %v8944, %v8928
    %v9473 = vpack.c.b16 %v8945, %v8929
    %v9474 = vpack.c.b16 %v8946, %v8930
    %v9475 = vpack.c.b16 %v8947, %v8931
    %v9476 = vpack.c.b16 %v8948, %v8932
    %v9477 = vpack.c.b16 %v8949, %v8933
    %v9478 = vpack.c.b16 %v8966, %v8950
    %v9479 = vpack.c.b16 %v8967, %v8951
    %v9480 = vpack.c.b16 %v8968, %v8952
    %v9481 = vpack.c.b16 %v8969, %v8953
    %v9482 = vpack.c.b16 %v8970, %v8954
    %v9483 = vpack.c.b16 %v8971, %v8955
    %v9484 = vpack.c.b16 %v8972, %v8956
    %v9485 = vpack.c.b16 %v8973, %v8957
    %v9486 = vpack.c.b16 %v8974, %v8958
    %v9487 = vpack.c.b16 %v8975, %v8959
    %v9488 = vpack.c.b16 %v8976, %v8960
    %v9489 = vpack.c.b16 %v8977, %v8961
    %v9490 = vpack.c.b16 %v8978, %v8962
    %v9491 = vpack.c.b16 %v8979, %v8963
    %v9492 = vpack.c.b16 %v8980, %v8964
    %v9493 = vpack.c.b16 %v8981, %v8965
    %10006 = vmatprep.subr.bf16.mxu0 %v8983
    %10007 = vmatpush1.bf16.msra.mxu0 %v8982
    %10008 = vmatprep.subr.bf16.mxu0 %v8999
    %10009 = vmatpush1.bf16.msra.mxu0 %v8998
    %10010 = vmatprep.subr.bf16.mxu0 %v9015
    %10011 = vmatpush1.bf16.msra.mxu0 %v9014
    %10012 = vmatprep.subr.bf16.mxu0 %v9031
    %10013 = vmatpush1.bf16.msra.mxu0 %v9030
    %10014 = vmatprep.subr.bf16.mxu0 %v9047
    %10015 = vmatpush1.bf16.msra.mxu0 %v9046
    %10016 = vmatprep.subr.bf16.mxu0 %v9063
    %10017 = vmatpush1.bf16.msra.mxu0 %v9062
    %10018 = vmatprep.subr.bf16.mxu0 %v9079
    %10019 = vmatpush1.bf16.msra.mxu0 %v9078
    %10020 = vmatprep.subr.bf16.mxu0 %v9095
    %10021 = vmatpush1.bf16.msra.mxu0 %v9094
    %10022 = vmatprep.subr.bf16.mxu0 %v9111
    %10023 = vmatpush1.bf16.msra.mxu0 %v9110
    %10024 = vmatprep.subr.bf16.mxu0 %v9127
    %10025 = vmatpush1.bf16.msra.mxu0 %v9126
    %10026 = vmatprep.subr.bf16.mxu0 %v9143
    %10027 = vmatpush1.bf16.msra.mxu0 %v9142
    %10028 = vmatprep.subr.bf16.mxu0 %v9159
    %10029 = vmatpush1.bf16.msra.mxu0 %v9158
    %10030 = vmatprep.subr.bf16.mxu0 %v9175
    %10031 = vmatpush1.bf16.msra.mxu0 %v9174
    %10032 = vmatprep.subr.bf16.mxu0 %v9191
    %10033 = vmatpush1.bf16.msra.mxu0 %v9190
    %10034 = vmatprep.subr.bf16.mxu0 %v9207
    %10035 = vmatpush1.bf16.msra.mxu0 %v9206
    %10036 = vmatprep.subr.bf16.mxu0 %v9223
    %10037 = vmatpush1.bf16.msra.mxu0 %v9222
    %10038 = vmatprep.mubr.bf16.mxu0 %v6847
    %10039 = vmatmul.mubr.bf16.gmra.mrb[0].mxu0 %v6846
    %v10040 = vpop.f32.mrb[0].mxu0
    %v10041 = vadd.f32 %v7369, %v10040
    %v10042 = vpop.f32.mrb[0].mxu0
    %v10043 = vadd.f32 %v7373, %v10042
    %v10044 = vpop.f32.mrb[0].mxu0
    %v10045 = vpop.f32.mrb[0].mxu0
    %10046 = vdwg.mxu0
    %10047 = vmatprep.subr.bf16.mxu0 %v9239
    %10048 = vmatpush1.bf16.msra.mxu0 %v9238
    %10049 = vmatprep.subr.bf16.mxu0 %v9255
    %10050 = vmatpush1.bf16.msra.mxu0 %v9254
    %10051 = vmatprep.subr.bf16.mxu0 %v9271
    %10052 = vmatpush1.bf16.msra.mxu0 %v9270
    %10053 = vmatprep.subr.bf16.mxu0 %v9287
    %10054 = vmatpush1.bf16.msra.mxu0 %v9286
    %10055 = vmatprep.subr.bf16.mxu0 %v9303
    %10056 = vmatpush1.bf16.msra.mxu0 %v9302
    %10057 = vmatprep.subr.bf16.mxu0 %v9319
    %10058 = vmatpush1.bf16.msra.mxu0 %v9318
    %10059 = vmatprep.subr.bf16.mxu0 %v9335
    %10060 = vmatpush1.bf16.msra.mxu0 %v9334
    %10061 = vmatprep.subr.bf16.mxu0 %v9351
    %10062 = vmatpush1.bf16.msra.mxu0 %v9350
    %10063 = vmatprep.subr.bf16.mxu0 %v9367
    %10064 = vmatpush1.bf16.msra.mxu0 %v9366
    %10065 = vmatprep.subr.bf16.mxu0 %v9383
    %10066 = vmatpush1.bf16.msra.mxu0 %v9382
    %10067 = vmatprep.subr.bf16.mxu0 %v9399
    %10068 = vmatpush1.bf16.msra.mxu0 %v9398
    %10069 = vmatprep.subr.bf16.mxu0 %v9415
    %10070 = vmatpush1.bf16.msra.mxu0 %v9414
    %10071 = vmatprep.subr.bf16.mxu0 %v9431
    %10072 = vmatpush1.bf16.msra.mxu0 %v9430
    %10073 = vmatprep.subr.bf16.mxu0 %v9447
    %10074 = vmatpush1.bf16.msra.mxu0 %v9446
    %10075 = vmatprep.subr.bf16.mxu0 %v9463
    %10076 = vmatpush1.bf16.msra.mxu0 %v9462
    %10077 = vmatprep.subr.bf16.mxu0 %v9479
    %10078 = vmatpush1.bf16.msra.mxu0 %v9478
    %10079 = vmatprep.mubr.bf16.mxu0 %v6849
    %10080 = vmatmul.mubr.bf16.gmra.mrb[0].mxu0 %v6848
    %v10081 = vpop.f32.mrb[0].mxu0
    %v10082 = vadd.f32 %v10041, %v10081
    %v10083 = vpop.f32.mrb[0].mxu0
    %v10084 = vadd.f32 %v10043, %v10083
    %v10085 = vpop.f32.mrb[0].mxu0
    %v10086 = vpop.f32.mrb[0].mxu0
    %10087 = vdwg.mxu0
    %10088 = vmatprep.subr.bf16.mxu0 %v8985
    %10089 = vmatpush1.bf16.msra.mxu0 %v8984
    %10090 = vmatprep.subr.bf16.mxu0 %v9001
    %10091 = vmatpush1.bf16.msra.mxu0 %v9000
    %10092 = vmatprep.subr.bf16.mxu0 %v9017
    %10093 = vmatpush1.bf16.msra.mxu0 %v9016
    %10094 = vmatprep.subr.bf16.mxu0 %v9033
    %10095 = vmatpush1.bf16.msra.mxu0 %v9032
    %10096 = vmatprep.subr.bf16.mxu0 %v9049
    %10097 = vmatpush1.bf16.msra.mxu0 %v9048
    %10098 = vmatprep.subr.bf16.mxu0 %v9065
    %10099 = vmatpush1.bf16.msra.mxu0 %v9064
    %10100 = vmatprep.subr.bf16.mxu0 %v9081
    %10101 = vmatpush1.bf16.msra.mxu0 %v9080
    %10102 = vmatprep.subr.bf16.mxu0 %v9097
    %10103 = vmatpush1.bf16.msra.mxu0 %v9096
    %10104 = vmatprep.subr.bf16.mxu0 %v9113
    %10105 = vmatpush1.bf16.msra.mxu0 %v9112
    %10106 = vmatprep.subr.bf16.mxu0 %v9129
    %10107 = vmatpush1.bf16.msra.mxu0 %v9128
    %10108 = vmatprep.subr.bf16.mxu0 %v9145
    %10109 = vmatpush1.bf16.msra.mxu0 %v9144
    %10110 = vmatprep.subr.bf16.mxu0 %v9161
    %10111 = vmatpush1.bf16.msra.mxu0 %v9160
    %10112 = vmatprep.subr.bf16.mxu0 %v9177
    %10113 = vmatpush1.bf16.msra.mxu0 %v9176
    %10114 = vmatprep.subr.bf16.mxu0 %v9193
    %10115 = vmatpush1.bf16.msra.mxu0 %v9192
    %10116 = vmatprep.subr.bf16.mxu0 %v9209
    %10117 = vmatpush1.bf16.msra.mxu0 %v9208
    %10118 = vmatprep.subr.bf16.mxu0 %v9225
    %10119 = vmatpush1.bf16.msra.mxu0 %v9224
    %10120 = vmatprep.mubr.bf16.mxu0 %v6847
    %10121 = vmatmul.mubr.bf16.gmra.mrb[0].mxu0 %v6846
    %v10122 = vpop.f32.mrb[0].mxu0
    %v10123 = vadd.f32 %v7377, %v10122
    %v10124 = vpop.f32.mrb[0].mxu0
    %v10125 = vadd.f32 %v7381, %v10124
    %v10126 = vpop.f32.mrb[0].mxu0
    %v10127 = vpop.f32.mrb[0].mxu0
    %10128 = vdwg.mxu0
    %10129 = vmatprep.subr.bf16.mxu0 %v9241
    %10130 = vmatpush1.bf16.msra.mxu0 %v9240
    %10131 = vmatprep.subr.bf16.mxu0 %v9257
    %10132 = vmatpush1.bf16.msra.mxu0 %v9256
    %10133 = vmatprep.subr.bf16.mxu0 %v9273
    %10134 = vmatpush1.bf16.msra.mxu0 %v9272
    %10135 = vmatprep.subr.bf16.mxu0 %v9289
    %10136 = vmatpush1.bf16.msra.mxu0 %v9288
    %10137 = vmatprep.subr.bf16.mxu0 %v9305
    %10138 = vmatpush1.bf16.msra.mxu0 %v9304
    %10139 = vmatprep.subr.bf16.mxu0 %v9321
    %10140 = vmatpush1.bf16.msra.mxu0 %v9320
    %10141 = vmatprep.subr.bf16.mxu0 %v9337
    %10142 = vmatpush1.bf16.msra.mxu0 %v9336
    %10143 = vmatprep.subr.bf16.mxu0 %v9353
    %10144 = vmatpush1.bf16.msra.mxu0 %v9352
    %10145 = vmatprep.subr.bf16.mxu0 %v9369
    %10146 = vmatpush1.bf16.msra.mxu0 %v9368
    %10147 = vmatprep.subr.bf16.mxu0 %v9385
    %10148 = vmatpush1.bf16.msra.mxu0 %v9384
    %10149 = vmatprep.subr.bf16.mxu0 %v9401
    %10150 = vmatpush1.bf16.msra.mxu0 %v9400
    %10151 = vmatprep.subr.bf16.mxu0 %v9417
    %10152 = vmatpush1.bf16.msra.mxu0 %v9416
    %10153 = vmatprep.subr.bf16.mxu0 %v9433
    %10154 = vmatpush1.bf16.msra.mxu0 %v9432
    %10155 = vmatprep.subr.bf16.mxu0 %v9449
    %10156 = vmatpush1.bf16.msra.mxu0 %v9448
    %10157 = vmatprep.subr.bf16.mxu0 %v9465
    %10158 = vmatpush1.bf16.msra.mxu0 %v9464
    %10159 = vmatprep.subr.bf16.mxu0 %v9481
    %10160 = vmatpush1.bf16.msra.mxu0 %v9480
    %10161 = vmatprep.mubr.bf16.mxu0 %v6849
    %10162 = vmatmul.mubr.bf16.gmra.mrb[0].mxu0 %v6848
    %v10163 = vpop.f32.mrb[0].mxu0
    %v10164 = vadd.f32 %v10123, %v10163
    %v10165 = vpop.f32.mrb[0].mxu0
    %v10166 = vadd.f32 %v10125, %v10165
    %v10167 = vpop.f32.mrb[0].mxu0
    %v10168 = vpop.f32.mrb[0].mxu0
    %10169 = vdwg.mxu0
    %10170 = vmatprep.subr.bf16.mxu0 %v8987
    %10171 = vmatpush1.bf16.msra.mxu0 %v8986
    %10172 = vmatprep.subr.bf16.mxu0 %v9003
    %10173 = vmatpush1.bf16.msra.mxu0 %v9002
    %10174 = vmatprep.subr.bf16.mxu0 %v9019
    %10175 = vmatpush1.bf16.msra.mxu0 %v9018
    %10176 = vmatprep.subr.bf16.mxu0 %v9035
    %10177 = vmatpush1.bf16.msra.mxu0 %v9034
    %10178 = vmatprep.subr.bf16.mxu0 %v9051
    %10179 = vmatpush1.bf16.msra.mxu0 %v9050
    %10180 = vmatprep.subr.bf16.mxu0 %v9067
    %10181 = vmatpush1.bf16.msra.mxu0 %v9066
    %10182 = vmatprep.subr.bf16.mxu0 %v9083
    %10183 = vmatpush1.bf16.msra.mxu0 %v9082
    %10184 = vmatprep.subr.bf16.mxu0 %v9099
    %10185 = vmatpush1.bf16.msra.mxu0 %v9098
    %10186 = vmatprep.subr.bf16.mxu0 %v9115
    %10187 = vmatpush1.bf16.msra.mxu0 %v9114
    %10188 = vmatprep.subr.bf16.mxu0 %v9131
    %10189 = vmatpush1.bf16.msra.mxu0 %v9130
    %10190 = vmatprep.subr.bf16.mxu0 %v9147
    %10191 = vmatpush1.bf16.msra.mxu0 %v9146
    %10192 = vmatprep.subr.bf16.mxu0 %v9163
    %10193 = vmatpush1.bf16.msra.mxu0 %v9162
    %10194 = vmatprep.subr.bf16.mxu0 %v9179
    %10195 = vmatpush1.bf16.msra.mxu0 %v9178
    %10196 = vmatprep.subr.bf16.mxu0 %v9195
    %10197 = vmatpush1.bf16.msra.mxu0 %v9194
    %10198 = vmatprep.subr.bf16.mxu0 %v9211
    %10199 = vmatpush1.bf16.msra.mxu0 %v9210
    %10200 = vmatprep.subr.bf16.mxu0 %v9227
    %10201 = vmatpush1.bf16.msra.mxu0 %v9226
    %10202 = vmatprep.mubr.bf16.mxu0 %v6847
    %10203 = vmatmul.mubr.bf16.gmra.mrb[0].mxu0 %v6846
    %v10204 = vpop.f32.mrb[0].mxu0
    %v10205 = vadd.f32 %v7385, %v10204
    %v10206 = vpop.f32.mrb[0].mxu0
    %v10207 = vadd.f32 %v7389, %v10206
    %v10208 = vpop.f32.mrb[0].mxu0
    %v10209 = vpop.f32.mrb[0].mxu0
    %10210 = vdwg.mxu0
    %10211 = vmatprep.subr.bf16.mxu0 %v9243
    %10212 = vmatpush1.bf16.msra.mxu0 %v9242
    %10213 = vmatprep.subr.bf16.mxu0 %v9259
    %10214 = vmatpush1.bf16.msra.mxu0 %v9258
    %10215 = vmatprep.subr.bf16.mxu0 %v9275
    %10216 = vmatpush1.bf16.msra.mxu0 %v9274
    %10217 = vmatprep.subr.bf16.mxu0 %v9291
    %10218 = vmatpush1.bf16.msra.mxu0 %v9290
    %10219 = vmatprep.subr.bf16.mxu0 %v9307
    %10220 = vmatpush1.bf16.msra.mxu0 %v9306
    %10221 = vmatprep.subr.bf16.mxu0 %v9323
    %10222 = vmatpush1.bf16.msra.mxu0 %v9322
    %10223 = vmatprep.subr.bf16.mxu0 %v9339
    %10224 = vmatpush1.bf16.msra.mxu0 %v9338
    %10225 = vmatprep.subr.bf16.mxu0 %v9355
    %10226 = vmatpush1.bf16.msra.mxu0 %v9354
    %10227 = vmatprep.subr.bf16.mxu0 %v9371
    %10228 = vmatpush1.bf16.msra.mxu0 %v9370
    %10229 = vmatprep.subr.bf16.mxu0 %v9387
    %10230 = vmatpush1.bf16.msra.mxu0 %v9386
    %10231 = vmatprep.subr.bf16.mxu0 %v9403
    %10232 = vmatpush1.bf16.msra.mxu0 %v9402
    %10233 = vmatprep.subr.bf16.mxu0 %v9419
    %10234 = vmatpush1.bf16.msra.mxu0 %v9418
    %10235 = vmatprep.subr.bf16.mxu0 %v9435
    %10236 = vmatpush1.bf16.msra.mxu0 %v9434
    %10237 = vmatprep.subr.bf16.mxu0 %v9451
    %10238 = vmatpush1.bf16.msra.mxu0 %v9450
    %10239 = vmatprep.subr.bf16.mxu0 %v9467
    %10240 = vmatpush1.bf16.msra.mxu0 %v9466
    %10241 = vmatprep.subr.bf16.mxu0 %v9483
    %10242 = vmatpush1.bf16.msra.mxu0 %v9482
    %10243 = vmatprep.mubr.bf16.mxu0 %v6849
    %10244 = vmatmul.mubr.bf16.gmra.mrb[0].mxu0 %v6848
    %v10245 = vpop.f32.mrb[0].mxu0
    %v10246 = vadd.f32 %v10205, %v10245
    %v10247 = vpop.f32.mrb[0].mxu0
    %v10248 = vadd.f32 %v10207, %v10247
    %v10249 = vpop.f32.mrb[0].mxu0
    %v10250 = vpop.f32.mrb[0].mxu0
    %10251 = vdwg.mxu0
    %10252 = vmatprep.subr.bf16.mxu0 %v8989
    %10253 = vmatpush1.bf16.msra.mxu0 %v8988
    %10254 = vmatprep.subr.bf16.mxu0 %v9005
    %10255 = vmatpush1.bf16.msra.mxu0 %v9004
    %10256 = vmatprep.subr.bf16.mxu0 %v9021
    %10257 = vmatpush1.bf16.msra.mxu0 %v9020
    %10258 = vmatprep.subr.bf16.mxu0 %v9037
    %10259 = vmatpush1.bf16.msra.mxu0 %v9036
    %10260 = vmatprep.subr.bf16.mxu0 %v9053
    %10261 = vmatpush1.bf16.msra.mxu0 %v9052
    %10262 = vmatprep.subr.bf16.mxu0 %v9069
    %10263 = vmatpush1.bf16.msra.mxu0 %v9068
    %10264 = vmatprep.subr.bf16.mxu0 %v9085
    %10265 = vmatpush1.bf16.msra.mxu0 %v9084
    %10266 = vmatprep.subr.bf16.mxu0 %v9101
    %10267 = vmatpush1.bf16.msra.mxu0 %v9100
    %10268 = vmatprep.subr.bf16.mxu0 %v9117
    %10269 = vmatpush1.bf16.msra.mxu0 %v9116
    %10270 = vmatprep.subr.bf16.mxu0 %v9133
    %10271 = vmatpush1.bf16.msra.mxu0 %v9132
    %10272 = vmatprep.subr.bf16.mxu0 %v9149
    %10273 = vmatpush1.bf16.msra.mxu0 %v9148
    %10274 = vmatprep.subr.bf16.mxu0 %v9165
    %10275 = vmatpush1.bf16.msra.mxu0 %v9164
    %10276 = vmatprep.subr.bf16.mxu0 %v9181
    %10277 = vmatpush1.bf16.msra.mxu0 %v9180
    %10278 = vmatprep.subr.bf16.mxu0 %v9197
    %10279 = vmatpush1.bf16.msra.mxu0 %v9196
    %10280 = vmatprep.subr.bf16.mxu0 %v9213
    %10281 = vmatpush1.bf16.msra.mxu0 %v9212
    %10282 = vmatprep.subr.bf16.mxu0 %v9229
    %10283 = vmatpush1.bf16.msra.mxu0 %v9228
    %10284 = vmatprep.mubr.bf16.mxu0 %v6847
    %10285 = vmatmul.mubr.bf16.gmra.mrb[0].mxu0 %v6846
    %v10286 = vpop.f32.mrb[0].mxu0
    %v10287 = vadd.f32 %v7393, %v10286
    %v10288 = vpop.f32.mrb[0].mxu0
    %v10289 = vadd.f32 %v7397, %v10288
    %v10290 = vpop.f32.mrb[0].mxu0
    %v10291 = vpop.f32.mrb[0].mxu0
    %10292 = vdwg.mxu0
    %10293 = vmatprep.subr.bf16.mxu0 %v9245
    %10294 = vmatpush1.bf16.msra.mxu0 %v9244
    %10295 = vmatprep.subr.bf16.mxu0 %v9261
    %10296 = vmatpush1.bf16.msra.mxu0 %v9260
    %10297 = vmatprep.subr.bf16.mxu0 %v9277
    %10298 = vmatpush1.bf16.msra.mxu0 %v9276
    %10299 = vmatprep.subr.bf16.mxu0 %v9293
    %10300 = vmatpush1.bf16.msra.mxu0 %v9292
    %10301 = vmatprep.subr.bf16.mxu0 %v9309
    %10302 = vmatpush1.bf16.msra.mxu0 %v9308
    %10303 = vmatprep.subr.bf16.mxu0 %v9325
    %10304 = vmatpush1.bf16.msra.mxu0 %v9324
    %10305 = vmatprep.subr.bf16.mxu0 %v9341
    %10306 = vmatpush1.bf16.msra.mxu0 %v9340
    %10307 = vmatprep.subr.bf16.mxu0 %v9357
    %10308 = vmatpush1.bf16.msra.mxu0 %v9356
    %10309 = vmatprep.subr.bf16.mxu0 %v9373
    %10310 = vmatpush1.bf16.msra.mxu0 %v9372
    %10311 = vmatprep.subr.bf16.mxu0 %v9389
    %10312 = vmatpush1.bf16.msra.mxu0 %v9388
    %10313 = vmatprep.subr.bf16.mxu0 %v9405
    %10314 = vmatpush1.bf16.msra.mxu0 %v9404
    %10315 = vmatprep.subr.bf16.mxu0 %v9421
    %10316 = vmatpush1.bf16.msra.mxu0 %v9420
    %10317 = vmatprep.subr.bf16.mxu0 %v9437
    %10318 = vmatpush1.bf16.msra.mxu0 %v9436
    %10319 = vmatprep.subr.bf16.mxu0 %v9453
    %10320 = vmatpush1.bf16.msra.mxu0 %v9452
    %10321 = vmatprep.subr.bf16.mxu0 %v9469
    %10322 = vmatpush1.bf16.msra.mxu0 %v9468
    %10323 = vmatprep.subr.bf16.mxu0 %v9485
    %10324 = vmatpush1.bf16.msra.mxu0 %v9484
    %10325 = vmatprep.mubr.bf16.mxu0 %v6849
    %10326 = vmatmul.mubr.bf16.gmra.mrb[0].mxu0 %v6848
    %v10327 = vpop.f32.mrb[0].mxu0
    %v10328 = vadd.f32 %v10287, %v10327
    %v10329 = vpop.f32.mrb[0].mxu0
    %v10330 = vadd.f32 %v10289, %v10329
    %v10331 = vpop.f32.mrb[0].mxu0
    %v10332 = vpop.f32.mrb[0].mxu0
    %10333 = vdwg.mxu0
    %10334 = vmatprep.subr.bf16.mxu0 %v8991
    %10335 = vmatpush1.bf16.msra.mxu0 %v8990
    %10336 = vmatprep.subr.bf16.mxu0 %v9007
    %10337 = vmatpush1.bf16.msra.mxu0 %v9006
    %10338 = vmatprep.subr.bf16.mxu0 %v9023
    %10339 = vmatpush1.bf16.msra.mxu0 %v9022
    %10340 = vmatprep.subr.bf16.mxu0 %v9039
    %10341 = vmatpush1.bf16.msra.mxu0 %v9038
    %10342 = vmatprep.subr.bf16.mxu0 %v9055
    %10343 = vmatpush1.bf16.msra.mxu0 %v9054
    %10344 = vmatprep.subr.bf16.mxu0 %v9071
    %10345 = vmatpush1.bf16.msra.mxu0 %v9070
    %10346 = vmatprep.subr.bf16.mxu0 %v9087
    %10347 = vmatpush1.bf16.msra.mxu0 %v9086
    %10348 = vmatprep.subr.bf16.mxu0 %v9103
    %10349 = vmatpush1.bf16.msra.mxu0 %v9102
    %10350 = vmatprep.subr.bf16.mxu0 %v9119
    %10351 = vmatpush1.bf16.msra.mxu0 %v9118
    %10352 = vmatprep.subr.bf16.mxu0 %v9135
    %10353 = vmatpush1.bf16.msra.mxu0 %v9134
    %10354 = vmatprep.subr.bf16.mxu0 %v9151
    %10355 = vmatpush1.bf16.msra.mxu0 %v9150
    %10356 = vmatprep.subr.bf16.mxu0 %v9167
    %10357 = vmatpush1.bf16.msra.mxu0 %v9166
    %10358 = vmatprep.subr.bf16.mxu0 %v9183
    %10359 = vmatpush1.bf16.msra.mxu0 %v9182
    %10360 = vmatprep.subr.bf16.mxu0 %v9199
    %10361 = vmatpush1.bf16.msra.mxu0 %v9198
    %10362 = vmatprep.subr.bf16.mxu0 %v9215
    %10363 = vmatpush1.bf16.msra.mxu0 %v9214
    %10364 = vmatprep.subr.bf16.mxu0 %v9231
    %10365 = vmatpush1.bf16.msra.mxu0 %v9230
    %10366 = vmatprep.mubr.bf16.mxu0 %v6847
    %10367 = vmatmul.mubr.bf16.gmra.mrb[0].mxu0 %v6846
    %v10368 = vpop.f32.mrb[0].mxu0
    %v10369 = vadd.f32 %v7401, %v10368
    %v10370 = vpop.f32.mrb[0].mxu0
    %v10371 = vadd.f32 %v7405, %v10370
    %v10372 = vpop.f32.mrb[0].mxu0
    %v10373 = vpop.f32.mrb[0].mxu0
    %10374 = vdwg.mxu0
    %10375 = vmatprep.subr.bf16.mxu0 %v9247
    %10376 = vmatpush1.bf16.msra.mxu0 %v9246
    %10377 = vmatprep.subr.bf16.mxu0 %v9263
    %10378 = vmatpush1.bf16.msra.mxu0 %v9262
    %10379 = vmatprep.subr.bf16.mxu0 %v9279
    %10380 = vmatpush1.bf16.msra.mxu0 %v9278
    %10381 = vmatprep.subr.bf16.mxu0 %v9295
    %10382 = vmatpush1.bf16.msra.mxu0 %v9294
    %10383 = vmatprep.subr.bf16.mxu0 %v9311
    %10384 = vmatpush1.bf16.msra.mxu0 %v9310
    %10385 = vmatprep.subr.bf16.mxu0 %v9327
    %10386 = vmatpush1.bf16.msra.mxu0 %v9326
    %10387 = vmatprep.subr.bf16.mxu0 %v9343
    %10388 = vmatpush1.bf16.msra.mxu0 %v9342
    %10389 = vmatprep.subr.bf16.mxu0 %v9359
    %10390 = vmatpush1.bf16.msra.mxu0 %v9358
    %10391 = vmatprep.subr.bf16.mxu0 %v9375
    %10392 = vmatpush1.bf16.msra.mxu0 %v9374
    %10393 = vmatprep.subr.bf16.mxu0 %v9391
    %10394 = vmatpush1.bf16.msra.mxu0 %v9390
    %10395 = vmatprep.subr.bf16.mxu0 %v9407
    %10396 = vmatpush1.bf16.msra.mxu0 %v9406
    %10397 = vmatprep.subr.bf16.mxu0 %v9423
    %10398 = vmatpush1.bf16.msra.mxu0 %v9422
    %10399 = vmatprep.subr.bf16.mxu0 %v9439
    %10400 = vmatpush1.bf16.msra.mxu0 %v9438
    %10401 = vmatprep.subr.bf16.mxu0 %v9455
    %10402 = vmatpush1.bf16.msra.mxu0 %v9454
    %10403 = vmatprep.subr.bf16.mxu0 %v9471
    %10404 = vmatpush1.bf16.msra.mxu0 %v9470
    %10405 = vmatprep.subr.bf16.mxu0 %v9487
    %10406 = vmatpush1.bf16.msra.mxu0 %v9486
    %10407 = vmatprep.mubr.bf16.mxu0 %v6849
    %10408 = vmatmul.mubr.bf16.gmra.mrb[0].mxu0 %v6848
    %v10409 = vpop.f32.mrb[0].mxu0
    %v10410 = vadd.f32 %v10369, %v10409
    %v10411 = vpop.f32.mrb[0].mxu0
    %v10412 = vadd.f32 %v10371, %v10411
    %v10413 = vpop.f32.mrb[0].mxu0
    %v10414 = vpop.f32.mrb[0].mxu0
    %10415 = vdwg.mxu0
    %10416 = vmatprep.subr.bf16.mxu0 %v8993
    %10417 = vmatpush1.bf16.msra.mxu0 %v8992
    %10418 = vmatprep.subr.bf16.mxu0 %v9009
    %10419 = vmatpush1.bf16.msra.mxu0 %v9008
    %10420 = vmatprep.subr.bf16.mxu0 %v9025
    %10421 = vmatpush1.bf16.msra.mxu0 %v9024
    %10422 = vmatprep.subr.bf16.mxu0 %v9041
    %10423 = vmatpush1.bf16.msra.mxu0 %v9040
    %10424 = vmatprep.subr.bf16.mxu0 %v9057
    %10425 = vmatpush1.bf16.msra.mxu0 %v9056
    %10426 = vmatprep.subr.bf16.mxu0 %v9073
    %10427 = vmatpush1.bf16.msra.mxu0 %v9072
    %10428 = vmatprep.subr.bf16.mxu0 %v9089
    %10429 = vmatpush1.bf16.msra.mxu0 %v9088
    %10430 = vmatprep.subr.bf16.mxu0 %v9105
    %10431 = vmatpush1.bf16.msra.mxu0 %v9104
    %10432 = vmatprep.subr.bf16.mxu0 %v9121
    %10433 = vmatpush1.bf16.msra.mxu0 %v9120
    %10434 = vmatprep.subr.bf16.mxu0 %v9137
    %10435 = vmatpush1.bf16.msra.mxu0 %v9136
    %10436 = vmatprep.subr.bf16.mxu0 %v9153
    %10437 = vmatpush1.bf16.msra.mxu0 %v9152
    %10438 = vmatprep.subr.bf16.mxu0 %v9169
    %10439 = vmatpush1.bf16.msra.mxu0 %v9168
    %10440 = vmatprep.subr.bf16.mxu0 %v9185
    %10441 = vmatpush1.bf16.msra.mxu0 %v9184
    %10442 = vmatprep.subr.bf16.mxu0 %v9201
    %10443 = vmatpush1.bf16.msra.mxu0 %v9200
    %10444 = vmatprep.subr.bf16.mxu0 %v9217
    %10445 = vmatpush1.bf16.msra.mxu0 %v9216
    %10446 = vmatprep.subr.bf16.mxu0 %v9233
    %10447 = vmatpush1.bf16.msra.mxu0 %v9232
    %10448 = vmatprep.mubr.bf16.mxu0 %v6847
    %10449 = vmatmul.mubr.bf16.gmra.mrb[0].mxu0 %v6846
    %v10450 = vpop.f32.mrb[0].mxu0
    %v10451 = vadd.f32 %v7409, %v10450
    %v10452 = vpop.f32.mrb[0].mxu0
    %v10453 = vadd.f32 %v7413, %v10452
    %v10454 = vpop.f32.mrb[0].mxu0
    %v10455 = vpop.f32.mrb[0].mxu0
    %10456 = vdwg.mxu0
    %10457 = vmatprep.subr.bf16.mxu0 %v9249
    %10458 = vmatpush1.bf16.msra.mxu0 %v9248
    %10459 = vmatprep.subr.bf16.mxu0 %v9265
    %10460 = vmatpush1.bf16.msra.mxu0 %v9264
    %10461 = vmatprep.subr.bf16.mxu0 %v9281
    %10462 = vmatpush1.bf16.msra.mxu0 %v9280
    %10463 = vmatprep.subr.bf16.mxu0 %v9297
    %10464 = vmatpush1.bf16.msra.mxu0 %v9296
    %10465 = vmatprep.subr.bf16.mxu0 %v9313
    %10466 = vmatpush1.bf16.msra.mxu0 %v9312
    %10467 = vmatprep.subr.bf16.mxu0 %v9329
    %10468 = vmatpush1.bf16.msra.mxu0 %v9328
    %10469 = vmatprep.subr.bf16.mxu0 %v9345
    %10470 = vmatpush1.bf16.msra.mxu0 %v9344
    %10471 = vmatprep.subr.bf16.mxu0 %v9361
    %10472 = vmatpush1.bf16.msra.mxu0 %v9360
    %10473 = vmatprep.subr.bf16.mxu0 %v9377
    %10474 = vmatpush1.bf16.msra.mxu0 %v9376
    %10475 = vmatprep.subr.bf16.mxu0 %v9393
    %10476 = vmatpush1.bf16.msra.mxu0 %v9392
    %10477 = vmatprep.subr.bf16.mxu0 %v9409
    %10478 = vmatpush1.bf16.msra.mxu0 %v9408
    %10479 = vmatprep.subr.bf16.mxu0 %v9425
    %10480 = vmatpush1.bf16.msra.mxu0 %v9424
    %10481 = vmatprep.subr.bf16.mxu0 %v9441
    %10482 = vmatpush1.bf16.msra.mxu0 %v9440
    %10483 = vmatprep.subr.bf16.mxu0 %v9457
    %10484 = vmatpush1.bf16.msra.mxu0 %v9456
    %10485 = vmatprep.subr.bf16.mxu0 %v9473
    %10486 = vmatpush1.bf16.msra.mxu0 %v9472
    %10487 = vmatprep.subr.bf16.mxu0 %v9489
    %10488 = vmatpush1.bf16.msra.mxu0 %v9488
    %10489 = vmatprep.mubr.bf16.mxu0 %v6849
    %10490 = vmatmul.mubr.bf16.gmra.mrb[0].mxu0 %v6848
    %v10491 = vpop.f32.mrb[0].mxu0
    %v10492 = vadd.f32 %v10451, %v10491
    %v10493 = vpop.f32.mrb[0].mxu0
    %v10494 = vadd.f32 %v10453, %v10493
    %v10495 = vpop.f32.mrb[0].mxu0
    %v10496 = vpop.f32.mrb[0].mxu0
    %10497 = vdwg.mxu0
    %10498 = vmatprep.subr.bf16.mxu0 %v8995
    %10499 = vmatpush1.bf16.msra.mxu0 %v8994
    %10500 = vmatprep.subr.bf16.mxu0 %v9011
    %10501 = vmatpush1.bf16.msra.mxu0 %v9010
    %10502 = vmatprep.subr.bf16.mxu0 %v9027
    %10503 = vmatpush1.bf16.msra.mxu0 %v9026
    %10504 = vmatprep.subr.bf16.mxu0 %v9043
    %10505 = vmatpush1.bf16.msra.mxu0 %v9042
    %10506 = vmatprep.subr.bf16.mxu0 %v9059
    %10507 = vmatpush1.bf16.msra.mxu0 %v9058
    %10508 = vmatprep.subr.bf16.mxu0 %v9075
    %10509 = vmatpush1.bf16.msra.mxu0 %v9074
    %10510 = vmatprep.subr.bf16.mxu0 %v9091
    %10511 = vmatpush1.bf16.msra.mxu0 %v9090
    %10512 = vmatprep.subr.bf16.mxu0 %v9107
    %10513 = vmatpush1.bf16.msra.mxu0 %v9106
    %10514 = vmatprep.subr.bf16.mxu0 %v9123
    %10515 = vmatpush1.bf16.msra.mxu0 %v9122
    %10516 = vmatprep.subr.bf16.mxu0 %v9139
    %10517 = vmatpush1.bf16.msra.mxu0 %v9138
    %10518 = vmatprep.subr.bf16.mxu0 %v9155
    %10519 = vmatpush1.bf16.msra.mxu0 %v9154
    %10520 = vmatprep.subr.bf16.mxu0 %v9171
    %10521 = vmatpush1.bf16.msra.mxu0 %v9170
    %10522 = vmatprep.subr.bf16.mxu0 %v9187
    %10523 = vmatpush1.bf16.msra.mxu0 %v9186
    %10524 = vmatprep.subr.bf16.mxu0 %v9203
    %10525 = vmatpush1.bf16.msra.mxu0 %v9202
    %10526 = vmatprep.subr.bf16.mxu0 %v9219
    %10527 = vmatpush1.bf16.msra.mxu0 %v9218
    %10528 = vmatprep.subr.bf16.mxu0 %v9235
    %10529 = vmatpush1.bf16.msra.mxu0 %v9234
    %10530 = vmatprep.mubr.bf16.mxu0 %v6847
    %10531 = vmatmul.mubr.bf16.gmra.mrb[0].mxu0 %v6846
    %v10532 = vpop.f32.mrb[0].mxu0
    %v10533 = vadd.f32 %v7417, %v10532
    %v10534 = vpop.f32.mrb[0].mxu0
    %v10535 = vadd.f32 %v7421, %v10534
    %v10536 = vpop.f32.mrb[0].mxu0
    %v10537 = vpop.f32.mrb[0].mxu0
    %10538 = vdwg.mxu0
    %10539 = vmatprep.subr.bf16.mxu0 %v9251
    %10540 = vmatpush1.bf16.msra.mxu0 %v9250
    %10541 = vmatprep.subr.bf16.mxu0 %v9267
    %10542 = vmatpush1.bf16.msra.mxu0 %v9266
    %10543 = vmatprep.subr.bf16.mxu0 %v9283
    %10544 = vmatpush1.bf16.msra.mxu0 %v9282
    %10545 = vmatprep.subr.bf16.mxu0 %v9299
    %10546 = vmatpush1.bf16.msra.mxu0 %v9298
    %10547 = vmatprep.subr.bf16.mxu0 %v9315
    %10548 = vmatpush1.bf16.msra.mxu0 %v9314
    %10549 = vmatprep.subr.bf16.mxu0 %v9331
    %10550 = vmatpush1.bf16.msra.mxu0 %v9330
    %10551 = vmatprep.subr.bf16.mxu0 %v9347
    %10552 = vmatpush1.bf16.msra.mxu0 %v9346
    %10553 = vmatprep.subr.bf16.mxu0 %v9363
    %10554 = vmatpush1.bf16.msra.mxu0 %v9362
    %10555 = vmatprep.subr.bf16.mxu0 %v9379
    %10556 = vmatpush1.bf16.msra.mxu0 %v9378
    %10557 = vmatprep.subr.bf16.mxu0 %v9395
    %10558 = vmatpush1.bf16.msra.mxu0 %v9394
    %10559 = vmatprep.subr.bf16.mxu0 %v9411
    %10560 = vmatpush1.bf16.msra.mxu0 %v9410
    %10561 = vmatprep.subr.bf16.mxu0 %v9427
    %10562 = vmatpush1.bf16.msra.mxu0 %v9426
    %10563 = vmatprep.subr.bf16.mxu0 %v9443
    %10564 = vmatpush1.bf16.msra.mxu0 %v9442
    %10565 = vmatprep.subr.bf16.mxu0 %v9459
    %10566 = vmatpush1.bf16.msra.mxu0 %v9458
    %10567 = vmatprep.subr.bf16.mxu0 %v9475
    %10568 = vmatpush1.bf16.msra.mxu0 %v9474
    %10569 = vmatprep.subr.bf16.mxu0 %v9491
    %10570 = vmatpush1.bf16.msra.mxu0 %v9490
    %10571 = vmatprep.mubr.bf16.mxu0 %v6849
    %10572 = vmatmul.mubr.bf16.gmra.mrb[0].mxu0 %v6848
    %v10573 = vpop.f32.mrb[0].mxu0
    %v10574 = vadd.f32 %v10533, %v10573
    %v10575 = vpop.f32.mrb[0].mxu0
    %v10576 = vadd.f32 %v10535, %v10575
    %v10577 = vpop.f32.mrb[0].mxu0
    %v10578 = vpop.f32.mrb[0].mxu0
    %10579 = vdwg.mxu0
    %10580 = vmatprep.subr.bf16.mxu0 %v8997
    %10581 = vmatpush1.bf16.msra.mxu0 %v8996
    %10582 = vmatprep.subr.bf16.mxu0 %v9013
    %10583 = vmatpush1.bf16.msra.mxu0 %v9012
    %10584 = vmatprep.subr.bf16.mxu0 %v9029
    %10585 = vmatpush1.bf16.msra.mxu0 %v9028
    %10586 = vmatprep.subr.bf16.mxu0 %v9045
    %10587 = vmatpush1.bf16.msra.mxu0 %v9044
    %10588 = vmatprep.subr.bf16.mxu0 %v9061
    %10589 = vmatpush1.bf16.msra.mxu0 %v9060
    %10590 = vmatprep.subr.bf16.mxu0 %v9077
    %10591 = vmatpush1.bf16.msra.mxu0 %v9076
    %10592 = vmatprep.subr.bf16.mxu0 %v9093
    %10593 = vmatpush1.bf16.msra.mxu0 %v9092
    %10594 = vmatprep.subr.bf16.mxu0 %v9109
    %10595 = vmatpush1.bf16.msra.mxu0 %v9108
    %10596 = vmatprep.subr.bf16.mxu0 %v9125
    %10597 = vmatpush1.bf16.msra.mxu0 %v9124
    %10598 = vmatprep.subr.bf16.mxu0 %v9141
    %10599 = vmatpush1.bf16.msra.mxu0 %v9140
    %10600 = vmatprep.subr.bf16.mxu0 %v9157
    %10601 = vmatpush1.bf16.msra.mxu0 %v9156
    %10602 = vmatprep.subr.bf16.mxu0 %v9173
    %10603 = vmatpush1.bf16.msra.mxu0 %v9172
    %10604 = vmatprep.subr.bf16.mxu0 %v9189
    %10605 = vmatpush1.bf16.msra.mxu0 %v9188
    %10606 = vmatprep.subr.bf16.mxu0 %v9205
    %10607 = vmatpush1.bf16.msra.mxu0 %v9204
    %10608 = vmatprep.subr.bf16.mxu0 %v9221
    %10609 = vmatpush1.bf16.msra.mxu0 %v9220
    %10610 = vmatprep.subr.bf16.mxu0 %v9237
    %10611 = vmatpush1.bf16.msra.mxu0 %v9236
    %10612 = vmatprep.mubr.bf16.mxu0 %v6847
    %10613 = vmatmul.mubr.bf16.gmra.mrb[0].mxu0 %v6846
    %v10614 = vpop.f32.mrb[0].mxu0
    %v10615 = vadd.f32 %v7425, %v10614
    %v10616 = vpop.f32.mrb[0].mxu0
    %v10617 = vadd.f32 %v7429, %v10616
    %v10618 = vpop.f32.mrb[0].mxu0
    %v10619 = vpop.f32.mrb[0].mxu0
    %10620 = vdwg.mxu0
    %10621 = vmatprep.subr.bf16.mxu0 %v9253
    %10622 = vmatpush1.bf16.msra.mxu0 %v9252
    %10623 = vmatprep.subr.bf16.mxu0 %v9269
    %10624 = vmatpush1.bf16.msra.mxu0 %v9268
    %10625 = vmatprep.subr.bf16.mxu0 %v9285
    %10626 = vmatpush1.bf16.msra.mxu0 %v9284
    %10627 = vmatprep.subr.bf16.mxu0 %v9301
    %10628 = vmatpush1.bf16.msra.mxu0 %v9300
    %10629 = vmatprep.subr.bf16.mxu0 %v9317
    %10630 = vmatpush1.bf16.msra.mxu0 %v9316
    %10631 = vmatprep.subr.bf16.mxu0 %v9333
    %10632 = vmatpush1.bf16.msra.mxu0 %v9332
    %10633 = vmatprep.subr.bf16.mxu0 %v9349
    %10634 = vmatpush1.bf16.msra.mxu0 %v9348
    %10635 = vmatprep.subr.bf16.mxu0 %v9365
    %10636 = vmatpush1.bf16.msra.mxu0 %v9364
    %10637 = vmatprep.subr.bf16.mxu0 %v9381
    %10638 = vmatpush1.bf16.msra.mxu0 %v9380
    %10639 = vmatprep.subr.bf16.mxu0 %v9397
    %10640 = vmatpush1.bf16.msra.mxu0 %v9396
    %10641 = vmatprep.subr.bf16.mxu0 %v9413
    %10642 = vmatpush1.bf16.msra.mxu0 %v9412
    %10643 = vmatprep.subr.bf16.mxu0 %v9429
    %10644 = vmatpush1.bf16.msra.mxu0 %v9428
    %10645 = vmatprep.subr.bf16.mxu0 %v9445
    %10646 = vmatpush1.bf16.msra.mxu0 %v9444
    %10647 = vmatprep.subr.bf16.mxu0 %v9461
    %10648 = vmatpush1.bf16.msra.mxu0 %v9460
    %10649 = vmatprep.subr.bf16.mxu0 %v9477
    %10650 = vmatpush1.bf16.msra.mxu0 %v9476
    %10651 = vmatprep.subr.bf16.mxu0 %v9493
    %10652 = vmatpush1.bf16.msra.mxu0 %v9492
    %10653 = vmatprep.mubr.bf16.mxu0 %v6849
    %10654 = vmatmul.mubr.bf16.gmra.mrb[0].mxu0 %v6848
    %v10655 = vpop.f32.mrb[0].mxu0
    %v10656 = vadd.f32 %v10615, %v10655
    %v10657 = vpop.f32.mrb[0].mxu0
    %v10658 = vadd.f32 %v10617, %v10657
    %v10659 = vpop.f32.mrb[0].mxu0
    %v10660 = vpop.f32.mrb[0].mxu0
    %10661 = vdwg.mxu0
    %v10662 = vmax.f32 %v10082, 0.0
    %v10663 = vmax.f32 %v10084, 0.0
    %v10664 = vmax.f32 %v10164, 0.0
    %v10665 = vmax.f32 %v10166, 0.0
    %v10666 = vmax.f32 %v10246, 0.0
    %v10667 = vmax.f32 %v10248, 0.0
    %v10668 = vmax.f32 %v10328, 0.0
    %v10669 = vmax.f32 %v10330, 0.0
    %v10670 = vmax.f32 %v10410, 0.0
    %v10671 = vmax.f32 %v10412, 0.0
    %v10672 = vmax.f32 %v10492, 0.0
    %v10673 = vmax.f32 %v10494, 0.0
    %v10674 = vmax.f32 %v10574, 0.0
    %v10675 = vmax.f32 %v10576, 0.0
    %v10676 = vmax.f32 %v10656, 0.0
    %v10677 = vmax.f32 %v10658, 0.0
    %v10678 = vpack.c.bf16 %v10662, %v10662
    %v10679 = vpack.c.bf16 %v10663, %v10663
    %v10680 = vpack.c.bf16 %v10664, %v10664
    %v10681 = vpack.c.bf16 %v10665, %v10665
    %v10682 = vpack.c.bf16 %v10666, %v10666
    %v10683 = vpack.c.bf16 %v10667, %v10667
    %v10684 = vpack.c.bf16 %v10668, %v10668
    %v10685 = vpack.c.bf16 %v10669, %v10669
    %v10686 = vpack.c.bf16 %v10670, %v10670
    %v10687 = vpack.c.bf16 %v10671, %v10671
    %v10688 = vpack.c.bf16 %v10672, %v10672
    %v10689 = vpack.c.bf16 %v10673, %v10673
    %v10690 = vpack.c.bf16 %v10674, %v10674
    %v10691 = vpack.c.bf16 %v10675, %v10675
    %v10692 = vpack.c.bf16 %v10676, %v10676
    %v10693 = vpack.c.bf16 %v10677, %v10677
    %v10694 = vld [vmem:[#allocation24] sm:$0xff]
    %v10695 = vld [vmem:[#allocation24 + $0x8] sm:$0xff]
    %v10696 = vld [vmem:[#allocation24 + $0x10] sm:$0xff]
    %v10697 = vld [vmem:[#allocation24 + $0x18] sm:$0xff]
    %v10698 = vld [vmem:[#allocation24 + $0x20] sm:$0xff]
    %v10699 = vld [vmem:[#allocation24 + $0x28] sm:$0xff]
    %v10700 = vld [vmem:[#allocation24 + $0x30] sm:$0xff]
    %v10701 = vld [vmem:[#allocation24 + $0x38] sm:$0xff]
    %v10702 = vld [vmem:[#allocation24 + $0x40] sm:$0xff]
    %v10703 = vld [vmem:[#allocation24 + $0x48] sm:$0xff]
    %v10704 = vld [vmem:[#allocation24 + $0x50] sm:$0xff]
    %v10705 = vld [vmem:[#allocation24 + $0x58] sm:$0xff]
    %v10706 = vld [vmem:[#allocation24 + $0x60] sm:$0xff]
    %v10707 = vld [vmem:[#allocation24 + $0x68] sm:$0xff]
    %v10708 = vld [vmem:[#allocation24 + $0x70] sm:$0xff]
    %v10709 = vld [vmem:[#allocation24 + $0x78] sm:$0xff]
    %v10710 = vld [vmem:[#allocation24 + $0x80] sm:$0xff]
    %v10711 = vld [vmem:[#allocation24 + $0x88] sm:$0xff]
    %v10712 = vld [vmem:[#allocation24 + $0x90] sm:$0xff]
    %v10713 = vld [vmem:[#allocation24 + $0x98] sm:$0xff]
    %v10714 = vld [vmem:[#allocation24 + $0xa0] sm:$0xff]
    %v10715 = vld [vmem:[#allocation24 + $0xa8] sm:$0xff]
    %v10716 = vld [vmem:[#allocation24 + $0xb0] sm:$0xff]
    %v10717 = vld [vmem:[#allocation24 + $0xb8] sm:$0xff]
    %v10718 = vld [vmem:[#allocation24 + $0xc0] sm:$0xff]
    %v10719 = vld [vmem:[#allocation24 + $0xc8] sm:$0xff]
    %v10720 = vld [vmem:[#allocation24 + $0xd0] sm:$0xff]
    %v10721 = vld [vmem:[#allocation24 + $0xd8] sm:$0xff]
    %v10722 = vld [vmem:[#allocation24 + $0xe0] sm:$0xff]
    %v10723 = vld [vmem:[#allocation24 + $0xe8] sm:$0xff]
    %v10724 = vld [vmem:[#allocation24 + $0xf0] sm:$0xff]
    %v10725 = vld [vmem:[#allocation24 + $0xf8] sm:$0xff]
    %v10726 = vld [vmem:[#allocation24 + $0x100] sm:$0xff]
    %v10727 = vld [vmem:[#allocation24 + $0x108] sm:$0xff]
    %v10728 = vld [vmem:[#allocation24 + $0x110] sm:$0xff]
    %v10729 = vld [vmem:[#allocation24 + $0x118] sm:$0xff]
    %v10730 = vld [vmem:[#allocation24 + $0x120] sm:$0xff]
    %v10731 = vld [vmem:[#allocation24 + $0x128] sm:$0xff]
    %v10732 = vld [vmem:[#allocation24 + $0x130] sm:$0xff]
    %v10733 = vld [vmem:[#allocation24 + $0x138] sm:$0xff]
    %v10734 = vld [vmem:[#allocation24 + $0x140] sm:$0xff]
    %v10735 = vld [vmem:[#allocation24 + $0x148] sm:$0xff]
    %v10736 = vld [vmem:[#allocation24 + $0x150] sm:$0xff]
    %v10737 = vld [vmem:[#allocation24 + $0x158] sm:$0xff]
    %v10738 = vld [vmem:[#allocation24 + $0x160] sm:$0xff]
    %v10739 = vld [vmem:[#allocation24 + $0x168] sm:$0xff]
    %v10740 = vld [vmem:[#allocation24 + $0x170] sm:$0xff]
    %v10741 = vld [vmem:[#allocation24 + $0x178] sm:$0xff]
    %v10742 = vld [vmem:[#allocation24 + $0x180] sm:$0xff]
    %v10743 = vld [vmem:[#allocation24 + $0x188] sm:$0xff]
    %v10744 = vld [vmem:[#allocation24 + $0x190] sm:$0xff]
    %v10745 = vld [vmem:[#allocation24 + $0x198] sm:$0xff]
    %v10746 = vld [vmem:[#allocation24 + $0x1a0] sm:$0xff]
    %v10747 = vld [vmem:[#allocation24 + $0x1a8] sm:$0xff]
    %v10748 = vld [vmem:[#allocation24 + $0x1b0] sm:$0xff]
    %v10749 = vld [vmem:[#allocation24 + $0x1b8] sm:$0xff]
    %v10750 = vld [vmem:[#allocation24 + $0x1c0] sm:$0xff]
    %v10751 = vld [vmem:[#allocation24 + $0x1c8] sm:$0xff]
    %v10752 = vld [vmem:[#allocation24 + $0x1d0] sm:$0xff]
    %v10753 = vld [vmem:[#allocation24 + $0x1d8] sm:$0xff]
    %v10754 = vld [vmem:[#allocation24 + $0x1e0] sm:$0xff]
    %v10755 = vld [vmem:[#allocation24 + $0x1e8] sm:$0xff]
    %v10756 = vld [vmem:[#allocation24 + $0x1f0] sm:$0xff]
    %v10757 = vld [vmem:[#allocation24 + $0x1f8] sm:$0xff]
    %v10758 = vld [vmem:[#allocation24 + $0x200] sm:$0xff]
    %v10759 = vld [vmem:[#allocation24 + $0x208] sm:$0xff]
    %v10760 = vld [vmem:[#allocation24 + $0x210] sm:$0xff]
    %v10761 = vld [vmem:[#allocation24 + $0x218] sm:$0xff]
    %v10762 = vld [vmem:[#allocation24 + $0x220] sm:$0xff]
    %v10763 = vld [vmem:[#allocation24 + $0x228] sm:$0xff]
    %v10764 = vld [vmem:[#allocation24 + $0x230] sm:$0xff]
    %v10765 = vld [vmem:[#allocation24 + $0x238] sm:$0xff]
    %v10766 = vld [vmem:[#allocation24 + $0x240] sm:$0xff]
    %v10767 = vld [vmem:[#allocation24 + $0x248] sm:$0xff]
    %v10768 = vld [vmem:[#allocation24 + $0x250] sm:$0xff]
    %v10769 = vld [vmem:[#allocation24 + $0x258] sm:$0xff]
    %v10770 = vld [vmem:[#allocation24 + $0x260] sm:$0xff]
    %v10771 = vld [vmem:[#allocation24 + $0x268] sm:$0xff]
    %v10772 = vld [vmem:[#allocation24 + $0x270] sm:$0xff]
    %v10773 = vld [vmem:[#allocation24 + $0x278] sm:$0xff]
    %v10774 = vld [vmem:[#allocation24 + $0x280] sm:$0xff]
    %v10775 = vld [vmem:[#allocation24 + $0x288] sm:$0xff]
    %v10776 = vld [vmem:[#allocation24 + $0x290] sm:$0xff]
    %v10777 = vld [vmem:[#allocation24 + $0x298] sm:$0xff]
    %v10778 = vld [vmem:[#allocation24 + $0x2a0] sm:$0xff]
    %v10779 = vld [vmem:[#allocation24 + $0x2a8] sm:$0xff]
    %v10780 = vld [vmem:[#allocation24 + $0x2b0] sm:$0xff]
    %v10781 = vld [vmem:[#allocation24 + $0x2b8] sm:$0xff]
    %v10782 = vld [vmem:[#allocation24 + $0x2c0] sm:$0xff]
    %v10783 = vld [vmem:[#allocation24 + $0x2c8] sm:$0xff]
    %v10784 = vld [vmem:[#allocation24 + $0x2d0] sm:$0xff]
    %v10785 = vld [vmem:[#allocation24 + $0x2d8] sm:$0xff]
    %v10786 = vld [vmem:[#allocation24 + $0x2e0] sm:$0xff]
    %v10787 = vld [vmem:[#allocation24 + $0x2e8] sm:$0xff]
    %v10788 = vld [vmem:[#allocation24 + $0x2f0] sm:$0xff]
    %v10789 = vld [vmem:[#allocation24 + $0x2f8] sm:$0xff]
    %v10790 = vld [vmem:[#allocation24 + $0x300] sm:$0xff]
    %v10791 = vld [vmem:[#allocation24 + $0x308] sm:$0xff]
    %v10792 = vld [vmem:[#allocation24 + $0x310] sm:$0xff]
    %v10793 = vld [vmem:[#allocation24 + $0x318] sm:$0xff]
    %v10794 = vld [vmem:[#allocation24 + $0x320] sm:$0xff]
    %v10795 = vld [vmem:[#allocation24 + $0x328] sm:$0xff]
    %v10796 = vld [vmem:[#allocation24 + $0x330] sm:$0xff]
    %v10797 = vld [vmem:[#allocation24 + $0x338] sm:$0xff]
    %v10798 = vld [vmem:[#allocation24 + $0x340] sm:$0xff]
    %v10799 = vld [vmem:[#allocation24 + $0x348] sm:$0xff]
    %v10800 = vld [vmem:[#allocation24 + $0x350] sm:$0xff]
    %v10801 = vld [vmem:[#allocation24 + $0x358] sm:$0xff]
    %v10802 = vld [vmem:[#allocation24 + $0x360] sm:$0xff]
    %v10803 = vld [vmem:[#allocation24 + $0x368] sm:$0xff]
    %v10804 = vld [vmem:[#allocation24 + $0x370] sm:$0xff]
    %v10805 = vld [vmem:[#allocation24 + $0x378] sm:$0xff]
    %v10806 = vld [vmem:[#allocation24 + $0x380] sm:$0xff]
    %v10807 = vld [vmem:[#allocation24 + $0x388] sm:$0xff]
    %v10808 = vld [vmem:[#allocation24 + $0x390] sm:$0xff]
    %v10809 = vld [vmem:[#allocation24 + $0x398] sm:$0xff]
    %v10810 = vld [vmem:[#allocation24 + $0x3a0] sm:$0xff]
    %v10811 = vld [vmem:[#allocation24 + $0x3a8] sm:$0xff]
    %v10812 = vld [vmem:[#allocation24 + $0x3b0] sm:$0xff]
    %v10813 = vld [vmem:[#allocation24 + $0x3b8] sm:$0xff]
    %v10814 = vld [vmem:[#allocation24 + $0x3c0] sm:$0xff]
    %v10815 = vld [vmem:[#allocation24 + $0x3c8] sm:$0xff]
    %v10816 = vld [vmem:[#allocation24 + $0x3d0] sm:$0xff]
    %v10817 = vld [vmem:[#allocation24 + $0x3d8] sm:$0xff]
    %v10818 = vld [vmem:[#allocation24 + $0x3e0] sm:$0xff]
    %v10819 = vld [vmem:[#allocation24 + $0x3e8] sm:$0xff]
    %v10820 = vld [vmem:[#allocation24 + $0x3f0] sm:$0xff]
    %v10821 = vld [vmem:[#allocation24 + $0x3f8] sm:$0xff]
    %v10822 = vld [vmem:[#allocation24 + $0x400] sm:$0xff]
    %v10823 = vld [vmem:[#allocation24 + $0x408] sm:$0xff]
    %v10824 = vld [vmem:[#allocation24 + $0x410] sm:$0xff]
    %v10825 = vld [vmem:[#allocation24 + $0x418] sm:$0xff]
    %v10826 = vld [vmem:[#allocation24 + $0x420] sm:$0xff]
    %v10827 = vld [vmem:[#allocation24 + $0x428] sm:$0xff]
    %v10828 = vld [vmem:[#allocation24 + $0x430] sm:$0xff]
    %v10829 = vld [vmem:[#allocation24 + $0x438] sm:$0xff]
    %v10830 = vld [vmem:[#allocation24 + $0x440] sm:$0xff]
    %v10831 = vld [vmem:[#allocation24 + $0x448] sm:$0xff]
    %v10832 = vld [vmem:[#allocation24 + $0x450] sm:$0xff]
    %v10833 = vld [vmem:[#allocation24 + $0x458] sm:$0xff]
    %v10834 = vld [vmem:[#allocation24 + $0x460] sm:$0xff]
    %v10835 = vld [vmem:[#allocation24 + $0x468] sm:$0xff]
    %v10836 = vld [vmem:[#allocation24 + $0x470] sm:$0xff]
    %v10837 = vld [vmem:[#allocation24 + $0x478] sm:$0xff]
    %v10838 = vld [vmem:[#allocation24 + $0x480] sm:$0xff]
    %v10839 = vld [vmem:[#allocation24 + $0x488] sm:$0xff]
    %v10840 = vld [vmem:[#allocation24 + $0x490] sm:$0xff]
    %v10841 = vld [vmem:[#allocation24 + $0x498] sm:$0xff]
    %v10842 = vld [vmem:[#allocation24 + $0x4a0] sm:$0xff]
    %v10843 = vld [vmem:[#allocation24 + $0x4a8] sm:$0xff]
    %v10844 = vld [vmem:[#allocation24 + $0x4b0] sm:$0xff]
    %v10845 = vld [vmem:[#allocation24 + $0x4b8] sm:$0xff]
    %v10846 = vld [vmem:[#allocation24 + $0x4c0] sm:$0xff]
    %v10847 = vld [vmem:[#allocation24 + $0x4c8] sm:$0xff]
    %v10848 = vld [vmem:[#allocation24 + $0x4d0] sm:$0xff]
    %v10849 = vld [vmem:[#allocation24 + $0x4d8] sm:$0xff]
    %v10850 = vld [vmem:[#allocation24 + $0x4e0] sm:$0xff]
    %v10851 = vld [vmem:[#allocation24 + $0x4e8] sm:$0xff]
    %v10852 = vld [vmem:[#allocation24 + $0x4f0] sm:$0xff]
    %v10853 = vld [vmem:[#allocation24 + $0x4f8] sm:$0xff]
    %v10854 = vld [vmem:[#allocation24 + $0x500] sm:$0xff]
    %v10855 = vld [vmem:[#allocation24 + $0x508] sm:$0xff]
    %v10856 = vld [vmem:[#allocation24 + $0x510] sm:$0xff]
    %v10857 = vld [vmem:[#allocation24 + $0x518] sm:$0xff]
    %v10858 = vld [vmem:[#allocation24 + $0x520] sm:$0xff]
    %v10859 = vld [vmem:[#allocation24 + $0x528] sm:$0xff]
    %v10860 = vld [vmem:[#allocation24 + $0x530] sm:$0xff]
    %v10861 = vld [vmem:[#allocation24 + $0x538] sm:$0xff]
    %v10862 = vld [vmem:[#allocation24 + $0x540] sm:$0xff]
    %v10863 = vld [vmem:[#allocation24 + $0x548] sm:$0xff]
    %v10864 = vld [vmem:[#allocation24 + $0x550] sm:$0xff]
    %v10865 = vld [vmem:[#allocation24 + $0x558] sm:$0xff]
    %v10866 = vld [vmem:[#allocation24 + $0x560] sm:$0xff]
    %v10867 = vld [vmem:[#allocation24 + $0x568] sm:$0xff]
    %v10868 = vld [vmem:[#allocation24 + $0x570] sm:$0xff]
    %v10869 = vld [vmem:[#allocation24 + $0x578] sm:$0xff]
    %v10870 = vld [vmem:[#allocation24 + $0x580] sm:$0xff]
    %v10871 = vld [vmem:[#allocation24 + $0x588] sm:$0xff]
    %v10872 = vld [vmem:[#allocation24 + $0x590] sm:$0xff]
    %v10873 = vld [vmem:[#allocation24 + $0x598] sm:$0xff]
    %v10874 = vld [vmem:[#allocation24 + $0x5a0] sm:$0xff]
    %v10875 = vld [vmem:[#allocation24 + $0x5a8] sm:$0xff]
    %v10876 = vld [vmem:[#allocation24 + $0x5b0] sm:$0xff]
    %v10877 = vld [vmem:[#allocation24 + $0x5b8] sm:$0xff]
    %v10878 = vld [vmem:[#allocation24 + $0x5c0] sm:$0xff]
    %v10879 = vld [vmem:[#allocation24 + $0x5c8] sm:$0xff]
    %v10880 = vld [vmem:[#allocation24 + $0x5d0] sm:$0xff]
    %v10881 = vld [vmem:[#allocation24 + $0x5d8] sm:$0xff]
    %v10882 = vld [vmem:[#allocation24 + $0x5e0] sm:$0xff]
    %v10883 = vld [vmem:[#allocation24 + $0x5e8] sm:$0xff]
    %v10884 = vld [vmem:[#allocation24 + $0x5f0] sm:$0xff]
    %v10885 = vld [vmem:[#allocation24 + $0x5f8] sm:$0xff]
    %v10886 = vld [vmem:[#allocation24 + $0x600] sm:$0xff]
    %v10887 = vld [vmem:[#allocation24 + $0x608] sm:$0xff]
    %v10888 = vld [vmem:[#allocation24 + $0x610] sm:$0xff]
    %v10889 = vld [vmem:[#allocation24 + $0x618] sm:$0xff]
    %v10890 = vld [vmem:[#allocation24 + $0x620] sm:$0xff]
    %v10891 = vld [vmem:[#allocation24 + $0x628] sm:$0xff]
    %v10892 = vld [vmem:[#allocation24 + $0x630] sm:$0xff]
    %v10893 = vld [vmem:[#allocation24 + $0x638] sm:$0xff]
    %v10894 = vld [vmem:[#allocation24 + $0x640] sm:$0xff]
    %v10895 = vld [vmem:[#allocation24 + $0x648] sm:$0xff]
    %v10896 = vld [vmem:[#allocation24 + $0x650] sm:$0xff]
    %v10897 = vld [vmem:[#allocation24 + $0x658] sm:$0xff]
    %v10898 = vld [vmem:[#allocation24 + $0x660] sm:$0xff]
    %v10899 = vld [vmem:[#allocation24 + $0x668] sm:$0xff]
    %v10900 = vld [vmem:[#allocation24 + $0x670] sm:$0xff]
    %v10901 = vld [vmem:[#allocation24 + $0x678] sm:$0xff]
    %v10902 = vld [vmem:[#allocation24 + $0x680] sm:$0xff]
    %v10903 = vld [vmem:[#allocation24 + $0x688] sm:$0xff]
    %v10904 = vld [vmem:[#allocation24 + $0x690] sm:$0xff]
    %v10905 = vld [vmem:[#allocation24 + $0x698] sm:$0xff]
    %v10906 = vld [vmem:[#allocation24 + $0x6a0] sm:$0xff]
    %v10907 = vld [vmem:[#allocation24 + $0x6a8] sm:$0xff]
    %v10908 = vld [vmem:[#allocation24 + $0x6b0] sm:$0xff]
    %v10909 = vld [vmem:[#allocation24 + $0x6b8] sm:$0xff]
    %v10910 = vld [vmem:[#allocation24 + $0x6c0] sm:$0xff]
    %v10911 = vld [vmem:[#allocation24 + $0x6c8] sm:$0xff]
    %v10912 = vld [vmem:[#allocation24 + $0x6d0] sm:$0xff]
    %v10913 = vld [vmem:[#allocation24 + $0x6d8] sm:$0xff]
    %v10914 = vld [vmem:[#allocation24 + $0x6e0] sm:$0xff]
    %v10915 = vld [vmem:[#allocation24 + $0x6e8] sm:$0xff]
    %v10916 = vld [vmem:[#allocation24 + $0x6f0] sm:$0xff]
    %v10917 = vld [vmem:[#allocation24 + $0x6f8] sm:$0xff]
    %v10918 = vld [vmem:[#allocation24 + $0x700] sm:$0xff]
    %v10919 = vld [vmem:[#allocation24 + $0x708] sm:$0xff]
    %v10920 = vld [vmem:[#allocation24 + $0x710] sm:$0xff]
    %v10921 = vld [vmem:[#allocation24 + $0x718] sm:$0xff]
    %v10922 = vld [vmem:[#allocation24 + $0x720] sm:$0xff]
    %v10923 = vld [vmem:[#allocation24 + $0x728] sm:$0xff]
    %v10924 = vld [vmem:[#allocation24 + $0x730] sm:$0xff]
    %v10925 = vld [vmem:[#allocation24 + $0x738] sm:$0xff]
    %v10926 = vld [vmem:[#allocation24 + $0x740] sm:$0xff]
    %v10927 = vld [vmem:[#allocation24 + $0x748] sm:$0xff]
    %v10928 = vld [vmem:[#allocation24 + $0x750] sm:$0xff]
    %v10929 = vld [vmem:[#allocation24 + $0x758] sm:$0xff]
    %v10930 = vld [vmem:[#allocation24 + $0x760] sm:$0xff]
    %v10931 = vld [vmem:[#allocation24 + $0x768] sm:$0xff]
    %v10932 = vld [vmem:[#allocation24 + $0x770] sm:$0xff]
    %v10933 = vld [vmem:[#allocation24 + $0x778] sm:$0xff]
    %v10934 = vld [vmem:[#allocation24 + $0x780] sm:$0xff]
    %v10935 = vld [vmem:[#allocation24 + $0x788] sm:$0xff]
    %v10936 = vld [vmem:[#allocation24 + $0x790] sm:$0xff]
    %v10937 = vld [vmem:[#allocation24 + $0x798] sm:$0xff]
    %v10938 = vld [vmem:[#allocation24 + $0x7a0] sm:$0xff]
    %v10939 = vld [vmem:[#allocation24 + $0x7a8] sm:$0xff]
    %v10940 = vld [vmem:[#allocation24 + $0x7b0] sm:$0xff]
    %v10941 = vld [vmem:[#allocation24 + $0x7b8] sm:$0xff]
    %v10942 = vld [vmem:[#allocation24 + $0x7c0] sm:$0xff]
    %v10943 = vld [vmem:[#allocation24 + $0x7c8] sm:$0xff]
    %v10944 = vld [vmem:[#allocation24 + $0x7d0] sm:$0xff]
    %v10945 = vld [vmem:[#allocation24 + $0x7d8] sm:$0xff]
    %v10946 = vld [vmem:[#allocation24 + $0x7e0] sm:$0xff]
    %v10947 = vld [vmem:[#allocation24 + $0x7e8] sm:$0xff]
    %v10948 = vld [vmem:[#allocation24 + $0x7f0] sm:$0xff]
    %v10949 = vld [vmem:[#allocation24 + $0x7f8] sm:$0xff]
    %v10950 = vld [vmem:[#allocation26] sm:$0x3]
    %v10952 = vlaneseq
    %v10953 = vshrl.u32 %v10952, 7
    %v10954 = vsub.s32 0, %v10953
    %v10955 = vrot.slane %v10950, %v10954
    %v10956 = vlaneseq
    %v10957 = vshrl.u32 %v10956, 7
    %v10958 = vsub.s32 1, %v10957
    %v10959 = vrot.slane %v10950, %v10958
    %v11218 = vunpack.c.l.b16 %v10694
    %v11219 = vunpack.c.h.b16 %v10694
    %v11220 = vunpack.c.l.b16 %v10695
    %v11221 = vunpack.c.h.b16 %v10695
    %v11222 = vunpack.c.l.b16 %v10696
    %v11223 = vunpack.c.h.b16 %v10696
    %v11224 = vunpack.c.l.b16 %v10697
    %v11225 = vunpack.c.h.b16 %v10697
    %v11226 = vunpack.c.l.b16 %v10698
    %v11227 = vunpack.c.h.b16 %v10698
    %v11228 = vunpack.c.l.b16 %v10699
    %v11229 = vunpack.c.h.b16 %v10699
    %v11230 = vunpack.c.l.b16 %v10700
    %v11231 = vunpack.c.h.b16 %v10700
    %v11232 = vunpack.c.l.b16 %v10701
    %v11233 = vunpack.c.h.b16 %v10701
    %v11234 = vunpack.c.l.b16 %v10702
    %v11235 = vunpack.c.h.b16 %v10702
    %v11236 = vunpack.c.l.b16 %v10703
    %v11237 = vunpack.c.h.b16 %v10703
    %v11238 = vunpack.c.l.b16 %v10704
    %v11239 = vunpack.c.h.b16 %v10704
    %v11240 = vunpack.c.l.b16 %v10705
    %v11241 = vunpack.c.h.b16 %v10705
    %v11242 = vunpack.c.l.b16 %v10706
    %v11243 = vunpack.c.h.b16 %v10706
    %v11244 = vunpack.c.l.b16 %v10707
    %v11245 = vunpack.c.h.b16 %v10707
    %v11246 = vunpack.c.l.b16 %v10708
    %v11247 = vunpack.c.h.b16 %v10708
    %v11248 = vunpack.c.l.b16 %v10709
    %v11249 = vunpack.c.h.b16 %v10709
    %v11250 = vunpack.c.l.b16 %v10710
    %v11251 = vunpack.c.h.b16 %v10710
    %v11252 = vunpack.c.l.b16 %v10711
    %v11253 = vunpack.c.h.b16 %v10711
    %v11254 = vunpack.c.l.b16 %v10712
    %v11255 = vunpack.c.h.b16 %v10712
    %v11256 = vunpack.c.l.b16 %v10713
    %v11257 = vunpack.c.h.b16 %v10713
    %v11258 = vunpack.c.l.b16 %v10714
    %v11259 = vunpack.c.h.b16 %v10714
    %v11260 = vunpack.c.l.b16 %v10715
    %v11261 = vunpack.c.h.b16 %v10715
    %v11262 = vunpack.c.l.b16 %v10716
    %v11263 = vunpack.c.h.b16 %v10716
    %v11264 = vunpack.c.l.b16 %v10717
    %v11265 = vunpack.c.h.b16 %v10717
    %v11266 = vunpack.c.l.b16 %v10718
    %v11267 = vunpack.c.h.b16 %v10718
    %v11268 = vunpack.c.l.b16 %v10719
    %v11269 = vunpack.c.h.b16 %v10719
    %v11270 = vunpack.c.l.b16 %v10720
    %v11271 = vunpack.c.h.b16 %v10720
    %v11272 = vunpack.c.l.b16 %v10721
    %v11273 = vunpack.c.h.b16 %v10721
    %v11274 = vunpack.c.l.b16 %v10722
    %v11275 = vunpack.c.h.b16 %v10722
    %v11276 = vunpack.c.l.b16 %v10723
    %v11277 = vunpack.c.h.b16 %v10723
    %v11278 = vunpack.c.l.b16 %v10724
    %v11279 = vunpack.c.h.b16 %v10724
    %v11280 = vunpack.c.l.b16 %v10725
    %v11281 = vunpack.c.h.b16 %v10725
    %v11282 = vunpack.c.l.b16 %v10726
    %v11283 = vunpack.c.h.b16 %v10726
    %v11284 = vunpack.c.l.b16 %v10727
    %v11285 = vunpack.c.h.b16 %v10727
    %v11286 = vunpack.c.l.b16 %v10728
    %v11287 = vunpack.c.h.b16 %v10728
    %v11288 = vunpack.c.l.b16 %v10729
    %v11289 = vunpack.c.h.b16 %v10729
    %v11290 = vunpack.c.l.b16 %v10730
    %v11291 = vunpack.c.h.b16 %v10730
    %v11292 = vunpack.c.l.b16 %v10731
    %v11293 = vunpack.c.h.b16 %v10731
    %v11294 = vunpack.c.l.b16 %v10732
    %v11295 = vunpack.c.h.b16 %v10732
    %v11296 = vunpack.c.l.b16 %v10733
    %v11297 = vunpack.c.h.b16 %v10733
    %v11298 = vunpack.c.l.b16 %v10734
    %v11299 = vunpack.c.h.b16 %v10734
    %v11300 = vunpack.c.l.b16 %v10735
    %v11301 = vunpack.c.h.b16 %v10735
    %v11302 = vunpack.c.l.b16 %v10736
    %v11303 = vunpack.c.h.b16 %v10736
    %v11304 = vunpack.c.l.b16 %v10737
    %v11305 = vunpack.c.h.b16 %v10737
    %v11306 = vunpack.c.l.b16 %v10738
    %v11307 = vunpack.c.h.b16 %v10738
    %v11308 = vunpack.c.l.b16 %v10739
    %v11309 = vunpack.c.h.b16 %v10739
    %v11310 = vunpack.c.l.b16 %v10740
    %v11311 = vunpack.c.h.b16 %v10740
    %v11312 = vunpack.c.l.b16 %v10741
    %v11313 = vunpack.c.h.b16 %v10741
    %v11314 = vunpack.c.l.b16 %v10742
    %v11315 = vunpack.c.h.b16 %v10742
    %v11316 = vunpack.c.l.b16 %v10743
    %v11317 = vunpack.c.h.b16 %v10743
    %v11318 = vunpack.c.l.b16 %v10744
    %v11319 = vunpack.c.h.b16 %v10744
    %v11320 = vunpack.c.l.b16 %v10745
    %v11321 = vunpack.c.h.b16 %v10745
    %v11322 = vunpack.c.l.b16 %v10746
    %v11323 = vunpack.c.h.b16 %v10746
    %v11324 = vunpack.c.l.b16 %v10747
    %v11325 = vunpack.c.h.b16 %v10747
    %v11326 = vunpack.c.l.b16 %v10748
    %v11327 = vunpack.c.h.b16 %v10748
    %v11328 = vunpack.c.l.b16 %v10749
    %v11329 = vunpack.c.h.b16 %v10749
    %v11330 = vunpack.c.l.b16 %v10750
    %v11331 = vunpack.c.h.b16 %v10750
    %v11332 = vunpack.c.l.b16 %v10751
    %v11333 = vunpack.c.h.b16 %v10751
    %v11334 = vunpack.c.l.b16 %v10752
    %v11335 = vunpack.c.h.b16 %v10752
    %v11336 = vunpack.c.l.b16 %v10753
    %v11337 = vunpack.c.h.b16 %v10753
    %v11338 = vunpack.c.l.b16 %v10754
    %v11339 = vunpack.c.h.b16 %v10754
    %v11340 = vunpack.c.l.b16 %v10755
    %v11341 = vunpack.c.h.b16 %v10755
    %v11342 = vunpack.c.l.b16 %v10756
    %v11343 = vunpack.c.h.b16 %v10756
    %v11344 = vunpack.c.l.b16 %v10757
    %v11345 = vunpack.c.h.b16 %v10757
    %v11346 = vunpack.c.l.b16 %v10758
    %v11347 = vunpack.c.h.b16 %v10758
    %v11348 = vunpack.c.l.b16 %v10759
    %v11349 = vunpack.c.h.b16 %v10759
    %v11350 = vunpack.c.l.b16 %v10760
    %v11351 = vunpack.c.h.b16 %v10760
    %v11352 = vunpack.c.l.b16 %v10761
    %v11353 = vunpack.c.h.b16 %v10761
    %v11354 = vunpack.c.l.b16 %v10762
    %v11355 = vunpack.c.h.b16 %v10762
    %v11356 = vunpack.c.l.b16 %v10763
    %v11357 = vunpack.c.h.b16 %v10763
    %v11358 = vunpack.c.l.b16 %v10764
    %v11359 = vunpack.c.h.b16 %v10764
    %v11360 = vunpack.c.l.b16 %v10765
    %v11361 = vunpack.c.h.b16 %v10765
    %v11362 = vunpack.c.l.b16 %v10766
    %v11363 = vunpack.c.h.b16 %v10766
    %v11364 = vunpack.c.l.b16 %v10767
    %v11365 = vunpack.c.h.b16 %v10767
    %v11366 = vunpack.c.l.b16 %v10768
    %v11367 = vunpack.c.h.b16 %v10768
    %v11368 = vunpack.c.l.b16 %v10769
    %v11369 = vunpack.c.h.b16 %v10769
    %v11370 = vunpack.c.l.b16 %v10770
    %v11371 = vunpack.c.h.b16 %v10770
    %v11372 = vunpack.c.l.b16 %v10771
    %v11373 = vunpack.c.h.b16 %v10771
    %v11374 = vunpack.c.l.b16 %v10772
    %v11375 = vunpack.c.h.b16 %v10772
    %v11376 = vunpack.c.l.b16 %v10773
    %v11377 = vunpack.c.h.b16 %v10773
    %v11378 = vunpack.c.l.b16 %v10774
    %v11379 = vunpack.c.h.b16 %v10774
    %v11380 = vunpack.c.l.b16 %v10775
    %v11381 = vunpack.c.h.b16 %v10775
    %v11382 = vunpack.c.l.b16 %v10776
    %v11383 = vunpack.c.h.b16 %v10776
    %v11384 = vunpack.c.l.b16 %v10777
    %v11385 = vunpack.c.h.b16 %v10777
    %v11386 = vunpack.c.l.b16 %v10778
    %v11387 = vunpack.c.h.b16 %v10778
    %v11388 = vunpack.c.l.b16 %v10779
    %v11389 = vunpack.c.h.b16 %v10779
    %v11390 = vunpack.c.l.b16 %v10780
    %v11391 = vunpack.c.h.b16 %v10780
    %v11392 = vunpack.c.l.b16 %v10781
    %v11393 = vunpack.c.h.b16 %v10781
    %v11394 = vunpack.c.l.b16 %v10782
    %v11395 = vunpack.c.h.b16 %v10782
    %v11396 = vunpack.c.l.b16 %v10783
    %v11397 = vunpack.c.h.b16 %v10783
    %v11398 = vunpack.c.l.b16 %v10784
    %v11399 = vunpack.c.h.b16 %v10784
    %v11400 = vunpack.c.l.b16 %v10785
    %v11401 = vunpack.c.h.b16 %v10785
    %v11402 = vunpack.c.l.b16 %v10786
    %v11403 = vunpack.c.h.b16 %v10786
    %v11404 = vunpack.c.l.b16 %v10787
    %v11405 = vunpack.c.h.b16 %v10787
    %v11406 = vunpack.c.l.b16 %v10788
    %v11407 = vunpack.c.h.b16 %v10788
    %v11408 = vunpack.c.l.b16 %v10789
    %v11409 = vunpack.c.h.b16 %v10789
    %v11410 = vunpack.c.l.b16 %v10790
    %v11411 = vunpack.c.h.b16 %v10790
    %v11412 = vunpack.c.l.b16 %v10791
    %v11413 = vunpack.c.h.b16 %v10791
    %v11414 = vunpack.c.l.b16 %v10792
    %v11415 = vunpack.c.h.b16 %v10792
    %v11416 = vunpack.c.l.b16 %v10793
    %v11417 = vunpack.c.h.b16 %v10793
    %v11418 = vunpack.c.l.b16 %v10794
    %v11419 = vunpack.c.h.b16 %v10794
    %v11420 = vunpack.c.l.b16 %v10795
    %v11421 = vunpack.c.h.b16 %v10795
    %v11422 = vunpack.c.l.b16 %v10796
    %v11423 = vunpack.c.h.b16 %v10796
    %v11424 = vunpack.c.l.b16 %v10797
    %v11425 = vunpack.c.h.b16 %v10797
    %v11426 = vunpack.c.l.b16 %v10798
    %v11427 = vunpack.c.h.b16 %v10798
    %v11428 = vunpack.c.l.b16 %v10799
    %v11429 = vunpack.c.h.b16 %v10799
    %v11430 = vunpack.c.l.b16 %v10800
    %v11431 = vunpack.c.h.b16 %v10800
    %v11432 = vunpack.c.l.b16 %v10801
    %v11433 = vunpack.c.h.b16 %v10801
    %v11434 = vunpack.c.l.b16 %v10802
    %v11435 = vunpack.c.h.b16 %v10802
    %v11436 = vunpack.c.l.b16 %v10803
    %v11437 = vunpack.c.h.b16 %v10803
    %v11438 = vunpack.c.l.b16 %v10804
    %v11439 = vunpack.c.h.b16 %v10804
    %v11440 = vunpack.c.l.b16 %v10805
    %v11441 = vunpack.c.h.b16 %v10805
    %v11442 = vunpack.c.l.b16 %v10806
    %v11443 = vunpack.c.h.b16 %v10806
    %v11444 = vunpack.c.l.b16 %v10807
    %v11445 = vunpack.c.h.b16 %v10807
    %v11446 = vunpack.c.l.b16 %v10808
    %v11447 = vunpack.c.h.b16 %v10808
    %v11448 = vunpack.c.l.b16 %v10809
    %v11449 = vunpack.c.h.b16 %v10809
    %v11450 = vunpack.c.l.b16 %v10810
    %v11451 = vunpack.c.h.b16 %v10810
    %v11452 = vunpack.c.l.b16 %v10811
    %v11453 = vunpack.c.h.b16 %v10811
    %v11454 = vunpack.c.l.b16 %v10812
    %v11455 = vunpack.c.h.b16 %v10812
    %v11456 = vunpack.c.l.b16 %v10813
    %v11457 = vunpack.c.h.b16 %v10813
    %v11458 = vunpack.c.l.b16 %v10814
    %v11459 = vunpack.c.h.b16 %v10814
    %v11460 = vunpack.c.l.b16 %v10815
    %v11461 = vunpack.c.h.b16 %v10815
    %v11462 = vunpack.c.l.b16 %v10816
    %v11463 = vunpack.c.h.b16 %v10816
    %v11464 = vunpack.c.l.b16 %v10817
    %v11465 = vunpack.c.h.b16 %v10817
    %v11466 = vunpack.c.l.b16 %v10818
    %v11467 = vunpack.c.h.b16 %v10818
    %v11468 = vunpack.c.l.b16 %v10819
    %v11469 = vunpack.c.h.b16 %v10819
    %v11470 = vunpack.c.l.b16 %v10820
    %v11471 = vunpack.c.h.b16 %v10820
    %v11472 = vunpack.c.l.b16 %v10821
    %v11473 = vunpack.c.h.b16 %v10821
    %v11474 = vunpack.c.l.b16 %v10822
    %v11475 = vunpack.c.h.b16 %v10822
    %v11476 = vunpack.c.l.b16 %v10823
    %v11477 = vunpack.c.h.b16 %v10823
    %v11478 = vunpack.c.l.b16 %v10824
    %v11479 = vunpack.c.h.b16 %v10824
    %v11480 = vunpack.c.l.b16 %v10825
    %v11481 = vunpack.c.h.b16 %v10825
    %v11482 = vunpack.c.l.b16 %v10826
    %v11483 = vunpack.c.h.b16 %v10826
    %v11484 = vunpack.c.l.b16 %v10827
    %v11485 = vunpack.c.h.b16 %v10827
    %v11486 = vunpack.c.l.b16 %v10828
    %v11487 = vunpack.c.h.b16 %v10828
    %v11488 = vunpack.c.l.b16 %v10829
    %v11489 = vunpack.c.h.b16 %v10829
    %v11490 = vunpack.c.l.b16 %v10830
    %v11491 = vunpack.c.h.b16 %v10830
    %v11492 = vunpack.c.l.b16 %v10831
    %v11493 = vunpack.c.h.b16 %v10831
    %v11494 = vunpack.c.l.b16 %v10832
    %v11495 = vunpack.c.h.b16 %v10832
    %v11496 = vunpack.c.l.b16 %v10833
    %v11497 = vunpack.c.h.b16 %v10833
    %v11498 = vunpack.c.l.b16 %v10834
    %v11499 = vunpack.c.h.b16 %v10834
    %v11500 = vunpack.c.l.b16 %v10835
    %v11501 = vunpack.c.h.b16 %v10835
    %v11502 = vunpack.c.l.b16 %v10836
    %v11503 = vunpack.c.h.b16 %v10836
    %v11504 = vunpack.c.l.b16 %v10837
    %v11505 = vunpack.c.h.b16 %v10837
    %v11506 = vunpack.c.l.b16 %v10838
    %v11507 = vunpack.c.h.b16 %v10838
    %v11508 = vunpack.c.l.b16 %v10839
    %v11509 = vunpack.c.h.b16 %v10839
    %v11510 = vunpack.c.l.b16 %v10840
    %v11511 = vunpack.c.h.b16 %v10840
    %v11512 = vunpack.c.l.b16 %v10841
    %v11513 = vunpack.c.h.b16 %v10841
    %v11514 = vunpack.c.l.b16 %v10842
    %v11515 = vunpack.c.h.b16 %v10842
    %v11516 = vunpack.c.l.b16 %v10843
    %v11517 = vunpack.c.h.b16 %v10843
    %v11518 = vunpack.c.l.b16 %v10844
    %v11519 = vunpack.c.h.b16 %v10844
    %v11520 = vunpack.c.l.b16 %v10845
    %v11521 = vunpack.c.h.b16 %v10845
    %v11522 = vunpack.c.l.b16 %v10846
    %v11523 = vunpack.c.h.b16 %v10846
    %v11524 = vunpack.c.l.b16 %v10847
    %v11525 = vunpack.c.h.b16 %v10847
    %v11526 = vunpack.c.l.b16 %v10848
    %v11527 = vunpack.c.h.b16 %v10848
    %v11528 = vunpack.c.l.b16 %v10849
    %v11529 = vunpack.c.h.b16 %v10849
    %v11530 = vunpack.c.l.b16 %v10850
    %v11531 = vunpack.c.h.b16 %v10850
    %v11532 = vunpack.c.l.b16 %v10851
    %v11533 = vunpack.c.h.b16 %v10851
    %v11534 = vunpack.c.l.b16 %v10852
    %v11535 = vunpack.c.h.b16 %v10852
    %v11536 = vunpack.c.l.b16 %v10853
    %v11537 = vunpack.c.h.b16 %v10853
    %v11538 = vunpack.c.l.b16 %v10854
    %v11539 = vunpack.c.h.b16 %v10854
    %v11540 = vunpack.c.l.b16 %v10855
    %v11541 = vunpack.c.h.b16 %v10855
    %v11542 = vunpack.c.l.b16 %v10856
    %v11543 = vunpack.c.h.b16 %v10856
    %v11544 = vunpack.c.l.b16 %v10857
    %v11545 = vunpack.c.h.b16 %v10857
    %v11546 = vunpack.c.l.b16 %v10858
    %v11547 = vunpack.c.h.b16 %v10858
    %v11548 = vunpack.c.l.b16 %v10859
    %v11549 = vunpack.c.h.b16 %v10859
    %v11550 = vunpack.c.l.b16 %v10860
    %v11551 = vunpack.c.h.b16 %v10860
    %v11552 = vunpack.c.l.b16 %v10861
    %v11553 = vunpack.c.h.b16 %v10861
    %v11554 = vunpack.c.l.b16 %v10862
    %v11555 = vunpack.c.h.b16 %v10862
    %v11556 = vunpack.c.l.b16 %v10863
    %v11557 = vunpack.c.h.b16 %v10863
    %v11558 = vunpack.c.l.b16 %v10864
    %v11559 = vunpack.c.h.b16 %v10864
    %v11560 = vunpack.c.l.b16 %v10865
    %v11561 = vunpack.c.h.b16 %v10865
    %v11562 = vunpack.c.l.b16 %v10866
    %v11563 = vunpack.c.h.b16 %v10866
    %v11564 = vunpack.c.l.b16 %v10867
    %v11565 = vunpack.c.h.b16 %v10867
    %v11566 = vunpack.c.l.b16 %v10868
    %v11567 = vunpack.c.h.b16 %v10868
    %v11568 = vunpack.c.l.b16 %v10869
    %v11569 = vunpack.c.h.b16 %v10869
    %v11570 = vunpack.c.l.b16 %v10870
    %v11571 = vunpack.c.h.b16 %v10870
    %v11572 = vunpack.c.l.b16 %v10871
    %v11573 = vunpack.c.h.b16 %v10871
    %v11574 = vunpack.c.l.b16 %v10872
    %v11575 = vunpack.c.h.b16 %v10872
    %v11576 = vunpack.c.l.b16 %v10873
    %v11577 = vunpack.c.h.b16 %v10873
    %v11578 = vunpack.c.l.b16 %v10874
    %v11579 = vunpack.c.h.b16 %v10874
    %v11580 = vunpack.c.l.b16 %v10875
    %v11581 = vunpack.c.h.b16 %v10875
    %v11582 = vunpack.c.l.b16 %v10876
    %v11583 = vunpack.c.h.b16 %v10876
    %v11584 = vunpack.c.l.b16 %v10877
    %v11585 = vunpack.c.h.b16 %v10877
    %v11586 = vunpack.c.l.b16 %v10878
    %v11587 = vunpack.c.h.b16 %v10878
    %v11588 = vunpack.c.l.b16 %v10879
    %v11589 = vunpack.c.h.b16 %v10879
    %v11590 = vunpack.c.l.b16 %v10880
    %v11591 = vunpack.c.h.b16 %v10880
    %v11592 = vunpack.c.l.b16 %v10881
    %v11593 = vunpack.c.h.b16 %v10881
    %v11594 = vunpack.c.l.b16 %v10882
    %v11595 = vunpack.c.h.b16 %v10882
    %v11596 = vunpack.c.l.b16 %v10883
    %v11597 = vunpack.c.h.b16 %v10883
    %v11598 = vunpack.c.l.b16 %v10884
    %v11599 = vunpack.c.h.b16 %v10884
    %v11600 = vunpack.c.l.b16 %v10885
    %v11601 = vunpack.c.h.b16 %v10885
    %v11602 = vunpack.c.l.b16 %v10886
    %v11603 = vunpack.c.h.b16 %v10886
    %v11604 = vunpack.c.l.b16 %v10887
    %v11605 = vunpack.c.h.b16 %v10887
    %v11606 = vunpack.c.l.b16 %v10888
    %v11607 = vunpack.c.h.b16 %v10888
    %v11608 = vunpack.c.l.b16 %v10889
    %v11609 = vunpack.c.h.b16 %v10889
    %v11610 = vunpack.c.l.b16 %v10890
    %v11611 = vunpack.c.h.b16 %v10890
    %v11612 = vunpack.c.l.b16 %v10891
    %v11613 = vunpack.c.h.b16 %v10891
    %v11614 = vunpack.c.l.b16 %v10892
    %v11615 = vunpack.c.h.b16 %v10892
    %v11616 = vunpack.c.l.b16 %v10893
    %v11617 = vunpack.c.h.b16 %v10893
    %v11618 = vunpack.c.l.b16 %v10894
    %v11619 = vunpack.c.h.b16 %v10894
    %v11620 = vunpack.c.l.b16 %v10895
    %v11621 = vunpack.c.h.b16 %v10895
    %v11622 = vunpack.c.l.b16 %v10896
    %v11623 = vunpack.c.h.b16 %v10896
    %v11624 = vunpack.c.l.b16 %v10897
    %v11625 = vunpack.c.h.b16 %v10897
    %v11626 = vunpack.c.l.b16 %v10898
    %v11627 = vunpack.c.h.b16 %v10898
    %v11628 = vunpack.c.l.b16 %v10899
    %v11629 = vunpack.c.h.b16 %v10899
    %v11630 = vunpack.c.l.b16 %v10900
    %v11631 = vunpack.c.h.b16 %v10900
    %v11632 = vunpack.c.l.b16 %v10901
    %v11633 = vunpack.c.h.b16 %v10901
    %v11634 = vunpack.c.l.b16 %v10902
    %v11635 = vunpack.c.h.b16 %v10902
    %v11636 = vunpack.c.l.b16 %v10903
    %v11637 = vunpack.c.h.b16 %v10903
    %v11638 = vunpack.c.l.b16 %v10904
    %v11639 = vunpack.c.h.b16 %v10904
    %v11640 = vunpack.c.l.b16 %v10905
    %v11641 = vunpack.c.h.b16 %v10905
    %v11642 = vunpack.c.l.b16 %v10906
    %v11643 = vunpack.c.h.b16 %v10906
    %v11644 = vunpack.c.l.b16 %v10907
    %v11645 = vunpack.c.h.b16 %v10907
    %v11646 = vunpack.c.l.b16 %v10908
    %v11647 = vunpack.c.h.b16 %v10908
    %v11648 = vunpack.c.l.b16 %v10909
    %v11649 = vunpack.c.h.b16 %v10909
    %v11650 = vunpack.c.l.b16 %v10910
    %v11651 = vunpack.c.h.b16 %v10910
    %v11652 = vunpack.c.l.b16 %v10911
    %v11653 = vunpack.c.h.b16 %v10911
    %v11654 = vunpack.c.l.b16 %v10912
    %v11655 = vunpack.c.h.b16 %v10912
    %v11656 = vunpack.c.l.b16 %v10913
    %v11657 = vunpack.c.h.b16 %v10913
    %v11658 = vunpack.c.l.b16 %v10914
    %v11659 = vunpack.c.h.b16 %v10914
    %v11660 = vunpack.c.l.b16 %v10915
    %v11661 = vunpack.c.h.b16 %v10915
    %v11662 = vunpack.c.l.b16 %v10916
    %v11663 = vunpack.c.h.b16 %v10916
    %v11664 = vunpack.c.l.b16 %v10917
    %v11665 = vunpack.c.h.b16 %v10917
    %v11666 = vunpack.c.l.b16 %v10918
    %v11667 = vunpack.c.h.b16 %v10918
    %v11668 = vunpack.c.l.b16 %v10919
    %v11669 = vunpack.c.h.b16 %v10919
    %v11670 = vunpack.c.l.b16 %v10920
    %v11671 = vunpack.c.h.b16 %v10920
    %v11672 = vunpack.c.l.b16 %v10921
    %v11673 = vunpack.c.h.b16 %v10921
    %v11674 = vunpack.c.l.b16 %v10922
    %v11675 = vunpack.c.h.b16 %v10922
    %v11676 = vunpack.c.l.b16 %v10923
    %v11677 = vunpack.c.h.b16 %v10923
    %v11678 = vunpack.c.l.b16 %v10924
    %v11679 = vunpack.c.h.b16 %v10924
    %v11680 = vunpack.c.l.b16 %v10925
    %v11681 = vunpack.c.h.b16 %v10925
    %v11682 = vunpack.c.l.b16 %v10926
    %v11683 = vunpack.c.h.b16 %v10926
    %v11684 = vunpack.c.l.b16 %v10927
    %v11685 = vunpack.c.h.b16 %v10927
    %v11686 = vunpack.c.l.b16 %v10928
    %v11687 = vunpack.c.h.b16 %v10928
    %v11688 = vunpack.c.l.b16 %v10929
    %v11689 = vunpack.c.h.b16 %v10929
    %v11690 = vunpack.c.l.b16 %v10930
    %v11691 = vunpack.c.h.b16 %v10930
    %v11692 = vunpack.c.l.b16 %v10931
    %v11693 = vunpack.c.h.b16 %v10931
    %v11694 = vunpack.c.l.b16 %v10932
    %v11695 = vunpack.c.h.b16 %v10932
    %v11696 = vunpack.c.l.b16 %v10933
    %v11697 = vunpack.c.h.b16 %v10933
    %v11698 = vunpack.c.l.b16 %v10934
    %v11699 = vunpack.c.h.b16 %v10934
    %v11700 = vunpack.c.l.b16 %v10935
    %v11701 = vunpack.c.h.b16 %v10935
    %v11702 = vunpack.c.l.b16 %v10936
    %v11703 = vunpack.c.h.b16 %v10936
    %v11704 = vunpack.c.l.b16 %v10937
    %v11705 = vunpack.c.h.b16 %v10937
    %v11706 = vunpack.c.l.b16 %v10938
    %v11707 = vunpack.c.h.b16 %v10938
    %v11708 = vunpack.c.l.b16 %v10939
    %v11709 = vunpack.c.h.b16 %v10939
    %v11710 = vunpack.c.l.b16 %v10940
    %v11711 = vunpack.c.h.b16 %v10940
    %v11712 = vunpack.c.l.b16 %v10941
    %v11713 = vunpack.c.h.b16 %v10941
    %v11714 = vunpack.c.l.b16 %v10942
    %v11715 = vunpack.c.h.b16 %v10942
    %v11716 = vunpack.c.l.b16 %v10943
    %v11717 = vunpack.c.h.b16 %v10943
    %v11718 = vunpack.c.l.b16 %v10944
    %v11719 = vunpack.c.h.b16 %v10944
    %v11720 = vunpack.c.l.b16 %v10945
    %v11721 = vunpack.c.h.b16 %v10945
    %v11722 = vunpack.c.l.b16 %v10946
    %v11723 = vunpack.c.h.b16 %v10946
    %v11724 = vunpack.c.l.b16 %v10947
    %v11725 = vunpack.c.h.b16 %v10947
    %v11726 = vunpack.c.l.b16 %v10948
    %v11727 = vunpack.c.h.b16 %v10948
    %v11728 = vunpack.c.l.b16 %v10949
    %v11729 = vunpack.c.h.b16 %v10949
    %v11730 = vpack.c.b16 %v11220, %v11218
    %v11731 = vpack.c.b16 %v11221, %v11219
    %v11732 = vpack.c.b16 %v11224, %v11222
    %v11733 = vpack.c.b16 %v11225, %v11223
    %v11734 = vpack.c.b16 %v11228, %v11226
    %v11735 = vpack.c.b16 %v11229, %v11227
    %v11736 = vpack.c.b16 %v11232, %v11230
    %v11737 = vpack.c.b16 %v11233, %v11231
    %v11738 = vpack.c.b16 %v11236, %v11234
    %v11739 = vpack.c.b16 %v11237, %v11235
    %v11740 = vpack.c.b16 %v11240, %v11238
    %v11741 = vpack.c.b16 %v11241, %v11239
    %v11742 = vpack.c.b16 %v11244, %v11242
    %v11743 = vpack.c.b16 %v11245, %v11243
    %v11744 = vpack.c.b16 %v11248, %v11246
    %v11745 = vpack.c.b16 %v11249, %v11247
    %v11746 = vpack.c.b16 %v11252, %v11250
    %v11747 = vpack.c.b16 %v11253, %v11251
    %v11748 = vpack.c.b16 %v11256, %v11254
    %v11749 = vpack.c.b16 %v11257, %v11255
    %v11750 = vpack.c.b16 %v11260, %v11258
    %v11751 = vpack.c.b16 %v11261, %v11259
    %v11752 = vpack.c.b16 %v11264, %v11262
    %v11753 = vpack.c.b16 %v11265, %v11263
    %v11754 = vpack.c.b16 %v11268, %v11266
    %v11755 = vpack.c.b16 %v11269, %v11267
    %v11756 = vpack.c.b16 %v11272, %v11270
    %v11757 = vpack.c.b16 %v11273, %v11271
    %v11758 = vpack.c.b16 %v11276, %v11274
    %v11759 = vpack.c.b16 %v11277, %v11275
    %v11760 = vpack.c.b16 %v11280, %v11278
    %v11761 = vpack.c.b16 %v11281, %v11279
    %v11762 = vpack.c.b16 %v11284, %v11282
    %v11763 = vpack.c.b16 %v11285, %v11283
    %v11764 = vpack.c.b16 %v11288, %v11286
    %v11765 = vpack.c.b16 %v11289, %v11287
    %v11766 = vpack.c.b16 %v11292, %v11290
    %v11767 = vpack.c.b16 %v11293, %v11291
    %v11768 = vpack.c.b16 %v11296, %v11294
    %v11769 = vpack.c.b16 %v11297, %v11295
    %v11770 = vpack.c.b16 %v11300, %v11298
    %v11771 = vpack.c.b16 %v11301, %v11299
    %v11772 = vpack.c.b16 %v11304, %v11302
    %v11773 = vpack.c.b16 %v11305, %v11303
    %v11774 = vpack.c.b16 %v11308, %v11306
    %v11775 = vpack.c.b16 %v11309, %v11307
    %v11776 = vpack.c.b16 %v11312, %v11310
    %v11777 = vpack.c.b16 %v11313, %v11311
    %v11778 = vpack.c.b16 %v11316, %v11314
    %v11779 = vpack.c.b16 %v11317, %v11315
    %v11780 = vpack.c.b16 %v11320, %v11318
    %v11781 = vpack.c.b16 %v11321, %v11319
    %v11782 = vpack.c.b16 %v11324, %v11322
    %v11783 = vpack.c.b16 %v11325, %v11323
    %v11784 = vpack.c.b16 %v11328, %v11326
    %v11785 = vpack.c.b16 %v11329, %v11327
    %v11786 = vpack.c.b16 %v11332, %v11330
    %v11787 = vpack.c.b16 %v11333, %v11331
    %v11788 = vpack.c.b16 %v11336, %v11334
    %v11789 = vpack.c.b16 %v11337, %v11335
    %v11790 = vpack.c.b16 %v11340, %v11338
    %v11791 = vpack.c.b16 %v11341, %v11339
    %v11792 = vpack.c.b16 %v11344, %v11342
    %v11793 = vpack.c.b16 %v11345, %v11343
    %v11794 = vpack.c.b16 %v11348, %v11346
    %v11795 = vpack.c.b16 %v11349, %v11347
    %v11796 = vpack.c.b16 %v11352, %v11350
    %v11797 = vpack.c.b16 %v11353, %v11351
    %v11798 = vpack.c.b16 %v11356, %v11354
    %v11799 = vpack.c.b16 %v11357, %v11355
    %v11800 = vpack.c.b16 %v11360, %v11358
    %v11801 = vpack.c.b16 %v11361, %v11359
    %v11802 = vpack.c.b16 %v11364, %v11362
    %v11803 = vpack.c.b16 %v11365, %v11363
    %v11804 = vpack.c.b16 %v11368, %v11366
    %v11805 = vpack.c.b16 %v11369, %v11367
    %v11806 = vpack.c.b16 %v11372, %v11370
    %v11807 = vpack.c.b16 %v11373, %v11371
    %v11808 = vpack.c.b16 %v11376, %v11374
    %v11809 = vpack.c.b16 %v11377, %v11375
    %v11810 = vpack.c.b16 %v11380, %v11378
    %v11811 = vpack.c.b16 %v11381, %v11379
    %v11812 = vpack.c.b16 %v11384, %v11382
    %v11813 = vpack.c.b16 %v11385, %v11383
    %v11814 = vpack.c.b16 %v11388, %v11386
    %v11815 = vpack.c.b16 %v11389, %v11387
    %v11816 = vpack.c.b16 %v11392, %v11390
    %v11817 = vpack.c.b16 %v11393, %v11391
    %v11818 = vpack.c.b16 %v11396, %v11394
    %v11819 = vpack.c.b16 %v11397, %v11395
    %v11820 = vpack.c.b16 %v11400, %v11398
    %v11821 = vpack.c.b16 %v11401, %v11399
    %v11822 = vpack.c.b16 %v11404, %v11402
    %v11823 = vpack.c.b16 %v11405, %v11403
    %v11824 = vpack.c.b16 %v11408, %v11406
    %v11825 = vpack.c.b16 %v11409, %v11407
    %v11826 = vpack.c.b16 %v11412, %v11410
    %v11827 = vpack.c.b16 %v11413, %v11411
    %v11828 = vpack.c.b16 %v11416, %v11414
    %v11829 = vpack.c.b16 %v11417, %v11415
    %v11830 = vpack.c.b16 %v11420, %v11418
    %v11831 = vpack.c.b16 %v11421, %v11419
    %v11832 = vpack.c.b16 %v11424, %v11422
    %v11833 = vpack.c.b16 %v11425, %v11423
    %v11834 = vpack.c.b16 %v11428, %v11426
    %v11835 = vpack.c.b16 %v11429, %v11427
    %v11836 = vpack.c.b16 %v11432, %v11430
    %v11837 = vpack.c.b16 %v11433, %v11431
    %v11838 = vpack.c.b16 %v11436, %v11434
    %v11839 = vpack.c.b16 %v11437, %v11435
    %v11840 = vpack.c.b16 %v11440, %v11438
    %v11841 = vpack.c.b16 %v11441, %v11439
    %v11842 = vpack.c.b16 %v11444, %v11442
    %v11843 = vpack.c.b16 %v11445, %v11443
    %v11844 = vpack.c.b16 %v11448, %v11446
    %v11845 = vpack.c.b16 %v11449, %v11447
    %v11846 = vpack.c.b16 %v11452, %v11450
    %v11847 = vpack.c.b16 %v11453, %v11451
    %v11848 = vpack.c.b16 %v11456, %v11454
    %v11849 = vpack.c.b16 %v11457, %v11455
    %v11850 = vpack.c.b16 %v11460, %v11458
    %v11851 = vpack.c.b16 %v11461, %v11459
    %v11852 = vpack.c.b16 %v11464, %v11462
    %v11853 = vpack.c.b16 %v11465, %v11463
    %v11854 = vpack.c.b16 %v11468, %v11466
    %v11855 = vpack.c.b16 %v11469, %v11467
    %v11856 = vpack.c.b16 %v11472, %v11470
    %v11857 = vpack.c.b16 %v11473, %v11471
    %v11858 = vpack.c.b16 %v11476, %v11474
    %v11859 = vpack.c.b16 %v11477, %v11475
    %v11860 = vpack.c.b16 %v11480, %v11478
    %v11861 = vpack.c.b16 %v11481, %v11479
    %v11862 = vpack.c.b16 %v11484, %v11482
    %v11863 = vpack.c.b16 %v11485, %v11483
    %v11864 = vpack.c.b16 %v11488, %v11486
    %v11865 = vpack.c.b16 %v11489, %v11487
    %v11866 = vpack.c.b16 %v11492, %v11490
    %v11867 = vpack.c.b16 %v11493, %v11491
    %v11868 = vpack.c.b16 %v11496, %v11494
    %v11869 = vpack.c.b16 %v11497, %v11495
    %v11870 = vpack.c.b16 %v11500, %v11498
    %v11871 = vpack.c.b16 %v11501, %v11499
    %v11872 = vpack.c.b16 %v11504, %v11502
    %v11873 = vpack.c.b16 %v11505, %v11503
    %v11874 = vpack.c.b16 %v11508, %v11506
    %v11875 = vpack.c.b16 %v11509, %v11507
    %v11876 = vpack.c.b16 %v11512, %v11510
    %v11877 = vpack.c.b16 %v11513, %v11511
    %v11878 = vpack.c.b16 %v11516, %v11514
    %v11879 = vpack.c.b16 %v11517, %v11515
    %v11880 = vpack.c.b16 %v11520, %v11518
    %v11881 = vpack.c.b16 %v11521, %v11519
    %v11882 = vpack.c.b16 %v11524, %v11522
    %v11883 = vpack.c.b16 %v11525, %v11523
    %v11884 = vpack.c.b16 %v11528, %v11526
    %v11885 = vpack.c.b16 %v11529, %v11527
    %v11886 = vpack.c.b16 %v11532, %v11530
    %v11887 = vpack.c.b16 %v11533, %v11531
    %v11888 = vpack.c.b16 %v11536, %v11534
    %v11889 = vpack.c.b16 %v11537, %v11535
    %v11890 = vpack.c.b16 %v11540, %v11538
    %v11891 = vpack.c.b16 %v11541, %v11539
    %v11892 = vpack.c.b16 %v11544, %v11542
    %v11893 = vpack.c.b16 %v11545, %v11543
    %v11894 = vpack.c.b16 %v11548, %v11546
    %v11895 = vpack.c.b16 %v11549, %v11547
    %v11896 = vpack.c.b16 %v11552, %v11550
    %v11897 = vpack.c.b16 %v11553, %v11551
    %v11898 = vpack.c.b16 %v11556, %v11554
    %v11899 = vpack.c.b16 %v11557, %v11555
    %v11900 = vpack.c.b16 %v11560, %v11558
    %v11901 = vpack.c.b16 %v11561, %v11559
    %v11902 = vpack.c.b16 %v11564, %v11562
    %v11903 = vpack.c.b16 %v11565, %v11563
    %v11904 = vpack.c.b16 %v11568, %v11566
    %v11905 = vpack.c.b16 %v11569, %v11567
    %v11906 = vpack.c.b16 %v11572, %v11570
    %v11907 = vpack.c.b16 %v11573, %v11571
    %v11908 = vpack.c.b16 %v11576, %v11574
    %v11909 = vpack.c.b16 %v11577, %v11575
    %v11910 = vpack.c.b16 %v11580, %v11578
    %v11911 = vpack.c.b16 %v11581, %v11579
    %v11912 = vpack.c.b16 %v11584, %v11582
    %v11913 = vpack.c.b16 %v11585, %v11583
    %v11914 = vpack.c.b16 %v11588, %v11586
    %v11915 = vpack.c.b16 %v11589, %v11587
    %v11916 = vpack.c.b16 %v11592, %v11590
    %v11917 = vpack.c.b16 %v11593, %v11591
    %v11918 = vpack.c.b16 %v11596, %v11594
    %v11919 = vpack.c.b16 %v11597, %v11595
    %v11920 = vpack.c.b16 %v11600, %v11598
    %v11921 = vpack.c.b16 %v11601, %v11599
    %v11922 = vpack.c.b16 %v11604, %v11602
    %v11923 = vpack.c.b16 %v11605, %v11603
    %v11924 = vpack.c.b16 %v11608, %v11606
    %v11925 = vpack.c.b16 %v11609, %v11607
    %v11926 = vpack.c.b16 %v11612, %v11610
    %v11927 = vpack.c.b16 %v11613, %v11611
    %v11928 = vpack.c.b16 %v11616, %v11614
    %v11929 = vpack.c.b16 %v11617, %v11615
    %v11930 = vpack.c.b16 %v11620, %v11618
    %v11931 = vpack.c.b16 %v11621, %v11619
    %v11932 = vpack.c.b16 %v11624, %v11622
    %v11933 = vpack.c.b16 %v11625, %v11623
    %v11934 = vpack.c.b16 %v11628, %v11626
    %v11935 = vpack.c.b16 %v11629, %v11627
    %v11936 = vpack.c.b16 %v11632, %v11630
    %v11937 = vpack.c.b16 %v11633, %v11631
    %v11938 = vpack.c.b16 %v11636, %v11634
    %v11939 = vpack.c.b16 %v11637, %v11635
    %v11940 = vpack.c.b16 %v11640, %v11638
    %v11941 = vpack.c.b16 %v11641, %v11639
    %v11942 = vpack.c.b16 %v11644, %v11642
    %v11943 = vpack.c.b16 %v11645, %v11643
    %v11944 = vpack.c.b16 %v11648, %v11646
    %v11945 = vpack.c.b16 %v11649, %v11647
    %v11946 = vpack.c.b16 %v11652, %v11650
    %v11947 = vpack.c.b16 %v11653, %v11651
    %v11948 = vpack.c.b16 %v11656, %v11654
    %v11949 = vpack.c.b16 %v11657, %v11655
    %v11950 = vpack.c.b16 %v11660, %v11658
    %v11951 = vpack.c.b16 %v11661, %v11659
    %v11952 = vpack.c.b16 %v11664, %v11662
    %v11953 = vpack.c.b16 %v11665, %v11663
    %v11954 = vpack.c.b16 %v11668, %v11666
    %v11955 = vpack.c.b16 %v11669, %v11667
    %v11956 = vpack.c.b16 %v11672, %v11670
    %v11957 = vpack.c.b16 %v11673, %v11671
    %v11958 = vpack.c.b16 %v11676, %v11674
    %v11959 = vpack.c.b16 %v11677, %v11675
    %v11960 = vpack.c.b16 %v11680, %v11678
    %v11961 = vpack.c.b16 %v11681, %v11679
    %v11962 = vpack.c.b16 %v11684, %v11682
    %v11963 = vpack.c.b16 %v11685, %v11683
    %v11964 = vpack.c.b16 %v11688, %v11686
    %v11965 = vpack.c.b16 %v11689, %v11687
    %v11966 = vpack.c.b16 %v11692, %v11690
    %v11967 = vpack.c.b16 %v11693, %v11691
    %v11968 = vpack.c.b16 %v11696, %v11694
    %v11969 = vpack.c.b16 %v11697, %v11695
    %v11970 = vpack.c.b16 %v11700, %v11698
    %v11971 = vpack.c.b16 %v11701, %v11699
    %v11972 = vpack.c.b16 %v11704, %v11702
    %v11973 = vpack.c.b16 %v11705, %v11703
    %v11974 = vpack.c.b16 %v11708, %v11706
    %v11975 = vpack.c.b16 %v11709, %v11707
    %v11976 = vpack.c.b16 %v11712, %v11710
    %v11977 = vpack.c.b16 %v11713, %v11711
    %v11978 = vpack.c.b16 %v11716, %v11714
    %v11979 = vpack.c.b16 %v11717, %v11715
    %v11980 = vpack.c.b16 %v11720, %v11718
    %v11981 = vpack.c.b16 %v11721, %v11719
    %v11982 = vpack.c.b16 %v11724, %v11722
    %v11983 = vpack.c.b16 %v11725, %v11723
    %v11984 = vpack.c.b16 %v11728, %v11726
    %v11985 = vpack.c.b16 %v11729, %v11727
    %12242 = vmatprep.subr.bf16.mxu0 %v11731
    %12243 = vmatpush1.bf16.msra.mxu0 %v11730
    %12244 = vmatprep.subr.bf16.mxu0 %v11733
    %12245 = vmatpush1.bf16.msra.mxu0 %v11732
    %12246 = vmatprep.subr.bf16.mxu0 %v11735
    %12247 = vmatpush1.bf16.msra.mxu0 %v11734
    %12248 = vmatprep.subr.bf16.mxu0 %v11737
    %12249 = vmatpush1.bf16.msra.mxu0 %v11736
    %12250 = vmatprep.subr.bf16.mxu0 %v11739
    %12251 = vmatpush1.bf16.msra.mxu0 %v11738
    %12252 = vmatprep.subr.bf16.mxu0 %v11741
    %12253 = vmatpush1.bf16.msra.mxu0 %v11740
    %12254 = vmatprep.subr.bf16.mxu0 %v11743
    %12255 = vmatpush1.bf16.msra.mxu0 %v11742
    %12256 = vmatprep.subr.bf16.mxu0 %v11745
    %12257 = vmatpush1.bf16.msra.mxu0 %v11744
    %12258 = vmatprep.subr.bf16.mxu0 %v11747
    %12259 = vmatpush1.bf16.msra.mxu0 %v11746
    %12260 = vmatprep.subr.bf16.mxu0 %v11749
    %12261 = vmatpush1.bf16.msra.mxu0 %v11748
    %12262 = vmatprep.subr.bf16.mxu0 %v11751
    %12263 = vmatpush1.bf16.msra.mxu0 %v11750
    %12264 = vmatprep.subr.bf16.mxu0 %v11753
    %12265 = vmatpush1.bf16.msra.mxu0 %v11752
    %12266 = vmatprep.subr.bf16.mxu0 %v11755
    %12267 = vmatpush1.bf16.msra.mxu0 %v11754
    %12268 = vmatprep.subr.bf16.mxu0 %v11757
    %12269 = vmatpush1.bf16.msra.mxu0 %v11756
    %12270 = vmatprep.subr.bf16.mxu0 %v11759
    %12271 = vmatpush1.bf16.msra.mxu0 %v11758
    %12272 = vmatprep.subr.bf16.mxu0 %v11761
    %12273 = vmatpush1.bf16.msra.mxu0 %v11760
    %12274 = vmatprep.mubr.bf16.mxu0 %v10679
    %12275 = vmatmul.mubr.bf16.gmra.mrb[0].mxu0 %v10678
    %v12276 = vpop.f32.mrb[0].mxu0
    %v12277 = vadd.f32 %v10955, %v12276
    %v12278 = vpop.f32.mrb[0].mxu0
    %v12279 = vadd.f32 %v10959, %v12278
    %v12280 = vpop.f32.mrb[0].mxu0
    %v12281 = vpop.f32.mrb[0].mxu0
    %12282 = vdwg.mxu0
    %12283 = vmatprep.subr.bf16.mxu0 %v11763
    %12284 = vmatpush1.bf16.msra.mxu0 %v11762
    %12285 = vmatprep.subr.bf16.mxu0 %v11765
    %12286 = vmatpush1.bf16.msra.mxu0 %v11764
    %12287 = vmatprep.subr.bf16.mxu0 %v11767
    %12288 = vmatpush1.bf16.msra.mxu0 %v11766
    %12289 = vmatprep.subr.bf16.mxu0 %v11769
    %12290 = vmatpush1.bf16.msra.mxu0 %v11768
    %12291 = vmatprep.subr.bf16.mxu0 %v11771
    %12292 = vmatpush1.bf16.msra.mxu0 %v11770
    %12293 = vmatprep.subr.bf16.mxu0 %v11773
    %12294 = vmatpush1.bf16.msra.mxu0 %v11772
    %12295 = vmatprep.subr.bf16.mxu0 %v11775
    %12296 = vmatpush1.bf16.msra.mxu0 %v11774
    %12297 = vmatprep.subr.bf16.mxu0 %v11777
    %12298 = vmatpush1.bf16.msra.mxu0 %v11776
    %12299 = vmatprep.subr.bf16.mxu0 %v11779
    %12300 = vmatpush1.bf16.msra.mxu0 %v11778
    %12301 = vmatprep.subr.bf16.mxu0 %v11781
    %12302 = vmatpush1.bf16.msra.mxu0 %v11780
    %12303 = vmatprep.subr.bf16.mxu0 %v11783
    %12304 = vmatpush1.bf16.msra.mxu0 %v11782
    %12305 = vmatprep.subr.bf16.mxu0 %v11785
    %12306 = vmatpush1.bf16.msra.mxu0 %v11784
    %12307 = vmatprep.subr.bf16.mxu0 %v11787
    %12308 = vmatpush1.bf16.msra.mxu0 %v11786
    %12309 = vmatprep.subr.bf16.mxu0 %v11789
    %12310 = vmatpush1.bf16.msra.mxu0 %v11788
    %12311 = vmatprep.subr.bf16.mxu0 %v11791
    %12312 = vmatpush1.bf16.msra.mxu0 %v11790
    %12313 = vmatprep.subr.bf16.mxu0 %v11793
    %12314 = vmatpush1.bf16.msra.mxu0 %v11792
    %12315 = vmatprep.mubr.bf16.mxu0 %v10681
    %12316 = vmatmul.mubr.bf16.gmra.mrb[0].mxu0 %v10680
    %v12317 = vpop.f32.mrb[0].mxu0
    %v12318 = vadd.f32 %v12277, %v12317
    %v12319 = vpop.f32.mrb[0].mxu0
    %v12320 = vadd.f32 %v12279, %v12319
    %v12321 = vpop.f32.mrb[0].mxu0
    %v12322 = vpop.f32.mrb[0].mxu0
    %12323 = vdwg.mxu0
    %12324 = vmatprep.subr.bf16.mxu0 %v11795
    %12325 = vmatpush1.bf16.msra.mxu0 %v11794
    %12326 = vmatprep.subr.bf16.mxu0 %v11797
    %12327 = vmatpush1.bf16.msra.mxu0 %v11796
    %12328 = vmatprep.subr.bf16.mxu0 %v11799
    %12329 = vmatpush1.bf16.msra.mxu0 %v11798
    %12330 = vmatprep.subr.bf16.mxu0 %v11801
    %12331 = vmatpush1.bf16.msra.mxu0 %v11800
    %12332 = vmatprep.subr.bf16.mxu0 %v11803
    %12333 = vmatpush1.bf16.msra.mxu0 %v11802
    %12334 = vmatprep.subr.bf16.mxu0 %v11805
    %12335 = vmatpush1.bf16.msra.mxu0 %v11804
    %12336 = vmatprep.subr.bf16.mxu0 %v11807
    %12337 = vmatpush1.bf16.msra.mxu0 %v11806
    %12338 = vmatprep.subr.bf16.mxu0 %v11809
    %12339 = vmatpush1.bf16.msra.mxu0 %v11808
    %12340 = vmatprep.subr.bf16.mxu0 %v11811
    %12341 = vmatpush1.bf16.msra.mxu0 %v11810
    %12342 = vmatprep.subr.bf16.mxu0 %v11813
    %12343 = vmatpush1.bf16.msra.mxu0 %v11812
    %12344 = vmatprep.subr.bf16.mxu0 %v11815
    %12345 = vmatpush1.bf16.msra.mxu0 %v11814
    %12346 = vmatprep.subr.bf16.mxu0 %v11817
    %12347 = vmatpush1.bf16.msra.mxu0 %v11816
    %12348 = vmatprep.subr.bf16.mxu0 %v11819
    %12349 = vmatpush1.bf16.msra.mxu0 %v11818
    %12350 = vmatprep.subr.bf16.mxu0 %v11821
    %12351 = vmatpush1.bf16.msra.mxu0 %v11820
    %12352 = vmatprep.subr.bf16.mxu0 %v11823
    %12353 = vmatpush1.bf16.msra.mxu0 %v11822
    %12354 = vmatprep.subr.bf16.mxu0 %v11825
    %12355 = vmatpush1.bf16.msra.mxu0 %v11824
    %12356 = vmatprep.mubr.bf16.mxu0 %v10683
    %12357 = vmatmul.mubr.bf16.gmra.mrb[0].mxu0 %v10682
    %v12358 = vpop.f32.mrb[0].mxu0
    %v12359 = vadd.f32 %v12318, %v12358
    %v12360 = vpop.f32.mrb[0].mxu0
    %v12361 = vadd.f32 %v12320, %v12360
    %v12362 = vpop.f32.mrb[0].mxu0
    %v12363 = vpop.f32.mrb[0].mxu0
    %12364 = vdwg.mxu0
    %12365 = vmatprep.subr.bf16.mxu0 %v11827
    %12366 = vmatpush1.bf16.msra.mxu0 %v11826
    %12367 = vmatprep.subr.bf16.mxu0 %v11829
    %12368 = vmatpush1.bf16.msra.mxu0 %v11828
    %12369 = vmatprep.subr.bf16.mxu0 %v11831
    %12370 = vmatpush1.bf16.msra.mxu0 %v11830
    %12371 = vmatprep.subr.bf16.mxu0 %v11833
    %12372 = vmatpush1.bf16.msra.mxu0 %v11832
    %12373 = vmatprep.subr.bf16.mxu0 %v11835
    %12374 = vmatpush1.bf16.msra.mxu0 %v11834
    %12375 = vmatprep.subr.bf16.mxu0 %v11837
    %12376 = vmatpush1.bf16.msra.mxu0 %v11836
    %12377 = vmatprep.subr.bf16.mxu0 %v11839
    %12378 = vmatpush1.bf16.msra.mxu0 %v11838
    %12379 = vmatprep.subr.bf16.mxu0 %v11841
    %12380 = vmatpush1.bf16.msra.mxu0 %v11840
    %12381 = vmatprep.subr.bf16.mxu0 %v11843
    %12382 = vmatpush1.bf16.msra.mxu0 %v11842
    %12383 = vmatprep.subr.bf16.mxu0 %v11845
    %12384 = vmatpush1.bf16.msra.mxu0 %v11844
    %12385 = vmatprep.subr.bf16.mxu0 %v11847
    %12386 = vmatpush1.bf16.msra.mxu0 %v11846
    %12387 = vmatprep.subr.bf16.mxu0 %v11849
    %12388 = vmatpush1.bf16.msra.mxu0 %v11848
    %12389 = vmatprep.subr.bf16.mxu0 %v11851
    %12390 = vmatpush1.bf16.msra.mxu0 %v11850
    %12391 = vmatprep.subr.bf16.mxu0 %v11853
    %12392 = vmatpush1.bf16.msra.mxu0 %v11852
    %12393 = vmatprep.subr.bf16.mxu0 %v11855
    %12394 = vmatpush1.bf16.msra.mxu0 %v11854
    %12395 = vmatprep.subr.bf16.mxu0 %v11857
    %12396 = vmatpush1.bf16.msra.mxu0 %v11856
    %12397 = vmatprep.mubr.bf16.mxu0 %v10685
    %12398 = vmatmul.mubr.bf16.gmra.mrb[0].mxu0 %v10684
    %v12399 = vpop.f32.mrb[0].mxu0
    %v12400 = vadd.f32 %v12359, %v12399
    %v12401 = vpop.f32.mrb[0].mxu0
    %v12402 = vadd.f32 %v12361, %v12401
    %v12403 = vpop.f32.mrb[0].mxu0
    %v12404 = vpop.f32.mrb[0].mxu0
    %12405 = vdwg.mxu0
    %12406 = vmatprep.subr.bf16.mxu0 %v11859
    %12407 = vmatpush1.bf16.msra.mxu0 %v11858
    %12408 = vmatprep.subr.bf16.mxu0 %v11861
    %12409 = vmatpush1.bf16.msra.mxu0 %v11860
    %12410 = vmatprep.subr.bf16.mxu0 %v11863
    %12411 = vmatpush1.bf16.msra.mxu0 %v11862
    %12412 = vmatprep.subr.bf16.mxu0 %v11865
    %12413 = vmatpush1.bf16.msra.mxu0 %v11864
    %12414 = vmatprep.subr.bf16.mxu0 %v11867
    %12415 = vmatpush1.bf16.msra.mxu0 %v11866
    %12416 = vmatprep.subr.bf16.mxu0 %v11869
    %12417 = vmatpush1.bf16.msra.mxu0 %v11868
    %12418 = vmatprep.subr.bf16.mxu0 %v11871
    %12419 = vmatpush1.bf16.msra.mxu0 %v11870
    %12420 = vmatprep.subr.bf16.mxu0 %v11873
    %12421 = vmatpush1.bf16.msra.mxu0 %v11872
    %12422 = vmatprep.subr.bf16.mxu0 %v11875
    %12423 = vmatpush1.bf16.msra.mxu0 %v11874
    %12424 = vmatprep.subr.bf16.mxu0 %v11877
    %12425 = vmatpush1.bf16.msra.mxu0 %v11876
    %12426 = vmatprep.subr.bf16.mxu0 %v11879
    %12427 = vmatpush1.bf16.msra.mxu0 %v11878
    %12428 = vmatprep.subr.bf16.mxu0 %v11881
    %12429 = vmatpush1.bf16.msra.mxu0 %v11880
    %12430 = vmatprep.subr.bf16.mxu0 %v11883
    %12431 = vmatpush1.bf16.msra.mxu0 %v11882
    %12432 = vmatprep.subr.bf16.mxu0 %v11885
    %12433 = vmatpush1.bf16.msra.mxu0 %v11884
    %12434 = vmatprep.subr.bf16.mxu0 %v11887
    %12435 = vmatpush1.bf16.msra.mxu0 %v11886
    %12436 = vmatprep.subr.bf16.mxu0 %v11889
    %12437 = vmatpush1.bf16.msra.mxu0 %v11888
    %12438 = vmatprep.mubr.bf16.mxu0 %v10687
    %12439 = vmatmul.mubr.bf16.gmra.mrb[0].mxu0 %v10686
    %v12440 = vpop.f32.mrb[0].mxu0
    %v12441 = vadd.f32 %v12400, %v12440
    %v12442 = vpop.f32.mrb[0].mxu0
    %v12443 = vadd.f32 %v12402, %v12442
    %v12444 = vpop.f32.mrb[0].mxu0
    %v12445 = vpop.f32.mrb[0].mxu0
    %12446 = vdwg.mxu0
    %12447 = vmatprep.subr.bf16.mxu0 %v11891
    %12448 = vmatpush1.bf16.msra.mxu0 %v11890
    %12449 = vmatprep.subr.bf16.mxu0 %v11893
    %12450 = vmatpush1.bf16.msra.mxu0 %v11892
    %12451 = vmatprep.subr.bf16.mxu0 %v11895
    %12452 = vmatpush1.bf16.msra.mxu0 %v11894
    %12453 = vmatprep.subr.bf16.mxu0 %v11897
    %12454 = vmatpush1.bf16.msra.mxu0 %v11896
    %12455 = vmatprep.subr.bf16.mxu0 %v11899
    %12456 = vmatpush1.bf16.msra.mxu0 %v11898
    %12457 = vmatprep.subr.bf16.mxu0 %v11901
    %12458 = vmatpush1.bf16.msra.mxu0 %v11900
    %12459 = vmatprep.subr.bf16.mxu0 %v11903
    %12460 = vmatpush1.bf16.msra.mxu0 %v11902
    %12461 = vmatprep.subr.bf16.mxu0 %v11905
    %12462 = vmatpush1.bf16.msra.mxu0 %v11904
    %12463 = vmatprep.subr.bf16.mxu0 %v11907
    %12464 = vmatpush1.bf16.msra.mxu0 %v11906
    %12465 = vmatprep.subr.bf16.mxu0 %v11909
    %12466 = vmatpush1.bf16.msra.mxu0 %v11908
    %12467 = vmatprep.subr.bf16.mxu0 %v11911
    %12468 = vmatpush1.bf16.msra.mxu0 %v11910
    %12469 = vmatprep.subr.bf16.mxu0 %v11913
    %12470 = vmatpush1.bf16.msra.mxu0 %v11912
    %12471 = vmatprep.subr.bf16.mxu0 %v11915
    %12472 = vmatpush1.bf16.msra.mxu0 %v11914
    %12473 = vmatprep.subr.bf16.mxu0 %v11917
    %12474 = vmatpush1.bf16.msra.mxu0 %v11916
    %12475 = vmatprep.subr.bf16.mxu0 %v11919
    %12476 = vmatpush1.bf16.msra.mxu0 %v11918
    %12477 = vmatprep.subr.bf16.mxu0 %v11921
    %12478 = vmatpush1.bf16.msra.mxu0 %v11920
    %12479 = vmatprep.mubr.bf16.mxu0 %v10689
    %12480 = vmatmul.mubr.bf16.gmra.mrb[0].mxu0 %v10688
    %v12481 = vpop.f32.mrb[0].mxu0
    %v12482 = vadd.f32 %v12441, %v12481
    %v12483 = vpop.f32.mrb[0].mxu0
    %v12484 = vadd.f32 %v12443, %v12483
    %v12485 = vpop.f32.mrb[0].mxu0
    %v12486 = vpop.f32.mrb[0].mxu0
    %12487 = vdwg.mxu0
    %12488 = vmatprep.subr.bf16.mxu0 %v11923
    %12489 = vmatpush1.bf16.msra.mxu0 %v11922
    %12490 = vmatprep.subr.bf16.mxu0 %v11925
    %12491 = vmatpush1.bf16.msra.mxu0 %v11924
    %12492 = vmatprep.subr.bf16.mxu0 %v11927
    %12493 = vmatpush1.bf16.msra.mxu0 %v11926
    %12494 = vmatprep.subr.bf16.mxu0 %v11929
    %12495 = vmatpush1.bf16.msra.mxu0 %v11928
    %12496 = vmatprep.subr.bf16.mxu0 %v11931
    %12497 = vmatpush1.bf16.msra.mxu0 %v11930
    %12498 = vmatprep.subr.bf16.mxu0 %v11933
    %12499 = vmatpush1.bf16.msra.mxu0 %v11932
    %12500 = vmatprep.subr.bf16.mxu0 %v11935
    %12501 = vmatpush1.bf16.msra.mxu0 %v11934
    %12502 = vmatprep.subr.bf16.mxu0 %v11937
    %12503 = vmatpush1.bf16.msra.mxu0 %v11936
    %12504 = vmatprep.subr.bf16.mxu0 %v11939
    %12505 = vmatpush1.bf16.msra.mxu0 %v11938
    %12506 = vmatprep.subr.bf16.mxu0 %v11941
    %12507 = vmatpush1.bf16.msra.mxu0 %v11940
    %12508 = vmatprep.subr.bf16.mxu0 %v11943
    %12509 = vmatpush1.bf16.msra.mxu0 %v11942
    %12510 = vmatprep.subr.bf16.mxu0 %v11945
    %12511 = vmatpush1.bf16.msra.mxu0 %v11944
    %12512 = vmatprep.subr.bf16.mxu0 %v11947
    %12513 = vmatpush1.bf16.msra.mxu0 %v11946
    %12514 = vmatprep.subr.bf16.mxu0 %v11949
    %12515 = vmatpush1.bf16.msra.mxu0 %v11948
    %12516 = vmatprep.subr.bf16.mxu0 %v11951
    %12517 = vmatpush1.bf16.msra.mxu0 %v11950
    %12518 = vmatprep.subr.bf16.mxu0 %v11953
    %12519 = vmatpush1.bf16.msra.mxu0 %v11952
    %12520 = vmatprep.mubr.bf16.mxu0 %v10691
    %12521 = vmatmul.mubr.bf16.gmra.mrb[0].mxu0 %v10690
    %v12522 = vpop.f32.mrb[0].mxu0
    %v12523 = vadd.f32 %v12482, %v12522
    %v12524 = vpop.f32.mrb[0].mxu0
    %v12525 = vadd.f32 %v12484, %v12524
    %v12526 = vpop.f32.mrb[0].mxu0
    %v12527 = vpop.f32.mrb[0].mxu0
    %12528 = vdwg.mxu0
    %12529 = vmatprep.subr.bf16.mxu0 %v11955
    %12530 = vmatpush1.bf16.msra.mxu0 %v11954
    %12531 = vmatprep.subr.bf16.mxu0 %v11957
    %12532 = vmatpush1.bf16.msra.mxu0 %v11956
    %12533 = vmatprep.subr.bf16.mxu0 %v11959
    %12534 = vmatpush1.bf16.msra.mxu0 %v11958
    %12535 = vmatprep.subr.bf16.mxu0 %v11961
    %12536 = vmatpush1.bf16.msra.mxu0 %v11960
    %12537 = vmatprep.subr.bf16.mxu0 %v11963
    %12538 = vmatpush1.bf16.msra.mxu0 %v11962
    %12539 = vmatprep.subr.bf16.mxu0 %v11965
    %12540 = vmatpush1.bf16.msra.mxu0 %v11964
    %12541 = vmatprep.subr.bf16.mxu0 %v11967
    %12542 = vmatpush1.bf16.msra.mxu0 %v11966
    %12543 = vmatprep.subr.bf16.mxu0 %v11969
    %12544 = vmatpush1.bf16.msra.mxu0 %v11968
    %12545 = vmatprep.subr.bf16.mxu0 %v11971
    %12546 = vmatpush1.bf16.msra.mxu0 %v11970
    %12547 = vmatprep.subr.bf16.mxu0 %v11973
    %12548 = vmatpush1.bf16.msra.mxu0 %v11972
    %12549 = vmatprep.subr.bf16.mxu0 %v11975
    %12550 = vmatpush1.bf16.msra.mxu0 %v11974
    %12551 = vmatprep.subr.bf16.mxu0 %v11977
    %12552 = vmatpush1.bf16.msra.mxu0 %v11976
    %12553 = vmatprep.subr.bf16.mxu0 %v11979
    %12554 = vmatpush1.bf16.msra.mxu0 %v11978
    %12555 = vmatprep.subr.bf16.mxu0 %v11981
    %12556 = vmatpush1.bf16.msra.mxu0 %v11980
    %12557 = vmatprep.subr.bf16.mxu0 %v11983
    %12558 = vmatpush1.bf16.msra.mxu0 %v11982
    %12559 = vmatprep.subr.bf16.mxu0 %v11985
    %12560 = vmatpush1.bf16.msra.mxu0 %v11984
    %12561 = vmatprep.mubr.bf16.mxu0 %v10693
    %12562 = vmatmul.mubr.bf16.gmra.mrb[0].mxu0 %v10692
    %v12563 = vpop.f32.mrb[0].mxu0
    %v12564 = vadd.f32 %v12523, %v12563
    %v12565 = vpop.f32.mrb[0].mxu0
    %v12566 = vadd.f32 %v12525, %v12565
    %v12567 = vpop.f32.mrb[0].mxu0
    %v12568 = vpop.f32.mrb[0].mxu0
    %12569 = vdwg.mxu0
    %v12570 = vxor.u32 %v12564, 2147483648
    %v12571 = vxor.u32 %v12566, 2147483648
    %v12572 = vmul.f32 %v12570, 1.442695
    %v12573 = vpow.pop %v12572
    %v12574 = vmul.f32 %v12571, 1.442695
    %v12575 = vpow.pop %v12574
    %v12576 = vadd.f32 %v12573, 1.0
    %v12577 = vadd.f32 %v12575, 1.0
    %v12578 = vrcp.pop %v12576
    %v12579 = vmul.f32 1.0, %v12578
    %v12580 = vrcp.pop %v12577
    %v12581 = vmul.f32 1.0, %v12580
    %v12582 = vld [vmem:[%s17] sm:$0xff]
    %v12583 = vld [vmem:[%s17 + $0x8] sm:$0x3]
    %v12585 = vsel %vm6496, %v6480, 0
    %vm12587 = vcmask 1041408
    %v12589 = vsel %vm12587, %v12583, 0
    %12591 = vmatprep.subr.mxu0 0.0
    %12592 = vmatpush1.msra.mxu0 %v12582
    %12593 = vmatprep.subr.mxu0 0.0
    %12594 = vmatpush1.msra.mxu0 %v12589
    %12595 = vmatprep.subr.mxu0 0.0
    %12596 = vmatpush1.msra.mxu0 0.0
    %12597 = vmatprep.subr.mxu0 0.0
    %12598 = vmatpush1.msra.mxu0 0.0
    %12599 = vmatprep.subr.mxu0 0.0
    %12600 = vmatpush1.msra.mxu0 0.0
    %12601 = vmatprep.subr.mxu0 0.0
    %12602 = vmatpush1.msra.mxu0 0.0
    %12603 = vmatprep.subr.mxu0 0.0
    %12604 = vmatpush1.msra.mxu0 0.0
    %12605 = vmatprep.subr.mxu0 0.0
    %12606 = vmatpush1.msra.mxu0 0.0
    %12607 = vmatprep.subr.mxu0 0.0
    %12608 = vmatpush1.msra.mxu0 0.0
    %12609 = vmatprep.subr.mxu0 0.0
    %12610 = vmatpush1.msra.mxu0 0.0
    %12611 = vmatprep.subr.mxu0 0.0
    %12612 = vmatpush1.msra.mxu0 0.0
    %12613 = vmatprep.subr.mxu0 0.0
    %12614 = vmatpush1.msra.mxu0 0.0
    %12615 = vmatprep.subr.mxu0 0.0
    %12616 = vmatpush1.msra.mxu0 0.0
    %12617 = vmatprep.subr.mxu0 0.0
    %12618 = vmatpush1.msra.mxu0 0.0
    %12619 = vmatprep.subr.mxu0 0.0
    %12620 = vmatpush1.msra.mxu0 0.0
    %12621 = vmatprep.subr.mxu0 0.0
    %12622 = vmatpush1.msra.mxu0 0.0
    %12623 = vmatprep.subr.mxu0 0.0
    %12624 = vmatpush1.msra.mxu0 0.0
    %12625 = vmatprep.subr.mxu0 0.0
    %12626 = vmatpush1.msra.mxu0 0.0
    %12627 = vmatprep.subr.mxu0 0.0
    %12628 = vmatpush1.msra.mxu0 0.0
    %12629 = vmatprep.subr.mxu0 0.0
    %12630 = vmatpush1.msra.mxu0 0.0
    %12631 = vmatprep.subr.mxu0 0.0
    %12632 = vmatpush1.msra.mxu0 0.0
    %12633 = vmatprep.subr.mxu0 0.0
    %12634 = vmatpush1.msra.mxu0 0.0
    %12635 = vmatprep.subr.mxu0 0.0
    %12636 = vmatpush1.msra.mxu0 0.0
    %12637 = vmatprep.subr.mxu0 0.0
    %12638 = vmatpush1.msra.mxu0 0.0
    %12639 = vmatprep.subr.mxu0 0.0
    %12640 = vmatpush1.msra.mxu0 0.0
    %12641 = vmatprep.subr.mxu0 0.0
    %12642 = vmatpush1.msra.mxu0 0.0
    %12643 = vmatprep.subr.mxu0 0.0
    %12644 = vmatpush1.msra.mxu0 0.0
    %12645 = vmatprep.subr.mxu0 0.0
    %12646 = vmatpush1.msra.mxu0 0.0
    %12647 = vmatprep.subr.mxu0 0.0
    %12648 = vmatpush1.msra.mxu0 0.0
    %12649 = vmatprep.subr.mxu0 0.0
    %12650 = vmatpush1.msra.mxu0 0.0
    %12651 = vmatprep.subr.mxu0 0.0
    %12652 = vmatpush1.msra.mxu0 0.0
    %12653 = vmatprep.subr.mxu0 0.0
    %12654 = vmatpush1.msra.mxu0 0.0
    %12655 = vmatprep.mubr.f32.mxu0 0.0
    %12656 = vmatmul.mubr.f32.gmra.mrb[0].mxu0 %v12585
    %v12657 = vpop.f32.mrb[0].mxu0
    %v12658 = vadd.f32 0.0, %v12657
    %v12659 = vpop.f32.mrb[0].mxu0
    %12660 = vdwg.mxu0
    %v12661 = vmul.f32 %v6480, %v6480
    %vm12662 = vcmask 74752
    %v12663 = vsel %vm12662, %v12661, 0.0
    %12664 = vadd.xlane.f32.xlu0 %v12663
    %v12665 = vpop.xlane.xlu0 %12664
    %v12666 = vmul.f32 %v12582, %v12582
    %v12667 = vmul.f32 %v12583, %v12583
    %vm12668 = vcmask 64512
    %v12669 = vsel %vm12668, %v12666, 0.0
    %vm12670 = vcmask 58368
    %v12671 = vsel %vm12670, %v12667, 0.0
    %v12672 = vadd.f32 %v12669, %v12671
    %v12673 = vrot.slane %v12672, 4
    %v12674 = vadd.f32 %v12672, %v12673
    %v12675 = vrot.slane %v12674, 2
    %v12676 = vadd.f32 %v12674, %v12675
    %v12677 = vrot.slane %v12676, 1
    %v12678 = vadd.f32 %v12676, %v12677
    %v12679 = vadd.f32 %v12665, %v12678
    %v12680 = vmul.f32 %v12658, 2.0
    %v12681 = vsub.f32 %v12679, %v12680
    %v12682 = vmax.f32 %v12681, 0.0
    %v12683 = vrsqrt.pop %v12682
    %v12684 = vmul.f32 %v12682, %v12683
    %vm12685 = vcmp.eq.f32.partialorder %v12682, inf
    %v12686 = vsel %vm12685, %v12682, %v12684
    %vm12687 = vcmp.eq.f32.partialorder %v12682, 0.0
    %v12688 = vand.u32 %v12682, 2147483648
    %v12689 = vsel %vm12687, %v12688, %v12686
    %v12690 = vld [vmem:[%s18] sm:$0xff]
    %v12691 = vld [vmem:[#allocation27] sm:$0x1]
    %v12693 = vlaneseq
    %v12694 = vshrl.u32 %v12693, 7
    %v12695 = vsub.s32 0, %v12694
    %v12696 = vrot.slane %v12691, %v12695
    %v12699 = vsel %vm12668, %v12689, 0
    %12701 = vmatprep.subr.mxu0 0.0
    %12702 = vmatpush1.msra.mxu0 %v12690
    %12703 = vmatprep.subr.mxu0 0.0
    %12704 = vmatpush1.msra.mxu0 0.0
    %12705 = vmatprep.subr.mxu0 0.0
    %12706 = vmatpush1.msra.mxu0 0.0
    %12707 = vmatprep.subr.mxu0 0.0
    %12708 = vmatpush1.msra.mxu0 0.0
    %12709 = vmatprep.subr.mxu0 0.0
    %12710 = vmatpush1.msra.mxu0 0.0
    %12711 = vmatprep.subr.mxu0 0.0
    %12712 = vmatpush1.msra.mxu0 0.0
    %12713 = vmatprep.subr.mxu0 0.0
    %12714 = vmatpush1.msra.mxu0 0.0
    %12715 = vmatprep.subr.mxu0 0.0
    %12716 = vmatpush1.msra.mxu0 0.0
    %12717 = vmatprep.subr.mxu0 0.0
    %12718 = vmatpush1.msra.mxu0 0.0
    %12719 = vmatprep.subr.mxu0 0.0
    %12720 = vmatpush1.msra.mxu0 0.0
    %12721 = vmatprep.subr.mxu0 0.0
    %12722 = vmatpush1.msra.mxu0 0.0
    %12723 = vmatprep.subr.mxu0 0.0
    %12724 = vmatpush1.msra.mxu0 0.0
    %12725 = vmatprep.subr.mxu0 0.0
    %12726 = vmatpush1.msra.mxu0 0.0
    %12727 = vmatprep.subr.mxu0 0.0
    %12728 = vmatpush1.msra.mxu0 0.0
    %12729 = vmatprep.subr.mxu0 0.0
    %12730 = vmatpush1.msra.mxu0 0.0
    %12731 = vmatprep.subr.mxu0 0.0
    %12732 = vmatpush1.msra.mxu0 0.0
    %12733 = vmatprep.subr.mxu0 0.0
    %12734 = vmatpush1.msra.mxu0 0.0
    %12735 = vmatprep.subr.mxu0 0.0
    %12736 = vmatpush1.msra.mxu0 0.0
    %12737 = vmatprep.subr.mxu0 0.0
    %12738 = vmatpush1.msra.mxu0 0.0
    %12739 = vmatprep.subr.mxu0 0.0
    %12740 = vmatpush1.msra.mxu0 0.0
    %12741 = vmatprep.subr.mxu0 0.0
    %12742 = vmatpush1.msra.mxu0 0.0
    %12743 = vmatprep.subr.mxu0 0.0
    %12744 = vmatpush1.msra.mxu0 0.0
    %12745 = vmatprep.subr.mxu0 0.0
    %12746 = vmatpush1.msra.mxu0 0.0
    %12747 = vmatprep.subr.mxu0 0.0
    %12748 = vmatpush1.msra.mxu0 0.0
    %12749 = vmatprep.subr.mxu0 0.0
    %12750 = vmatpush1.msra.mxu0 0.0
    %12751 = vmatprep.subr.mxu0 0.0
    %12752 = vmatpush1.msra.mxu0 0.0
    %12753 = vmatprep.subr.mxu0 0.0
    %12754 = vmatpush1.msra.mxu0 0.0
    %12755 = vmatprep.subr.mxu0 0.0
    %12756 = vmatpush1.msra.mxu0 0.0
    %12757 = vmatprep.subr.mxu0 0.0
    %12758 = vmatpush1.msra.mxu0 0.0
    %12759 = vmatprep.subr.mxu0 0.0
    %12760 = vmatpush1.msra.mxu0 0.0
    %12761 = vmatprep.subr.mxu0 0.0
    %12762 = vmatpush1.msra.mxu0 0.0
    %12763 = vmatprep.subr.mxu0 0.0
    %12764 = vmatpush1.msra.mxu0 0.0
    %12765 = vmatprep.mubr.f32.mxu0 0.0
    %12766 = vmatmul.mubr.f32.gmra.mrb[0].mxu0 %v12699
    %v12767 = vpop.f32.mrb[0].mxu0
    %v12768 = vadd.f32 %v12696, %v12767
    %v12769 = vpop.f32.mrb[0].mxu0
    %12770 = vdwg.mxu0
    %vm12771 = vcmask 25600
    %12772 = vst.msk [vmem:[#allocation29] sm:$0x3] %vm12771, %v12768
    %v12773 = vsub.f32 %v12579, %v280
    %v12774 = vsub.f32 %v12581, %v281
    %v12775 = vmul.f32 %v12773, %v12773
    %v12776 = vmul.f32 %v12774, %v12774
    %v12777 = vsel %vm12587, %v12775, 0.0
    %v12778 = vsel %vm12587, %v12776, 0.0
    %v12779 = vadd.f32 %v12777, %v12778
    %12780 = vadd.xlane.f32.xlu0 %v12779
    %v12781 = vpop.xlane.xlu0 %12780
    %v12782 = vrsqrt.pop %v12781
    %v12783 = vmul.f32 %v12781, %v12782
    %vm12784 = vcmp.eq.f32.partialorder %v12781, inf
    %v12785 = vsel %vm12784, %v12781, %v12783
    %vm12786 = vcmp.eq.f32.partialorder %v12781, 0.0
    %v12787 = vand.u32 %v12781, 2147483648
    %v12788 = vsel %vm12786, %v12787, %v12785
    %vm12789 = vcmask 1024
    %v12790 = vsel %vm12789, %v12788, 0.0
    %12791 = vadd.xlane.f32.xlu0 %v12790
    %v12792 = vpop.xlane.xlu0 %12791
    %v12793 = vrot.slane %v12792, 4
    %v12794 = vadd.f32 %v12792, %v12793
    %v12795 = vrot.slane %v12794, 2
    %v12796 = vadd.f32 %v12794, %v12795
    %v12797 = vrot.slane %v12796, 1
    %v12798 = vadd.f32 %v12796, %v12797
    %s12799 = vtos %v12798
    %v12800 = vrcp.pop 2.0
    %s12801 = vtos %v12800
    %s12802 = smul.f32 %s12799, %s12801
    %s12803 = scalar_lea.smem [#allocation30], 0
    %12804 = sst [smem:[%s12803]] %s12802
    %v12805 = vsel %vm12670, %v12689, inf
    %v12806 = vrot.slane %v12805, 4
    %v12807 = vmin.f32 %v12805, %v12806
    %v12808 = vrot.slane %v12807, 2
    %v12809 = vmin.f32 %v12807, %v12808
    %v12810 = vrot.slane %v12809, 1
    %v12811 = vmin.f32 %v12809, %v12810
    %vm12812 = vcmask 57344
    %v12813 = vsel %vm12812, %v12811, 0.0
    %12814 = vadd.xlane.f32.xlu0 %v12813
    %v12815 = vpop.xlane.xlu0 %12814
    %v12816 = vrot.slane %v12815, 4
    %v12817 = vadd.f32 %v12815, %v12816
    %v12818 = vrot.slane %v12817, 2
    %v12819 = vadd.f32 %v12817, %v12818
    %v12820 = vrot.slane %v12819, 1
    %v12821 = vadd.f32 %v12819, %v12820
    %s12822 = vtos %v12821
    %v12823 = vrcp.pop 8.0
    %s12824 = vtos %v12823
    %s12825 = smul.f32 %s12822, %s12824
    %s12826 = scalar_lea.smem [#allocation31], 0
    %12827 = sst [smem:[%s12826]] %s12825
    %12828 = vmin.xlane.f32.xlu0 %v12805
    %v12829 = vpop.xlane.xlu0 %12828
    %v12830 = vsel %vm12789, %v12829, 0.0
    %12831 = vadd.xlane.f32.xlu0 %v12830
    %v12832 = vpop.xlane.xlu0 %12831
    %v12833 = vrot.slane %v12832, 4
    %v12834 = vadd.f32 %v12832, %v12833
    %v12835 = vrot.slane %v12834, 2
    %v12836 = vadd.f32 %v12834, %v12835
    %v12837 = vrot.slane %v12836, 1
    %v12838 = vadd.f32 %v12836, %v12837
    %s12839 = vtos %v12838
    %v12840 = vrcp.pop 2.0
    %s12841 = vtos %v12840
    %s12842 = smul.f32 %s12839, %s12841
    %s12843 = scalar_lea.smem [#allocation33], 0
    %12844 = sst [smem:[%s12843]] %s12842
    // Predicated region
    $region146: #{cae_forward.1} parent=1 // pred_check
      _
    $region147: #{cae_forward.1} parent=1 // pred_check_branch
      %12846 = sbr.rel (0) target = $region149
    $region148: #{cae_forward.1} parent=1 // pred_region
      %s12848 = ssub.s32 32, 32
      %12849 = vsyncadd [#allocation4], %s12848
      %s12851 = sshll.u32 [#allocation29], 4
      %s12852 = int_to_ptr.vmem [resolvable:$true] %s12851
      %12854 = dma.vmem_to_hbm [thread:$0]  %s12852, 32, %s20, [#allocation4]
    $region149: #{cae_forward.1} parent=1 // pred_fallthru
      _
    // Predicated region
    $region150: #{cae_forward.1} parent=1 // pred_check
      _
    $region151: #{cae_forward.1} parent=1 // pred_check_branch
      %12856 = sbr.rel (0) target = $region153
    $region152: #{cae_forward.1} parent=1 // pred_region
      %s12858 = ssub.s32 16, 16
      %12859 = vsyncadd [#allocation5], %s12858
      %12862 = dma.smem_to_hbm [#allocation30], 16, %s21, [#allocation5]
    $region153: #{cae_forward.1} parent=1 // pred_fallthru
      _
    // Predicated region
    $region154: #{cae_forward.1} parent=1 // pred_check
      _
    $region155: #{cae_forward.1} parent=1 // pred_check_branch
      %12864 = sbr.rel (0) target = $region157
    $region156: #{cae_forward.1} parent=1 // pred_region
      %s12866 = ssub.s32 16, 16
      %12867 = vsyncadd [#allocation32], %s12866
      %12870 = dma.smem_to_hbm [#allocation31], 16, %s22, [#allocation32]
    $region157: #{cae_forward.1} parent=1 // pred_fallthru
      _
    // Predicated region
    $region158: #{cae_forward.1} parent=1 // pred_check
      _
    $region159: #{cae_forward.1} parent=1 // pred_check_branch
      %12872 = sbr.rel (0) target = $region161
    $region160: #{cae_forward.1} parent=1 // pred_region
      %s12874 = ssub.s32 16, 16
      %12875 = vsyncadd [#allocation32], %s12874
      %12878 = dma.smem_to_hbm [#allocation33], 16, %s23, [#allocation32]
    $region161: #{cae_forward.1} parent=1 // pred_fallthru
      _
    // Predicated region
    $region162: #{cae_forward.1} parent=1 // pred_check
      _
    $region163: #{cae_forward.1} parent=1 // pred_check_branch
      %12880 = sbr.rel (0) target = $region165
    $region164: #{cae_forward.1} parent=1 // pred_region
      %12881 = dma.done [#allocation4], 32
    $region165: #{cae_forward.1} parent=1 // pred_fallthru
      _
    // Predicated region
    $region166: #{cae_forward.1} parent=1 // pred_check
      _
    $region167: #{cae_forward.1} parent=1 // pred_check_branch
      %12883 = sbr.rel (0) target = $region169
    $region168: #{cae_forward.1} parent=1 // pred_region
      %12884 = dma.done [#allocation5], 16
    $region169: #{cae_forward.1} parent=1 // pred_fallthru
      _
    // Predicated region
    $region170: #{cae_forward.1} parent=1 // pred_check
      _
    $region171: #{cae_forward.1} parent=1 // pred_check_branch
      %12886 = sbr.rel (0) target = $region173
    $region172: #{cae_forward.1} parent=1 // pred_region
      %12887 = dma.done [#allocation32], 16
    $region173: #{cae_forward.1} parent=1 // pred_fallthru
      _
    // Predicated region
    $region174: #{cae_forward.1} parent=1 // pred_check
      _
    $region175: #{cae_forward.1} parent=1 // pred_check_branch
      %12889 = sbr.rel (0) target = $region177
    $region176: #{cae_forward.1} parent=1 // pred_region
      %12890 = dma.done [#allocation32], 16
    $region177: #{cae_forward.1} parent=1 // pred_fallthru
      _
    %12891 = sfence
    %12892 = vsyncpa [#allocation3], 1
    %12893 = vsyncpa [#allocation7], 1
    %12894 = vsyncpa [#allocation10], 1
    %12895 = vsyncpa [#allocation13], 1
    %12896 = vsyncpa [#allocation16], 1
    %12897 = vsyncpa [#allocation19], 1
    %12898 = vsyncpa [#allocation22], 1
    %12899 = vsyncpa [#allocation25], 1
    %12900 = vsyncpa [#allocation28], 1
    %12901 = vsyncpa [#allocation4], 1
    %12902 = vsyncpa [#allocation5], 1
    %12903 = vsyncpa [#allocation32], 1

</llo_original>
